<compile_context>
chip_gen: v7x
topology: tpu7x:2x2x1
jax: 0.10.0
libtpu: 0.0.40
codegen_flags: <defaults>
</compile_context>

<pallas_src>
import functools

import jax
import jax.numpy as jnp
from jax.experimental import pallas as pl
from jax.experimental.pallas import tpu as pltpu

_EPS = 1e-5
_LANE = 128
_PACKED_CIN_MAX = 32      # below this, pre-pack all 9 conv1 taps in the wrapper


def _round_up(x, m):
    return (x + m - 1) // m * m


def _vmem_limit_bytes():
    """Generation-aware VMEM budget: ~3/4 of physical (96 MiB v5e/v6e, 48 MiB v7x)."""
    try:
        cap = int(pltpu.get_tpu_info().vmem_capacity_bytes)
    except Exception:
        cap = 64 * 1024 * 1024
    return min(cap * 3 // 4, 112 * 1024 * 1024)


def _pick_row_tile(H, W, ci, co, budget_bytes, override=None):
    """Largest divisor of H whose per-step working set fits the VMEM budget."""
    if override is not None:
        assert H % override == 0, (H, override)
        return int(override)

    def est(th):
        main_in = 2 * th * W * ci * 2            # double-buffered bf16 input tile
        out = 2 * th * W * co * 2                # double-buffered bf16 output tile
        pad = (th + 2) * (W + 2) * ci * 2        # halo/pad scratch (bf16)
        acc = th * W * co * 4                    # f32 accumulator
        tmp = 2 * th * W * ci * 4                # activation / tap temporaries
        wgt = 2 * 9 * ci * co * 2                # double-buffered weights
        return int(1.25 * (main_in + out + pad + acc + tmp + wgt)) + (2 << 20)

    for th in sorted((d for d in range(1, H + 1) if H % d == 0), reverse=True):
        if est(th) <= budget_bytes:
            return th
    return 1


# ---------------------------------------------------------------------------
# in-kernel helpers / kernels
# ---------------------------------------------------------------------------
def _write_stats(stat_ref, ybf):
    """stat_ref block (1, 1, 2, C); ybf (rows, C) f32 (bf16-rounded activations)."""
    ssum = jnp.sum(ybf, axis=0, keepdims=True)
    ssq = jnp.sum(ybf * ybf, axis=0, keepdims=True)
    stat_ref[0, 0] = jnp.concatenate([ssum, ssq], axis=0)


def _conv1_packed_kernel(x9_ref, w_ref, y_ref, stat_ref):
    """conv1 for small Cin: all 9 taps pre-packed on the channel axis by the
    wrapper -> ONE MXU matmul with K = 9*Cin per row tile, no halo needed."""
    _, th, wc, k9 = x9_ref.shape
    co = y_ref.shape[-1]
    acc = jnp.dot(x9_ref[0].reshape(th * wc, k9), w_ref[...],
                  preferred_element_type=jnp.float32)
    yb = acc.astype(jnp.bfloat16)                 # bf16 intermediate (HBM traffic /2)
    y_ref[0] = yb.reshape(th, wc, co)
    _write_stats(stat_ref, yb.astype(jnp.float32))


def _affine_conv_halo_kernel(main_ref, top_ref, bot_ref, s_ref, t_ref, w_ref,
                             y_ref, stat_ref, pad_ref, *, relu):
    """(optional BN+ReLU) -> 1-px padded row-tile scratch (halo rows arrive as
    separate clamped single-row blocks, zeroed at the image edges) -> 3x3 conv
    as 9 accumulating MXU matmuls (K = C_in, no im2col buffer) -> bf16 store
    + per-step partial batch statistics.

    Used for conv2 (relu=True, scale/shift from pass-1 stats) and for conv1
    when Cin is large (relu=False, identity scale/shift)."""
    _, th, wc, ci = main_ref.shape
    co = y_ref.shape[-1]
    r = pl.program_id(1)
    nr = pl.num_programs(1)

    s = s_ref[...].reshape(1, 1, ci)
    t = t_ref[...].reshape(1, 1, ci)

    def act(v):                                    # bf16 -> f32 FMA (+ReLU)
        y = v.astype(jnp.float32) * s + t
        return jnp.maximum(y, 0.0) if relu else y

    # Assemble the padded bf16 activation tile.  The scratch is fully
    # rewritten every step, so both grid axes can stay 'parallel' (megacore).
    # TODO(synk): if vst becomes the binding slot, do the dx shifts with
    # pltpu.roll (XLU slot) or a lane-aligned dx-concat buffer instead of this
    # sublane-offset pad scratch.
    zcol = jnp.zeros((th + 2, 1, ci), jnp.bfloat16)
    pad_ref[:, 0:1, :] = zcol
    pad_ref[:, wc + 1:wc + 2, :] = zcol
    pad_ref[1:th + 1, 1:wc + 1, :] = act(main_ref[0]).astype(jnp.bfloat16)
    top = act(top_ref[0]) * (r != 0).astype(jnp.float32)        # zero halo at r == 0
    pad_ref[0:1, 1:wc + 1, :] = top.astype(jnp.bfloat16)
    bot = act(bot_ref[0]) * (r != nr - 1).astype(jnp.float32)   # zero halo at last r
    pad_ref[th + 1:th + 2, 1:wc + 1, :] = bot.astype(jnp.bfloat16)

    # 9 accumulating tap matmuls -- no im2col materialization, no 9x-wide temp.
    acc = jnp.zeros((th * wc, co), jnp.float32)
    for dy in range(3):
        for dx in range(3):
            tap = pad_ref[dy:dy + th, dx:dx + wc, :].reshape(th * wc, ci)
            acc = acc + jnp.dot(tap, w_ref[dy * 3 + dx],
                                preferred_element_type=jnp.float32)

    yb = acc.astype(jnp.bfloat16)
    y_ref[0] = yb.reshape(th, wc, co)
    _write_stats(stat_ref, yb.astype(jnp.float32))


def _bn_relu_out_kernel(y_ref, s_ref, t_ref, o_ref):
    """Final BN + ReLU; writes only the real Cout channels (no padded lanes)."""
    cp = y_ref.shape[-1]
    co = o_ref.shape[-1]
    s = s_ref[...].reshape(1, 1, cp)
    t = t_ref[...].reshape(1, 1, cp)
    v = jnp.maximum(y_ref[0].astype(jnp.float32) * s + t, 0.0)
    o_ref[0] = v[..., :co]


# ---------------------------------------------------------------------------
# wrapper
# ---------------------------------------------------------------------------
def _scale_shift(stats, count, gamma, beta):
    """Fold training-mode BN into y*scale + shift from (sum, sumsq) stats."""
    mean = stats[0:1] / count
    var = jnp.maximum(stats[1:2] / count - mean * mean, 0.0)
    # TODO(synk): one-pass variance can lose precision when |mean| >> std;
    # switch to shifted / Welford accumulation if tighter tolerance is needed.
    scale = gamma * jax.lax.rsqrt(var + _EPS)
    return scale, beta - mean * scale


def double_convolution(x_nchw, w1, b1, w2, b2, gamma, beta, *, row_tile=None):
    """Forward of DoubleConvolution (normalization='batch', training mode).

    x_nchw: (N, Cin, H, W); w1: (Cout, Cin, 3, 3); w2: (Cout, Cout, 3, 3).
    b1/b2 are accepted for interface parity but unused: training-mode BN
    subtracts the per-channel batch mean right after each conv, which cancels
    a constant per-channel bias exactly.  `row_tile` (static) optionally
    overrides the automatic VMEM-based row-tile choice (must divide H).
    """
    del b1, b2
    N, Cin, H, W = x_nchw.shape
    Cout = w1.shape[0]
    Cp = _round_up(Cout, _LANE)          # lane-dense channels / full MXU columns
    count = jnp.float32(N * H * W)       # BN reduction size

    vmem_limit = _vmem_limit_bytes()
    packed_first = Cin < _PACKED_CIN_MAX
    ci1 = 9 * Cin if packed_first else Cin
    th = _pick_row_tile(H, W, max(ci1, Cp), Cp, (vmem_limit * 3) // 4, row_tile)
    R = H // th

    # ---- layout prep (XLA): NCHW -> NHWC, bf16 conv operands ----
    x = jnp.transpose(x_nchw, (0, 2, 3, 1)).astype(jnp.bfloat16)

    # Shared BN affine params, zero-padded (keeps padded channels exactly 0).
    g = jnp.pad(gamma.astype(jnp.float32), (0, Cp - Cout)).reshape(1, Cp)
    b = jnp.pad(beta.astype(jnp.float32), (0, Cp - Cout)).reshape(1, Cp)

    cparams = pltpu.CompilerParams(
        dimension_semantics=("parallel", "parallel"),
        vmem_limit_bytes=int(vmem_limit))

    def img_spec(C):
        return pl.BlockSpec((1, th, W, C), lambda n, r: (n, r, 0, 0))

    def row_above(C):            # last row of the previous tile (clamped at r == 0)
        return pl.BlockSpec((1, 1, W, C),
                            lambda n, r: (n, jnp.maximum(r * th - 1, 0), 0, 0))

    def row_below(C):            # first row of the next tile (clamped at r == R-1)
        return pl.BlockSpec((1, 1, W, C),
                            lambda n, r: (n, jnp.minimum((r + 1) * th, H - 1), 0, 0))

    def vec_spec(C):
        return pl.BlockSpec((1, C), lambda n, r: (0, 0))

    def stat_spec(C):
        return pl.BlockSpec((1, 1, 2, C), lambda n, r: (n, r, 0, 0))

    def stat_shape(C):
        return jax.ShapeDtypeStruct((N, R, 2, C), jnp.float32)

    def img_shape(C):
        return jax.ShapeDtypeStruct((N, H, W, C), jnp.bfloat16)

    # ---- pass 1: conv1 + per-step partial batch stats ----
    # TODO(synk): mark the constant-index weight specs single-buffered
    # (pipeline_mode=pl.Buffered(1)) to save VMEM at deep-block channel counts.
    if packed_first:
        # Small Cin: pre-pack all 9 taps -> ONE matmul with K = 9*Cin, no halo.
        xp = jnp.pad(x, ((0, 0), (1, 1), (1, 1), (0, 0)))
        x9 = jnp.concatenate([xp[:, dy:dy + H, dx:dx + W, :]
                              for dy in range(3) for dx in range(3)], axis=-1)
        w1k = jnp.transpose(w1, (2, 3, 1, 0)).reshape(9 * Cin, Cout)
        w1k = jnp.pad(w1k, ((0, 0), (0, Cp - Cout))).astype(jnp.bfloat16)
        y1, st1 = pl.pallas_call(
            _conv1_packed_kernel,
            grid=(N, R),
            in_specs=[img_spec(9 * Cin),
                      pl.BlockSpec((9 * Cin, Cp), lambda n, r: (0, 0))],
            out_specs=[img_spec(Cp), stat_spec(Cp)],
            out_shape=[img_shape(Cp), stat_shape(Cp)],
            compiler_params=cparams,
        )(x9, w1k)
    else:
        # Large Cin: read the plain bf16 input once (no 9x pre-pack traffic);
        # identity scale/shift, no ReLU, in-kernel halo tap matmuls.
        w1k = jnp.transpose(w1, (2, 3, 1, 0)).reshape(9, Cin, Cout)
        w1k = jnp.pad(w1k, ((0, 0), (0, 0), (0, Cp - Cout))).astype(jnp.bfloat16)
        one = jnp.ones((1, Cin), jnp.float32)
        zero = jnp.zeros((1, Cin), jnp.float32)
        y1, st1 = pl.pallas_call(
            functools.partial(_affine_conv_halo_kernel, relu=False),
            grid=(N, R),
            in_specs=[img_spec(Cin), row_above(Cin), row_below(Cin),
                      vec_spec(Cin), vec_spec(Cin),
                      pl.BlockSpec((9, Cin, Cp), lambda n, r: (0, 0, 0))],
            out_specs=[img_spec(Cp), stat_spec(Cp)],
            out_shape=[img_shape(Cp), stat_shape(Cp)],
            scratch_shapes=[pltpu.VMEM((th + 2, W + 2, Cin), jnp.bfloat16)],
            compiler_params=cparams,
        )(x, x, x, one, zero, w1k)
    scale1, shift1 = _scale_shift(jnp.sum(st1, axis=(0, 1)), count, g, b)

    # ---- pass 2: BN1 + ReLU -> conv2 (halo tap matmuls) + partial stats ----
    w2k = jnp.transpose(w2, (2, 3, 1, 0)).reshape(9, Cout, Cout)
    w2k = jnp.pad(w2k, ((0, 0), (0, Cp - Cout), (0, Cp - Cout))).astype(jnp.bfloat16)
    y2, st2 = pl.pallas_call(
        functools.partial(_affine_conv_halo_kernel, relu=True),
        grid=(N, R),
        in_specs=[img_spec(Cp), row_above(Cp), row_below(Cp),
                  vec_spec(Cp), vec_spec(Cp),
                  pl.BlockSpec((9, Cp, Cp), lambda n, r: (0, 0, 0))],
        out_specs=[img_spec(Cp), stat_spec(Cp)],
        out_shape=[img_shape(Cp), stat_shape(Cp)],
        scratch_shapes=[pltpu.VMEM((th + 2, W + 2, Cp), jnp.bfloat16)],
        compiler_params=cparams,
    )(y1, y1, y1, scale1, shift1, w2k)
    scale2, shift2 = _scale_shift(jnp.sum(st2, axis=(0, 1)), count, g, b)

    # ---- pass 3: final BN + ReLU (writes only the real Cout channels) ----
    # TODO(synk): if the consumer accepts NHWC/bf16 (chained Pallas blocks),
    # return that directly and drop the XLA transpose below.
    z = pl.pallas_call(
        _bn_relu_out_kernel,
        grid=(N, R),
        in_specs=[img_spec(Cp), vec_spec(Cp), vec_spec(Cp)],
        out_specs=pl.BlockSpec((1, th, W, Cout), lambda n, r: (n, r, 0, 0)),
        out_shape=jax.ShapeDtypeStruct((N, H, W, Cout), jnp.float32),
        compiler_params=cparams,
    )(y2, scale2, shift2)

    return jnp.transpose(z, (0, 3, 1, 2))


# ---------------------------------------------------------------------------
# reference + self-test
# ---------------------------------------------------------------------------
def _reference(x, w1, b1, w2, b2, gamma, beta):
    """Plain-JAX reference of the PyTorch forward (training-mode BN).

    bf16 rounding is applied at exactly the points where the kernels quantize
    (conv operands and stored conv outputs).  The conv biases are kept so the
    test still verifies that batch-norm cancels them."""
    bf = lambda a: a.astype(jnp.bfloat16).astype(jnp.float32)

    def conv(v, w):
        return jax.lax.conv_general_dilated(
            v, w, window_strides=(1, 1), padding=((1, 1), (1, 1)),
            dimension_numbers=('NCHW', 'OIHW', 'NCHW'),
            preferred_element_type=jnp.float32)

    def bn(v):
        mean = jnp.mean(v, axis=(0, 2, 3), keepdims=True)
        var = jnp.var(v, axis=(0, 2, 3), keepdims=True)
        return ((v - mean) * jax.lax.rsqrt(var + _EPS)
                * gamma[None, :, None, None] + beta[None, :, None, None])

    y = bf(conv(bf(x), bf(w1))) + b1[None, :, None, None]
    y = jnp.maximum(bn(y), 0.0)
    z = bf(conv(bf(y), bf(w2))) + b2[None, :, None, None]
    return jnp.maximum(bn(z), 0.0)


if __name__ == "__main__":
    def make_case(key, N, Cin, Cout, H, W):
        ks = jax.random.split(key, 7)
        x = jax.random.normal(ks[0], (N, Cin, H, W), jnp.float32)
        w1 = jax.random.normal(ks[1], (Cout, Cin, 3, 3), jnp.float32) * 0.1
        b1 = jax.random.normal(ks[2], (Cout,), jnp.float32) * 0.1
        w2 = jax.random.normal(ks[3], (Cout, Cout, 3, 3), jnp.float32) * 0.1
        b2 = jax.random.normal(ks[4], (Cout,), jnp.float32) * 0.1
        gamma = 1.0 + 0.1 * jax.random.normal(ks[5], (Cout,), jnp.float32)
        beta = 0.1 * jax.random.normal(ks[6], (Cout,), jnp.float32)
        return (x, w1, b1, w2, b2, gamma, beta)

    root = jax.random.PRNGKey(0)
    fn = jax.jit(double_convolution, static_argnames=("row_tile",))

    cases = [
        # small Cin -> packed conv1, auto row tile
        (make_case(jax.random.fold_in(root, 0), 2, 4, 8, 16, 16), None),
        # small Cin, forced row tiling (multi-tile halo logic in pass 2)
        (make_case(jax.random.fold_in(root, 1), 2, 4, 8, 16, 16), 8),
        # larger Cin -> in-kernel halo conv1 path, row tiling
        (make_case(jax.random.fold_in(root, 2), 2, 32, 8, 16, 16), 8),
    ]
    for args, rt in cases:
        out = jax.block_until_ready(fn(*args, row_tile=rt))
        ref = jax.block_until_ready(_reference(*args))
        n, _, h, w = args[0].shape
        cout = args[1].shape[0]
        assert out.shape == (n, cout, h, w), out.shape
        max_err = float(jnp.max(jnp.abs(out - ref)))
        assert jnp.allclose(out, ref, atol=1e-2, rtol=1e-2), max_err
    print("KERNEL_OK")
</pallas_src>

<mosaic_0001>
module attributes {stable_mosaic.version = 11 : i64} {
  func.func @_conv1_packed_kernel(%arg0: i32, %arg1: i32, %arg2: memref<1x16x16x36xbf16, #tpu.memory_space<vmem>>, %arg3: memref<36x128xbf16, #tpu.memory_space<vmem>>, %arg4: memref<1x16x16x128xbf16, #tpu.memory_space<vmem>>, %arg5: memref<1x1x2x128xf32, #tpu.memory_space<vmem>>) attributes {dimension_semantics = [#tpu.dimension_semantics<parallel>, #tpu.dimension_semantics<parallel>], iteration_bounds = array<i64: 2, 1>, scalar_prefetch = 0 : i64, scratch_operands = 0 : i64, tpu.core_type = #tpu.core_type<tc>, window_params = [{transform_indices = @transform_0, window_bounds = array<i64: 1, 16, 16, 36>}, {pipeline_mode = #tpu.pipeline_mode<synchronous>, transform_indices = @transform_1, window_bounds = array<i64: 36, 128>}, {transform_indices = @transform_2, window_bounds = array<i64: 1, 16, 16, 128>}, {transform_indices = @transform_3, window_bounds = array<i64: 1, 1, 2, 128>}]} {
    %c0 = arith.constant 0 : index
    %c0_0 = arith.constant 0 : index
    %c0_1 = arith.constant 0 : index
    %c0_2 = arith.constant 0 : index
    %0 = vector.load %arg2[%c0, %c0_0, %c0_1, %c0_2] : memref<1x16x16x36xbf16, #tpu.memory_space<vmem>>, vector<1x16x16x36xbf16>
    %1 = vector.shape_cast %0 : vector<1x16x16x36xbf16> to vector<16x16x36xbf16>
    %2 = vector.shape_cast %1 : vector<16x16x36xbf16> to vector<256x36xbf16>
    %c0_3 = arith.constant 0 : index
    %c0_4 = arith.constant 0 : index
    %3 = vector.load %arg3[%c0_3, %c0_4] : memref<36x128xbf16, #tpu.memory_space<vmem>>, vector<36x128xbf16>
    %cst = arith.constant dense<0.000000e+00> : vector<256x128xf32>
    %4 = tpu.matmul %2, %3, %cst {dimension_numbers = #tpu.dot_dimension_numbers<[1], [0], [0], [1], [0, 0, 1, 1], [], []>} : vector<256x36xbf16>, vector<36x128xbf16>, vector<256x128xf32> -> vector<256x128xf32>
    %5 = arith.truncf %4 : vector<256x128xf32> to vector<256x128xbf16>
    %6 = vector.shape_cast %5 : vector<256x128xbf16> to vector<16x16x128xbf16>
    %c0_5 = arith.constant 0 : index
    %c0_6 = arith.constant 0 : index
    %c0_7 = arith.constant 0 : index
    %c0_8 = arith.constant 0 : index
    %7 = vector.load %arg4[%c0_5, %c0_6, %c0_7, %c0_8] : memref<1x16x16x128xbf16, #tpu.memory_space<vmem>>, vector<1x16x16x128xbf16>
    %8 = vector.shape_cast %7 : vector<1x16x16x128xbf16> to vector<16x16x128xbf16>
    %9 = vector.shape_cast %6 : vector<16x16x128xbf16> to vector<1x16x16x128xbf16>
    tpu.vector_store %arg4[%c0_5, %c0_6, %c0_7, %c0_8], %9 {strides = array<i32>} : memref<1x16x16x128xbf16, #tpu.memory_space<vmem>>, vector<1x16x16x128xbf16>,
    %10 = arith.extf %5 : vector<256x128xbf16> to vector<256x128xf32>
    %cst_9 = arith.constant dense<0.000000e+00> : vector<128xf32>
    %11 = vector.multi_reduction <add>, %10, %cst_9 [0] : vector<256x128xf32> to vector<128xf32>
    %12 = vector.shape_cast %11 : vector<128xf32> to vector<1x128xf32>
    %13 = arith.mulf %10, %10 : vector<256x128xf32>
    %cst_10 = arith.constant dense<0.000000e+00> : vector<128xf32>
    %14 = vector.multi_reduction <add>, %13, %cst_10 [0] : vector<256x128xf32> to vector<128xf32>
    %15 = vector.shape_cast %14 : vector<128xf32> to vector<1x128xf32>
    %16 = tpu.concatenate %12, %15 in 0 : vector<1x128xf32>, vector<1x128xf32> -> vector<2x128xf32>
    %c0_11 = arith.constant 0 : index
    %c0_12 = arith.constant 0 : index
    %c0_13 = arith.constant 0 : index
    %c0_14 = arith.constant 0 : index
    %17 = vector.load %arg5[%c0_11, %c0_12, %c0_13, %c0_14] : memref<1x1x2x128xf32, #tpu.memory_space<vmem>>, vector<1x1x2x128xf32>
    %18 = vector.shape_cast %17 : vector<1x1x2x128xf32> to vector<2x128xf32>
    %19 = vector.shape_cast %16 : vector<2x128xf32> to vector<1x1x2x128xf32>
    tpu.vector_store %arg5[%c0_11, %c0_12, %c0_13, %c0_14], %19 {strides = array<i32>} : memref<1x1x2x128xf32, #tpu.memory_space<vmem>>, vector<1x1x2x128xf32>,
    return
  }
  func.func @transform_0(%arg0: i32, %arg1: i32) -> (i32, i32, i32, i32) {
    %c0_i32 = arith.constant 0 : i32
    %c0_i32_0 = arith.constant 0 : i32
    %c0_i32_1 = arith.constant 0 : i32
    return %arg0, %arg1, %c0_i32, %c0_i32_0 : i32, i32, i32, i32
  }
  func.func @transform_1(%arg0: i32, %arg1: i32) -> (i32, i32) {
    %c0_i32 = arith.constant 0 : i32
    %c0_i32_0 = arith.constant 0 : i32
    %c0_i32_1 = arith.constant 0 : i32
    return %c0_i32, %c0_i32_0 : i32, i32
  }
  func.func @transform_2(%arg0: i32, %arg1: i32) -> (i32, i32, i32, i32) {
    %c0_i32 = arith.constant 0 : i32
    %c0_i32_0 = arith.constant 0 : i32
    %c0_i32_1 = arith.constant 0 : i32
    return %arg0, %arg1, %c0_i32, %c0_i32_0 : i32, i32, i32, i32
  }
  func.func @transform_3(%arg0: i32, %arg1: i32) -> (i32, i32, i32, i32) {
    %c0_i32 = arith.constant 0 : i32
    %c0_i32_0 = arith.constant 0 : i32
    %c0_i32_1 = arith.constant 0 : i32
    return %arg0, %arg1, %c0_i32, %c0_i32_0 : i32, i32, i32, i32
  }
}

module attributes {stable_mosaic.version = 11 : i64} {
  func.func @_bn_relu_out_kernel(%arg0: i32, %arg1: i32, %arg2: memref<1x16x16x128xbf16, #tpu.memory_space<vmem>>, %arg3: memref<1x128xf32, #tpu.memory_space<vmem>>, %arg4: memref<1x128xf32, #tpu.memory_space<vmem>>, %arg5: memref<1x16x16x8xf32, #tpu.memory_space<vmem>>) attributes {dimension_semantics = [#tpu.dimension_semantics<parallel>, #tpu.dimension_semantics<parallel>], iteration_bounds = array<i64: 2, 1>, scalar_prefetch = 0 : i64, scratch_operands = 0 : i64, tpu.core_type = #tpu.core_type<tc>, window_params = [{transform_indices = @transform_0, window_bounds = array<i64: 1, 16, 16, 128>}, {pipeline_mode = #tpu.pipeline_mode<synchronous>, transform_indices = @transform_1, window_bounds = array<i64: 1, 128>}, {pipeline_mode = #tpu.pipeline_mode<synchronous>, transform_indices = @transform_2, window_bounds = array<i64: 1, 128>}, {transform_indices = @transform_3, window_bounds = array<i64: 1, 16, 16, 8>}]} {
    %c0 = arith.constant 0 : index
    %c0_0 = arith.constant 0 : index
    %0 = vector.load %arg3[%c0, %c0_0] : memref<1x128xf32, #tpu.memory_space<vmem>>, vector<1x128xf32>
    %1 = vector.shape_cast %0 : vector<1x128xf32> to vector<1x1x128xf32>
    %c0_1 = arith.constant 0 : index
    %c0_2 = arith.constant 0 : index
    %2 = vector.load %arg4[%c0_1, %c0_2] : memref<1x128xf32, #tpu.memory_space<vmem>>, vector<1x128xf32>
    %3 = vector.shape_cast %2 : vector<1x128xf32> to vector<1x1x128xf32>
    %c0_3 = arith.constant 0 : index
    %c0_4 = arith.constant 0 : index
    %c0_5 = arith.constant 0 : index
    %c0_6 = arith.constant 0 : index
    %4 = vector.load %arg2[%c0_3, %c0_4, %c0_5, %c0_6] : memref<1x16x16x128xbf16, #tpu.memory_space<vmem>>, vector<1x16x16x128xbf16>
    %5 = vector.shape_cast %4 : vector<1x16x16x128xbf16> to vector<16x16x128xbf16>
    %6 = arith.extf %5 : vector<16x16x128xbf16> to vector<16x16x128xf32>
    %7 = vector.broadcast %1 : vector<1x1x128xf32> to vector<16x16x128xf32>
    %8 = arith.mulf %6, %7 : vector<16x16x128xf32>
    %9 = vector.broadcast %3 : vector<1x1x128xf32> to vector<16x16x128xf32>
    %10 = arith.addf %8, %9 : vector<16x16x128xf32>
    %cst = arith.constant 0.000000e+00 : f32
    %11 = vector.broadcast %cst : f32 to vector<16x16x128xf32>
    %12 = arith.maximumf %10, %11 : vector<16x16x128xf32>
    %13 = vector.extract_strided_slice %12 {offsets = [0, 0, 0], sizes = [16, 16, 8], strides = [1, 1, 1]} : vector<16x16x128xf32> to vector<16x16x8xf32>
    %c0_7 = arith.constant 0 : index
    %c0_8 = arith.constant 0 : index
    %c0_9 = arith.constant 0 : index
    %c0_10 = arith.constant 0 : index
    %14 = vector.load %arg5[%c0_7, %c0_8, %c0_9, %c0_10] : memref<1x16x16x8xf32, #tpu.memory_space<vmem>>, vector<1x16x16x8xf32>
    %15 = vector.shape_cast %14 : vector<1x16x16x8xf32> to vector<16x16x8xf32>
    %16 = vector.shape_cast %13 : vector<16x16x8xf32> to vector<1x16x16x8xf32>
    tpu.vector_store %arg5[%c0_7, %c0_8, %c0_9, %c0_10], %16 {strides = array<i32>} : memref<1x16x16x8xf32, #tpu.memory_space<vmem>>, vector<1x16x16x8xf32>,
    return
  }
  func.func @transform_0(%arg0: i32, %arg1: i32) -> (i32, i32, i32, i32) {
    %c0_i32 = arith.constant 0 : i32
    %c0_i32_0 = arith.constant 0 : i32
    %c0_i32_1 = arith.constant 0 : i32
    return %arg0, %arg1, %c0_i32, %c0_i32_0 : i32, i32, i32, i32
  }
  func.func @transform_1(%arg0: i32, %arg1: i32) -> (i32, i32) {
    %c0_i32 = arith.constant 0 : i32
    %c0_i32_0 = arith.constant 0 : i32
    %c0_i32_1 = arith.constant 0 : i32
    return %c0_i32, %c0_i32_0 : i32, i32
  }
  func.func @transform_2(%arg0: i32, %arg1: i32) -> (i32, i32) {
    %c0_i32 = arith.constant 0 : i32
    %c0_i32_0 = arith.constant 0 : i32
    %c0_i32_1 = arith.constant 0 : i32
    return %c0_i32, %c0_i32_0 : i32, i32
  }
  func.func @transform_3(%arg0: i32, %arg1: i32) -> (i32, i32, i32, i32) {
    %c0_i32 = arith.constant 0 : i32
    %c0_i32_0 = arith.constant 0 : i32
    %c0_i32_1 = arith.constant 0 : i32
    return %arg0, %arg1, %c0_i32, %c0_i32_0 : i32, i32, i32, i32
  }
}

module attributes {stable_mosaic.version = 11 : i64} {
  func.func @_affine_conv_halo_kernel(%arg0: i32, %arg1: i32, %arg2: memref<1x16x16x128xbf16, #tpu.memory_space<vmem>>, %arg3: memref<1x1x16x128xbf16, #tpu.memory_space<vmem>>, %arg4: memref<1x1x16x128xbf16, #tpu.memory_space<vmem>>, %arg5: memref<1x128xf32, #tpu.memory_space<vmem>>, %arg6: memref<1x128xf32, #tpu.memory_space<vmem>>, %arg7: memref<9x128x128xbf16, #tpu.memory_space<vmem>>, %arg8: memref<1x16x16x128xbf16, #tpu.memory_space<vmem>>, %arg9: memref<1x1x2x128xf32, #tpu.memory_space<vmem>>, %arg10: memref<18x18x128xbf16, #tpu.memory_space<vmem>>) attributes {dimension_semantics = [#tpu.dimension_semantics<parallel>, #tpu.dimension_semantics<parallel>], iteration_bounds = array<i64: 2, 1>, scalar_prefetch = 0 : i64, scratch_operands = 1 : i64, tpu.core_type = #tpu.core_type<tc>, window_params = [{transform_indices = @transform_0, window_bounds = array<i64: 1, 16, 16, 128>}, {transform_indices = @transform_1, window_bounds = array<i64: 1, 1, 16, 128>}, {transform_indices = @transform_2, window_bounds = array<i64: 1, 1, 16, 128>}, {pipeline_mode = #tpu.pipeline_mode<synchronous>, transform_indices = @transform_3, window_bounds = array<i64: 1, 128>}, {pipeline_mode = #tpu.pipeline_mode<synchronous>, transform_indices = @transform_4, window_bounds = array<i64: 1, 128>}, {pipeline_mode = #tpu.pipeline_mode<synchronous>, transform_indices = @transform_5, window_bounds = array<i64: 9, 128, 128>}, {transform_indices = @transform_6, window_bounds = array<i64: 1, 16, 16, 128>}, {transform_indices = @transform_7, window_bounds = array<i64: 1, 1, 2, 128>}]} {
    %c0 = arith.constant 0 : index
    %c0_0 = arith.constant 0 : index
    %0 = vector.load %arg5[%c0, %c0_0] : memref<1x128xf32, #tpu.memory_space<vmem>>, vector<1x128xf32>
    %1 = vector.shape_cast %0 : vector<1x128xf32> to vector<1x1x128xf32>
    %c0_1 = arith.constant 0 : index
    %c0_2 = arith.constant 0 : index
    %2 = vector.load %arg6[%c0_1, %c0_2] : memref<1x128xf32, #tpu.memory_space<vmem>>, vector<1x128xf32>
    %3 = vector.shape_cast %2 : vector<1x128xf32> to vector<1x1x128xf32>
    %cst = arith.constant 0.000000e+00 : bf16
    %4 = vector.broadcast %cst : bf16 to vector<18x1x128xbf16>
    %c0_3 = arith.constant 0 : index
    %c0_4 = arith.constant 0 : index
    %c0_5 = arith.constant 0 : index
    %5 = vector.load %arg10[%c0_3, %c0_4, %c0_5] : memref<18x18x128xbf16, #tpu.memory_space<vmem>>, vector<18x1x128xbf16>
    tpu.vector_store %arg10[%c0_3, %c0_4, %c0_5], %4 {strides = array<i32>} : memref<18x18x128xbf16, #tpu.memory_space<vmem>>, vector<18x1x128xbf16>,
    %c0_6 = arith.constant 0 : index
    %c17 = arith.constant 17 : index
    %c0_7 = arith.constant 0 : index
    %6 = vector.load %arg10[%c0_6, %c17, %c0_7] : memref<18x18x128xbf16, #tpu.memory_space<vmem>>, vector<18x1x128xbf16>
    tpu.vector_store %arg10[%c0_6, %c17, %c0_7], %4 {strides = array<i32>} : memref<18x18x128xbf16, #tpu.memory_space<vmem>>, vector<18x1x128xbf16>,
    %c0_8 = arith.constant 0 : index
    %c0_9 = arith.constant 0 : index
    %c0_10 = arith.constant 0 : index
    %c0_11 = arith.constant 0 : index
    %7 = vector.load %arg2[%c0_8, %c0_9, %c0_10, %c0_11] : memref<1x16x16x128xbf16, #tpu.memory_space<vmem>>, vector<1x16x16x128xbf16>
    %8 = vector.shape_cast %7 : vector<1x16x16x128xbf16> to vector<16x16x128xbf16>
    %9 = arith.extf %8 : vector<16x16x128xbf16> to vector<16x16x128xf32>
    %10 = vector.broadcast %1 : vector<1x1x128xf32> to vector<16x16x128xf32>
    %11 = arith.mulf %9, %10 : vector<16x16x128xf32>
    %12 = vector.broadcast %3 : vector<1x1x128xf32> to vector<16x16x128xf32>
    %13 = arith.addf %11, %12 : vector<16x16x128xf32>
    %cst_12 = arith.constant 0.000000e+00 : f32
    %14 = vector.broadcast %cst_12 : f32 to vector<16x16x128xf32>
    %15 = arith.maximumf %13, %14 : vector<16x16x128xf32>
    %16 = arith.truncf %15 : vector<16x16x128xf32> to vector<16x16x128xbf16>
    %c1 = arith.constant 1 : index
    %c1_13 = arith.constant 1 : index
    %c0_14 = arith.constant 0 : index
    %17 = vector.load %arg10[%c1, %c1_13, %c0_14] : memref<18x18x128xbf16, #tpu.memory_space<vmem>>, vector<16x16x128xbf16>
    tpu.vector_store %arg10[%c1, %c1_13, %c0_14], %16 {strides = array<i32>} : memref<18x18x128xbf16, #tpu.memory_space<vmem>>, vector<16x16x128xbf16>,
    %c0_15 = arith.constant 0 : index
    %c0_16 = arith.constant 0 : index
    %c0_17 = arith.constant 0 : index
    %c0_18 = arith.constant 0 : index
    %18 = vector.load %arg3[%c0_15, %c0_16, %c0_17, %c0_18] : memref<1x1x16x128xbf16, #tpu.memory_space<vmem>>, vector<1x1x16x128xbf16>
    %19 = vector.shape_cast %18 : vector<1x1x16x128xbf16> to vector<1x16x128xbf16>
    %20 = arith.extf %19 : vector<1x16x128xbf16> to vector<1x16x128xf32>
    %21 = vector.broadcast %1 : vector<1x1x128xf32> to vector<1x16x128xf32>
    %22 = arith.mulf %20, %21 : vector<1x16x128xf32>
    %23 = vector.broadcast %3 : vector<1x1x128xf32> to vector<1x16x128xf32>
    %24 = arith.addf %22, %23 : vector<1x16x128xf32>
    %cst_19 = arith.constant 0.000000e+00 : f32
    %25 = vector.broadcast %cst_19 : f32 to vector<1x16x128xf32>
    %26 = arith.maximumf %24, %25 : vector<1x16x128xf32>
    %c0_i32 = arith.constant 0 : i32
    %27 = arith.cmpi ne, %arg1, %c0_i32 : i32
    %28 = arith.extui %27 : i1 to i32
    %29 = arith.sitofp %28 : i32 to f32
    %30 = vector.broadcast %29 : f32 to vector<1x16x128xf32>
    %31 = arith.mulf %26, %30 : vector<1x16x128xf32>
    %32 = arith.truncf %31 : vector<1x16x128xf32> to vector<1x16x128xbf16>
    %c0_20 = arith.constant 0 : index
    %c1_21 = arith.constant 1 : index
    %c0_22 = arith.constant 0 : index
    %33 = vector.load %arg10[%c0_20, %c1_21, %c0_22] : memref<18x18x128xbf16, #tpu.memory_space<vmem>>, vector<1x16x128xbf16>
    tpu.vector_store %arg10[%c0_20, %c1_21, %c0_22], %32 {strides = array<i32>} : memref<18x18x128xbf16, #tpu.memory_space<vmem>>, vector<1x16x128xbf16>,
    %c0_23 = arith.constant 0 : index
    %c0_24 = arith.constant 0 : index
    %c0_25 = arith.constant 0 : index
    %c0_26 = arith.constant 0 : index
    %34 = vector.load %arg4[%c0_23, %c0_24, %c0_25, %c0_26] : memref<1x1x16x128xbf16, #tpu.memory_space<vmem>>, vector<1x1x16x128xbf16>
    %35 = vector.shape_cast %34 : vector<1x1x16x128xbf16> to vector<1x16x128xbf16>
    %36 = arith.extf %35 : vector<1x16x128xbf16> to vector<1x16x128xf32>
    %37 = vector.broadcast %1 : vector<1x1x128xf32> to vector<1x16x128xf32>
    %38 = arith.mulf %36, %37 : vector<1x16x128xf32>
    %39 = vector.broadcast %3 : vector<1x1x128xf32> to vector<1x16x128xf32>
    %40 = arith.addf %38, %39 : vector<1x16x128xf32>
    %cst_27 = arith.constant 0.000000e+00 : f32
    %41 = vector.broadcast %cst_27 : f32 to vector<1x16x128xf32>
    %42 = arith.maximumf %40, %41 : vector<1x16x128xf32>
    %c0_i32_28 = arith.constant 0 : i32
    %43 = arith.cmpi ne, %arg1, %c0_i32_28 : i32
    %44 = arith.extui %43 : i1 to i32
    %45 = arith.sitofp %44 : i32 to f32
    %46 = vector.broadcast %45 : f32 to vector<1x16x128xf32>
    %47 = arith.mulf %42, %46 : vector<1x16x128xf32>
    %48 = arith.truncf %47 : vector<1x16x128xf32> to vector<1x16x128xbf16>
    %c17_29 = arith.constant 17 : index
    %c1_30 = arith.constant 1 : index
    %c0_31 = arith.constant 0 : index
    %49 = vector.load %arg10[%c17_29, %c1_30, %c0_31] : memref<18x18x128xbf16, #tpu.memory_space<vmem>>, vector<1x16x128xbf16>
    tpu.vector_store %arg10[%c17_29, %c1_30, %c0_31], %48 {strides = array<i32>} : memref<18x18x128xbf16, #tpu.memory_space<vmem>>, vector<1x16x128xbf16>,
    %cst_32 = arith.constant 0.000000e+00 : f32
    %50 = vector.broadcast %cst_32 : f32 to vector<256x128xf32>
    %c0_33 = arith.constant 0 : index
    %c0_34 = arith.constant 0 : index
    %c0_35 = arith.constant 0 : index
    %51 = vector.load %arg10[%c0_33, %c0_34, %c0_35] : memref<18x18x128xbf16, #tpu.memory_space<vmem>>, vector<16x16x128xbf16>
    %52 = vector.shape_cast %51 : vector<16x16x128xbf16> to vector<256x128xbf16>
    %c0_36 = arith.constant 0 : index
    %c0_37 = arith.constant 0 : index
    %c0_38 = arith.constant 0 : index
    %53 = vector.load %arg7[%c0_36, %c0_37, %c0_38] : memref<9x128x128xbf16, #tpu.memory_space<vmem>>, vector<1x128x128xbf16>
    %54 = vector.shape_cast %53 : vector<1x128x128xbf16> to vector<128x128xbf16>
    %cst_39 = arith.constant dense<0.000000e+00> : vector<256x128xf32>
    %55 = tpu.matmul %52, %54, %cst_39 {dimension_numbers = #tpu.dot_dimension_numbers<[1], [0], [0], [1], [0, 0, 1, 1], [], []>} : vector<256x128xbf16>, vector<128x128xbf16>, vector<256x128xf32> -> vector<256x128xf32>
    %56 = arith.addf %50, %55 : vector<256x128xf32>
    %c0_40 = arith.constant 0 : index
    %c1_41 = arith.constant 1 : index
    %c0_42 = arith.constant 0 : index
    %57 = vector.load %arg10[%c0_40, %c1_41, %c0_42] : memref<18x18x128xbf16, #tpu.memory_space<vmem>>, vector<16x16x128xbf16>
    %58 = vector.shape_cast %57 : vector<16x16x128xbf16> to vector<256x128xbf16>
    %c1_43 = arith.constant 1 : index
    %c0_44 = arith.constant 0 : index
    %c0_45 = arith.constant 0 : index
    %59 = vector.load %arg7[%c1_43, %c0_44, %c0_45] : memref<9x128x128xbf16, #tpu.memory_space<vmem>>, vector<1x128x128xbf16>
    %60 = vector.shape_cast %59 : vector<1x128x128xbf16> to vector<128x128xbf16>
    %cst_46 = arith.constant dense<0.000000e+00> : vector<256x128xf32>
    %61 = tpu.matmul %58, %60, %cst_46 {dimension_numbers = #tpu.dot_dimension_numbers<[1], [0], [0], [1], [0, 0, 1, 1], [], []>} : vector<256x128xbf16>, vector<128x128xbf16>, vector<256x128xf32> -> vector<256x128xf32>
    %62 = arith.addf %56, %61 : vector<256x128xf32>
    %c0_47 = arith.constant 0 : index
    %c2 = arith.constant 2 : index
    %c0_48 = arith.constant 0 : index
    %63 = vector.load %arg10[%c0_47, %c2, %c0_48] : memref<18x18x128xbf16, #tpu.memory_space<vmem>>, vector<16x16x128xbf16>
    %64 = vector.shape_cast %63 : vector<16x16x128xbf16> to vector<256x128xbf16>
    %c2_49 = arith.constant 2 : index
    %c0_50 = arith.constant 0 : index
    %c0_51 = arith.constant 0 : index
    %65 = vector.load %arg7[%c2_49, %c0_50, %c0_51] : memref<9x128x128xbf16, #tpu.memory_space<vmem>>, vector<1x128x128xbf16>
    %66 = vector.shape_cast %65 : vector<1x128x128xbf16> to vector<128x128xbf16>
    %cst_52 = arith.constant dense<0.000000e+00> : vector<256x128xf32>
    %67 = tpu.matmul %64, %66, %cst_52 {dimension_numbers = #tpu.dot_dimension_numbers<[1], [0], [0], [1], [0, 0, 1, 1], [], []>} : vector<256x128xbf16>, vector<128x128xbf16>, vector<256x128xf32> -> vector<256x128xf32>
    %68 = arith.addf %62, %67 : vector<256x128xf32>
    %c1_53 = arith.constant 1 : index
    %c0_54 = arith.constant 0 : index
    %c0_55 = arith.constant 0 : index
    %69 = vector.load %arg10[%c1_53, %c0_54, %c0_55] : memref<18x18x128xbf16, #tpu.memory_space<vmem>>, vector<16x16x128xbf16>
    %70 = vector.shape_cast %69 : vector<16x16x128xbf16> to vector<256x128xbf16>
    %c3 = arith.constant 3 : index
    %c0_56 = arith.constant 0 : index
    %c0_57 = arith.constant 0 : index
    %71 = vector.load %arg7[%c3, %c0_56, %c0_57] : memref<9x128x128xbf16, #tpu.memory_space<vmem>>, vector<1x128x128xbf16>
    %72 = vector.shape_cast %71 : vector<1x128x128xbf16> to vector<128x128xbf16>
    %cst_58 = arith.constant dense<0.000000e+00> : vector<256x128xf32>
    %73 = tpu.matmul %70, %72, %cst_58 {dimension_numbers = #tpu.dot_dimension_numbers<[1], [0], [0], [1], [0, 0, 1, 1], [], []>} : vector<256x128xbf16>, vector<128x128xbf16>, vector<256x128xf32> -> vector<256x128xf32>
    %74 = arith.addf %68, %73 : vector<256x128xf32>
    %c1_59 = arith.constant 1 : index
    %c1_60 = arith.constant 1 : index
    %c0_61 = arith.constant 0 : index
    %75 = vector.load %arg10[%c1_59, %c1_60, %c0_61] : memref<18x18x128xbf16, #tpu.memory_space<vmem>>, vector<16x16x128xbf16>
    %76 = vector.shape_cast %75 : vector<16x16x128xbf16> to vector<256x128xbf16>
    %c4 = arith.constant 4 : index
    %c0_62 = arith.constant 0 : index
    %c0_63 = arith.constant 0 : index
    %77 = vector.load %arg7[%c4, %c0_62, %c0_63] : memref<9x128x128xbf16, #tpu.memory_space<vmem>>, vector<1x128x128xbf16>
    %78 = vector.shape_cast %77 : vector<1x128x128xbf16> to vector<128x128xbf16>
    %cst_64 = arith.constant dense<0.000000e+00> : vector<256x128xf32>
    %79 = tpu.matmul %76, %78, %cst_64 {dimension_numbers = #tpu.dot_dimension_numbers<[1], [0], [0], [1], [0, 0, 1, 1], [], []>} : vector<256x128xbf16>, vector<128x128xbf16>, vector<256x128xf32> -> vector<256x128xf32>
    %80 = arith.addf %74, %79 : vector<256x128xf32>
    %c1_65 = arith.constant 1 : index
    %c2_66 = arith.constant 2 : index
    %c0_67 = arith.constant 0 : index
    %81 = vector.load %arg10[%c1_65, %c2_66, %c0_67] : memref<18x18x128xbf16, #tpu.memory_space<vmem>>, vector<16x16x128xbf16>
    %82 = vector.shape_cast %81 : vector<16x16x128xbf16> to vector<256x128xbf16>
    %c5 = arith.constant 5 : index
    %c0_68 = arith.constant 0 : index
    %c0_69 = arith.constant 0 : index
    %83 = vector.load %arg7[%c5, %c0_68, %c0_69] : memref<9x128x128xbf16, #tpu.memory_space<vmem>>, vector<1x128x128xbf16>
    %84 = vector.shape_cast %83 : vector<1x128x128xbf16> to vector<128x128xbf16>
    %cst_70 = arith.constant dense<0.000000e+00> : vector<256x128xf32>
    %85 = tpu.matmul %82, %84, %cst_70 {dimension_numbers = #tpu.dot_dimension_numbers<[1], [0], [0], [1], [0, 0, 1, 1], [], []>} : vector<256x128xbf16>, vector<128x128xbf16>, vector<256x128xf32> -> vector<256x128xf32>
    %86 = arith.addf %80, %85 : vector<256x128xf32>
    %c2_71 = arith.constant 2 : index
    %c0_72 = arith.constant 0 : index
    %c0_73 = arith.constant 0 : index
    %87 = vector.load %arg10[%c2_71, %c0_72, %c0_73] : memref<18x18x128xbf16, #tpu.memory_space<vmem>>, vector<16x16x128xbf16>
    %88 = vector.shape_cast %87 : vector<16x16x128xbf16> to vector<256x128xbf16>
    %c6 = arith.constant 6 : index
    %c0_74 = arith.constant 0 : index
    %c0_75 = arith.constant 0 : index
    %89 = vector.load %arg7[%c6, %c0_74, %c0_75] : memref<9x128x128xbf16, #tpu.memory_space<vmem>>, vector<1x128x128xbf16>
    %90 = vector.shape_cast %89 : vector<1x128x128xbf16> to vector<128x128xbf16>
    %cst_76 = arith.constant dense<0.000000e+00> : vector<256x128xf32>
    %91 = tpu.matmul %88, %90, %cst_76 {dimension_numbers = #tpu.dot_dimension_numbers<[1], [0], [0], [1], [0, 0, 1, 1], [], []>} : vector<256x128xbf16>, vector<128x128xbf16>, vector<256x128xf32> -> vector<256x128xf32>
    %92 = arith.addf %86, %91 : vector<256x128xf32>
    %c2_77 = arith.constant 2 : index
    %c1_78 = arith.constant 1 : index
    %c0_79 = arith.constant 0 : index
    %93 = vector.load %arg10[%c2_77, %c1_78, %c0_79] : memref<18x18x128xbf16, #tpu.memory_space<vmem>>, vector<16x16x128xbf16>
    %94 = vector.shape_cast %93 : vector<16x16x128xbf16> to vector<256x128xbf16>
    %c7 = arith.constant 7 : index
    %c0_80 = arith.constant 0 : index
    %c0_81 = arith.constant 0 : index
    %95 = vector.load %arg7[%c7, %c0_80, %c0_81] : memref<9x128x128xbf16, #tpu.memory_space<vmem>>, vector<1x128x128xbf16>
    %96 = vector.shape_cast %95 : vector<1x128x128xbf16> to vector<128x128xbf16>
    %cst_82 = arith.constant dense<0.000000e+00> : vector<256x128xf32>
    %97 = tpu.matmul %94, %96, %cst_82 {dimension_numbers = #tpu.dot_dimension_numbers<[1], [0], [0], [1], [0, 0, 1, 1], [], []>} : vector<256x128xbf16>, vector<128x128xbf16>, vector<256x128xf32> -> vector<256x128xf32>
    %98 = arith.addf %92, %97 : vector<256x128xf32>
    %c2_83 = arith.constant 2 : index
    %c2_84 = arith.constant 2 : index
    %c0_85 = arith.constant 0 : index
    %99 = vector.load %arg10[%c2_83, %c2_84, %c0_85] : memref<18x18x128xbf16, #tpu.memory_space<vmem>>, vector<16x16x128xbf16>
    %100 = vector.shape_cast %99 : vector<16x16x128xbf16> to vector<256x128xbf16>
    %c8 = arith.constant 8 : index
    %c0_86 = arith.constant 0 : index
    %c0_87 = arith.constant 0 : index
    %101 = vector.load %arg7[%c8, %c0_86, %c0_87] : memref<9x128x128xbf16, #tpu.memory_space<vmem>>, vector<1x128x128xbf16>
    %102 = vector.shape_cast %101 : vector<1x128x128xbf16> to vector<128x128xbf16>
    %cst_88 = arith.constant dense<0.000000e+00> : vector<256x128xf32>
    %103 = tpu.matmul %100, %102, %cst_88 {dimension_numbers = #tpu.dot_dimension_numbers<[1], [0], [0], [1], [0, 0, 1, 1], [], []>} : vector<256x128xbf16>, vector<128x128xbf16>, vector<256x128xf32> -> vector<256x128xf32>
    %104 = arith.addf %98, %103 : vector<256x128xf32>
    %105 = arith.truncf %104 : vector<256x128xf32> to vector<256x128xbf16>
    %106 = vector.shape_cast %105 : vector<256x128xbf16> to vector<16x16x128xbf16>
    %c0_89 = arith.constant 0 : index
    %c0_90 = arith.constant 0 : index
    %c0_91 = arith.constant 0 : index
    %c0_92 = arith.constant 0 : index
    %107 = vector.load %arg8[%c0_89, %c0_90, %c0_91, %c0_92] : memref<1x16x16x128xbf16, #tpu.memory_space<vmem>>, vector<1x16x16x128xbf16>
    %108 = vector.shape_cast %107 : vector<1x16x16x128xbf16> to vector<16x16x128xbf16>
    %109 = vector.shape_cast %106 : vector<16x16x128xbf16> to vector<1x16x16x128xbf16>
    tpu.vector_store %arg8[%c0_89, %c0_90, %c0_91, %c0_92], %109 {strides = array<i32>} : memref<1x16x16x128xbf16, #tpu.memory_space<vmem>>, vector<1x16x16x128xbf16>,
    %110 = arith.extf %105 : vector<256x128xbf16> to vector<256x128xf32>
    %cst_93 = arith.constant dense<0.000000e+00> : vector<128xf32>
    %111 = vector.multi_reduction <add>, %110, %cst_93 [0] : vector<256x128xf32> to vector<128xf32>
    %112 = vector.shape_cast %111 : vector<128xf32> to vector<1x128xf32>
    %113 = arith.mulf %110, %110 : vector<256x128xf32>
    %cst_94 = arith.constant dense<0.000000e+00> : vector<128xf32>
    %114 = vector.multi_reduction <add>, %113, %cst_94 [0] : vector<256x128xf32> to vector<128xf32>
    %115 = vector.shape_cast %114 : vector<128xf32> to vector<1x128xf32>
    %116 = tpu.concatenate %112, %115 in 0 : vector<1x128xf32>, vector<1x128xf32> -> vector<2x128xf32>
    %c0_95 = arith.constant 0 : index
    %c0_96 = arith.constant 0 : index
    %c0_97 = arith.constant 0 : index
    %c0_98 = arith.constant 0 : index
    %117 = vector.load %arg9[%c0_95, %c0_96, %c0_97, %c0_98] : memref<1x1x2x128xf32, #tpu.memory_space<vmem>>, vector<1x1x2x128xf32>
    %118 = vector.shape_cast %117 : vector<1x1x2x128xf32> to vector<2x128xf32>
    %119 = vector.shape_cast %116 : vector<2x128xf32> to vector<1x1x2x128xf32>
    tpu.vector_store %arg9[%c0_95, %c0_96, %c0_97, %c0_98], %119 {strides = array<i32>} : memref<1x1x2x128xf32, #tpu.memory_space<vmem>>, vector<1x1x2x128xf32>,
    return
  }
  func.func @transform_0(%arg0: i32, %arg1: i32) -> (i32, i32, i32, i32) {
    %c0_i32 = arith.constant 0 : i32
    %c0_i32_0 = arith.constant 0 : i32
    %c0_i32_1 = arith.constant 0 : i32
    return %arg0, %arg1, %c0_i32, %c0_i32_0 : i32, i32, i32, i32
  }
  func.func @transform_1(%arg0: i32, %arg1: i32) -> (i32, i32, i32, i32) {
    %c16_i32 = arith.constant 16 : i32
    %0 = arith.muli %arg1, %c16_i32 : i32
    %c1_i32 = arith.constant 1 : i32
    %1 = arith.subi %0, %c1_i32 : i32
    %c0_i32 = arith.constant 0 : i32
    %2 = arith.maxsi %1, %c0_i32 : i32
    %c0_i32_0 = arith.constant 0 : i32
    %c0_i32_1 = arith.constant 0 : i32
    %c0_i32_2 = arith.constant 0 : i32
    return %arg0, %2, %c0_i32_0, %c0_i32_1 : i32, i32, i32, i32
  }
  func.func @transform_2(%arg0: i32, %arg1: i32) -> (i32, i32, i32, i32) {
    %c1_i32 = arith.constant 1 : i32
    %0 = arith.addi %arg1, %c1_i32 : i32
    %c16_i32 = arith.constant 16 : i32
    %1 = arith.muli %0, %c16_i32 : i32
    %c15_i32 = arith.constant 15 : i32
    %2 = arith.minsi %1, %c15_i32 : i32
    %c0_i32 = arith.constant 0 : i32
    %c0_i32_0 = arith.constant 0 : i32
    %c0_i32_1 = arith.constant 0 : i32
    return %arg0, %2, %c0_i32, %c0_i32_0 : i32, i32, i32, i32
  }
  func.func @transform_3(%arg0: i32, %arg1: i32) -> (i32, i32) {
    %c0_i32 = arith.constant 0 : i32
    %c0_i32_0 = arith.constant 0 : i32
    %c0_i32_1 = arith.constant 0 : i32
    return %c0_i32, %c0_i32_0 : i32, i32
  }
  func.func @transform_4(%arg0: i32, %arg1: i32) -> (i32, i32) {
    %c0_i32 = arith.constant 0 : i32
    %c0_i32_0 = arith.constant 0 : i32
    %c0_i32_1 = arith.constant 0 : i32
    return %c0_i32, %c0_i32_0 : i32, i32
  }
  func.func @transform_5(%arg0: i32, %arg1: i32) -> (i32, i32, i32) {
    %c0_i32 = arith.constant 0 : i32
    %c0_i32_0 = arith.constant 0 : i32
    %c0_i32_1 = arith.constant 0 : i32
    %c0_i32_2 = arith.constant 0 : i32
    return %c0_i32, %c0_i32_0, %c0_i32_1 : i32, i32, i32
  }
  func.func @transform_6(%arg0: i32, %arg1: i32) -> (i32, i32, i32, i32) {
    %c0_i32 = arith.constant 0 : i32
    %c0_i32_0 = arith.constant 0 : i32
    %c0_i32_1 = arith.constant 0 : i32
    return %arg0, %arg1, %c0_i32, %c0_i32_0 : i32, i32, i32, i32
  }
  func.func @transform_7(%arg0: i32, %arg1: i32) -> (i32, i32, i32, i32) {
    %c0_i32 = arith.constant 0 : i32
    %c0_i32_0 = arith.constant 0 : i32
    %c0_i32_1 = arith.constant 0 : i32
    return %arg0, %arg1, %c0_i32, %c0_i32_0 : i32, i32, i32, i32
  }
}

</mosaic_0001>

<llo_original>
// kernel: double_convolution.5
$region0: #{double_convolution.5}
  #allocation0 [shape = 'u32[]', space=smem, size = 0x4, offset = 0x4, fixed_abs, tag = 'smem constant byte address 0x4 - core index']
  #allocation1 [shape = 'u32[144,128]{1,0:T(1,128)}', space=vmem, size = 0x12000, scoped, tag = 'internal scratch']
  %s0 = inlined_call_operand.vmem [shape: bf16[2,16,16,128], index: 0, kind: input, shape index: {}]
  %s1 = inlined_call_operand.vmem [shape: f32[1,128], index: 1, kind: input, shape index: {}]
  %s2 = inlined_call_operand.vmem [shape: f32[1,128], index: 2, kind: input, shape index: {}]
  %s3 = inlined_call_operand.vmem [shape: f32[2,16,16,8], index: 3, kind: output, shape index: {}]
  %s4 = sld [smem:[#allocation0]]
  $region45: #{double_convolution.5} parent=0
    _
  %s6 = ssub.s32 1, %s4
  %s7 = scalar_select 0, %s6, %s4
  loop: start=0, step=1, limit=4
  $region2: #{double_convolution.5} parent=0 // loop_pre_header
    _
  $region3: #{double_convolution.5} parent=0 // loop_header
    %s9 = sphi 0, %s13
    %p10 = scmp.ge.s32.totalorder %s9, 4
    %s16 = sphi 0, %s28
    %s17 = sphi 0, %s24
    %s18 = sphi 0, %s16
    %s19 = sphi 0, %s17
    %s20 = sphi 0, %s18
    %s21 = sphi 0, %s19
    %s33 = sphi 0, %s35
    %s36 = sphi 0, %s33
    %s37 = sphi 0, %s36
    %s53 = sphi 0, %s37
    %s57 = sphi 0, %s57
    %s59 = sphi 0, %s57
    %s60 = sphi 0, %s59
    %s74 = sphi 0, %s60
    %s78 = sphi 0, %s78
    %s80 = sphi 0, %s78
    %s81 = sphi 0, %s80
    %s95 = sphi 0, %s81
    %s103 = sphi 0, %s105
    %s106 = sphi 0, %s103
    %s107 = sphi 0, %s106
    %s123 = sphi 0, %s107
  $region4: #{double_convolution.5} parent=0 // loop_header_branch
    %12 = sbr.rel (%p10) target = $region8
  $region5: #{double_convolution.5} parent=0 // loop_body
    %s14 = ssub.s32 %s9, 1
    %s15 = ssub.s32 %s9, 2
    %s22 = sadd.s32 1, %s17
    %p23 = scmp.ge.s32.totalorder %s22, 1
    %s24 = scalar_select %p23, 0, %s22
    %s25 = sadd.s32 1, %s16
    %s26 = scalar_select %p23, %s25, %s16
    %p27 = scmp.ge.s32.totalorder %s26, 2
    %s28 = scalar_select %p27, 0, %s26
    %s29 = ssub.s32 %s16, %s28
    %s30 = ssub.s32 %s17, %s24
    %s31 = sor.u32 %s29, %s30
    %p32 = scmp.eq.s32.totalorder %s31, 0
    %s34 = sadd.s32 %s33, 1
    %s35 = scalar_select %p32, %s33, %s34
    %p38 = pneg %p32
    %p39 = scmp.eq.s32.totalorder %s9, 1
    %p40 = por %p38, %p39
    %p41 = scmp.ne.s32.totalorder %s33, %s36
    %p42 = scmp.eq.s32.totalorder %s9, 0
    %p43 = por %p41, %p42
    %p44 = scmp.ne.s32.totalorder %s33, %s36
    %p45 = scmp.eq.s32.totalorder %s14, 1
    %p46 = por %p44, %p45
    %p47 = scmp.ne.s32.totalorder %s36, %s37
    %p48 = scmp.eq.s32.totalorder %s14, 0
    %p49 = por %p47, %p48
    %p50 = scmp.ne.s32.totalorder %s36, %s37
    %p51 = scmp.eq.s32.totalorder %s15, 1
    %p52 = por %p50, %p51
    %p54 = scmp.ne.s32.totalorder %s37, %s53
    %p55 = scmp.eq.s32.totalorder %s15, 0
    %p56 = por %p54, %p55
    %s58 = sadd.s32 %s57, 1
    %p61 = scmp.eq.s32.totalorder %s9, 1
    %p62 = scmp.ne.s32.totalorder %s57, %s59
    %p63 = scmp.eq.s32.totalorder %s9, 0
    %p64 = por %p62, %p63
    %p65 = scmp.ne.s32.totalorder %s57, %s59
    %p66 = scmp.eq.s32.totalorder %s14, 1
    %p67 = por %p65, %p66
    %p68 = scmp.ne.s32.totalorder %s59, %s60
    %p69 = scmp.eq.s32.totalorder %s14, 0
    %p70 = por %p68, %p69
    %p71 = scmp.ne.s32.totalorder %s59, %s60
    %p72 = scmp.eq.s32.totalorder %s15, 1
    %p73 = por %p71, %p72
    %p75 = scmp.ne.s32.totalorder %s60, %s74
    %p76 = scmp.eq.s32.totalorder %s15, 0
    %p77 = por %p75, %p76
    %s79 = sadd.s32 %s78, 1
    %p82 = scmp.eq.s32.totalorder %s9, 1
    %p83 = scmp.ne.s32.totalorder %s78, %s80
    %p84 = scmp.eq.s32.totalorder %s9, 0
    %p85 = por %p83, %p84
    %p86 = scmp.ne.s32.totalorder %s78, %s80
    %p87 = scmp.eq.s32.totalorder %s14, 1
    %p88 = por %p86, %p87
    %p89 = scmp.ne.s32.totalorder %s80, %s81
    %p90 = scmp.eq.s32.totalorder %s14, 0
    %p91 = por %p89, %p90
    %p92 = scmp.ne.s32.totalorder %s80, %s81
    %p93 = scmp.eq.s32.totalorder %s15, 1
    %p94 = por %p92, %p93
    %p96 = scmp.ne.s32.totalorder %s81, %s95
    %p97 = scmp.eq.s32.totalorder %s15, 0
    %p98 = por %p96, %p97
    %s99 = ssub.s32 %s16, %s28
    %s100 = ssub.s32 %s17, %s24
    %s101 = sor.u32 %s99, %s100
    %p102 = scmp.eq.s32.totalorder %s101, 0
    %s104 = sadd.s32 %s103, 1
    %s105 = scalar_select %p102, %s103, %s104
    %p108 = pneg %p102
    %p109 = scmp.eq.s32.totalorder %s9, 1
    %p110 = por %p108, %p109
    %p111 = scmp.ne.s32.totalorder %s103, %s106
    %p112 = scmp.eq.s32.totalorder %s9, 0
    %p113 = por %p111, %p112
    %p114 = scmp.ne.s32.totalorder %s103, %s106
    %p115 = scmp.eq.s32.totalorder %s14, 1
    %p116 = por %p114, %p115
    %p117 = scmp.ne.s32.totalorder %s106, %s107
    %p118 = scmp.eq.s32.totalorder %s14, 0
    %p119 = por %p117, %p118
    %p120 = scmp.ne.s32.totalorder %s106, %s107
    %p121 = scmp.eq.s32.totalorder %s15, 1
    %p122 = por %p120, %p121
    %p124 = scmp.ne.s32.totalorder %s107, %s123
    %p125 = scmp.eq.s32.totalorder %s15, 0
    %p126 = por %p124, %p125
    %p127 = scmp.le.s32.totalorder 1, %s9
    %p128 = scmp.lt.s32.totalorder %s9, 3
    %p129 = pnand %p127, %p128
    %p130 = pneg %p129
    // Predicated region
    $region9: #{double_convolution.5} parent=5 // pred_check
      _
    $region10: #{double_convolution.5} parent=5 // pred_check_branch
      %132 = sbr.rel (%p129) target = $region12
    $region11: #{double_convolution.5} parent=5 // pred_region
      %s133 = ssub.s32 %s9, 1
      // Predicated region
      $region13: #{double_convolution.5} parent=11 // pred_check
        %p134 = pneg %p70
      $region14: #{double_convolution.5} parent=11 // pred_check_branch
        %136 = sbr.rel (%p134) target = $region16
      $region15: #{double_convolution.5} parent=11 // pred_region
        _
      $region16: #{double_convolution.5} parent=11 // pred_fallthru
        _
      // Predicated region
      $region17: #{double_convolution.5} parent=11 // pred_check
        %p137 = pneg %p91
      $region18: #{double_convolution.5} parent=11 // pred_check_branch
        %139 = sbr.rel (%p137) target = $region20
      $region19: #{double_convolution.5} parent=11 // pred_region
        _
      $region20: #{double_convolution.5} parent=11 // pred_fallthru
        _
    $region12: #{double_convolution.5} parent=5 // pred_fallthru
      _
    %p140 = scmp.lt.s32.totalorder %s9, 2
    // Predicated region
    $region21: #{double_convolution.5} parent=5 // pred_check
      %p141 = pneg %p140
    $region22: #{double_convolution.5} parent=5 // pred_check_branch
      %143 = sbr.rel (%p141) target = $region24
    $region23: #{double_convolution.5} parent=5 // pred_region
      // Predicated region
      $region25: #{double_convolution.5} parent=23 // pred_check
        %p144 = pneg %p43
      $region26: #{double_convolution.5} parent=23 // pred_check_branch
        %146 = sbr.rel (%p144) target = $region28
      $region27: #{double_convolution.5} parent=23 // pred_region
        %s147 = smul.u32 16, %s17
        %p148 = scmp.lt.s32.totalorder %s16, 1
        %s149 = scalar_select %p148, %s16, 1
        %p150 = scmp.lt.s32.totalorder %s147, 15
        %s151 = scalar_select %p150, %s147, 15
        %s152 = smul.addr %s151, 2
        %s153 = smul.addr %s149, 32
        %s154 = sadd.s32 %s152, %s153
        %s155 = smul.addr %s154, 4
        %s156 = scalar_lea.vmem %s0, %s155
        %s157 = smul.u32 16, %s17
      $region28: #{double_convolution.5} parent=23 // pred_fallthru
        _
    $region24: #{double_convolution.5} parent=5 // pred_fallthru
      _
    %p158 = scmp.le.s32.totalorder 1, %s9
    %p159 = scmp.lt.s32.totalorder %s9, 3
    %p160 = pnand %p158, %p159
    %p161 = pneg %p160
    // Predicated region
    $region29: #{double_convolution.5} parent=5 // pred_check
      _
    $region30: #{double_convolution.5} parent=5 // pred_check_branch
      %163 = sbr.rel (%p160) target = $region32
    $region31: #{double_convolution.5} parent=5 // pred_region
      %s164 = ssub.s32 %s9, 1
      %s165 = smul.u32 16, %s19
      %p166 = scmp.lt.s32.totalorder %s18, 1
      %s167 = scalar_select %p166, %s18, 1
      %p168 = scmp.lt.s32.totalorder %s165, 15
      %s169 = scalar_select %p168, %s165, 15
      %s170 = smul.addr %s169, 2
      %s171 = smul.addr %s167, 32
      %s172 = sadd.s32 %s170, %s171
      %s173 = smul.addr %s172, 4
      %s174 = scalar_lea.vmem %s0, %s173
      %p175 = pneg %p49
      %p176 = pneg %p46
      %p177 = pneg %p70
      %p178 = pneg %p67
      %p179 = pneg %p91
      %p180 = pneg %p88
      %p181 = pneg %p119
      %p182 = pneg %p116
      %s183 = smul.u32 16, %s19
      %p184 = scmp.lt.s32.totalorder %s18, 1
      %s185 = scalar_select %p184, %s18, 1
      %p186 = scmp.lt.s32.totalorder %s183, 15
      %s187 = scalar_select %p186, %s183, 15
      %s188 = smul.addr %s187, 2
      %s189 = smul.addr %s185, 32
      %s190 = sadd.s32 %s188, %s189
      %s191 = smul.addr %s190, 8
      %s192 = scalar_lea.vmem %s3, %s191
      %s193 = smul.u32 16, %s19
      %p194 = scmp.lt.s32.totalorder %s18, 1
      %s195 = scalar_select %p194, %s18, 1
      %p196 = scmp.lt.s32.totalorder %s193, 15
      %s197 = scalar_select %p196, %s193, 15
      %s198 = smul.addr %s197, 2
      %s199 = smul.addr %s195, 32
      %s200 = sadd.s32 %s198, %s199
      %s201 = smul.addr %s200, 4
      %s202 = scalar_lea.vmem %s0, %s201
      %s203 = smul.u32 16, %s19
      %s204 = smul.u32 16, %s19
      %p205 = scmp.lt.s32.totalorder %s18, 1
      %s206 = scalar_select %p205, %s18, 1
      %p207 = scmp.lt.s32.totalorder %s204, 15
      %s208 = scalar_select %p207, %s204, 15
      %s209 = smul.addr %s208, 2
      %s210 = smul.addr %s206, 32
      %s211 = sadd.s32 %s209, %s210
      %s212 = smul.addr %s211, 8
      %s213 = scalar_lea.vmem %s3, %s212
      %s214 = smul.u32 16, %s19
      %v215 = vld [vmem:[%s1] sm:$0x1]
      %v216 = vld [vmem:[%s2] sm:$0x1]
      %v217 = vld [vmem:[%s202] sm:$0xf]
      %v218 = vld [vmem:[%s202 + $0x4] sm:$0xf]
      %v219 = vld [vmem:[%s202 + $0x8] sm:$0xf]
      %v220 = vld [vmem:[%s202 + $0xc] sm:$0xf]
      %v221 = vld [vmem:[%s202 + $0x10] sm:$0xf]
      %v222 = vld [vmem:[%s202 + $0x14] sm:$0xf]
      %v223 = vld [vmem:[%s202 + $0x18] sm:$0xf]
      %v224 = vld [vmem:[%s202 + $0x1c] sm:$0xf]
      %v225 = vld [vmem:[%s202 + $0x20] sm:$0xf]
      %v226 = vld [vmem:[%s202 + $0x24] sm:$0xf]
      %v227 = vld [vmem:[%s202 + $0x28] sm:$0xf]
      %v228 = vld [vmem:[%s202 + $0x2c] sm:$0xf]
      %v229 = vld [vmem:[%s202 + $0x30] sm:$0xf]
      %v230 = vld [vmem:[%s202 + $0x34] sm:$0xf]
      %v231 = vld [vmem:[%s202 + $0x38] sm:$0xf]
      %v232 = vld [vmem:[%s202 + $0x3c] sm:$0xf]
      %v233 = vld [vmem:[%s202 + $0x40] sm:$0xf]
      %v234 = vld [vmem:[%s202 + $0x44] sm:$0xf]
      %v235 = vld [vmem:[%s202 + $0x48] sm:$0xf]
      %v236 = vld [vmem:[%s202 + $0x4c] sm:$0xf]
      %v237 = vld [vmem:[%s202 + $0x50] sm:$0xf]
      %v238 = vld [vmem:[%s202 + $0x54] sm:$0xf]
      %v239 = vld [vmem:[%s202 + $0x58] sm:$0xf]
      %v240 = vld [vmem:[%s202 + $0x5c] sm:$0xf]
      %v241 = vld [vmem:[%s202 + $0x60] sm:$0xf]
      %v242 = vld [vmem:[%s202 + $0x64] sm:$0xf]
      %v243 = vld [vmem:[%s202 + $0x68] sm:$0xf]
      %v244 = vld [vmem:[%s202 + $0x6c] sm:$0xf]
      %v245 = vld [vmem:[%s202 + $0x70] sm:$0xf]
      %v246 = vld [vmem:[%s202 + $0x74] sm:$0xf]
      %v247 = vld [vmem:[%s202 + $0x78] sm:$0xf]
      %v248 = vld [vmem:[%s202 + $0x7c] sm:$0xf]
      %v249 = vunpack.c.l.bf16 %v217
      %v250 = vunpack.c.l.bf16 %v218
      %v251 = vunpack.c.l.bf16 %v219
      %v252 = vunpack.c.l.bf16 %v220
      %v253 = vunpack.c.l.bf16 %v221
      %v254 = vunpack.c.l.bf16 %v222
      %v255 = vunpack.c.l.bf16 %v223
      %v256 = vunpack.c.l.bf16 %v224
      %v257 = vunpack.c.l.bf16 %v225
      %v258 = vunpack.c.l.bf16 %v226
      %v259 = vunpack.c.l.bf16 %v227
      %v260 = vunpack.c.l.bf16 %v228
      %v261 = vunpack.c.l.bf16 %v229
      %v262 = vunpack.c.l.bf16 %v230
      %v263 = vunpack.c.l.bf16 %v231
      %v264 = vunpack.c.l.bf16 %v232
      %v265 = vunpack.c.l.bf16 %v233
      %v266 = vunpack.c.l.bf16 %v234
      %v267 = vunpack.c.l.bf16 %v235
      %v268 = vunpack.c.l.bf16 %v236
      %v269 = vunpack.c.l.bf16 %v237
      %v270 = vunpack.c.l.bf16 %v238
      %v271 = vunpack.c.l.bf16 %v239
      %v272 = vunpack.c.l.bf16 %v240
      %v273 = vunpack.c.l.bf16 %v241
      %v274 = vunpack.c.l.bf16 %v242
      %v275 = vunpack.c.l.bf16 %v243
      %v276 = vunpack.c.l.bf16 %v244
      %v277 = vunpack.c.l.bf16 %v245
      %v278 = vunpack.c.l.bf16 %v246
      %v279 = vunpack.c.l.bf16 %v247
      %v280 = vunpack.c.l.bf16 %v248
      %v282 = vlaneseq
      %v283 = vshrl.u32 %v282, 7
      %v284 = vsub.s32 0, %v283
      %v285 = vrot.slane %v215, %v284
      %v287 = vmul.f32 %v249, %v285
      %v288 = vmul.f32 %v250, %v285
      %v289 = vmul.f32 %v251, %v285
      %v290 = vmul.f32 %v252, %v285
      %v291 = vmul.f32 %v253, %v285
      %v292 = vmul.f32 %v254, %v285
      %v293 = vmul.f32 %v255, %v285
      %v294 = vmul.f32 %v256, %v285
      %v295 = vmul.f32 %v257, %v285
      %v296 = vmul.f32 %v258, %v285
      %v297 = vmul.f32 %v259, %v285
      %v298 = vmul.f32 %v260, %v285
      %v299 = vmul.f32 %v261, %v285
      %v300 = vmul.f32 %v262, %v285
      %v301 = vmul.f32 %v263, %v285
      %v302 = vmul.f32 %v264, %v285
      %v303 = vmul.f32 %v265, %v285
      %v304 = vmul.f32 %v266, %v285
      %v305 = vmul.f32 %v267, %v285
      %v306 = vmul.f32 %v268, %v285
      %v307 = vmul.f32 %v269, %v285
      %v308 = vmul.f32 %v270, %v285
      %v309 = vmul.f32 %v271, %v285
      %v310 = vmul.f32 %v272, %v285
      %v311 = vmul.f32 %v273, %v285
      %v312 = vmul.f32 %v274, %v285
      %v313 = vmul.f32 %v275, %v285
      %v314 = vmul.f32 %v276, %v285
      %v315 = vmul.f32 %v277, %v285
      %v316 = vmul.f32 %v278, %v285
      %v317 = vmul.f32 %v279, %v285
      %v318 = vmul.f32 %v280, %v285
      %v320 = vlaneseq
      %v321 = vshrl.u32 %v320, 7
      %v322 = vsub.s32 0, %v321
      %v323 = vrot.slane %v216, %v322
      %v325 = vadd.f32 %v287, %v323
      %v326 = vadd.f32 %v288, %v323
      %v327 = vadd.f32 %v289, %v323
      %v328 = vadd.f32 %v290, %v323
      %v329 = vadd.f32 %v291, %v323
      %v330 = vadd.f32 %v292, %v323
      %v331 = vadd.f32 %v293, %v323
      %v332 = vadd.f32 %v294, %v323
      %v333 = vadd.f32 %v295, %v323
      %v334 = vadd.f32 %v296, %v323
      %v335 = vadd.f32 %v297, %v323
      %v336 = vadd.f32 %v298, %v323
      %v337 = vadd.f32 %v299, %v323
      %v338 = vadd.f32 %v300, %v323
      %v339 = vadd.f32 %v301, %v323
      %v340 = vadd.f32 %v302, %v323
      %v341 = vadd.f32 %v303, %v323
      %v342 = vadd.f32 %v304, %v323
      %v343 = vadd.f32 %v305, %v323
      %v344 = vadd.f32 %v306, %v323
      %v345 = vadd.f32 %v307, %v323
      %v346 = vadd.f32 %v308, %v323
      %v347 = vadd.f32 %v309, %v323
      %v348 = vadd.f32 %v310, %v323
      %v349 = vadd.f32 %v311, %v323
      %v350 = vadd.f32 %v312, %v323
      %v351 = vadd.f32 %v313, %v323
      %v352 = vadd.f32 %v314, %v323
      %v353 = vadd.f32 %v315, %v323
      %v354 = vadd.f32 %v316, %v323
      %v355 = vadd.f32 %v317, %v323
      %v356 = vadd.f32 %v318, %v323
      %v357 = vmax.f32 %v325, 0.0
      %v358 = vmax.f32 %v326, 0.0
      %v359 = vmax.f32 %v327, 0.0
      %v360 = vmax.f32 %v328, 0.0
      %v361 = vmax.f32 %v329, 0.0
      %v362 = vmax.f32 %v330, 0.0
      %v363 = vmax.f32 %v331, 0.0
      %v364 = vmax.f32 %v332, 0.0
      %v365 = vmax.f32 %v333, 0.0
      %v366 = vmax.f32 %v334, 0.0
      %v367 = vmax.f32 %v335, 0.0
      %v368 = vmax.f32 %v336, 0.0
      %v369 = vmax.f32 %v337, 0.0
      %v370 = vmax.f32 %v338, 0.0
      %v371 = vmax.f32 %v339, 0.0
      %v372 = vmax.f32 %v340, 0.0
      %v373 = vmax.f32 %v341, 0.0
      %v374 = vmax.f32 %v342, 0.0
      %v375 = vmax.f32 %v343, 0.0
      %v376 = vmax.f32 %v344, 0.0
      %v377 = vmax.f32 %v345, 0.0
      %v378 = vmax.f32 %v346, 0.0
      %v379 = vmax.f32 %v347, 0.0
      %v380 = vmax.f32 %v348, 0.0
      %v381 = vmax.f32 %v349, 0.0
      %v382 = vmax.f32 %v350, 0.0
      %v383 = vmax.f32 %v351, 0.0
      %v384 = vmax.f32 %v352, 0.0
      %v385 = vmax.f32 %v353, 0.0
      %v386 = vmax.f32 %v354, 0.0
      %v387 = vmax.f32 %v355, 0.0
      %v388 = vmax.f32 %v356, 0.0
      %vm389 = vcmask 64512
      %390 = vst.msk [vmem:[%s213] sm:$0xff] %vm389, %v357
      %391 = vst.msk [vmem:[%s213 + $0x8] sm:$0xff] %vm389, %v358
      %392 = vst.msk [vmem:[%s213 + $0x10] sm:$0xff] %vm389, %v359
      %393 = vst.msk [vmem:[%s213 + $0x18] sm:$0xff] %vm389, %v360
      %394 = vst.msk [vmem:[%s213 + $0x20] sm:$0xff] %vm389, %v361
      %395 = vst.msk [vmem:[%s213 + $0x28] sm:$0xff] %vm389, %v362
      %396 = vst.msk [vmem:[%s213 + $0x30] sm:$0xff] %vm389, %v363
      %397 = vst.msk [vmem:[%s213 + $0x38] sm:$0xff] %vm389, %v364
      %398 = vst.msk [vmem:[%s213 + $0x40] sm:$0xff] %vm389, %v365
      %399 = vst.msk [vmem:[%s213 + $0x48] sm:$0xff] %vm389, %v366
      %400 = vst.msk [vmem:[%s213 + $0x50] sm:$0xff] %vm389, %v367
      %401 = vst.msk [vmem:[%s213 + $0x58] sm:$0xff] %vm389, %v368
      %402 = vst.msk [vmem:[%s213 + $0x60] sm:$0xff] %vm389, %v369
      %403 = vst.msk [vmem:[%s213 + $0x68] sm:$0xff] %vm389, %v370
      %404 = vst.msk [vmem:[%s213 + $0x70] sm:$0xff] %vm389, %v371
      %405 = vst.msk [vmem:[%s213 + $0x78] sm:$0xff] %vm389, %v372
      %406 = vst.msk [vmem:[%s213 + $0x80] sm:$0xff] %vm389, %v373
      %407 = vst.msk [vmem:[%s213 + $0x88] sm:$0xff] %vm389, %v374
      %408 = vst.msk [vmem:[%s213 + $0x90] sm:$0xff] %vm389, %v375
      %409 = vst.msk [vmem:[%s213 + $0x98] sm:$0xff] %vm389, %v376
      %410 = vst.msk [vmem:[%s213 + $0xa0] sm:$0xff] %vm389, %v377
      %411 = vst.msk [vmem:[%s213 + $0xa8] sm:$0xff] %vm389, %v378
      %412 = vst.msk [vmem:[%s213 + $0xb0] sm:$0xff] %vm389, %v379
      %413 = vst.msk [vmem:[%s213 + $0xb8] sm:$0xff] %vm389, %v380
      %414 = vst.msk [vmem:[%s213 + $0xc0] sm:$0xff] %vm389, %v381
      %415 = vst.msk [vmem:[%s213 + $0xc8] sm:$0xff] %vm389, %v382
      %416 = vst.msk [vmem:[%s213 + $0xd0] sm:$0xff] %vm389, %v383
      %417 = vst.msk [vmem:[%s213 + $0xd8] sm:$0xff] %vm389, %v384
      %418 = vst.msk [vmem:[%s213 + $0xe0] sm:$0xff] %vm389, %v385
      %419 = vst.msk [vmem:[%s213 + $0xe8] sm:$0xff] %vm389, %v386
      %420 = vst.msk [vmem:[%s213 + $0xf0] sm:$0xff] %vm389, %v387
      %421 = vst.msk [vmem:[%s213 + $0xf8] sm:$0xff] %vm389, %v388
      %s422 = smul.u32 16, %s19
      %p423 = scmp.lt.s32.totalorder %s18, 1
      %s424 = scalar_select %p423, %s18, 1
      %p425 = scmp.lt.s32.totalorder %s422, 15
      %s426 = scalar_select %p425, %s422, 15
      %s427 = smul.addr %s426, 2
      %s428 = smul.addr %s424, 32
      %s429 = sadd.s32 %s427, %s428
      %s430 = smul.addr %s429, 8
      %s431 = scalar_lea.vmem %s3, %s430
      // Predicated region
      $region33: #{double_convolution.5} parent=31 // pred_check
        %p432 = pneg %p116
      $region34: #{double_convolution.5} parent=31 // pred_check_branch
        %434 = sbr.rel (%p432) target = $region36
      $region35: #{double_convolution.5} parent=31 // pred_region
        %s435 = smul.u32 16, %s19
      $region36: #{double_convolution.5} parent=31 // pred_fallthru
        _
    $region32: #{double_convolution.5} parent=5 // pred_fallthru
      _
    %p436 = scmp.le.s32.totalorder 2, %s9
    // Predicated region
    $region37: #{double_convolution.5} parent=5 // pred_check
      %p437 = pneg %p436
    $region38: #{double_convolution.5} parent=5 // pred_check_branch
      %439 = sbr.rel (%p437) target = $region40
    $region39: #{double_convolution.5} parent=5 // pred_region
      %s440 = ssub.s32 %s9, 2
      // Predicated region
      $region41: #{double_convolution.5} parent=39 // pred_check
        %p441 = pneg %p122
      $region42: #{double_convolution.5} parent=39 // pred_check_branch
        %443 = sbr.rel (%p441) target = $region44
      $region43: #{double_convolution.5} parent=39 // pred_region
        %s444 = smul.u32 16, %s21
        %p445 = scmp.lt.s32.totalorder %s20, 1
        %s446 = scalar_select %p445, %s20, 1
        %p447 = scmp.lt.s32.totalorder %s444, 15
        %s448 = scalar_select %p447, %s444, 15
        %s449 = smul.addr %s448, 2
        %s450 = smul.addr %s446, 32
        %s451 = sadd.s32 %s449, %s450
        %s452 = smul.addr %s451, 8
        %s453 = scalar_lea.vmem %s3, %s452
      $region44: #{double_convolution.5} parent=39 // pred_fallthru
        _
    $region40: #{double_convolution.5} parent=5 // pred_fallthru
      _
  $region6: #{double_convolution.5} parent=0 // loop_footer
    %s13 = sadd.s32 1, %s9
  $region7: #{double_convolution.5} parent=0 // loop_footer_branch
    %8 = sbr.rel target = $region3
  $region8: #{double_convolution.5} parent=0 // loop_exit
    _

// kernel: double_convolution.3
$region0: #{double_convolution.3}
  #allocation0 [shape = 'u32[]', space=smem, size = 0x4, offset = 0x4, fixed_abs, tag = 'smem constant byte address 0x4 - core index']
  #allocation1 [shape = 'u32[144,128]{1,0:T(1,128)}', space=vmem, size = 0x12000, scoped, tag = 'internal scratch']
  %s0 = inlined_call_operand.vmem [shape: bf16[2,16,16,36], index: 0, kind: input, shape index: {}]
  %s1 = inlined_call_operand.vmem [shape: bf16[36,128], index: 1, kind: input, shape index: {}]
  %s2 = inlined_call_operand.vmem [shape: bf16[2,16,16,128], index: 2, kind: output, shape index: {0}]
  %s3 = inlined_call_operand.vmem [shape: f32[2,1,2,128], index: 3, kind: output, shape index: {1}]
  %4 = xla_tuple %s2, %s3
  %s5 = sld [smem:[#allocation0]]
  $region49: #{double_convolution.3} parent=0
    _
  %s7 = ssub.s32 1, %s5
  %s8 = scalar_select 0, %s7, %s5
  loop: start=0, step=1, limit=4
  $region2: #{double_convolution.3} parent=0 // loop_pre_header
    _
  $region3: #{double_convolution.3} parent=0 // loop_header
    %s10 = sphi 0, %s14
    %p11 = scmp.ge.s32.totalorder %s10, 4
    %s17 = sphi 0, %s29
    %s18 = sphi 0, %s25
    %s19 = sphi 0, %s17
    %s20 = sphi 0, %s18
    %s21 = sphi 0, %s19
    %s22 = sphi 0, %s20
    %s34 = sphi 0, %s36
    %s37 = sphi 0, %s34
    %s38 = sphi 0, %s37
    %s54 = sphi 0, %s38
    %s58 = sphi 0, %s58
    %s60 = sphi 0, %s58
    %s61 = sphi 0, %s60
    %s75 = sphi 0, %s61
    %s83 = sphi 0, %s85
    %s86 = sphi 0, %s83
    %s87 = sphi 0, %s86
    %s103 = sphi 0, %s87
    %s111 = sphi 0, %s113
    %s114 = sphi 0, %s111
    %s115 = sphi 0, %s114
    %s131 = sphi 0, %s115
  $region4: #{double_convolution.3} parent=0 // loop_header_branch
    %13 = sbr.rel (%p11) target = $region8
  $region5: #{double_convolution.3} parent=0 // loop_body
    %s15 = ssub.s32 %s10, 1
    %s16 = ssub.s32 %s10, 2
    %s23 = sadd.s32 1, %s18
    %p24 = scmp.ge.s32.totalorder %s23, 1
    %s25 = scalar_select %p24, 0, %s23
    %s26 = sadd.s32 1, %s17
    %s27 = scalar_select %p24, %s26, %s17
    %p28 = scmp.ge.s32.totalorder %s27, 2
    %s29 = scalar_select %p28, 0, %s27
    %s30 = ssub.s32 %s17, %s29
    %s31 = ssub.s32 %s18, %s25
    %s32 = sor.u32 %s30, %s31
    %p33 = scmp.eq.s32.totalorder %s32, 0
    %s35 = sadd.s32 %s34, 1
    %s36 = scalar_select %p33, %s34, %s35
    %p39 = pneg %p33
    %p40 = scmp.eq.s32.totalorder %s10, 1
    %p41 = por %p39, %p40
    %p42 = scmp.ne.s32.totalorder %s34, %s37
    %p43 = scmp.eq.s32.totalorder %s10, 0
    %p44 = por %p42, %p43
    %p45 = scmp.ne.s32.totalorder %s34, %s37
    %p46 = scmp.eq.s32.totalorder %s15, 1
    %p47 = por %p45, %p46
    %p48 = scmp.ne.s32.totalorder %s37, %s38
    %p49 = scmp.eq.s32.totalorder %s15, 0
    %p50 = por %p48, %p49
    %p51 = scmp.ne.s32.totalorder %s37, %s38
    %p52 = scmp.eq.s32.totalorder %s16, 1
    %p53 = por %p51, %p52
    %p55 = scmp.ne.s32.totalorder %s38, %s54
    %p56 = scmp.eq.s32.totalorder %s16, 0
    %p57 = por %p55, %p56
    %s59 = sadd.s32 %s58, 1
    %p62 = scmp.eq.s32.totalorder %s10, 1
    %p63 = scmp.ne.s32.totalorder %s58, %s60
    %p64 = scmp.eq.s32.totalorder %s10, 0
    %p65 = por %p63, %p64
    %p66 = scmp.ne.s32.totalorder %s58, %s60
    %p67 = scmp.eq.s32.totalorder %s15, 1
    %p68 = por %p66, %p67
    %p69 = scmp.ne.s32.totalorder %s60, %s61
    %p70 = scmp.eq.s32.totalorder %s15, 0
    %p71 = por %p69, %p70
    %p72 = scmp.ne.s32.totalorder %s60, %s61
    %p73 = scmp.eq.s32.totalorder %s16, 1
    %p74 = por %p72, %p73
    %p76 = scmp.ne.s32.totalorder %s61, %s75
    %p77 = scmp.eq.s32.totalorder %s16, 0
    %p78 = por %p76, %p77
    %s79 = ssub.s32 %s17, %s29
    %s80 = ssub.s32 %s18, %s25
    %s81 = sor.u32 %s79, %s80
    %p82 = scmp.eq.s32.totalorder %s81, 0
    %s84 = sadd.s32 %s83, 1
    %s85 = scalar_select %p82, %s83, %s84
    %p88 = pneg %p82
    %p89 = scmp.eq.s32.totalorder %s10, 1
    %p90 = por %p88, %p89
    %p91 = scmp.ne.s32.totalorder %s83, %s86
    %p92 = scmp.eq.s32.totalorder %s10, 0
    %p93 = por %p91, %p92
    %p94 = scmp.ne.s32.totalorder %s83, %s86
    %p95 = scmp.eq.s32.totalorder %s15, 1
    %p96 = por %p94, %p95
    %p97 = scmp.ne.s32.totalorder %s86, %s87
    %p98 = scmp.eq.s32.totalorder %s15, 0
    %p99 = por %p97, %p98
    %p100 = scmp.ne.s32.totalorder %s86, %s87
    %p101 = scmp.eq.s32.totalorder %s16, 1
    %p102 = por %p100, %p101
    %p104 = scmp.ne.s32.totalorder %s87, %s103
    %p105 = scmp.eq.s32.totalorder %s16, 0
    %p106 = por %p104, %p105
    %s107 = ssub.s32 %s17, %s29
    %s108 = ssub.s32 %s18, %s25
    %s109 = sor.u32 %s107, %s108
    %p110 = scmp.eq.s32.totalorder %s109, 0
    %s112 = sadd.s32 %s111, 1
    %s113 = scalar_select %p110, %s111, %s112
    %p116 = pneg %p110
    %p117 = scmp.eq.s32.totalorder %s10, 1
    %p118 = por %p116, %p117
    %p119 = scmp.ne.s32.totalorder %s111, %s114
    %p120 = scmp.eq.s32.totalorder %s10, 0
    %p121 = por %p119, %p120
    %p122 = scmp.ne.s32.totalorder %s111, %s114
    %p123 = scmp.eq.s32.totalorder %s15, 1
    %p124 = por %p122, %p123
    %p125 = scmp.ne.s32.totalorder %s114, %s115
    %p126 = scmp.eq.s32.totalorder %s15, 0
    %p127 = por %p125, %p126
    %p128 = scmp.ne.s32.totalorder %s114, %s115
    %p129 = scmp.eq.s32.totalorder %s16, 1
    %p130 = por %p128, %p129
    %p132 = scmp.ne.s32.totalorder %s115, %s131
    %p133 = scmp.eq.s32.totalorder %s16, 0
    %p134 = por %p132, %p133
    %p135 = scmp.le.s32.totalorder 1, %s10
    %p136 = scmp.lt.s32.totalorder %s10, 3
    %p137 = pnand %p135, %p136
    %p138 = pneg %p137
    // Predicated region
    $region9: #{double_convolution.3} parent=5 // pred_check
      _
    $region10: #{double_convolution.3} parent=5 // pred_check_branch
      %140 = sbr.rel (%p137) target = $region12
    $region11: #{double_convolution.3} parent=5 // pred_region
      %s141 = ssub.s32 %s10, 1
      // Predicated region
      $region13: #{double_convolution.3} parent=11 // pred_check
        %p142 = pneg %p71
      $region14: #{double_convolution.3} parent=11 // pred_check_branch
        %144 = sbr.rel (%p142) target = $region16
      $region15: #{double_convolution.3} parent=11 // pred_region
        _
      $region16: #{double_convolution.3} parent=11 // pred_fallthru
        _
    $region12: #{double_convolution.3} parent=5 // pred_fallthru
      _
    %p145 = scmp.lt.s32.totalorder %s10, 2
    // Predicated region
    $region17: #{double_convolution.3} parent=5 // pred_check
      %p146 = pneg %p145
    $region18: #{double_convolution.3} parent=5 // pred_check_branch
      %148 = sbr.rel (%p146) target = $region20
    $region19: #{double_convolution.3} parent=5 // pred_region
      // Predicated region
      $region21: #{double_convolution.3} parent=19 // pred_check
        %p149 = pneg %p44
      $region22: #{double_convolution.3} parent=19 // pred_check_branch
        %151 = sbr.rel (%p149) target = $region24
      $region23: #{double_convolution.3} parent=19 // pred_region
        %s152 = smul.u32 16, %s18
        %p153 = scmp.lt.s32.totalorder %s17, 1
        %s154 = scalar_select %p153, %s17, 1
        %p155 = scmp.lt.s32.totalorder %s152, 15
        %s156 = scalar_select %p155, %s152, 15
        %s157 = smul.addr %s156, 2
        %s158 = smul.addr %s154, 32
        %s159 = sadd.s32 %s157, %s158
        %s160 = smul.addr %s159, 4
        %s161 = scalar_lea.vmem %s0, %s160
        %s162 = smul.u32 16, %s18
      $region24: #{double_convolution.3} parent=19 // pred_fallthru
        _
    $region20: #{double_convolution.3} parent=5 // pred_fallthru
      _
    %p163 = scmp.le.s32.totalorder 1, %s10
    %p164 = scmp.lt.s32.totalorder %s10, 3
    %p165 = pnand %p163, %p164
    %p166 = pneg %p165
    // Predicated region
    $region25: #{double_convolution.3} parent=5 // pred_check
      _
    $region26: #{double_convolution.3} parent=5 // pred_check_branch
      %168 = sbr.rel (%p165) target = $region28
    $region27: #{double_convolution.3} parent=5 // pred_region
      %s169 = ssub.s32 %s10, 1
      %s170 = smul.u32 16, %s20
      %p171 = scmp.lt.s32.totalorder %s19, 1
      %s172 = scalar_select %p171, %s19, 1
      %p173 = scmp.lt.s32.totalorder %s170, 15
      %s174 = scalar_select %p173, %s170, 15
      %s175 = smul.addr %s174, 2
      %s176 = smul.addr %s172, 32
      %s177 = sadd.s32 %s175, %s176
      %s178 = smul.addr %s177, 4
      %s179 = scalar_lea.vmem %s0, %s178
      %p180 = pneg %p50
      %p181 = pneg %p47
      %p182 = pneg %p71
      %p183 = pneg %p68
      %p184 = pneg %p99
      %p185 = pneg %p96
      %s186 = smul.u32 16, %s20
      %p187 = scmp.lt.s32.totalorder %s19, 1
      %s188 = scalar_select %p187, %s19, 1
      %p189 = scmp.lt.s32.totalorder %s186, 15
      %s190 = scalar_select %p189, %s186, 15
      %s191 = smul.addr %s190, 2
      %s192 = smul.addr %s188, 32
      %s193 = sadd.s32 %s191, %s192
      %s194 = smul.addr %s193, 4
      %s195 = scalar_lea.vmem %s2, %s194
      %p196 = pneg %p127
      %p197 = pneg %p124
      %p198 = scmp.lt.s32.totalorder %s19, 1
      %s199 = scalar_select %p198, %s19, 1
      %p200 = scmp.lt.s32.totalorder %s20, 0
      %s201 = scalar_select %p200, %s20, 0
      %s202 = sadd.s32 %s201, %s199
      %s203 = smul.addr %s202, 2
      %s204 = scalar_lea.vmem %s3, %s203
      %s205 = smul.u32 16, %s20
      %p206 = scmp.lt.s32.totalorder %s19, 1
      %s207 = scalar_select %p206, %s19, 1
      %p208 = scmp.lt.s32.totalorder %s205, 15
      %s209 = scalar_select %p208, %s205, 15
      %s210 = smul.addr %s209, 2
      %s211 = smul.addr %s207, 32
      %s212 = sadd.s32 %s210, %s211
      %s213 = smul.addr %s212, 4
      %s214 = scalar_lea.vmem %s0, %s213
      %s215 = smul.u32 16, %s20
      %s216 = smul.u32 16, %s20
      %p217 = scmp.lt.s32.totalorder %s19, 1
      %s218 = scalar_select %p217, %s19, 1
      %p219 = scmp.lt.s32.totalorder %s216, 15
      %s220 = scalar_select %p219, %s216, 15
      %s221 = smul.addr %s220, 2
      %s222 = smul.addr %s218, 32
      %s223 = sadd.s32 %s221, %s222
      %s224 = smul.addr %s223, 4
      %s225 = scalar_lea.vmem %s2, %s224
      %s226 = smul.u32 16, %s20
      %p227 = scmp.lt.s32.totalorder %s19, 1
      %s228 = scalar_select %p227, %s19, 1
      %p229 = scmp.lt.s32.totalorder %s20, 0
      %s230 = scalar_select %p229, %s20, 0
      %s231 = sadd.s32 %s230, %s228
      %s232 = smul.addr %s231, 2
      %s233 = scalar_lea.vmem %s3, %s232
      %v235 = vld [vmem:[%s214] sm:$0xf]
      %v236 = vld [vmem:[%s214 + $0x4] sm:$0xf]
      %v237 = vld [vmem:[%s214 + $0x8] sm:$0xf]
      %v238 = vld [vmem:[%s214 + $0xc] sm:$0xf]
      %v239 = vld [vmem:[%s214 + $0x10] sm:$0xf]
      %v240 = vld [vmem:[%s214 + $0x14] sm:$0xf]
      %v241 = vld [vmem:[%s214 + $0x18] sm:$0xf]
      %v242 = vld [vmem:[%s214 + $0x1c] sm:$0xf]
      %v243 = vld [vmem:[%s214 + $0x20] sm:$0xf]
      %v244 = vld [vmem:[%s214 + $0x24] sm:$0xf]
      %v245 = vld [vmem:[%s214 + $0x28] sm:$0xf]
      %v246 = vld [vmem:[%s214 + $0x2c] sm:$0xf]
      %v247 = vld [vmem:[%s214 + $0x30] sm:$0xf]
      %v248 = vld [vmem:[%s214 + $0x34] sm:$0xf]
      %v249 = vld [vmem:[%s214 + $0x38] sm:$0xf]
      %v250 = vld [vmem:[%s214 + $0x3c] sm:$0xf]
      %v251 = vld [vmem:[%s214 + $0x40] sm:$0xf]
      %v252 = vld [vmem:[%s214 + $0x44] sm:$0xf]
      %v253 = vld [vmem:[%s214 + $0x48] sm:$0xf]
      %v254 = vld [vmem:[%s214 + $0x4c] sm:$0xf]
      %v255 = vld [vmem:[%s214 + $0x50] sm:$0xf]
      %v256 = vld [vmem:[%s214 + $0x54] sm:$0xf]
      %v257 = vld [vmem:[%s214 + $0x58] sm:$0xf]
      %v258 = vld [vmem:[%s214 + $0x5c] sm:$0xf]
      %v259 = vld [vmem:[%s214 + $0x60] sm:$0xf]
      %v260 = vld [vmem:[%s214 + $0x64] sm:$0xf]
      %v261 = vld [vmem:[%s214 + $0x68] sm:$0xf]
      %v262 = vld [vmem:[%s214 + $0x6c] sm:$0xf]
      %v263 = vld [vmem:[%s214 + $0x70] sm:$0xf]
      %v264 = vld [vmem:[%s214 + $0x74] sm:$0xf]
      %v265 = vld [vmem:[%s214 + $0x78] sm:$0xf]
      %v266 = vld [vmem:[%s214 + $0x7c] sm:$0xf]
      %v267 = vld [vmem:[%s1] sm:$0xf]
      %v268 = vld [vmem:[%s1 + $0x4] sm:$0xf]
      %v269 = vld [vmem:[%s1 + $0x8] sm:$0xf]
      %v270 = vld [vmem:[%s1 + $0xc] sm:$0xf]
      %v271 = vld [vmem:[%s1 + $0x10] sm:$0x3]
      %v304 = vunpack.c.l.b16 %v235
      %v305 = vunpack.c.l.b16 %v236
      %v306 = vunpack.c.l.b16 %v237
      %v307 = vunpack.c.l.b16 %v238
      %v308 = vunpack.c.l.b16 %v239
      %v309 = vunpack.c.l.b16 %v240
      %v310 = vunpack.c.l.b16 %v241
      %v311 = vunpack.c.l.b16 %v242
      %v312 = vunpack.c.l.b16 %v243
      %v313 = vunpack.c.l.b16 %v244
      %v314 = vunpack.c.l.b16 %v245
      %v315 = vunpack.c.l.b16 %v246
      %v316 = vunpack.c.l.b16 %v247
      %v317 = vunpack.c.l.b16 %v248
      %v318 = vunpack.c.l.b16 %v249
      %v319 = vunpack.c.l.b16 %v250
      %v320 = vunpack.c.l.b16 %v251
      %v321 = vunpack.c.l.b16 %v252
      %v322 = vunpack.c.l.b16 %v253
      %v323 = vunpack.c.l.b16 %v254
      %v324 = vunpack.c.l.b16 %v255
      %v325 = vunpack.c.l.b16 %v256
      %v326 = vunpack.c.l.b16 %v257
      %v327 = vunpack.c.l.b16 %v258
      %v328 = vunpack.c.l.b16 %v259
      %v329 = vunpack.c.l.b16 %v260
      %v330 = vunpack.c.l.b16 %v261
      %v331 = vunpack.c.l.b16 %v262
      %v332 = vunpack.c.l.b16 %v263
      %v333 = vunpack.c.l.b16 %v264
      %v334 = vunpack.c.l.b16 %v265
      %v335 = vunpack.c.l.b16 %v266
      %v336 = vpack.c.b16 %v305, %v304
      %v337 = vpack.c.b16 %v307, %v306
      %v338 = vpack.c.b16 %v309, %v308
      %v339 = vpack.c.b16 %v311, %v310
      %v340 = vpack.c.b16 %v313, %v312
      %v341 = vpack.c.b16 %v315, %v314
      %v342 = vpack.c.b16 %v317, %v316
      %v343 = vpack.c.b16 %v319, %v318
      %v344 = vpack.c.b16 %v321, %v320
      %v345 = vpack.c.b16 %v323, %v322
      %v346 = vpack.c.b16 %v325, %v324
      %v347 = vpack.c.b16 %v327, %v326
      %v348 = vpack.c.b16 %v329, %v328
      %v349 = vpack.c.b16 %v331, %v330
      %v350 = vpack.c.b16 %v333, %v332
      %v351 = vpack.c.b16 %v335, %v334
      %v357 = vunpack.c.l.b16 %v267
      %v358 = vunpack.c.l.b16 %v268
      %v359 = vunpack.c.l.b16 %v269
      %v360 = vunpack.c.l.b16 %v270
      %v361 = vunpack.c.l.b16 %v271
      %v362 = vpack.c.b16 %v358, %v357
      %v363 = vpack.c.b16 %v360, %v359
      %v364 = vpack.c.b16 %v361, %v361
      %vm367 = vcmask 293888
      %v369 = vsel %vm367, %v336, 0
      %v372 = vsel %vm367, %v337, 0
      %v375 = vsel %vm367, %v338, 0
      %v378 = vsel %vm367, %v339, 0
      %v381 = vsel %vm367, %v340, 0
      %v384 = vsel %vm367, %v341, 0
      %v387 = vsel %vm367, %v342, 0
      %v390 = vsel %vm367, %v343, 0
      %v393 = vsel %vm367, %v344, 0
      %v396 = vsel %vm367, %v345, 0
      %v399 = vsel %vm367, %v346, 0
      %v402 = vsel %vm367, %v347, 0
      %v405 = vsel %vm367, %v348, 0
      %v408 = vsel %vm367, %v349, 0
      %v411 = vsel %vm367, %v350, 0
      %v414 = vsel %vm367, %v351, 0
      %vm416 = vcmask 1041408
      %v418 = vsel %vm416, %v364, 0
      %420 = vmatprep.subr.bf16.mxu0 0
      %421 = vmatpush1.bf16.msra.mxu0 %v362
      %422 = vmatprep.subr.bf16.mxu0 0
      %423 = vmatpush1.bf16.msra.mxu0 %v363
      %424 = vmatprep.subr.bf16.mxu0 0
      %425 = vmatpush1.bf16.msra.mxu0 %v418
      %426 = vmatprep.subr.bf16.mxu0 0
      %427 = vmatpush1.bf16.msra.mxu0 0
      %428 = vmatprep.subr.bf16.mxu0 0
      %429 = vmatpush1.bf16.msra.mxu0 0
      %430 = vmatprep.subr.bf16.mxu0 0
      %431 = vmatpush1.bf16.msra.mxu0 0
      %432 = vmatprep.subr.bf16.mxu0 0
      %433 = vmatpush1.bf16.msra.mxu0 0
      %434 = vmatprep.subr.bf16.mxu0 0
      %435 = vmatpush1.bf16.msra.mxu0 0
      %436 = vmatprep.subr.bf16.mxu0 0
      %437 = vmatpush1.bf16.msra.mxu0 0
      %438 = vmatprep.subr.bf16.mxu0 0
      %439 = vmatpush1.bf16.msra.mxu0 0
      %440 = vmatprep.subr.bf16.mxu0 0
      %441 = vmatpush1.bf16.msra.mxu0 0
      %442 = vmatprep.subr.bf16.mxu0 0
      %443 = vmatpush1.bf16.msra.mxu0 0
      %444 = vmatprep.subr.bf16.mxu0 0
      %445 = vmatpush1.bf16.msra.mxu0 0
      %446 = vmatprep.subr.bf16.mxu0 0
      %447 = vmatpush1.bf16.msra.mxu0 0
      %448 = vmatprep.subr.bf16.mxu0 0
      %449 = vmatpush1.bf16.msra.mxu0 0
      %450 = vmatprep.subr.bf16.mxu0 0
      %451 = vmatpush1.bf16.msra.mxu0 0
      %452 = vmatprep.mubr.bf16.mxu0 0
      %453 = vmatmul.mubr.bf16.gmra.mrb[0].mxu0 %v369
      %v454 = vpop.f32.mrb[0].mxu0
      %v455 = vadd.f32 0.0, %v454
      %v456 = vpop.f32.mrb[0].mxu0
      %v457 = vpop.f32.mrb[0].mxu0
      %v458 = vadd.f32 0.0, %v457
      %v459 = vpop.f32.mrb[0].mxu0
      %460 = vmatprep.mubr.bf16.mxu0 0
      %461 = vmatmul.mubr.bf16.gmra.mrb[0].mxu0 %v372
      %v462 = vpop.f32.mrb[0].mxu0
      %v463 = vadd.f32 0.0, %v462
      %v464 = vpop.f32.mrb[0].mxu0
      %v465 = vpop.f32.mrb[0].mxu0
      %v466 = vadd.f32 0.0, %v465
      %v467 = vpop.f32.mrb[0].mxu0
      %468 = vmatprep.mubr.bf16.mxu0 0
      %469 = vmatmul.mubr.bf16.gmra.mrb[0].mxu0 %v375
      %v470 = vpop.f32.mrb[0].mxu0
      %v471 = vadd.f32 0.0, %v470
      %v472 = vpop.f32.mrb[0].mxu0
      %v473 = vpop.f32.mrb[0].mxu0
      %v474 = vadd.f32 0.0, %v473
      %v475 = vpop.f32.mrb[0].mxu0
      %476 = vmatprep.mubr.bf16.mxu0 0
      %477 = vmatmul.mubr.bf16.gmra.mrb[0].mxu0 %v378
      %v478 = vpop.f32.mrb[0].mxu0
      %v479 = vadd.f32 0.0, %v478
      %v480 = vpop.f32.mrb[0].mxu0
      %v481 = vpop.f32.mrb[0].mxu0
      %v482 = vadd.f32 0.0, %v481
      %v483 = vpop.f32.mrb[0].mxu0
      %484 = vmatprep.mubr.bf16.mxu0 0
      %485 = vmatmul.mubr.bf16.gmra.mrb[0].mxu0 %v381
      %v486 = vpop.f32.mrb[0].mxu0
      %v487 = vadd.f32 0.0, %v486
      %v488 = vpop.f32.mrb[0].mxu0
      %v489 = vpop.f32.mrb[0].mxu0
      %v490 = vadd.f32 0.0, %v489
      %v491 = vpop.f32.mrb[0].mxu0
      %492 = vmatprep.mubr.bf16.mxu0 0
      %493 = vmatmul.mubr.bf16.gmra.mrb[0].mxu0 %v384
      %v494 = vpop.f32.mrb[0].mxu0
      %v495 = vadd.f32 0.0, %v494
      %v496 = vpop.f32.mrb[0].mxu0
      %v497 = vpop.f32.mrb[0].mxu0
      %v498 = vadd.f32 0.0, %v497
      %v499 = vpop.f32.mrb[0].mxu0
      %500 = vmatprep.mubr.bf16.mxu0 0
      %501 = vmatmul.mubr.bf16.gmra.mrb[0].mxu0 %v387
      %v502 = vpop.f32.mrb[0].mxu0
      %v503 = vadd.f32 0.0, %v502
      %v504 = vpop.f32.mrb[0].mxu0
      %v505 = vpop.f32.mrb[0].mxu0
      %v506 = vadd.f32 0.0, %v505
      %v507 = vpop.f32.mrb[0].mxu0
      %508 = vmatprep.mubr.bf16.mxu0 0
      %509 = vmatmul.mubr.bf16.gmra.mrb[0].mxu0 %v390
      %v510 = vpop.f32.mrb[0].mxu0
      %v511 = vadd.f32 0.0, %v510
      %v512 = vpop.f32.mrb[0].mxu0
      %v513 = vpop.f32.mrb[0].mxu0
      %v514 = vadd.f32 0.0, %v513
      %v515 = vpop.f32.mrb[0].mxu0
      %516 = vmatprep.mubr.bf16.mxu0 0
      %517 = vmatmul.mubr.bf16.gmra.mrb[0].mxu0 %v393
      %v518 = vpop.f32.mrb[0].mxu0
      %v519 = vadd.f32 0.0, %v518
      %v520 = vpop.f32.mrb[0].mxu0
      %v521 = vpop.f32.mrb[0].mxu0
      %v522 = vadd.f32 0.0, %v521
      %v523 = vpop.f32.mrb[0].mxu0
      %524 = vmatprep.mubr.bf16.mxu0 0
      %525 = vmatmul.mubr.bf16.gmra.mrb[0].mxu0 %v396
      %v526 = vpop.f32.mrb[0].mxu0
      %v527 = vadd.f32 0.0, %v526
      %v528 = vpop.f32.mrb[0].mxu0
      %v529 = vpop.f32.mrb[0].mxu0
      %v530 = vadd.f32 0.0, %v529
      %v531 = vpop.f32.mrb[0].mxu0
      %532 = vmatprep.mubr.bf16.mxu0 0
      %533 = vmatmul.mubr.bf16.gmra.mrb[0].mxu0 %v399
      %v534 = vpop.f32.mrb[0].mxu0
      %v535 = vadd.f32 0.0, %v534
      %v536 = vpop.f32.mrb[0].mxu0
      %v537 = vpop.f32.mrb[0].mxu0
      %v538 = vadd.f32 0.0, %v537
      %v539 = vpop.f32.mrb[0].mxu0
      %540 = vmatprep.mubr.bf16.mxu0 0
      %541 = vmatmul.mubr.bf16.gmra.mrb[0].mxu0 %v402
      %v542 = vpop.f32.mrb[0].mxu0
      %v543 = vadd.f32 0.0, %v542
      %v544 = vpop.f32.mrb[0].mxu0
      %v545 = vpop.f32.mrb[0].mxu0
      %v546 = vadd.f32 0.0, %v545
      %v547 = vpop.f32.mrb[0].mxu0
      %548 = vmatprep.mubr.bf16.mxu0 0
      %549 = vmatmul.mubr.bf16.gmra.mrb[0].mxu0 %v405
      %v550 = vpop.f32.mrb[0].mxu0
      %v551 = vadd.f32 0.0, %v550
      %v552 = vpop.f32.mrb[0].mxu0
      %v553 = vpop.f32.mrb[0].mxu0
      %v554 = vadd.f32 0.0, %v553
      %v555 = vpop.f32.mrb[0].mxu0
      %556 = vmatprep.mubr.bf16.mxu0 0
      %557 = vmatmul.mubr.bf16.gmra.mrb[0].mxu0 %v408
      %v558 = vpop.f32.mrb[0].mxu0
      %v559 = vadd.f32 0.0, %v558
      %v560 = vpop.f32.mrb[0].mxu0
      %v561 = vpop.f32.mrb[0].mxu0
      %v562 = vadd.f32 0.0, %v561
      %v563 = vpop.f32.mrb[0].mxu0
      %564 = vmatprep.mubr.bf16.mxu0 0
      %565 = vmatmul.mubr.bf16.gmra.mrb[0].mxu0 %v411
      %v566 = vpop.f32.mrb[0].mxu0
      %v567 = vadd.f32 0.0, %v566
      %v568 = vpop.f32.mrb[0].mxu0
      %v569 = vpop.f32.mrb[0].mxu0
      %v570 = vadd.f32 0.0, %v569
      %v571 = vpop.f32.mrb[0].mxu0
      %572 = vmatprep.mubr.bf16.mxu0 0
      %573 = vmatmul.mubr.bf16.gmra.mrb[0].mxu0 %v414
      %v574 = vpop.f32.mrb[0].mxu0
      %v575 = vadd.f32 0.0, %v574
      %v576 = vpop.f32.mrb[0].mxu0
      %v577 = vpop.f32.mrb[0].mxu0
      %v578 = vadd.f32 0.0, %v577
      %v579 = vpop.f32.mrb[0].mxu0
      %580 = vdwg.mxu0
      %v581 = vpack.c.bf16 %v458, %v455
      %v582 = vpack.c.bf16 %v466, %v463
      %v583 = vpack.c.bf16 %v474, %v471
      %v584 = vpack.c.bf16 %v482, %v479
      %v585 = vpack.c.bf16 %v490, %v487
      %v586 = vpack.c.bf16 %v498, %v495
      %v587 = vpack.c.bf16 %v506, %v503
      %v588 = vpack.c.bf16 %v514, %v511
      %v589 = vpack.c.bf16 %v522, %v519
      %v590 = vpack.c.bf16 %v530, %v527
      %v591 = vpack.c.bf16 %v538, %v535
      %v592 = vpack.c.bf16 %v546, %v543
      %v593 = vpack.c.bf16 %v554, %v551
      %v594 = vpack.c.bf16 %v562, %v559
      %v595 = vpack.c.bf16 %v570, %v567
      %v596 = vpack.c.bf16 %v578, %v575
      %v613 = vunpack.c.l.b16 %v581
      %v614 = vunpack.c.h.b16 %v581
      %v615 = vunpack.c.l.b16 %v582
      %v616 = vunpack.c.h.b16 %v582
      %v617 = vunpack.c.l.b16 %v583
      %v618 = vunpack.c.h.b16 %v583
      %v619 = vunpack.c.l.b16 %v584
      %v620 = vunpack.c.h.b16 %v584
      %v621 = vunpack.c.l.b16 %v585
      %v622 = vunpack.c.h.b16 %v585
      %v623 = vunpack.c.l.b16 %v586
      %v624 = vunpack.c.h.b16 %v586
      %v625 = vunpack.c.l.b16 %v587
      %v626 = vunpack.c.h.b16 %v587
      %v627 = vunpack.c.l.b16 %v588
      %v628 = vunpack.c.h.b16 %v588
      %v629 = vunpack.c.l.b16 %v589
      %v630 = vunpack.c.h.b16 %v589
      %v631 = vunpack.c.l.b16 %v590
      %v632 = vunpack.c.h.b16 %v590
      %v633 = vunpack.c.l.b16 %v591
      %v634 = vunpack.c.h.b16 %v591
      %v635 = vunpack.c.l.b16 %v592
      %v636 = vunpack.c.h.b16 %v592
      %v637 = vunpack.c.l.b16 %v593
      %v638 = vunpack.c.h.b16 %v593
      %v639 = vunpack.c.l.b16 %v594
      %v640 = vunpack.c.h.b16 %v594
      %v641 = vunpack.c.l.b16 %v595
      %v642 = vunpack.c.h.b16 %v595
      %v643 = vunpack.c.l.b16 %v596
      %v644 = vunpack.c.h.b16 %v596
      %v645 = vpack.c.b16 %v613, %v613
      %v646 = vpack.c.b16 %v614, %v614
      %v647 = vpack.c.b16 %v615, %v615
      %v648 = vpack.c.b16 %v616, %v616
      %v649 = vpack.c.b16 %v617, %v617
      %v650 = vpack.c.b16 %v618, %v618
      %v651 = vpack.c.b16 %v619, %v619
      %v652 = vpack.c.b16 %v620, %v620
      %v653 = vpack.c.b16 %v621, %v621
      %v654 = vpack.c.b16 %v622, %v622
      %v655 = vpack.c.b16 %v623, %v623
      %v656 = vpack.c.b16 %v624, %v624
      %v657 = vpack.c.b16 %v625, %v625
      %v658 = vpack.c.b16 %v626, %v626
      %v659 = vpack.c.b16 %v627, %v627
      %v660 = vpack.c.b16 %v628, %v628
      %v661 = vpack.c.b16 %v629, %v629
      %v662 = vpack.c.b16 %v630, %v630
      %v663 = vpack.c.b16 %v631, %v631
      %v664 = vpack.c.b16 %v632, %v632
      %v665 = vpack.c.b16 %v633, %v633
      %v666 = vpack.c.b16 %v634, %v634
      %v667 = vpack.c.b16 %v635, %v635
      %v668 = vpack.c.b16 %v636, %v636
      %v669 = vpack.c.b16 %v637, %v637
      %v670 = vpack.c.b16 %v638, %v638
      %v671 = vpack.c.b16 %v639, %v639
      %v672 = vpack.c.b16 %v640, %v640
      %v673 = vpack.c.b16 %v641, %v641
      %v674 = vpack.c.b16 %v642, %v642
      %v675 = vpack.c.b16 %v643, %v643
      %v676 = vpack.c.b16 %v644, %v644
      %709 = vst [vmem:[%s225] sm:$0xf] %v645
      %710 = vst [vmem:[%s225 + $0x4] sm:$0xf] %v646
      %711 = vst [vmem:[%s225 + $0x8] sm:$0xf] %v647
      %712 = vst [vmem:[%s225 + $0xc] sm:$0xf] %v648
      %713 = vst [vmem:[%s225 + $0x10] sm:$0xf] %v649
      %714 = vst [vmem:[%s225 + $0x14] sm:$0xf] %v650
      %715 = vst [vmem:[%s225 + $0x18] sm:$0xf] %v651
      %716 = vst [vmem:[%s225 + $0x1c] sm:$0xf] %v652
      %717 = vst [vmem:[%s225 + $0x20] sm:$0xf] %v653
      %718 = vst [vmem:[%s225 + $0x24] sm:$0xf] %v654
      %719 = vst [vmem:[%s225 + $0x28] sm:$0xf] %v655
      %720 = vst [vmem:[%s225 + $0x2c] sm:$0xf] %v656
      %721 = vst [vmem:[%s225 + $0x30] sm:$0xf] %v657
      %722 = vst [vmem:[%s225 + $0x34] sm:$0xf] %v658
      %723 = vst [vmem:[%s225 + $0x38] sm:$0xf] %v659
      %724 = vst [vmem:[%s225 + $0x3c] sm:$0xf] %v660
      %725 = vst [vmem:[%s225 + $0x40] sm:$0xf] %v661
      %726 = vst [vmem:[%s225 + $0x44] sm:$0xf] %v662
      %727 = vst [vmem:[%s225 + $0x48] sm:$0xf] %v663
      %728 = vst [vmem:[%s225 + $0x4c] sm:$0xf] %v664
      %729 = vst [vmem:[%s225 + $0x50] sm:$0xf] %v665
      %730 = vst [vmem:[%s225 + $0x54] sm:$0xf] %v666
      %731 = vst [vmem:[%s225 + $0x58] sm:$0xf] %v667
      %732 = vst [vmem:[%s225 + $0x5c] sm:$0xf] %v668
      %733 = vst [vmem:[%s225 + $0x60] sm:$0xf] %v669
      %734 = vst [vmem:[%s225 + $0x64] sm:$0xf] %v670
      %735 = vst [vmem:[%s225 + $0x68] sm:$0xf] %v671
      %736 = vst [vmem:[%s225 + $0x6c] sm:$0xf] %v672
      %737 = vst [vmem:[%s225 + $0x70] sm:$0xf] %v673
      %738 = vst [vmem:[%s225 + $0x74] sm:$0xf] %v674
      %739 = vst [vmem:[%s225 + $0x78] sm:$0xf] %v675
      %740 = vst [vmem:[%s225 + $0x7c] sm:$0xf] %v676
      %v741 = vunpack.c.l.bf16 %v581
      %v742 = vunpack.c.h.bf16 %v581
      %v743 = vunpack.c.l.bf16 %v582
      %v744 = vunpack.c.h.bf16 %v582
      %v745 = vunpack.c.l.bf16 %v583
      %v746 = vunpack.c.h.bf16 %v583
      %v747 = vunpack.c.l.bf16 %v584
      %v748 = vunpack.c.h.bf16 %v584
      %v749 = vunpack.c.l.bf16 %v585
      %v750 = vunpack.c.h.bf16 %v585
      %v751 = vunpack.c.l.bf16 %v586
      %v752 = vunpack.c.h.bf16 %v586
      %v753 = vunpack.c.l.bf16 %v587
      %v754 = vunpack.c.h.bf16 %v587
      %v755 = vunpack.c.l.bf16 %v588
      %v756 = vunpack.c.h.bf16 %v588
      %v757 = vunpack.c.l.bf16 %v589
      %v758 = vunpack.c.h.bf16 %v589
      %v759 = vunpack.c.l.bf16 %v590
      %v760 = vunpack.c.h.bf16 %v590
      %v761 = vunpack.c.l.bf16 %v591
      %v762 = vunpack.c.h.bf16 %v591
      %v763 = vunpack.c.l.bf16 %v592
      %v764 = vunpack.c.h.bf16 %v592
      %v765 = vunpack.c.l.bf16 %v593
      %v766 = vunpack.c.h.bf16 %v593
      %v767 = vunpack.c.l.bf16 %v594
      %v768 = vunpack.c.h.bf16 %v594
      %v769 = vunpack.c.l.bf16 %v595
      %v770 = vunpack.c.h.bf16 %v595
      %v771 = vunpack.c.l.bf16 %v596
      %v772 = vunpack.c.h.bf16 %v596
      %v773 = vadd.f32 %v741, %v742
      %v774 = vadd.f32 %v773, %v743
      %v775 = vadd.f32 %v774, %v744
      %v776 = vadd.f32 %v775, %v745
      %v777 = vadd.f32 %v776, %v746
      %v778 = vadd.f32 %v777, %v747
      %v779 = vadd.f32 %v778, %v748
      %v780 = vadd.f32 %v779, %v749
      %v781 = vadd.f32 %v780, %v750
      %v782 = vadd.f32 %v781, %v751
      %v783 = vadd.f32 %v782, %v752
      %v784 = vadd.f32 %v783, %v753
      %v785 = vadd.f32 %v784, %v754
      %v786 = vadd.f32 %v785, %v755
      %v787 = vadd.f32 %v786, %v756
      %v788 = vadd.f32 %v787, %v757
      %v789 = vadd.f32 %v788, %v758
      %v790 = vadd.f32 %v789, %v759
      %v791 = vadd.f32 %v790, %v760
      %v792 = vadd.f32 %v791, %v761
      %v793 = vadd.f32 %v792, %v762
      %v794 = vadd.f32 %v793, %v763
      %v795 = vadd.f32 %v794, %v764
      %v796 = vadd.f32 %v795, %v765
      %v797 = vadd.f32 %v796, %v766
      %v798 = vadd.f32 %v797, %v767
      %v799 = vadd.f32 %v798, %v768
      %v800 = vadd.f32 %v799, %v769
      %v801 = vadd.f32 %v800, %v770
      %v802 = vadd.f32 %v801, %v771
      %v803 = vadd.f32 %v802, %v772
      %v804 = vrot.slane %v803, 4
      %v805 = vadd.f32 %v803, %v804
      %v806 = vrot.slane %v805, 2
      %v807 = vadd.f32 %v805, %v806
      %v808 = vrot.slane %v807, 1
      %v809 = vadd.f32 %v807, %v808
      %v810 = vmul.f32 %v741, %v741
      %v811 = vmul.f32 %v742, %v742
      %v812 = vmul.f32 %v743, %v743
      %v813 = vmul.f32 %v744, %v744
      %v814 = vmul.f32 %v745, %v745
      %v815 = vmul.f32 %v746, %v746
      %v816 = vmul.f32 %v747, %v747
      %v817 = vmul.f32 %v748, %v748
      %v818 = vmul.f32 %v749, %v749
      %v819 = vmul.f32 %v750, %v750
      %v820 = vmul.f32 %v751, %v751
      %v821 = vmul.f32 %v752, %v752
      %v822 = vmul.f32 %v753, %v753
      %v823 = vmul.f32 %v754, %v754
      %v824 = vmul.f32 %v755, %v755
      %v825 = vmul.f32 %v756, %v756
      %v826 = vmul.f32 %v757, %v757
      %v827 = vmul.f32 %v758, %v758
      %v828 = vmul.f32 %v759, %v759
      %v829 = vmul.f32 %v760, %v760
      %v830 = vmul.f32 %v761, %v761
      %v831 = vmul.f32 %v762, %v762
      %v832 = vmul.f32 %v763, %v763
      %v833 = vmul.f32 %v764, %v764
      %v834 = vmul.f32 %v765, %v765
      %v835 = vmul.f32 %v766, %v766
      %v836 = vmul.f32 %v767, %v767
      %v837 = vmul.f32 %v768, %v768
      %v838 = vmul.f32 %v769, %v769
      %v839 = vmul.f32 %v770, %v770
      %v840 = vmul.f32 %v771, %v771
      %v841 = vmul.f32 %v772, %v772
      %v842 = vadd.f32 %v810, %v811
      %v843 = vadd.f32 %v842, %v812
      %v844 = vadd.f32 %v843, %v813
      %v845 = vadd.f32 %v844, %v814
      %v846 = vadd.f32 %v845, %v815
      %v847 = vadd.f32 %v846, %v816
      %v848 = vadd.f32 %v847, %v817
      %v849 = vadd.f32 %v848, %v818
      %v850 = vadd.f32 %v849, %v819
      %v851 = vadd.f32 %v850, %v820
      %v852 = vadd.f32 %v851, %v821
      %v853 = vadd.f32 %v852, %v822
      %v854 = vadd.f32 %v853, %v823
      %v855 = vadd.f32 %v854, %v824
      %v856 = vadd.f32 %v855, %v825
      %v857 = vadd.f32 %v856, %v826
      %v858 = vadd.f32 %v857, %v827
      %v859 = vadd.f32 %v858, %v828
      %v860 = vadd.f32 %v859, %v829
      %v861 = vadd.f32 %v860, %v830
      %v862 = vadd.f32 %v861, %v831
      %v863 = vadd.f32 %v862, %v832
      %v864 = vadd.f32 %v863, %v833
      %v865 = vadd.f32 %v864, %v834
      %v866 = vadd.f32 %v865, %v835
      %v867 = vadd.f32 %v866, %v836
      %v868 = vadd.f32 %v867, %v837
      %v869 = vadd.f32 %v868, %v838
      %v870 = vadd.f32 %v869, %v839
      %v871 = vadd.f32 %v870, %v840
      %v872 = vadd.f32 %v871, %v841
      %v873 = vrot.slane %v872, 4
      %v874 = vadd.f32 %v872, %v873
      %v875 = vrot.slane %v874, 2
      %v876 = vadd.f32 %v874, %v875
      %v877 = vrot.slane %v876, 1
      %v878 = vadd.f32 %v876, %v877
      %vm879 = vcmask 1040384
      %v880 = vsel %vm879, %v809, %v878
      %881 = vst [vmem:[%s233] sm:$0x3] %v880
      %s882 = smul.u32 16, %s20
      %p883 = scmp.lt.s32.totalorder %s19, 1
      %s884 = scalar_select %p883, %s19, 1
      %p885 = scmp.lt.s32.totalorder %s882, 15
      %s886 = scalar_select %p885, %s882, 15
      %s887 = smul.addr %s886, 2
      %s888 = smul.addr %s884, 32
      %s889 = sadd.s32 %s887, %s888
      %s890 = smul.addr %s889, 4
      %s891 = scalar_lea.vmem %s2, %s890
      %p892 = scmp.lt.s32.totalorder %s19, 1
      %s893 = scalar_select %p892, %s19, 1
      %p894 = scmp.lt.s32.totalorder %s20, 0
      %s895 = scalar_select %p894, %s20, 0
      %s896 = sadd.s32 %s895, %s893
      %s897 = smul.addr %s896, 2
      %s898 = scalar_lea.vmem %s3, %s897
      // Predicated region
      $region29: #{double_convolution.3} parent=27 // pred_check
        %p899 = pneg %p96
      $region30: #{double_convolution.3} parent=27 // pred_check_branch
        %901 = sbr.rel (%p899) target = $region32
      $region31: #{double_convolution.3} parent=27 // pred_region
        %s902 = smul.u32 16, %s20
      $region32: #{double_convolution.3} parent=27 // pred_fallthru
        _
      // Predicated region
      $region33: #{double_convolution.3} parent=27 // pred_check
        %p903 = pneg %p124
      $region34: #{double_convolution.3} parent=27 // pred_check_branch
        %905 = sbr.rel (%p903) target = $region36
      $region35: #{double_convolution.3} parent=27 // pred_region
        _
      $region36: #{double_convolution.3} parent=27 // pred_fallthru
        _
    $region28: #{double_convolution.3} parent=5 // pred_fallthru
      _
    %p906 = scmp.le.s32.totalorder 2, %s10
    // Predicated region
    $region37: #{double_convolution.3} parent=5 // pred_check
      %p907 = pneg %p906
    $region38: #{double_convolution.3} parent=5 // pred_check_branch
      %909 = sbr.rel (%p907) target = $region40
    $region39: #{double_convolution.3} parent=5 // pred_region
      %s910 = ssub.s32 %s10, 2
      // Predicated region
      $region41: #{double_convolution.3} parent=39 // pred_check
        %p911 = pneg %p102
      $region42: #{double_convolution.3} parent=39 // pred_check_branch
        %913 = sbr.rel (%p911) target = $region44
      $region43: #{double_convolution.3} parent=39 // pred_region
        %s914 = smul.u32 16, %s22
        %p915 = scmp.lt.s32.totalorder %s21, 1
        %s916 = scalar_select %p915, %s21, 1
        %p917 = scmp.lt.s32.totalorder %s914, 15
        %s918 = scalar_select %p917, %s914, 15
        %s919 = smul.addr %s918, 2
        %s920 = smul.addr %s916, 32
        %s921 = sadd.s32 %s919, %s920
        %s922 = smul.addr %s921, 4
        %s923 = scalar_lea.vmem %s2, %s922
      $region44: #{double_convolution.3} parent=39 // pred_fallthru
        _
      // Predicated region
      $region45: #{double_convolution.3} parent=39 // pred_check
        %p924 = pneg %p130
      $region46: #{double_convolution.3} parent=39 // pred_check_branch
        %926 = sbr.rel (%p924) target = $region48
      $region47: #{double_convolution.3} parent=39 // pred_region
        %p927 = scmp.lt.s32.totalorder %s21, 1
        %s928 = scalar_select %p927, %s21, 1
        %p929 = scmp.lt.s32.totalorder %s22, 0
        %s930 = scalar_select %p929, %s22, 0
        %s931 = sadd.s32 %s930, %s928
        %s932 = smul.addr %s931, 2
        %s933 = scalar_lea.vmem %s3, %s932
      $region48: #{double_convolution.3} parent=39 // pred_fallthru
        _
    $region40: #{double_convolution.3} parent=5 // pred_fallthru
      _
  $region6: #{double_convolution.3} parent=0 // loop_footer
    %s14 = sadd.s32 1, %s10
  $region7: #{double_convolution.3} parent=0 // loop_footer_branch
    %9 = sbr.rel target = $region3
  $region8: #{double_convolution.3} parent=0 // loop_exit
    _

// kernel: double_convolution.4
$region0: #{double_convolution.4}
  #allocation0 [shape = 'u32[]', space=smem, size = 0x4, offset = 0x4, fixed_abs, tag = 'smem constant byte address 0x4 - core index']
  #allocation1 [shape = 'u32[144,128]{1,0:T(1,128)}', space=vmem, size = 0x12000, scoped, tag = 'internal scratch']
  #allocation2 [shape = 'bf16[18,18,128]{2,1,0:T(8,128)(2,1)}', space=vmem, size = 0x1b000, scoped, tag = 'scratch operand']
  %s0 = inlined_call_operand.vmem [shape: bf16[2,16,16,128], index: 0, kind: input, shape index: {}, may-alias: {0,1,2}]
  %s1 = inlined_call_operand.vmem [shape: bf16[2,16,16,128], index: 1, kind: input, shape index: {}, may-alias: {0,1,2}]
  %s2 = inlined_call_operand.vmem [shape: bf16[2,16,16,128], index: 2, kind: input, shape index: {}, may-alias: {0,1,2}]
  %s3 = inlined_call_operand.vmem [shape: f32[1,128], index: 3, kind: input, shape index: {}]
  %s4 = inlined_call_operand.vmem [shape: f32[1,128], index: 4, kind: input, shape index: {}]
  %s5 = inlined_call_operand.vmem [shape: bf16[9,128,128], index: 5, kind: input, shape index: {}]
  %s6 = inlined_call_operand.vmem [shape: bf16[2,16,16,128], index: 6, kind: output, shape index: {0}]
  %s7 = inlined_call_operand.vmem [shape: f32[2,1,2,128], index: 7, kind: output, shape index: {1}]
  %8 = xla_tuple %s6, %s7
  %s9 = sld [smem:[#allocation0]]
  $region65: #{double_convolution.4} parent=0
    _
  %s11 = ssub.s32 1, %s9
  %s12 = scalar_select 0, %s11, %s9
  loop: start=0, step=1, limit=4
  $region2: #{double_convolution.4} parent=0 // loop_pre_header
    _
  $region3: #{double_convolution.4} parent=0 // loop_header
    %s14 = sphi 0, %s18
    %p15 = scmp.ge.s32.totalorder %s14, 4
    %s21 = sphi 0, %s33
    %s22 = sphi 0, %s29
    %s23 = sphi 0, %s21
    %s24 = sphi 0, %s22
    %s25 = sphi 0, %s23
    %s26 = sphi 0, %s24
    %s38 = sphi 0, %s40
    %s41 = sphi 0, %s38
    %s42 = sphi 0, %s41
    %s58 = sphi 0, %s42
    %s74 = sphi 0, %s76
    %s77 = sphi 0, %s74
    %s78 = sphi 0, %s77
    %s94 = sphi 0, %s78
    %s110 = sphi 0, %s112
    %s113 = sphi 0, %s110
    %s114 = sphi 0, %s113
    %s130 = sphi 0, %s114
    %s134 = sphi 0, %s134
    %s136 = sphi 0, %s134
    %s137 = sphi 0, %s136
    %s151 = sphi 0, %s137
    %s155 = sphi 0, %s155
    %s157 = sphi 0, %s155
    %s158 = sphi 0, %s157
    %s172 = sphi 0, %s158
    %s176 = sphi 0, %s176
    %s178 = sphi 0, %s176
    %s179 = sphi 0, %s178
    %s193 = sphi 0, %s179
    %s201 = sphi 0, %s203
    %s204 = sphi 0, %s201
    %s205 = sphi 0, %s204
    %s221 = sphi 0, %s205
    %s229 = sphi 0, %s231
    %s232 = sphi 0, %s229
    %s233 = sphi 0, %s232
    %s249 = sphi 0, %s233
  $region4: #{double_convolution.4} parent=0 // loop_header_branch
    %17 = sbr.rel (%p15) target = $region8
  $region5: #{double_convolution.4} parent=0 // loop_body
    %s19 = ssub.s32 %s14, 1
    %s20 = ssub.s32 %s14, 2
    %s27 = sadd.s32 1, %s22
    %p28 = scmp.ge.s32.totalorder %s27, 1
    %s29 = scalar_select %p28, 0, %s27
    %s30 = sadd.s32 1, %s21
    %s31 = scalar_select %p28, %s30, %s21
    %p32 = scmp.ge.s32.totalorder %s31, 2
    %s33 = scalar_select %p32, 0, %s31
    %s34 = ssub.s32 %s21, %s33
    %s35 = ssub.s32 %s22, %s29
    %s36 = sor.u32 %s34, %s35
    %p37 = scmp.eq.s32.totalorder %s36, 0
    %s39 = sadd.s32 %s38, 1
    %s40 = scalar_select %p37, %s38, %s39
    %p43 = pneg %p37
    %p44 = scmp.eq.s32.totalorder %s14, 1
    %p45 = por %p43, %p44
    %p46 = scmp.ne.s32.totalorder %s38, %s41
    %p47 = scmp.eq.s32.totalorder %s14, 0
    %p48 = por %p46, %p47
    %p49 = scmp.ne.s32.totalorder %s38, %s41
    %p50 = scmp.eq.s32.totalorder %s19, 1
    %p51 = por %p49, %p50
    %p52 = scmp.ne.s32.totalorder %s41, %s42
    %p53 = scmp.eq.s32.totalorder %s19, 0
    %p54 = por %p52, %p53
    %p55 = scmp.ne.s32.totalorder %s41, %s42
    %p56 = scmp.eq.s32.totalorder %s20, 1
    %p57 = por %p55, %p56
    %p59 = scmp.ne.s32.totalorder %s42, %s58
    %p60 = scmp.eq.s32.totalorder %s20, 0
    %p61 = por %p59, %p60
    %s62 = smul.u32 %s22, 16
    %s63 = ssub.s32 %s62, 1
    %p64 = scmp.gt.s32.totalorder %s63, 0
    %s65 = scalar_select %p64, %s63, 0
    %s66 = smul.u32 %s29, 16
    %s67 = ssub.s32 %s66, 1
    %p68 = scmp.gt.s32.totalorder %s67, 0
    %s69 = scalar_select %p68, %s67, 0
    %s70 = ssub.s32 %s21, %s33
    %s71 = ssub.s32 %s65, %s69
    %s72 = sor.u32 %s70, %s71
    %p73 = scmp.eq.s32.totalorder %s72, 0
    %s75 = sadd.s32 %s74, 1
    %s76 = scalar_select %p73, %s74, %s75
    %p79 = pneg %p73
    %p80 = scmp.eq.s32.totalorder %s14, 1
    %p81 = por %p79, %p80
    %p82 = scmp.ne.s32.totalorder %s74, %s77
    %p83 = scmp.eq.s32.totalorder %s14, 0
    %p84 = por %p82, %p83
    %p85 = scmp.ne.s32.totalorder %s74, %s77
    %p86 = scmp.eq.s32.totalorder %s19, 1
    %p87 = por %p85, %p86
    %p88 = scmp.ne.s32.totalorder %s77, %s78
    %p89 = scmp.eq.s32.totalorder %s19, 0
    %p90 = por %p88, %p89
    %p91 = scmp.ne.s32.totalorder %s77, %s78
    %p92 = scmp.eq.s32.totalorder %s20, 1
    %p93 = por %p91, %p92
    %p95 = scmp.ne.s32.totalorder %s78, %s94
    %p96 = scmp.eq.s32.totalorder %s20, 0
    %p97 = por %p95, %p96
    %s98 = sadd.s32 %s22, 1
    %s99 = smul.u32 %s98, 16
    %p100 = scmp.lt.s32.totalorder %s99, 15
    %s101 = scalar_select %p100, %s99, 15
    %s102 = sadd.s32 %s29, 1
    %s103 = smul.u32 %s102, 16
    %p104 = scmp.lt.s32.totalorder %s103, 15
    %s105 = scalar_select %p104, %s103, 15
    %s106 = ssub.s32 %s21, %s33
    %s107 = ssub.s32 %s101, %s105
    %s108 = sor.u32 %s106, %s107
    %p109 = scmp.eq.s32.totalorder %s108, 0
    %s111 = sadd.s32 %s110, 1
    %s112 = scalar_select %p109, %s110, %s111
    %p115 = pneg %p109
    %p116 = scmp.eq.s32.totalorder %s14, 1
    %p117 = por %p115, %p116
    %p118 = scmp.ne.s32.totalorder %s110, %s113
    %p119 = scmp.eq.s32.totalorder %s14, 0
    %p120 = por %p118, %p119
    %p121 = scmp.ne.s32.totalorder %s110, %s113
    %p122 = scmp.eq.s32.totalorder %s19, 1
    %p123 = por %p121, %p122
    %p124 = scmp.ne.s32.totalorder %s113, %s114
    %p125 = scmp.eq.s32.totalorder %s19, 0
    %p126 = por %p124, %p125
    %p127 = scmp.ne.s32.totalorder %s113, %s114
    %p128 = scmp.eq.s32.totalorder %s20, 1
    %p129 = por %p127, %p128
    %p131 = scmp.ne.s32.totalorder %s114, %s130
    %p132 = scmp.eq.s32.totalorder %s20, 0
    %p133 = por %p131, %p132
    %s135 = sadd.s32 %s134, 1
    %p138 = scmp.eq.s32.totalorder %s14, 1
    %p139 = scmp.ne.s32.totalorder %s134, %s136
    %p140 = scmp.eq.s32.totalorder %s14, 0
    %p141 = por %p139, %p140
    %p142 = scmp.ne.s32.totalorder %s134, %s136
    %p143 = scmp.eq.s32.totalorder %s19, 1
    %p144 = por %p142, %p143
    %p145 = scmp.ne.s32.totalorder %s136, %s137
    %p146 = scmp.eq.s32.totalorder %s19, 0
    %p147 = por %p145, %p146
    %p148 = scmp.ne.s32.totalorder %s136, %s137
    %p149 = scmp.eq.s32.totalorder %s20, 1
    %p150 = por %p148, %p149
    %p152 = scmp.ne.s32.totalorder %s137, %s151
    %p153 = scmp.eq.s32.totalorder %s20, 0
    %p154 = por %p152, %p153
    %s156 = sadd.s32 %s155, 1
    %p159 = scmp.eq.s32.totalorder %s14, 1
    %p160 = scmp.ne.s32.totalorder %s155, %s157
    %p161 = scmp.eq.s32.totalorder %s14, 0
    %p162 = por %p160, %p161
    %p163 = scmp.ne.s32.totalorder %s155, %s157
    %p164 = scmp.eq.s32.totalorder %s19, 1
    %p165 = por %p163, %p164
    %p166 = scmp.ne.s32.totalorder %s157, %s158
    %p167 = scmp.eq.s32.totalorder %s19, 0
    %p168 = por %p166, %p167
    %p169 = scmp.ne.s32.totalorder %s157, %s158
    %p170 = scmp.eq.s32.totalorder %s20, 1
    %p171 = por %p169, %p170
    %p173 = scmp.ne.s32.totalorder %s158, %s172
    %p174 = scmp.eq.s32.totalorder %s20, 0
    %p175 = por %p173, %p174
    %s177 = sadd.s32 %s176, 1
    %p180 = scmp.eq.s32.totalorder %s14, 1
    %p181 = scmp.ne.s32.totalorder %s176, %s178
    %p182 = scmp.eq.s32.totalorder %s14, 0
    %p183 = por %p181, %p182
    %p184 = scmp.ne.s32.totalorder %s176, %s178
    %p185 = scmp.eq.s32.totalorder %s19, 1
    %p186 = por %p184, %p185
    %p187 = scmp.ne.s32.totalorder %s178, %s179
    %p188 = scmp.eq.s32.totalorder %s19, 0
    %p189 = por %p187, %p188
    %p190 = scmp.ne.s32.totalorder %s178, %s179
    %p191 = scmp.eq.s32.totalorder %s20, 1
    %p192 = por %p190, %p191
    %p194 = scmp.ne.s32.totalorder %s179, %s193
    %p195 = scmp.eq.s32.totalorder %s20, 0
    %p196 = por %p194, %p195
    %s197 = ssub.s32 %s21, %s33
    %s198 = ssub.s32 %s22, %s29
    %s199 = sor.u32 %s197, %s198
    %p200 = scmp.eq.s32.totalorder %s199, 0
    %s202 = sadd.s32 %s201, 1
    %s203 = scalar_select %p200, %s201, %s202
    %p206 = pneg %p200
    %p207 = scmp.eq.s32.totalorder %s14, 1
    %p208 = por %p206, %p207
    %p209 = scmp.ne.s32.totalorder %s201, %s204
    %p210 = scmp.eq.s32.totalorder %s14, 0
    %p211 = por %p209, %p210
    %p212 = scmp.ne.s32.totalorder %s201, %s204
    %p213 = scmp.eq.s32.totalorder %s19, 1
    %p214 = por %p212, %p213
    %p215 = scmp.ne.s32.totalorder %s204, %s205
    %p216 = scmp.eq.s32.totalorder %s19, 0
    %p217 = por %p215, %p216
    %p218 = scmp.ne.s32.totalorder %s204, %s205
    %p219 = scmp.eq.s32.totalorder %s20, 1
    %p220 = por %p218, %p219
    %p222 = scmp.ne.s32.totalorder %s205, %s221
    %p223 = scmp.eq.s32.totalorder %s20, 0
    %p224 = por %p222, %p223
    %s225 = ssub.s32 %s21, %s33
    %s226 = ssub.s32 %s22, %s29
    %s227 = sor.u32 %s225, %s226
    %p228 = scmp.eq.s32.totalorder %s227, 0
    %s230 = sadd.s32 %s229, 1
    %s231 = scalar_select %p228, %s229, %s230
    %p234 = pneg %p228
    %p235 = scmp.eq.s32.totalorder %s14, 1
    %p236 = por %p234, %p235
    %p237 = scmp.ne.s32.totalorder %s229, %s232
    %p238 = scmp.eq.s32.totalorder %s14, 0
    %p239 = por %p237, %p238
    %p240 = scmp.ne.s32.totalorder %s229, %s232
    %p241 = scmp.eq.s32.totalorder %s19, 1
    %p242 = por %p240, %p241
    %p243 = scmp.ne.s32.totalorder %s232, %s233
    %p244 = scmp.eq.s32.totalorder %s19, 0
    %p245 = por %p243, %p244
    %p246 = scmp.ne.s32.totalorder %s232, %s233
    %p247 = scmp.eq.s32.totalorder %s20, 1
    %p248 = por %p246, %p247
    %p250 = scmp.ne.s32.totalorder %s233, %s249
    %p251 = scmp.eq.s32.totalorder %s20, 0
    %p252 = por %p250, %p251
    %p253 = scmp.le.s32.totalorder 1, %s14
    %p254 = scmp.lt.s32.totalorder %s14, 3
    %p255 = pnand %p253, %p254
    %p256 = pneg %p255
    // Predicated region
    $region9: #{double_convolution.4} parent=5 // pred_check
      _
    $region10: #{double_convolution.4} parent=5 // pred_check_branch
      %258 = sbr.rel (%p255) target = $region12
    $region11: #{double_convolution.4} parent=5 // pred_region
      %s259 = ssub.s32 %s14, 1
      // Predicated region
      $region13: #{double_convolution.4} parent=11 // pred_check
        %p260 = pneg %p147
      $region14: #{double_convolution.4} parent=11 // pred_check_branch
        %262 = sbr.rel (%p260) target = $region16
      $region15: #{double_convolution.4} parent=11 // pred_region
        _
      $region16: #{double_convolution.4} parent=11 // pred_fallthru
        _
      // Predicated region
      $region17: #{double_convolution.4} parent=11 // pred_check
        %p263 = pneg %p168
      $region18: #{double_convolution.4} parent=11 // pred_check_branch
        %265 = sbr.rel (%p263) target = $region20
      $region19: #{double_convolution.4} parent=11 // pred_region
        _
      $region20: #{double_convolution.4} parent=11 // pred_fallthru
        _
      // Predicated region
      $region21: #{double_convolution.4} parent=11 // pred_check
        %p266 = pneg %p189
      $region22: #{double_convolution.4} parent=11 // pred_check_branch
        %268 = sbr.rel (%p266) target = $region24
      $region23: #{double_convolution.4} parent=11 // pred_region
        _
      $region24: #{double_convolution.4} parent=11 // pred_fallthru
        _
    $region12: #{double_convolution.4} parent=5 // pred_fallthru
      _
    %p269 = scmp.lt.s32.totalorder %s14, 2
    // Predicated region
    $region25: #{double_convolution.4} parent=5 // pred_check
      %p270 = pneg %p269
    $region26: #{double_convolution.4} parent=5 // pred_check_branch
      %272 = sbr.rel (%p270) target = $region28
    $region27: #{double_convolution.4} parent=5 // pred_region
      // Predicated region
      $region29: #{double_convolution.4} parent=27 // pred_check
        %p273 = pneg %p48
      $region30: #{double_convolution.4} parent=27 // pred_check_branch
        %275 = sbr.rel (%p273) target = $region32
      $region31: #{double_convolution.4} parent=27 // pred_region
        %s276 = smul.u32 16, %s22
        %p277 = scmp.lt.s32.totalorder %s21, 1
        %s278 = scalar_select %p277, %s21, 1
        %p279 = scmp.lt.s32.totalorder %s276, 15
        %s280 = scalar_select %p279, %s276, 15
        %s281 = smul.addr %s280, 2
        %s282 = smul.addr %s278, 32
        %s283 = sadd.s32 %s281, %s282
        %s284 = smul.addr %s283, 4
        %s285 = scalar_lea.vmem %s0, %s284
        %s286 = smul.u32 16, %s22
      $region32: #{double_convolution.4} parent=27 // pred_fallthru
        _
      // Predicated region
      $region33: #{double_convolution.4} parent=27 // pred_check
        %p287 = pneg %p84
      $region34: #{double_convolution.4} parent=27 // pred_check_branch
        %289 = sbr.rel (%p287) target = $region36
      $region35: #{double_convolution.4} parent=27 // pred_region
        %s290 = smul.u32 %s22, 16
        %s291 = ssub.s32 %s290, 1
        %p292 = scmp.gt.s32.totalorder %s291, 0
        %s293 = scalar_select %p292, %s291, 0
        %p294 = scmp.lt.s32.totalorder %s21, 1
        %s295 = scalar_select %p294, %s21, 1
        %p296 = scmp.lt.s32.totalorder %s293, 15
        %s297 = scalar_select %p296, %s293, 15
        %s298 = smul.addr %s297, 2
        %s299 = smul.addr %s295, 32
        %s300 = sadd.s32 %s298, %s299
        %s301 = smul.addr %s300, 4
        %s302 = scalar_lea.vmem %s1, %s301
        %s303 = smul.u32 %s22, 16
        %s304 = ssub.s32 %s303, 1
        %p305 = scmp.gt.s32.totalorder %s304, 0
        %s306 = scalar_select %p305, %s304, 0
      $region36: #{double_convolution.4} parent=27 // pred_fallthru
        _
      // Predicated region
      $region37: #{double_convolution.4} parent=27 // pred_check
        %p307 = pneg %p120
      $region38: #{double_convolution.4} parent=27 // pred_check_branch
        %309 = sbr.rel (%p307) target = $region40
      $region39: #{double_convolution.4} parent=27 // pred_region
        %s310 = sadd.s32 %s22, 1
        %s311 = smul.u32 %s310, 16
        %p312 = scmp.lt.s32.totalorder %s311, 15
        %s313 = scalar_select %p312, %s311, 15
        %p314 = scmp.lt.s32.totalorder %s21, 1
        %s315 = scalar_select %p314, %s21, 1
        %p316 = scmp.lt.s32.totalorder %s313, 15
        %s317 = scalar_select %p316, %s313, 15
        %s318 = smul.addr %s317, 2
        %s319 = smul.addr %s315, 32
        %s320 = sadd.s32 %s318, %s319
        %s321 = smul.addr %s320, 4
        %s322 = scalar_lea.vmem %s2, %s321
        %s323 = sadd.s32 %s22, 1
        %s324 = smul.u32 %s323, 16
        %p325 = scmp.lt.s32.totalorder %s324, 15
        %s326 = scalar_select %p325, %s324, 15
      $region40: #{double_convolution.4} parent=27 // pred_fallthru
        _
    $region28: #{double_convolution.4} parent=5 // pred_fallthru
      _
    %p327 = scmp.le.s32.totalorder 1, %s14
    %p328 = scmp.lt.s32.totalorder %s14, 3
    %p329 = pnand %p327, %p328
    %p330 = pneg %p329
    // Predicated region
    $region41: #{double_convolution.4} parent=5 // pred_check
      _
    $region42: #{double_convolution.4} parent=5 // pred_check_branch
      %332 = sbr.rel (%p329) target = $region44
    $region43: #{double_convolution.4} parent=5 // pred_region
      %s333 = ssub.s32 %s14, 1
      %s334 = smul.u32 16, %s24
      %p335 = scmp.lt.s32.totalorder %s23, 1
      %s336 = scalar_select %p335, %s23, 1
      %p337 = scmp.lt.s32.totalorder %s334, 15
      %s338 = scalar_select %p337, %s334, 15
      %s339 = smul.addr %s338, 2
      %s340 = smul.addr %s336, 32
      %s341 = sadd.s32 %s339, %s340
      %s342 = smul.addr %s341, 4
      %s343 = scalar_lea.vmem %s0, %s342
      %p344 = pneg %p54
      %p345 = pneg %p51
      %s346 = smul.u32 %s24, 16
      %s347 = ssub.s32 %s346, 1
      %p348 = scmp.gt.s32.totalorder %s347, 0
      %s349 = scalar_select %p348, %s347, 0
      %p350 = scmp.lt.s32.totalorder %s23, 1
      %s351 = scalar_select %p350, %s23, 1
      %p352 = scmp.lt.s32.totalorder %s349, 15
      %s353 = scalar_select %p352, %s349, 15
      %s354 = smul.addr %s353, 2
      %s355 = smul.addr %s351, 32
      %s356 = sadd.s32 %s354, %s355
      %s357 = smul.addr %s356, 4
      %s358 = scalar_lea.vmem %s1, %s357
      %p359 = pneg %p90
      %p360 = pneg %p87
      %s361 = sadd.s32 %s24, 1
      %s362 = smul.u32 %s361, 16
      %p363 = scmp.lt.s32.totalorder %s362, 15
      %s364 = scalar_select %p363, %s362, 15
      %p365 = scmp.lt.s32.totalorder %s23, 1
      %s366 = scalar_select %p365, %s23, 1
      %p367 = scmp.lt.s32.totalorder %s364, 15
      %s368 = scalar_select %p367, %s364, 15
      %s369 = smul.addr %s368, 2
      %s370 = smul.addr %s366, 32
      %s371 = sadd.s32 %s369, %s370
      %s372 = smul.addr %s371, 4
      %s373 = scalar_lea.vmem %s2, %s372
      %p374 = pneg %p126
      %p375 = pneg %p123
      %p376 = pneg %p147
      %p377 = pneg %p144
      %p378 = pneg %p168
      %p379 = pneg %p165
      %p380 = pneg %p189
      %p381 = pneg %p186
      %p382 = pneg %p217
      %p383 = pneg %p214
      %s384 = smul.u32 16, %s24
      %p385 = scmp.lt.s32.totalorder %s23, 1
      %s386 = scalar_select %p385, %s23, 1
      %p387 = scmp.lt.s32.totalorder %s384, 15
      %s388 = scalar_select %p387, %s384, 15
      %s389 = smul.addr %s388, 2
      %s390 = smul.addr %s386, 32
      %s391 = sadd.s32 %s389, %s390
      %s392 = smul.addr %s391, 4
      %s393 = scalar_lea.vmem %s6, %s392
      %p394 = pneg %p245
      %p395 = pneg %p242
      %p396 = scmp.lt.s32.totalorder %s23, 1
      %s397 = scalar_select %p396, %s23, 1
      %p398 = scmp.lt.s32.totalorder %s24, 0
      %s399 = scalar_select %p398, %s24, 0
      %s400 = sadd.s32 %s399, %s397
      %s401 = smul.addr %s400, 2
      %s402 = scalar_lea.vmem %s7, %s401
      %s403 = smul.u32 16, %s24
      %p404 = scmp.lt.s32.totalorder %s23, 1
      %s405 = scalar_select %p404, %s23, 1
      %p406 = scmp.lt.s32.totalorder %s403, 15
      %s407 = scalar_select %p406, %s403, 15
      %s408 = smul.addr %s407, 2
      %s409 = smul.addr %s405, 32
      %s410 = sadd.s32 %s408, %s409
      %s411 = smul.addr %s410, 4
      %s412 = scalar_lea.vmem %s0, %s411
      %s413 = smul.u32 16, %s24
      %s414 = smul.u32 %s24, 16
      %s415 = ssub.s32 %s414, 1
      %p416 = scmp.gt.s32.totalorder %s415, 0
      %s417 = scalar_select %p416, %s415, 0
      %p418 = scmp.lt.s32.totalorder %s23, 1
      %s419 = scalar_select %p418, %s23, 1
      %p420 = scmp.lt.s32.totalorder %s417, 15
      %s421 = scalar_select %p420, %s417, 15
      %s422 = smul.addr %s421, 2
      %s423 = smul.addr %s419, 32
      %s424 = sadd.s32 %s422, %s423
      %s425 = smul.addr %s424, 4
      %s426 = scalar_lea.vmem %s1, %s425
      %s427 = smul.u32 %s24, 16
      %s428 = ssub.s32 %s427, 1
      %p429 = scmp.gt.s32.totalorder %s428, 0
      %s430 = scalar_select %p429, %s428, 0
      %s431 = sadd.s32 %s24, 1
      %s432 = smul.u32 %s431, 16
      %p433 = scmp.lt.s32.totalorder %s432, 15
      %s434 = scalar_select %p433, %s432, 15
      %p435 = scmp.lt.s32.totalorder %s23, 1
      %s436 = scalar_select %p435, %s23, 1
      %p437 = scmp.lt.s32.totalorder %s434, 15
      %s438 = scalar_select %p437, %s434, 15
      %s439 = smul.addr %s438, 2
      %s440 = smul.addr %s436, 32
      %s441 = sadd.s32 %s439, %s440
      %s442 = smul.addr %s441, 4
      %s443 = scalar_lea.vmem %s2, %s442
      %s444 = sadd.s32 %s24, 1
      %s445 = smul.u32 %s444, 16
      %p446 = scmp.lt.s32.totalorder %s445, 15
      %s447 = scalar_select %p446, %s445, 15
      %s448 = smul.u32 16, %s24
      %p449 = scmp.lt.s32.totalorder %s23, 1
      %s450 = scalar_select %p449, %s23, 1
      %p451 = scmp.lt.s32.totalorder %s448, 15
      %s452 = scalar_select %p451, %s448, 15
      %s453 = smul.addr %s452, 2
      %s454 = smul.addr %s450, 32
      %s455 = sadd.s32 %s453, %s454
      %s456 = smul.addr %s455, 4
      %s457 = scalar_lea.vmem %s6, %s456
      %s458 = smul.u32 16, %s24
      %p459 = scmp.lt.s32.totalorder %s23, 1
      %s460 = scalar_select %p459, %s23, 1
      %p461 = scmp.lt.s32.totalorder %s24, 0
      %s462 = scalar_select %p461, %s24, 0
      %s463 = sadd.s32 %s462, %s460
      %s464 = smul.addr %s463, 2
      %s465 = scalar_lea.vmem %s7, %s464
      %v467 = vld [vmem:[%s3] sm:$0x1]
      %v468 = vld [vmem:[%s4] sm:$0x1]
      %vm469 = vcmask 1040384
      %vm470 = vsmask.f32 256
      %vm471 = vmand %vm469, %vm470
      %v472 = vld [vmem:[#allocation2] sm:$0x1]
      %v473 = vsel %vm471, 0, %v472
      %474 = vst [vmem:[#allocation2] sm:$0x1] %v473
      %v475 = vld [vmem:[#allocation2 + $0xc] sm:$0x1]
      %v476 = vsel %vm471, 0, %v475
      %477 = vst [vmem:[#allocation2 + $0xc] sm:$0x1] %v476
      %v478 = vld [vmem:[#allocation2 + $0x18] sm:$0x1]
      %v479 = vsel %vm471, 0, %v478
      %480 = vst [vmem:[#allocation2 + $0x18] sm:$0x1] %v479
      %v481 = vld [vmem:[#allocation2 + $0x24] sm:$0x1]
      %v482 = vsel %vm471, 0, %v481
      %483 = vst [vmem:[#allocation2 + $0x24] sm:$0x1] %v482
      %v484 = vld [vmem:[#allocation2 + $0x30] sm:$0x1]
      %v485 = vsel %vm471, 0, %v484
      %486 = vst [vmem:[#allocation2 + $0x30] sm:$0x1] %v485
      %v487 = vld [vmem:[#allocation2 + $0x3c] sm:$0x1]
      %v488 = vsel %vm471, 0, %v487
      %489 = vst [vmem:[#allocation2 + $0x3c] sm:$0x1] %v488
      %v490 = vld [vmem:[#allocation2 + $0x48] sm:$0x1]
      %v491 = vsel %vm471, 0, %v490
      %492 = vst [vmem:[#allocation2 + $0x48] sm:$0x1] %v491
      %v493 = vld [vmem:[#allocation2 + $0x54] sm:$0x1]
      %v494 = vsel %vm471, 0, %v493
      %495 = vst [vmem:[#allocation2 + $0x54] sm:$0x1] %v494
      %v496 = vld [vmem:[#allocation2 + $0x60] sm:$0x1]
      %v497 = vsel %vm471, 0, %v496
      %498 = vst [vmem:[#allocation2 + $0x60] sm:$0x1] %v497
      %v499 = vld [vmem:[#allocation2 + $0x6c] sm:$0x1]
      %v500 = vsel %vm471, 0, %v499
      %501 = vst [vmem:[#allocation2 + $0x6c] sm:$0x1] %v500
      %v502 = vld [vmem:[#allocation2 + $0x78] sm:$0x1]
      %v503 = vsel %vm471, 0, %v502
      %504 = vst [vmem:[#allocation2 + $0x78] sm:$0x1] %v503
      %v505 = vld [vmem:[#allocation2 + $0x84] sm:$0x1]
      %v506 = vsel %vm471, 0, %v505
      %507 = vst [vmem:[#allocation2 + $0x84] sm:$0x1] %v506
      %v508 = vld [vmem:[#allocation2 + $0x90] sm:$0x1]
      %v509 = vsel %vm471, 0, %v508
      %510 = vst [vmem:[#allocation2 + $0x90] sm:$0x1] %v509
      %v511 = vld [vmem:[#allocation2 + $0x9c] sm:$0x1]
      %v512 = vsel %vm471, 0, %v511
      %513 = vst [vmem:[#allocation2 + $0x9c] sm:$0x1] %v512
      %v514 = vld [vmem:[#allocation2 + $0xa8] sm:$0x1]
      %v515 = vsel %vm471, 0, %v514
      %516 = vst [vmem:[#allocation2 + $0xa8] sm:$0x1] %v515
      %v517 = vld [vmem:[#allocation2 + $0xb4] sm:$0x1]
      %v518 = vsel %vm471, 0, %v517
      %519 = vst [vmem:[#allocation2 + $0xb4] sm:$0x1] %v518
      %v520 = vld [vmem:[#allocation2 + $0xc0] sm:$0x1]
      %v521 = vsel %vm471, 0, %v520
      %522 = vst [vmem:[#allocation2 + $0xc0] sm:$0x1] %v521
      %v523 = vld [vmem:[#allocation2 + $0xcc] sm:$0x1]
      %v524 = vsel %vm471, 0, %v523
      %525 = vst [vmem:[#allocation2 + $0xcc] sm:$0x1] %v524
      %vm526 = vsmask.f32 7938
      %vm527 = vmand %vm469, %vm526
      %v528 = vld [vmem:[#allocation2 + $0x8] sm:$0x1]
      %v529 = vsel %vm527, 0, %v528
      %530 = vst [vmem:[#allocation2 + $0x8] sm:$0x1] %v529
      %v531 = vld [vmem:[#allocation2 + $0x14] sm:$0x1]
      %v532 = vsel %vm527, 0, %v531
      %533 = vst [vmem:[#allocation2 + $0x14] sm:$0x1] %v532
      %v534 = vld [vmem:[#allocation2 + $0x20] sm:$0x1]
      %v535 = vsel %vm527, 0, %v534
      %536 = vst [vmem:[#allocation2 + $0x20] sm:$0x1] %v535
      %v537 = vld [vmem:[#allocation2 + $0x2c] sm:$0x1]
      %v538 = vsel %vm527, 0, %v537
      %539 = vst [vmem:[#allocation2 + $0x2c] sm:$0x1] %v538
      %v540 = vld [vmem:[#allocation2 + $0x38] sm:$0x1]
      %v541 = vsel %vm527, 0, %v540
      %542 = vst [vmem:[#allocation2 + $0x38] sm:$0x1] %v541
      %v543 = vld [vmem:[#allocation2 + $0x44] sm:$0x1]
      %v544 = vsel %vm527, 0, %v543
      %545 = vst [vmem:[#allocation2 + $0x44] sm:$0x1] %v544
      %v546 = vld [vmem:[#allocation2 + $0x50] sm:$0x1]
      %v547 = vsel %vm527, 0, %v546
      %548 = vst [vmem:[#allocation2 + $0x50] sm:$0x1] %v547
      %v549 = vld [vmem:[#allocation2 + $0x5c] sm:$0x1]
      %v550 = vsel %vm527, 0, %v549
      %551 = vst [vmem:[#allocation2 + $0x5c] sm:$0x1] %v550
      %v552 = vld [vmem:[#allocation2 + $0x68] sm:$0x1]
      %v553 = vsel %vm527, 0, %v552
      %554 = vst [vmem:[#allocation2 + $0x68] sm:$0x1] %v553
      %v555 = vld [vmem:[#allocation2 + $0x74] sm:$0x1]
      %v556 = vsel %vm527, 0, %v555
      %557 = vst [vmem:[#allocation2 + $0x74] sm:$0x1] %v556
      %v558 = vld [vmem:[#allocation2 + $0x80] sm:$0x1]
      %v559 = vsel %vm527, 0, %v558
      %560 = vst [vmem:[#allocation2 + $0x80] sm:$0x1] %v559
      %v561 = vld [vmem:[#allocation2 + $0x8c] sm:$0x1]
      %v562 = vsel %vm527, 0, %v561
      %563 = vst [vmem:[#allocation2 + $0x8c] sm:$0x1] %v562
      %v564 = vld [vmem:[#allocation2 + $0x98] sm:$0x1]
      %v565 = vsel %vm527, 0, %v564
      %566 = vst [vmem:[#allocation2 + $0x98] sm:$0x1] %v565
      %v567 = vld [vmem:[#allocation2 + $0xa4] sm:$0x1]
      %v568 = vsel %vm527, 0, %v567
      %569 = vst [vmem:[#allocation2 + $0xa4] sm:$0x1] %v568
      %v570 = vld [vmem:[#allocation2 + $0xb0] sm:$0x1]
      %v571 = vsel %vm527, 0, %v570
      %572 = vst [vmem:[#allocation2 + $0xb0] sm:$0x1] %v571
      %v573 = vld [vmem:[#allocation2 + $0xbc] sm:$0x1]
      %v574 = vsel %vm527, 0, %v573
      %575 = vst [vmem:[#allocation2 + $0xbc] sm:$0x1] %v574
      %v576 = vld [vmem:[#allocation2 + $0xc8] sm:$0x1]
      %v577 = vsel %vm527, 0, %v576
      %578 = vst [vmem:[#allocation2 + $0xc8] sm:$0x1] %v577
      %v579 = vld [vmem:[#allocation2 + $0xd4] sm:$0x1]
      %v580 = vsel %vm527, 0, %v579
      %581 = vst [vmem:[#allocation2 + $0xd4] sm:$0x1] %v580
      %v582 = vld [vmem:[%s412] sm:$0xf]
      %v583 = vld [vmem:[%s412 + $0x4] sm:$0xf]
      %v584 = vld [vmem:[%s412 + $0x8] sm:$0xf]
      %v585 = vld [vmem:[%s412 + $0xc] sm:$0xf]
      %v586 = vld [vmem:[%s412 + $0x10] sm:$0xf]
      %v587 = vld [vmem:[%s412 + $0x14] sm:$0xf]
      %v588 = vld [vmem:[%s412 + $0x18] sm:$0xf]
      %v589 = vld [vmem:[%s412 + $0x1c] sm:$0xf]
      %v590 = vld [vmem:[%s412 + $0x20] sm:$0xf]
      %v591 = vld [vmem:[%s412 + $0x24] sm:$0xf]
      %v592 = vld [vmem:[%s412 + $0x28] sm:$0xf]
      %v593 = vld [vmem:[%s412 + $0x2c] sm:$0xf]
      %v594 = vld [vmem:[%s412 + $0x30] sm:$0xf]
      %v595 = vld [vmem:[%s412 + $0x34] sm:$0xf]
      %v596 = vld [vmem:[%s412 + $0x38] sm:$0xf]
      %v597 = vld [vmem:[%s412 + $0x3c] sm:$0xf]
      %v598 = vld [vmem:[%s412 + $0x40] sm:$0xf]
      %v599 = vld [vmem:[%s412 + $0x44] sm:$0xf]
      %v600 = vld [vmem:[%s412 + $0x48] sm:$0xf]
      %v601 = vld [vmem:[%s412 + $0x4c] sm:$0xf]
      %v602 = vld [vmem:[%s412 + $0x50] sm:$0xf]
      %v603 = vld [vmem:[%s412 + $0x54] sm:$0xf]
      %v604 = vld [vmem:[%s412 + $0x58] sm:$0xf]
      %v605 = vld [vmem:[%s412 + $0x5c] sm:$0xf]
      %v606 = vld [vmem:[%s412 + $0x60] sm:$0xf]
      %v607 = vld [vmem:[%s412 + $0x64] sm:$0xf]
      %v608 = vld [vmem:[%s412 + $0x68] sm:$0xf]
      %v609 = vld [vmem:[%s412 + $0x6c] sm:$0xf]
      %v610 = vld [vmem:[%s412 + $0x70] sm:$0xf]
      %v611 = vld [vmem:[%s412 + $0x74] sm:$0xf]
      %v612 = vld [vmem:[%s412 + $0x78] sm:$0xf]
      %v613 = vld [vmem:[%s412 + $0x7c] sm:$0xf]
      %v614 = vunpack.c.l.bf16 %v582
      %v615 = vunpack.c.l.bf16 %v583
      %v616 = vunpack.c.l.bf16 %v584
      %v617 = vunpack.c.l.bf16 %v585
      %v618 = vunpack.c.l.bf16 %v586
      %v619 = vunpack.c.l.bf16 %v587
      %v620 = vunpack.c.l.bf16 %v588
      %v621 = vunpack.c.l.bf16 %v589
      %v622 = vunpack.c.l.bf16 %v590
      %v623 = vunpack.c.l.bf16 %v591
      %v624 = vunpack.c.l.bf16 %v592
      %v625 = vunpack.c.l.bf16 %v593
      %v626 = vunpack.c.l.bf16 %v594
      %v627 = vunpack.c.l.bf16 %v595
      %v628 = vunpack.c.l.bf16 %v596
      %v629 = vunpack.c.l.bf16 %v597
      %v630 = vunpack.c.l.bf16 %v598
      %v631 = vunpack.c.l.bf16 %v599
      %v632 = vunpack.c.l.bf16 %v600
      %v633 = vunpack.c.l.bf16 %v601
      %v634 = vunpack.c.l.bf16 %v602
      %v635 = vunpack.c.l.bf16 %v603
      %v636 = vunpack.c.l.bf16 %v604
      %v637 = vunpack.c.l.bf16 %v605
      %v638 = vunpack.c.l.bf16 %v606
      %v639 = vunpack.c.l.bf16 %v607
      %v640 = vunpack.c.l.bf16 %v608
      %v641 = vunpack.c.l.bf16 %v609
      %v642 = vunpack.c.l.bf16 %v610
      %v643 = vunpack.c.l.bf16 %v611
      %v644 = vunpack.c.l.bf16 %v612
      %v645 = vunpack.c.l.bf16 %v613
      %v647 = vlaneseq
      %v648 = vshrl.u32 %v647, 7
      %v649 = vsub.s32 0, %v648
      %v650 = vrot.slane %v467, %v649
      %v652 = vmul.f32 %v614, %v650
      %v653 = vmul.f32 %v615, %v650
      %v654 = vmul.f32 %v616, %v650
      %v655 = vmul.f32 %v617, %v650
      %v656 = vmul.f32 %v618, %v650
      %v657 = vmul.f32 %v619, %v650
      %v658 = vmul.f32 %v620, %v650
      %v659 = vmul.f32 %v621, %v650
      %v660 = vmul.f32 %v622, %v650
      %v661 = vmul.f32 %v623, %v650
      %v662 = vmul.f32 %v624, %v650
      %v663 = vmul.f32 %v625, %v650
      %v664 = vmul.f32 %v626, %v650
      %v665 = vmul.f32 %v627, %v650
      %v666 = vmul.f32 %v628, %v650
      %v667 = vmul.f32 %v629, %v650
      %v668 = vmul.f32 %v630, %v650
      %v669 = vmul.f32 %v631, %v650
      %v670 = vmul.f32 %v632, %v650
      %v671 = vmul.f32 %v633, %v650
      %v672 = vmul.f32 %v634, %v650
      %v673 = vmul.f32 %v635, %v650
      %v674 = vmul.f32 %v636, %v650
      %v675 = vmul.f32 %v637, %v650
      %v676 = vmul.f32 %v638, %v650
      %v677 = vmul.f32 %v639, %v650
      %v678 = vmul.f32 %v640, %v650
      %v679 = vmul.f32 %v641, %v650
      %v680 = vmul.f32 %v642, %v650
      %v681 = vmul.f32 %v643, %v650
      %v682 = vmul.f32 %v644, %v650
      %v683 = vmul.f32 %v645, %v650
      %v685 = vlaneseq
      %v686 = vshrl.u32 %v685, 7
      %v687 = vsub.s32 0, %v686
      %v688 = vrot.slane %v468, %v687
      %v690 = vadd.f32 %v652, %v688
      %v691 = vadd.f32 %v653, %v688
      %v692 = vadd.f32 %v654, %v688
      %v693 = vadd.f32 %v655, %v688
      %v694 = vadd.f32 %v656, %v688
      %v695 = vadd.f32 %v657, %v688
      %v696 = vadd.f32 %v658, %v688
      %v697 = vadd.f32 %v659, %v688
      %v698 = vadd.f32 %v660, %v688
      %v699 = vadd.f32 %v661, %v688
      %v700 = vadd.f32 %v662, %v688
      %v701 = vadd.f32 %v663, %v688
      %v702 = vadd.f32 %v664, %v688
      %v703 = vadd.f32 %v665, %v688
      %v704 = vadd.f32 %v666, %v688
      %v705 = vadd.f32 %v667, %v688
      %v706 = vadd.f32 %v668, %v688
      %v707 = vadd.f32 %v669, %v688
      %v708 = vadd.f32 %v670, %v688
      %v709 = vadd.f32 %v671, %v688
      %v710 = vadd.f32 %v672, %v688
      %v711 = vadd.f32 %v673, %v688
      %v712 = vadd.f32 %v674, %v688
      %v713 = vadd.f32 %v675, %v688
      %v714 = vadd.f32 %v676, %v688
      %v715 = vadd.f32 %v677, %v688
      %v716 = vadd.f32 %v678, %v688
      %v717 = vadd.f32 %v679, %v688
      %v718 = vadd.f32 %v680, %v688
      %v719 = vadd.f32 %v681, %v688
      %v720 = vadd.f32 %v682, %v688
      %v721 = vadd.f32 %v683, %v688
      %v722 = vmax.f32 %v690, 0.0
      %v723 = vmax.f32 %v691, 0.0
      %v724 = vmax.f32 %v692, 0.0
      %v725 = vmax.f32 %v693, 0.0
      %v726 = vmax.f32 %v694, 0.0
      %v727 = vmax.f32 %v695, 0.0
      %v728 = vmax.f32 %v696, 0.0
      %v729 = vmax.f32 %v697, 0.0
      %v730 = vmax.f32 %v698, 0.0
      %v731 = vmax.f32 %v699, 0.0
      %v732 = vmax.f32 %v700, 0.0
      %v733 = vmax.f32 %v701, 0.0
      %v734 = vmax.f32 %v702, 0.0
      %v735 = vmax.f32 %v703, 0.0
      %v736 = vmax.f32 %v704, 0.0
      %v737 = vmax.f32 %v705, 0.0
      %v738 = vmax.f32 %v706, 0.0
      %v739 = vmax.f32 %v707, 0.0
      %v740 = vmax.f32 %v708, 0.0
      %v741 = vmax.f32 %v709, 0.0
      %v742 = vmax.f32 %v710, 0.0
      %v743 = vmax.f32 %v711, 0.0
      %v744 = vmax.f32 %v712, 0.0
      %v745 = vmax.f32 %v713, 0.0
      %v746 = vmax.f32 %v714, 0.0
      %v747 = vmax.f32 %v715, 0.0
      %v748 = vmax.f32 %v716, 0.0
      %v749 = vmax.f32 %v717, 0.0
      %v750 = vmax.f32 %v718, 0.0
      %v751 = vmax.f32 %v719, 0.0
      %v752 = vmax.f32 %v720, 0.0
      %v753 = vmax.f32 %v721, 0.0
      %v754 = vpack.c.bf16 %v723, %v722
      %v755 = vpack.c.bf16 %v725, %v724
      %v756 = vpack.c.bf16 %v727, %v726
      %v757 = vpack.c.bf16 %v729, %v728
      %v758 = vpack.c.bf16 %v731, %v730
      %v759 = vpack.c.bf16 %v733, %v732
      %v760 = vpack.c.bf16 %v735, %v734
      %v761 = vpack.c.bf16 %v737, %v736
      %v762 = vpack.c.bf16 %v739, %v738
      %v763 = vpack.c.bf16 %v741, %v740
      %v764 = vpack.c.bf16 %v743, %v742
      %v765 = vpack.c.bf16 %v745, %v744
      %v766 = vpack.c.bf16 %v747, %v746
      %v767 = vpack.c.bf16 %v749, %v748
      %v768 = vpack.c.bf16 %v751, %v750
      %v769 = vpack.c.bf16 %v753, %v752
      %v786 = vunpack.c.l.b16 %v754
      %v787 = vunpack.c.h.b16 %v754
      %v788 = vunpack.c.l.b16 %v755
      %v789 = vunpack.c.h.b16 %v755
      %v790 = vunpack.c.l.b16 %v756
      %v791 = vunpack.c.h.b16 %v756
      %v792 = vunpack.c.l.b16 %v757
      %v793 = vunpack.c.h.b16 %v757
      %v794 = vunpack.c.l.b16 %v758
      %v795 = vunpack.c.h.b16 %v758
      %v796 = vunpack.c.l.b16 %v759
      %v797 = vunpack.c.h.b16 %v759
      %v798 = vunpack.c.l.b16 %v760
      %v799 = vunpack.c.h.b16 %v760
      %v800 = vunpack.c.l.b16 %v761
      %v801 = vunpack.c.h.b16 %v761
      %v802 = vunpack.c.l.b16 %v762
      %v803 = vunpack.c.h.b16 %v762
      %v804 = vunpack.c.l.b16 %v763
      %v805 = vunpack.c.h.b16 %v763
      %v806 = vunpack.c.l.b16 %v764
      %v807 = vunpack.c.h.b16 %v764
      %v808 = vunpack.c.l.b16 %v765
      %v809 = vunpack.c.h.b16 %v765
      %v810 = vunpack.c.l.b16 %v766
      %v811 = vunpack.c.h.b16 %v766
      %v812 = vunpack.c.l.b16 %v767
      %v813 = vunpack.c.h.b16 %v767
      %v814 = vunpack.c.l.b16 %v768
      %v815 = vunpack.c.h.b16 %v768
      %v816 = vunpack.c.l.b16 %v769
      %v817 = vunpack.c.h.b16 %v769
      %v818 = vpack.c.b16 %v786, %v786
      %v819 = vpack.c.b16 %v787, %v787
      %v820 = vpack.c.b16 %v788, %v788
      %v821 = vpack.c.b16 %v789, %v789
      %v822 = vpack.c.b16 %v790, %v790
      %v823 = vpack.c.b16 %v791, %v791
      %v824 = vpack.c.b16 %v792, %v792
      %v825 = vpack.c.b16 %v793, %v793
      %v826 = vpack.c.b16 %v794, %v794
      %v827 = vpack.c.b16 %v795, %v795
      %v828 = vpack.c.b16 %v796, %v796
      %v829 = vpack.c.b16 %v797, %v797
      %v830 = vpack.c.b16 %v798, %v798
      %v831 = vpack.c.b16 %v799, %v799
      %v832 = vpack.c.b16 %v800, %v800
      %v833 = vpack.c.b16 %v801, %v801
      %v834 = vpack.c.b16 %v802, %v802
      %v835 = vpack.c.b16 %v803, %v803
      %v836 = vpack.c.b16 %v804, %v804
      %v837 = vpack.c.b16 %v805, %v805
      %v838 = vpack.c.b16 %v806, %v806
      %v839 = vpack.c.b16 %v807, %v807
      %v840 = vpack.c.b16 %v808, %v808
      %v841 = vpack.c.b16 %v809, %v809
      %v842 = vpack.c.b16 %v810, %v810
      %v843 = vpack.c.b16 %v811, %v811
      %v844 = vpack.c.b16 %v812, %v812
      %v845 = vpack.c.b16 %v813, %v813
      %v846 = vpack.c.b16 %v814, %v814
      %v847 = vpack.c.b16 %v815, %v815
      %v848 = vpack.c.b16 %v816, %v816
      %v849 = vpack.c.b16 %v817, %v817
      %vm850 = vsmask.f32 4368
      %vm851 = vmor %vm470, %vm850
      %v853 = vshrl.u32 %v818, 16
      %v855 = vrot.slane %v853, 7
      %v856 = vshll.u32 %v818, 16
      %v858 = vor.u32 %v855, %v856
      %v859 = vrot.slane %v855, 4
      %v861 = vshrl.u32 %v819, 16
      %v863 = vrot.slane %v861, 7
      %v864 = vshll.u32 %v819, 16
      %v866 = vor.u32 %v863, %v864
      %v867 = vsel %vm851, %v859, %v866
      %v868 = vrot.slane %v863, 4
      %v870 = vshrl.u32 %v820, 16
      %v872 = vrot.slane %v870, 7
      %v873 = vshll.u32 %v820, 16
      %v875 = vor.u32 %v872, %v873
      %v876 = vrot.slane %v872, 4
      %v878 = vshrl.u32 %v821, 16
      %v880 = vrot.slane %v878, 7
      %v881 = vshll.u32 %v821, 16
      %v883 = vor.u32 %v880, %v881
      %v884 = vsel %vm851, %v876, %v883
      %v885 = vrot.slane %v880, 4
      %v887 = vshrl.u32 %v822, 16
      %v889 = vrot.slane %v887, 7
      %v890 = vshll.u32 %v822, 16
      %v892 = vor.u32 %v889, %v890
      %v893 = vrot.slane %v889, 4
      %v895 = vshrl.u32 %v823, 16
      %v897 = vrot.slane %v895, 7
      %v898 = vshll.u32 %v823, 16
      %v900 = vor.u32 %v897, %v898
      %v901 = vsel %vm851, %v893, %v900
      %v902 = vrot.slane %v897, 4
      %v904 = vshrl.u32 %v824, 16
      %v906 = vrot.slane %v904, 7
      %v907 = vshll.u32 %v824, 16
      %v909 = vor.u32 %v906, %v907
      %v910 = vrot.slane %v906, 4
      %v912 = vshrl.u32 %v825, 16
      %v914 = vrot.slane %v912, 7
      %v915 = vshll.u32 %v825, 16
      %v917 = vor.u32 %v914, %v915
      %v918 = vsel %vm851, %v910, %v917
      %v919 = vrot.slane %v914, 4
      %v921 = vshrl.u32 %v826, 16
      %v923 = vrot.slane %v921, 7
      %v924 = vshll.u32 %v826, 16
      %v926 = vor.u32 %v923, %v924
      %v927 = vrot.slane %v923, 4
      %v929 = vshrl.u32 %v827, 16
      %v931 = vrot.slane %v929, 7
      %v932 = vshll.u32 %v827, 16
      %v934 = vor.u32 %v931, %v932
      %v935 = vsel %vm851, %v927, %v934
      %v936 = vrot.slane %v931, 4
      %v938 = vshrl.u32 %v828, 16
      %v940 = vrot.slane %v938, 7
      %v941 = vshll.u32 %v828, 16
      %v943 = vor.u32 %v940, %v941
      %v944 = vrot.slane %v940, 4
      %v946 = vshrl.u32 %v829, 16
      %v948 = vrot.slane %v946, 7
      %v949 = vshll.u32 %v829, 16
      %v951 = vor.u32 %v948, %v949
      %v952 = vsel %vm851, %v944, %v951
      %v953 = vrot.slane %v948, 4
      %v955 = vshrl.u32 %v830, 16
      %v957 = vrot.slane %v955, 7
      %v958 = vshll.u32 %v830, 16
      %v960 = vor.u32 %v957, %v958
      %v961 = vrot.slane %v957, 4
      %v963 = vshrl.u32 %v831, 16
      %v965 = vrot.slane %v963, 7
      %v966 = vshll.u32 %v831, 16
      %v968 = vor.u32 %v965, %v966
      %v969 = vsel %vm851, %v961, %v968
      %v970 = vrot.slane %v965, 4
      %v972 = vshrl.u32 %v832, 16
      %v974 = vrot.slane %v972, 7
      %v975 = vshll.u32 %v832, 16
      %v977 = vor.u32 %v974, %v975
      %v978 = vrot.slane %v974, 4
      %v980 = vshrl.u32 %v833, 16
      %v982 = vrot.slane %v980, 7
      %v983 = vshll.u32 %v833, 16
      %v985 = vor.u32 %v982, %v983
      %v986 = vsel %vm851, %v978, %v985
      %v987 = vrot.slane %v982, 4
      %v989 = vshrl.u32 %v834, 16
      %v991 = vrot.slane %v989, 7
      %v992 = vshll.u32 %v834, 16
      %v994 = vor.u32 %v991, %v992
      %v995 = vrot.slane %v991, 4
      %v997 = vshrl.u32 %v835, 16
      %v999 = vrot.slane %v997, 7
      %v1000 = vshll.u32 %v835, 16
      %v1002 = vor.u32 %v999, %v1000
      %v1003 = vsel %vm851, %v995, %v1002
      %v1004 = vrot.slane %v999, 4
      %v1006 = vshrl.u32 %v836, 16
      %v1008 = vrot.slane %v1006, 7
      %v1009 = vshll.u32 %v836, 16
      %v1011 = vor.u32 %v1008, %v1009
      %v1012 = vrot.slane %v1008, 4
      %v1014 = vshrl.u32 %v837, 16
      %v1016 = vrot.slane %v1014, 7
      %v1017 = vshll.u32 %v837, 16
      %v1019 = vor.u32 %v1016, %v1017
      %v1020 = vsel %vm851, %v1012, %v1019
      %v1021 = vrot.slane %v1016, 4
      %v1023 = vshrl.u32 %v838, 16
      %v1025 = vrot.slane %v1023, 7
      %v1026 = vshll.u32 %v838, 16
      %v1028 = vor.u32 %v1025, %v1026
      %v1029 = vrot.slane %v1025, 4
      %v1031 = vshrl.u32 %v839, 16
      %v1033 = vrot.slane %v1031, 7
      %v1034 = vshll.u32 %v839, 16
      %v1036 = vor.u32 %v1033, %v1034
      %v1037 = vsel %vm851, %v1029, %v1036
      %v1038 = vrot.slane %v1033, 4
      %v1040 = vshrl.u32 %v840, 16
      %v1042 = vrot.slane %v1040, 7
      %v1043 = vshll.u32 %v840, 16
      %v1045 = vor.u32 %v1042, %v1043
      %v1046 = vrot.slane %v1042, 4
      %v1048 = vshrl.u32 %v841, 16
      %v1050 = vrot.slane %v1048, 7
      %v1051 = vshll.u32 %v841, 16
      %v1053 = vor.u32 %v1050, %v1051
      %v1054 = vsel %vm851, %v1046, %v1053
      %v1055 = vrot.slane %v1050, 4
      %v1057 = vshrl.u32 %v842, 16
      %v1059 = vrot.slane %v1057, 7
      %v1060 = vshll.u32 %v842, 16
      %v1062 = vor.u32 %v1059, %v1060
      %v1063 = vrot.slane %v1059, 4
      %v1065 = vshrl.u32 %v843, 16
      %v1067 = vrot.slane %v1065, 7
      %v1068 = vshll.u32 %v843, 16
      %v1070 = vor.u32 %v1067, %v1068
      %v1071 = vsel %vm851, %v1063, %v1070
      %v1072 = vrot.slane %v1067, 4
      %v1074 = vshrl.u32 %v844, 16
      %v1076 = vrot.slane %v1074, 7
      %v1077 = vshll.u32 %v844, 16
      %v1079 = vor.u32 %v1076, %v1077
      %v1080 = vrot.slane %v1076, 4
      %v1082 = vshrl.u32 %v845, 16
      %v1084 = vrot.slane %v1082, 7
      %v1085 = vshll.u32 %v845, 16
      %v1087 = vor.u32 %v1084, %v1085
      %v1088 = vsel %vm851, %v1080, %v1087
      %v1089 = vrot.slane %v1084, 4
      %v1091 = vshrl.u32 %v846, 16
      %v1093 = vrot.slane %v1091, 7
      %v1094 = vshll.u32 %v846, 16
      %v1096 = vor.u32 %v1093, %v1094
      %v1097 = vrot.slane %v1093, 4
      %v1099 = vshrl.u32 %v847, 16
      %v1101 = vrot.slane %v1099, 7
      %v1102 = vshll.u32 %v847, 16
      %v1104 = vor.u32 %v1101, %v1102
      %v1105 = vsel %vm851, %v1097, %v1104
      %v1106 = vrot.slane %v1101, 4
      %v1108 = vshrl.u32 %v848, 16
      %v1110 = vrot.slane %v1108, 7
      %v1111 = vshll.u32 %v848, 16
      %v1113 = vor.u32 %v1110, %v1111
      %v1114 = vrot.slane %v1110, 4
      %v1116 = vshrl.u32 %v849, 16
      %v1118 = vrot.slane %v1116, 7
      %v1119 = vshll.u32 %v849, 16
      %v1121 = vor.u32 %v1118, %v1119
      %v1122 = vsel %vm851, %v1114, %v1121
      %v1123 = vrot.slane %v1118, 4
      %s1172 = scalar_lea.vmem [#allocation2], 12
      %vm1173 = vcmask 1043456
      %vm1174 = vmand %vm1173, %vm526
      %v1175 = vld [vmem:[%s1172] sm:$0xf]
      %v1176 = vsel %vm1174, %v858, %v1175
      %1177 = vst [vmem:[%s1172] sm:$0xf] %v1176
      %1178 = vst [vmem:[%s1172 + $0x4] sm:$0xf] %v867
      %v1179 = vld [vmem:[%s1172 + $0x8] sm:$0x1]
      %v1180 = vsel %vm471, %v868, %v1179
      %1181 = vst [vmem:[%s1172 + $0x8] sm:$0x1] %v1180
      %v1182 = vld [vmem:[%s1172 + $0xc] sm:$0xf]
      %v1183 = vsel %vm1174, %v875, %v1182
      %1184 = vst [vmem:[%s1172 + $0xc] sm:$0xf] %v1183
      %1185 = vst [vmem:[%s1172 + $0x10] sm:$0xf] %v884
      %v1186 = vld [vmem:[%s1172 + $0x14] sm:$0x1]
      %v1187 = vsel %vm471, %v885, %v1186
      %1188 = vst [vmem:[%s1172 + $0x14] sm:$0x1] %v1187
      %v1189 = vld [vmem:[%s1172 + $0x18] sm:$0xf]
      %v1190 = vsel %vm1174, %v892, %v1189
      %1191 = vst [vmem:[%s1172 + $0x18] sm:$0xf] %v1190
      %1192 = vst [vmem:[%s1172 + $0x1c] sm:$0xf] %v901
      %v1193 = vld [vmem:[%s1172 + $0x20] sm:$0x1]
      %v1194 = vsel %vm471, %v902, %v1193
      %1195 = vst [vmem:[%s1172 + $0x20] sm:$0x1] %v1194
      %v1196 = vld [vmem:[%s1172 + $0x24] sm:$0xf]
      %v1197 = vsel %vm1174, %v909, %v1196
      %1198 = vst [vmem:[%s1172 + $0x24] sm:$0xf] %v1197
      %1199 = vst [vmem:[%s1172 + $0x28] sm:$0xf] %v918
      %v1200 = vld [vmem:[%s1172 + $0x2c] sm:$0x1]
      %v1201 = vsel %vm471, %v919, %v1200
      %1202 = vst [vmem:[%s1172 + $0x2c] sm:$0x1] %v1201
      %v1203 = vld [vmem:[%s1172 + $0x30] sm:$0xf]
      %v1204 = vsel %vm1174, %v926, %v1203
      %1205 = vst [vmem:[%s1172 + $0x30] sm:$0xf] %v1204
      %1206 = vst [vmem:[%s1172 + $0x34] sm:$0xf] %v935
      %v1207 = vld [vmem:[%s1172 + $0x38] sm:$0x1]
      %v1208 = vsel %vm471, %v936, %v1207
      %1209 = vst [vmem:[%s1172 + $0x38] sm:$0x1] %v1208
      %v1210 = vld [vmem:[%s1172 + $0x3c] sm:$0xf]
      %v1211 = vsel %vm1174, %v943, %v1210
      %1212 = vst [vmem:[%s1172 + $0x3c] sm:$0xf] %v1211
      %1213 = vst [vmem:[%s1172 + $0x40] sm:$0xf] %v952
      %v1214 = vld [vmem:[%s1172 + $0x44] sm:$0x1]
      %v1215 = vsel %vm471, %v953, %v1214
      %1216 = vst [vmem:[%s1172 + $0x44] sm:$0x1] %v1215
      %v1217 = vld [vmem:[%s1172 + $0x48] sm:$0xf]
      %v1218 = vsel %vm1174, %v960, %v1217
      %1219 = vst [vmem:[%s1172 + $0x48] sm:$0xf] %v1218
      %1220 = vst [vmem:[%s1172 + $0x4c] sm:$0xf] %v969
      %v1221 = vld [vmem:[%s1172 + $0x50] sm:$0x1]
      %v1222 = vsel %vm471, %v970, %v1221
      %1223 = vst [vmem:[%s1172 + $0x50] sm:$0x1] %v1222
      %v1224 = vld [vmem:[%s1172 + $0x54] sm:$0xf]
      %v1225 = vsel %vm1174, %v977, %v1224
      %1226 = vst [vmem:[%s1172 + $0x54] sm:$0xf] %v1225
      %1227 = vst [vmem:[%s1172 + $0x58] sm:$0xf] %v986
      %v1228 = vld [vmem:[%s1172 + $0x5c] sm:$0x1]
      %v1229 = vsel %vm471, %v987, %v1228
      %1230 = vst [vmem:[%s1172 + $0x5c] sm:$0x1] %v1229
      %v1231 = vld [vmem:[%s1172 + $0x60] sm:$0xf]
      %v1232 = vsel %vm1174, %v994, %v1231
      %1233 = vst [vmem:[%s1172 + $0x60] sm:$0xf] %v1232
      %1234 = vst [vmem:[%s1172 + $0x64] sm:$0xf] %v1003
      %v1235 = vld [vmem:[%s1172 + $0x68] sm:$0x1]
      %v1236 = vsel %vm471, %v1004, %v1235
      %1237 = vst [vmem:[%s1172 + $0x68] sm:$0x1] %v1236
      %v1238 = vld [vmem:[%s1172 + $0x6c] sm:$0xf]
      %v1239 = vsel %vm1174, %v1011, %v1238
      %1240 = vst [vmem:[%s1172 + $0x6c] sm:$0xf] %v1239
      %1241 = vst [vmem:[%s1172 + $0x70] sm:$0xf] %v1020
      %v1242 = vld [vmem:[%s1172 + $0x74] sm:$0x1]
      %v1243 = vsel %vm471, %v1021, %v1242
      %1244 = vst [vmem:[%s1172 + $0x74] sm:$0x1] %v1243
      %v1245 = vld [vmem:[%s1172 + $0x78] sm:$0xf]
      %v1246 = vsel %vm1174, %v1028, %v1245
      %1247 = vst [vmem:[%s1172 + $0x78] sm:$0xf] %v1246
      %1248 = vst [vmem:[%s1172 + $0x7c] sm:$0xf] %v1037
      %v1249 = vld [vmem:[%s1172 + $0x80] sm:$0x1]
      %v1250 = vsel %vm471, %v1038, %v1249
      %1251 = vst [vmem:[%s1172 + $0x80] sm:$0x1] %v1250
      %v1252 = vld [vmem:[%s1172 + $0x84] sm:$0xf]
      %v1253 = vsel %vm1174, %v1045, %v1252
      %1254 = vst [vmem:[%s1172 + $0x84] sm:$0xf] %v1253
      %1255 = vst [vmem:[%s1172 + $0x88] sm:$0xf] %v1054
      %v1256 = vld [vmem:[%s1172 + $0x8c] sm:$0x1]
      %v1257 = vsel %vm471, %v1055, %v1256
      %1258 = vst [vmem:[%s1172 + $0x8c] sm:$0x1] %v1257
      %v1259 = vld [vmem:[%s1172 + $0x90] sm:$0xf]
      %v1260 = vsel %vm1174, %v1062, %v1259
      %1261 = vst [vmem:[%s1172 + $0x90] sm:$0xf] %v1260
      %1262 = vst [vmem:[%s1172 + $0x94] sm:$0xf] %v1071
      %v1263 = vld [vmem:[%s1172 + $0x98] sm:$0x1]
      %v1264 = vsel %vm471, %v1072, %v1263
      %1265 = vst [vmem:[%s1172 + $0x98] sm:$0x1] %v1264
      %v1266 = vld [vmem:[%s1172 + $0x9c] sm:$0xf]
      %v1267 = vsel %vm1174, %v1079, %v1266
      %1268 = vst [vmem:[%s1172 + $0x9c] sm:$0xf] %v1267
      %1269 = vst [vmem:[%s1172 + $0xa0] sm:$0xf] %v1088
      %v1270 = vld [vmem:[%s1172 + $0xa4] sm:$0x1]
      %v1271 = vsel %vm471, %v1089, %v1270
      %1272 = vst [vmem:[%s1172 + $0xa4] sm:$0x1] %v1271
      %v1273 = vld [vmem:[%s1172 + $0xa8] sm:$0xf]
      %v1274 = vsel %vm1174, %v1096, %v1273
      %1275 = vst [vmem:[%s1172 + $0xa8] sm:$0xf] %v1274
      %1276 = vst [vmem:[%s1172 + $0xac] sm:$0xf] %v1105
      %v1277 = vld [vmem:[%s1172 + $0xb0] sm:$0x1]
      %v1278 = vsel %vm471, %v1106, %v1277
      %1279 = vst [vmem:[%s1172 + $0xb0] sm:$0x1] %v1278
      %v1280 = vld [vmem:[%s1172 + $0xb4] sm:$0xf]
      %v1281 = vsel %vm1174, %v1113, %v1280
      %1282 = vst [vmem:[%s1172 + $0xb4] sm:$0xf] %v1281
      %1283 = vst [vmem:[%s1172 + $0xb8] sm:$0xf] %v1122
      %v1284 = vld [vmem:[%s1172 + $0xbc] sm:$0x1]
      %v1285 = vsel %vm471, %v1123, %v1284
      %1286 = vst [vmem:[%s1172 + $0xbc] sm:$0x1] %v1285
      %v1287 = vld [vmem:[%s426] sm:$0xf]
      %v1288 = vld [vmem:[%s426 + $0x4] sm:$0xf]
      %v1289 = vunpack.c.l.bf16 %v1287
      %v1290 = vunpack.c.l.bf16 %v1288
      %v1291 = vmul.f32 %v1289, %v650
      %v1292 = vmul.f32 %v1290, %v650
      %v1293 = vadd.f32 %v1291, %v688
      %v1294 = vadd.f32 %v1292, %v688
      %v1295 = vmax.f32 %v1293, 0.0
      %v1296 = vmax.f32 %v1294, 0.0
      %p1297 = scmp.ne.s32.totalorder %s24, 0
      %s1298 = scalar_select %p1297, 1, 0
      %s1299 = scvt.s32.f32 %s1298
      %v1300 = vstv %s1299
      %v1301 = vmul.f32 %v1295, %v1300
      %v1302 = vmul.f32 %v1296, %v1300
      %v1303 = vpack.c.bf16 %v1302, %v1301
      %v1305 = vunpack.c.l.b16 %v1303
      %v1306 = vunpack.c.h.b16 %v1303
      %v1307 = vpack.c.b16 %v1305, %v1305
      %v1308 = vpack.c.b16 %v1306, %v1306
      %v1310 = vshrl.u32 %v1307, 16
      %v1312 = vrot.slane %v1310, 7
      %v1313 = vshll.u32 %v1307, 16
      %v1315 = vor.u32 %v1312, %v1313
      %v1316 = vrot.slane %v1312, 4
      %v1318 = vshrl.u32 %v1308, 16
      %v1320 = vrot.slane %v1318, 7
      %v1321 = vshll.u32 %v1308, 16
      %v1323 = vor.u32 %v1320, %v1321
      %v1324 = vsel %vm851, %v1316, %v1323
      %v1325 = vrot.slane %v1320, 4
      %v1329 = vld [vmem:[#allocation2] sm:$0xf]
      %v1330 = vsel %vm1174, %v1315, %v1329
      %1331 = vst [vmem:[#allocation2] sm:$0xf] %v1330
      %1332 = vst [vmem:[#allocation2 + $0x4] sm:$0xf] %v1324
      %v1333 = vld [vmem:[#allocation2 + $0x8] sm:$0x1]
      %v1334 = vsel %vm471, %v1325, %v1333
      %1335 = vst [vmem:[#allocation2 + $0x8] sm:$0x1] %v1334
      %v1336 = vld [vmem:[%s443] sm:$0xf]
      %v1337 = vld [vmem:[%s443 + $0x4] sm:$0xf]
      %v1338 = vunpack.c.l.bf16 %v1336
      %v1339 = vunpack.c.l.bf16 %v1337
      %v1340 = vmul.f32 %v1338, %v650
      %v1341 = vmul.f32 %v1339, %v650
      %v1342 = vadd.f32 %v1340, %v688
      %v1343 = vadd.f32 %v1341, %v688
      %v1344 = vmax.f32 %v1342, 0.0
      %v1345 = vmax.f32 %v1343, 0.0
      %v1346 = vmul.f32 %v1344, %v1300
      %v1347 = vmul.f32 %v1345, %v1300
      %v1348 = vpack.c.bf16 %v1347, %v1346
      %v1350 = vunpack.c.l.b16 %v1348
      %v1351 = vunpack.c.h.b16 %v1348
      %v1352 = vpack.c.b16 %v1350, %v1350
      %v1353 = vpack.c.b16 %v1351, %v1351
      %v1355 = vshrl.u32 %v1352, 16
      %v1357 = vrot.slane %v1355, 7
      %v1358 = vshll.u32 %v1352, 16
      %v1360 = vor.u32 %v1357, %v1358
      %v1361 = vrot.slane %v1357, 4
      %v1363 = vshrl.u32 %v1353, 16
      %v1365 = vrot.slane %v1363, 7
      %v1366 = vshll.u32 %v1353, 16
      %v1368 = vor.u32 %v1365, %v1366
      %v1369 = vsel %vm851, %v1361, %v1368
      %v1370 = vrot.slane %v1365, 4
      %s1374 = scalar_lea.vmem [#allocation2], 204
      %v1375 = vld [vmem:[%s1374] sm:$0xf]
      %v1376 = vsel %vm1174, %v1360, %v1375
      %1377 = vst [vmem:[%s1374] sm:$0xf] %v1376
      %1378 = vst [vmem:[%s1374 + $0x4] sm:$0xf] %v1369
      %v1379 = vld [vmem:[%s1374 + $0x8] sm:$0x1]
      %v1380 = vsel %vm471, %v1370, %v1379
      %1381 = vst [vmem:[%s1374 + $0x8] sm:$0x1] %v1380
      %v1382 = vld [vmem:[#allocation2] sm:$0xf]
      %v1383 = vld [vmem:[#allocation2 + $0x4] sm:$0xf]
      %v1384 = vld [vmem:[#allocation2 + $0xc] sm:$0xf]
      %v1385 = vld [vmem:[#allocation2 + $0x10] sm:$0xf]
      %v1386 = vld [vmem:[#allocation2 + $0x18] sm:$0xf]
      %v1387 = vld [vmem:[#allocation2 + $0x1c] sm:$0xf]
      %v1388 = vld [vmem:[#allocation2 + $0x24] sm:$0xf]
      %v1389 = vld [vmem:[#allocation2 + $0x28] sm:$0xf]
      %v1390 = vld [vmem:[#allocation2 + $0x30] sm:$0xf]
      %v1391 = vld [vmem:[#allocation2 + $0x34] sm:$0xf]
      %v1392 = vld [vmem:[#allocation2 + $0x3c] sm:$0xf]
      %v1393 = vld [vmem:[#allocation2 + $0x40] sm:$0xf]
      %v1394 = vld [vmem:[#allocation2 + $0x48] sm:$0xf]
      %v1395 = vld [vmem:[#allocation2 + $0x4c] sm:$0xf]
      %v1396 = vld [vmem:[#allocation2 + $0x54] sm:$0xf]
      %v1397 = vld [vmem:[#allocation2 + $0x58] sm:$0xf]
      %v1398 = vld [vmem:[#allocation2 + $0x60] sm:$0xf]
      %v1399 = vld [vmem:[#allocation2 + $0x64] sm:$0xf]
      %v1400 = vld [vmem:[#allocation2 + $0x6c] sm:$0xf]
      %v1401 = vld [vmem:[#allocation2 + $0x70] sm:$0xf]
      %v1402 = vld [vmem:[#allocation2 + $0x78] sm:$0xf]
      %v1403 = vld [vmem:[#allocation2 + $0x7c] sm:$0xf]
      %v1404 = vld [vmem:[#allocation2 + $0x84] sm:$0xf]
      %v1405 = vld [vmem:[#allocation2 + $0x88] sm:$0xf]
      %v1406 = vld [vmem:[#allocation2 + $0x90] sm:$0xf]
      %v1407 = vld [vmem:[#allocation2 + $0x94] sm:$0xf]
      %v1408 = vld [vmem:[#allocation2 + $0x9c] sm:$0xf]
      %v1409 = vld [vmem:[#allocation2 + $0xa0] sm:$0xf]
      %v1410 = vld [vmem:[#allocation2 + $0xa8] sm:$0xf]
      %v1411 = vld [vmem:[#allocation2 + $0xac] sm:$0xf]
      %v1412 = vld [vmem:[#allocation2 + $0xb4] sm:$0xf]
      %v1413 = vld [vmem:[#allocation2 + $0xb8] sm:$0xf]
      %v1414 = vld [vmem:[%s5] sm:$0xf]
      %v1415 = vld [vmem:[%s5 + $0x4] sm:$0xf]
      %v1416 = vld [vmem:[%s5 + $0x8] sm:$0xf]
      %v1417 = vld [vmem:[%s5 + $0xc] sm:$0xf]
      %v1418 = vld [vmem:[%s5 + $0x10] sm:$0xf]
      %v1419 = vld [vmem:[%s5 + $0x14] sm:$0xf]
      %v1420 = vld [vmem:[%s5 + $0x18] sm:$0xf]
      %v1421 = vld [vmem:[%s5 + $0x1c] sm:$0xf]
      %v1422 = vld [vmem:[%s5 + $0x20] sm:$0xf]
      %v1423 = vld [vmem:[%s5 + $0x24] sm:$0xf]
      %v1424 = vld [vmem:[%s5 + $0x28] sm:$0xf]
      %v1425 = vld [vmem:[%s5 + $0x2c] sm:$0xf]
      %v1426 = vld [vmem:[%s5 + $0x30] sm:$0xf]
      %v1427 = vld [vmem:[%s5 + $0x34] sm:$0xf]
      %v1428 = vld [vmem:[%s5 + $0x38] sm:$0xf]
      %v1429 = vld [vmem:[%s5 + $0x3c] sm:$0xf]
      %v1430 = vld [vmem:[#allocation2 + $0x8] sm:$0x1]
      %v1431 = vld [vmem:[#allocation2 + $0x14] sm:$0x1]
      %v1432 = vld [vmem:[#allocation2 + $0x20] sm:$0x1]
      %v1433 = vld [vmem:[#allocation2 + $0x2c] sm:$0x1]
      %v1434 = vld [vmem:[#allocation2 + $0x38] sm:$0x1]
      %v1435 = vld [vmem:[#allocation2 + $0x44] sm:$0x1]
      %v1436 = vld [vmem:[#allocation2 + $0x50] sm:$0x1]
      %v1437 = vld [vmem:[#allocation2 + $0x5c] sm:$0x1]
      %v1438 = vld [vmem:[#allocation2 + $0x68] sm:$0x1]
      %v1439 = vld [vmem:[#allocation2 + $0x74] sm:$0x1]
      %v1440 = vld [vmem:[#allocation2 + $0x80] sm:$0x1]
      %v1441 = vld [vmem:[#allocation2 + $0x8c] sm:$0x1]
      %v1442 = vld [vmem:[#allocation2 + $0x98] sm:$0x1]
      %v1443 = vld [vmem:[#allocation2 + $0xa4] sm:$0x1]
      %v1444 = vld [vmem:[#allocation2 + $0xb0] sm:$0x1]
      %v1445 = vld [vmem:[#allocation2 + $0xbc] sm:$0x1]
      %vm1446 = vsmask.f32 3328
      %vm1447 = vsmask.f32 7440
      %vm1448 = vmor %vm1446, %vm1447
      %v1450 = vshrl.u32 %v1382, 16
      %v1452 = vrot.slane %v1450, 4
      %v1453 = vshll.u32 %v1382, 16
      %v1455 = vrot.slane %v1453, 5
      %v1456 = vor.u32 %v1452, %v1455
      %v1457 = vrot.slane %v1456, 4
      %v1459 = vshll.u32 %v1383, 16
      %v1461 = vrot.slane %v1459, 5
      %v1462 = vsel %vm1448, %v1457, %v1461
      %v1463 = vshrl.u32 %v1383, 16
      %v1465 = vrot.slane %v1463, 4
      %v1466 = vor.u32 %v1465, %v1461
      %v1467 = vrot.slane %v1466, 4
      %v1469 = vshll.u32 %v1430, 16
      %v1471 = vrot.slane %v1469, 5
      %v1472 = vsel %vm1448, %v1467, %v1471
      %v1474 = vshrl.u32 %v1384, 16
      %v1476 = vrot.slane %v1474, 4
      %v1477 = vshll.u32 %v1384, 16
      %v1479 = vrot.slane %v1477, 5
      %v1480 = vor.u32 %v1476, %v1479
      %v1481 = vrot.slane %v1480, 4
      %v1483 = vshll.u32 %v1385, 16
      %v1485 = vrot.slane %v1483, 5
      %v1486 = vsel %vm1448, %v1481, %v1485
      %v1487 = vshrl.u32 %v1385, 16
      %v1489 = vrot.slane %v1487, 4
      %v1490 = vor.u32 %v1489, %v1485
      %v1491 = vrot.slane %v1490, 4
      %v1493 = vshll.u32 %v1431, 16
      %v1495 = vrot.slane %v1493, 5
      %v1496 = vsel %vm1448, %v1491, %v1495
      %v1498 = vshrl.u32 %v1386, 16
      %v1500 = vrot.slane %v1498, 4
      %v1501 = vshll.u32 %v1386, 16
      %v1503 = vrot.slane %v1501, 5
      %v1504 = vor.u32 %v1500, %v1503
      %v1505 = vrot.slane %v1504, 4
      %v1507 = vshll.u32 %v1387, 16
      %v1509 = vrot.slane %v1507, 5
      %v1510 = vsel %vm1448, %v1505, %v1509
      %v1511 = vshrl.u32 %v1387, 16
      %v1513 = vrot.slane %v1511, 4
      %v1514 = vor.u32 %v1513, %v1509
      %v1515 = vrot.slane %v1514, 4
      %v1517 = vshll.u32 %v1432, 16
      %v1519 = vrot.slane %v1517, 5
      %v1520 = vsel %vm1448, %v1515, %v1519
      %v1522 = vshrl.u32 %v1388, 16
      %v1524 = vrot.slane %v1522, 4
      %v1525 = vshll.u32 %v1388, 16
      %v1527 = vrot.slane %v1525, 5
      %v1528 = vor.u32 %v1524, %v1527
      %v1529 = vrot.slane %v1528, 4
      %v1531 = vshll.u32 %v1389, 16
      %v1533 = vrot.slane %v1531, 5
      %v1534 = vsel %vm1448, %v1529, %v1533
      %v1535 = vshrl.u32 %v1389, 16
      %v1537 = vrot.slane %v1535, 4
      %v1538 = vor.u32 %v1537, %v1533
      %v1539 = vrot.slane %v1538, 4
      %v1541 = vshll.u32 %v1433, 16
      %v1543 = vrot.slane %v1541, 5
      %v1544 = vsel %vm1448, %v1539, %v1543
      %v1546 = vshrl.u32 %v1390, 16
      %v1548 = vrot.slane %v1546, 4
      %v1549 = vshll.u32 %v1390, 16
      %v1551 = vrot.slane %v1549, 5
      %v1552 = vor.u32 %v1548, %v1551
      %v1553 = vrot.slane %v1552, 4
      %v1555 = vshll.u32 %v1391, 16
      %v1557 = vrot.slane %v1555, 5
      %v1558 = vsel %vm1448, %v1553, %v1557
      %v1559 = vshrl.u32 %v1391, 16
      %v1561 = vrot.slane %v1559, 4
      %v1562 = vor.u32 %v1561, %v1557
      %v1563 = vrot.slane %v1562, 4
      %v1565 = vshll.u32 %v1434, 16
      %v1567 = vrot.slane %v1565, 5
      %v1568 = vsel %vm1448, %v1563, %v1567
      %v1570 = vshrl.u32 %v1392, 16
      %v1572 = vrot.slane %v1570, 4
      %v1573 = vshll.u32 %v1392, 16
      %v1575 = vrot.slane %v1573, 5
      %v1576 = vor.u32 %v1572, %v1575
      %v1577 = vrot.slane %v1576, 4
      %v1579 = vshll.u32 %v1393, 16
      %v1581 = vrot.slane %v1579, 5
      %v1582 = vsel %vm1448, %v1577, %v1581
      %v1583 = vshrl.u32 %v1393, 16
      %v1585 = vrot.slane %v1583, 4
      %v1586 = vor.u32 %v1585, %v1581
      %v1587 = vrot.slane %v1586, 4
      %v1589 = vshll.u32 %v1435, 16
      %v1591 = vrot.slane %v1589, 5
      %v1592 = vsel %vm1448, %v1587, %v1591
      %v1594 = vshrl.u32 %v1394, 16
      %v1596 = vrot.slane %v1594, 4
      %v1597 = vshll.u32 %v1394, 16
      %v1599 = vrot.slane %v1597, 5
      %v1600 = vor.u32 %v1596, %v1599
      %v1601 = vrot.slane %v1600, 4
      %v1603 = vshll.u32 %v1395, 16
      %v1605 = vrot.slane %v1603, 5
      %v1606 = vsel %vm1448, %v1601, %v1605
      %v1607 = vshrl.u32 %v1395, 16
      %v1609 = vrot.slane %v1607, 4
      %v1610 = vor.u32 %v1609, %v1605
      %v1611 = vrot.slane %v1610, 4
      %v1613 = vshll.u32 %v1436, 16
      %v1615 = vrot.slane %v1613, 5
      %v1616 = vsel %vm1448, %v1611, %v1615
      %v1618 = vshrl.u32 %v1396, 16
      %v1620 = vrot.slane %v1618, 4
      %v1621 = vshll.u32 %v1396, 16
      %v1623 = vrot.slane %v1621, 5
      %v1624 = vor.u32 %v1620, %v1623
      %v1625 = vrot.slane %v1624, 4
      %v1627 = vshll.u32 %v1397, 16
      %v1629 = vrot.slane %v1627, 5
      %v1630 = vsel %vm1448, %v1625, %v1629
      %v1631 = vshrl.u32 %v1397, 16
      %v1633 = vrot.slane %v1631, 4
      %v1634 = vor.u32 %v1633, %v1629
      %v1635 = vrot.slane %v1634, 4
      %v1637 = vshll.u32 %v1437, 16
      %v1639 = vrot.slane %v1637, 5
      %v1640 = vsel %vm1448, %v1635, %v1639
      %v1642 = vshrl.u32 %v1398, 16
      %v1644 = vrot.slane %v1642, 4
      %v1645 = vshll.u32 %v1398, 16
      %v1647 = vrot.slane %v1645, 5
      %v1648 = vor.u32 %v1644, %v1647
      %v1649 = vrot.slane %v1648, 4
      %v1651 = vshll.u32 %v1399, 16
      %v1653 = vrot.slane %v1651, 5
      %v1654 = vsel %vm1448, %v1649, %v1653
      %v1655 = vshrl.u32 %v1399, 16
      %v1657 = vrot.slane %v1655, 4
      %v1658 = vor.u32 %v1657, %v1653
      %v1659 = vrot.slane %v1658, 4
      %v1661 = vshll.u32 %v1438, 16
      %v1663 = vrot.slane %v1661, 5
      %v1664 = vsel %vm1448, %v1659, %v1663
      %v1666 = vshrl.u32 %v1400, 16
      %v1668 = vrot.slane %v1666, 4
      %v1669 = vshll.u32 %v1400, 16
      %v1671 = vrot.slane %v1669, 5
      %v1672 = vor.u32 %v1668, %v1671
      %v1673 = vrot.slane %v1672, 4
      %v1675 = vshll.u32 %v1401, 16
      %v1677 = vrot.slane %v1675, 5
      %v1678 = vsel %vm1448, %v1673, %v1677
      %v1679 = vshrl.u32 %v1401, 16
      %v1681 = vrot.slane %v1679, 4
      %v1682 = vor.u32 %v1681, %v1677
      %v1683 = vrot.slane %v1682, 4
      %v1685 = vshll.u32 %v1439, 16
      %v1687 = vrot.slane %v1685, 5
      %v1688 = vsel %vm1448, %v1683, %v1687
      %v1690 = vshrl.u32 %v1402, 16
      %v1692 = vrot.slane %v1690, 4
      %v1693 = vshll.u32 %v1402, 16
      %v1695 = vrot.slane %v1693, 5
      %v1696 = vor.u32 %v1692, %v1695
      %v1697 = vrot.slane %v1696, 4
      %v1699 = vshll.u32 %v1403, 16
      %v1701 = vrot.slane %v1699, 5
      %v1702 = vsel %vm1448, %v1697, %v1701
      %v1703 = vshrl.u32 %v1403, 16
      %v1705 = vrot.slane %v1703, 4
      %v1706 = vor.u32 %v1705, %v1701
      %v1707 = vrot.slane %v1706, 4
      %v1709 = vshll.u32 %v1440, 16
      %v1711 = vrot.slane %v1709, 5
      %v1712 = vsel %vm1448, %v1707, %v1711
      %v1714 = vshrl.u32 %v1404, 16
      %v1716 = vrot.slane %v1714, 4
      %v1717 = vshll.u32 %v1404, 16
      %v1719 = vrot.slane %v1717, 5
      %v1720 = vor.u32 %v1716, %v1719
      %v1721 = vrot.slane %v1720, 4
      %v1723 = vshll.u32 %v1405, 16
      %v1725 = vrot.slane %v1723, 5
      %v1726 = vsel %vm1448, %v1721, %v1725
      %v1727 = vshrl.u32 %v1405, 16
      %v1729 = vrot.slane %v1727, 4
      %v1730 = vor.u32 %v1729, %v1725
      %v1731 = vrot.slane %v1730, 4
      %v1733 = vshll.u32 %v1441, 16
      %v1735 = vrot.slane %v1733, 5
      %v1736 = vsel %vm1448, %v1731, %v1735
      %v1738 = vshrl.u32 %v1406, 16
      %v1740 = vrot.slane %v1738, 4
      %v1741 = vshll.u32 %v1406, 16
      %v1743 = vrot.slane %v1741, 5
      %v1744 = vor.u32 %v1740, %v1743
      %v1745 = vrot.slane %v1744, 4
      %v1747 = vshll.u32 %v1407, 16
      %v1749 = vrot.slane %v1747, 5
      %v1750 = vsel %vm1448, %v1745, %v1749
      %v1751 = vshrl.u32 %v1407, 16
      %v1753 = vrot.slane %v1751, 4
      %v1754 = vor.u32 %v1753, %v1749
      %v1755 = vrot.slane %v1754, 4
      %v1757 = vshll.u32 %v1442, 16
      %v1759 = vrot.slane %v1757, 5
      %v1760 = vsel %vm1448, %v1755, %v1759
      %v1762 = vshrl.u32 %v1408, 16
      %v1764 = vrot.slane %v1762, 4
      %v1765 = vshll.u32 %v1408, 16
      %v1767 = vrot.slane %v1765, 5
      %v1768 = vor.u32 %v1764, %v1767
      %v1769 = vrot.slane %v1768, 4
      %v1771 = vshll.u32 %v1409, 16
      %v1773 = vrot.slane %v1771, 5
      %v1774 = vsel %vm1448, %v1769, %v1773
      %v1775 = vshrl.u32 %v1409, 16
      %v1777 = vrot.slane %v1775, 4
      %v1778 = vor.u32 %v1777, %v1773
      %v1779 = vrot.slane %v1778, 4
      %v1781 = vshll.u32 %v1443, 16
      %v1783 = vrot.slane %v1781, 5
      %v1784 = vsel %vm1448, %v1779, %v1783
      %v1786 = vshrl.u32 %v1410, 16
      %v1788 = vrot.slane %v1786, 4
      %v1789 = vshll.u32 %v1410, 16
      %v1791 = vrot.slane %v1789, 5
      %v1792 = vor.u32 %v1788, %v1791
      %v1793 = vrot.slane %v1792, 4
      %v1795 = vshll.u32 %v1411, 16
      %v1797 = vrot.slane %v1795, 5
      %v1798 = vsel %vm1448, %v1793, %v1797
      %v1799 = vshrl.u32 %v1411, 16
      %v1801 = vrot.slane %v1799, 4
      %v1802 = vor.u32 %v1801, %v1797
      %v1803 = vrot.slane %v1802, 4
      %v1805 = vshll.u32 %v1444, 16
      %v1807 = vrot.slane %v1805, 5
      %v1808 = vsel %vm1448, %v1803, %v1807
      %v1810 = vshrl.u32 %v1412, 16
      %v1812 = vrot.slane %v1810, 4
      %v1813 = vshll.u32 %v1412, 16
      %v1815 = vrot.slane %v1813, 5
      %v1816 = vor.u32 %v1812, %v1815
      %v1817 = vrot.slane %v1816, 4
      %v1819 = vshll.u32 %v1413, 16
      %v1821 = vrot.slane %v1819, 5
      %v1822 = vsel %vm1448, %v1817, %v1821
      %v1823 = vshrl.u32 %v1413, 16
      %v1825 = vrot.slane %v1823, 4
      %v1826 = vor.u32 %v1825, %v1821
      %v1827 = vrot.slane %v1826, 4
      %v1829 = vshll.u32 %v1445, 16
      %v1831 = vrot.slane %v1829, 5
      %v1832 = vsel %vm1448, %v1827, %v1831
      %s1833 = scalar_lea.vmem %s5, 64
      %v1834 = vld [vmem:[%s1833] sm:$0xf]
      %v1835 = vld [vmem:[%s1833 + $0x4] sm:$0xf]
      %v1836 = vld [vmem:[%s1833 + $0x8] sm:$0xf]
      %v1837 = vld [vmem:[%s1833 + $0xc] sm:$0xf]
      %v1838 = vld [vmem:[%s1833 + $0x10] sm:$0xf]
      %v1839 = vld [vmem:[%s1833 + $0x14] sm:$0xf]
      %v1840 = vld [vmem:[%s1833 + $0x18] sm:$0xf]
      %v1841 = vld [vmem:[%s1833 + $0x1c] sm:$0xf]
      %v1842 = vld [vmem:[%s1833 + $0x20] sm:$0xf]
      %v1843 = vld [vmem:[%s1833 + $0x24] sm:$0xf]
      %v1844 = vld [vmem:[%s1833 + $0x28] sm:$0xf]
      %v1845 = vld [vmem:[%s1833 + $0x2c] sm:$0xf]
      %v1846 = vld [vmem:[%s1833 + $0x30] sm:$0xf]
      %v1847 = vld [vmem:[%s1833 + $0x34] sm:$0xf]
      %v1848 = vld [vmem:[%s1833 + $0x38] sm:$0xf]
      %v1849 = vld [vmem:[%s1833 + $0x3c] sm:$0xf]
      %v1850 = vunpack.c.l.b16 %v1462
      %v1851 = vunpack.c.l.b16 %v1472
      %v1852 = vunpack.c.l.b16 %v1486
      %v1853 = vunpack.c.l.b16 %v1496
      %v1854 = vunpack.c.l.b16 %v1510
      %v1855 = vunpack.c.l.b16 %v1520
      %v1856 = vunpack.c.l.b16 %v1534
      %v1857 = vunpack.c.l.b16 %v1544
      %v1858 = vunpack.c.l.b16 %v1558
      %v1859 = vunpack.c.l.b16 %v1568
      %v1860 = vunpack.c.l.b16 %v1582
      %v1861 = vunpack.c.l.b16 %v1592
      %v1862 = vunpack.c.l.b16 %v1606
      %v1863 = vunpack.c.l.b16 %v1616
      %v1864 = vunpack.c.l.b16 %v1630
      %v1865 = vunpack.c.l.b16 %v1640
      %v1866 = vunpack.c.l.b16 %v1654
      %v1867 = vunpack.c.l.b16 %v1664
      %v1868 = vunpack.c.l.b16 %v1678
      %v1869 = vunpack.c.l.b16 %v1688
      %v1870 = vunpack.c.l.b16 %v1702
      %v1871 = vunpack.c.l.b16 %v1712
      %v1872 = vunpack.c.l.b16 %v1726
      %v1873 = vunpack.c.l.b16 %v1736
      %v1874 = vunpack.c.l.b16 %v1750
      %v1875 = vunpack.c.l.b16 %v1760
      %v1876 = vunpack.c.l.b16 %v1774
      %v1877 = vunpack.c.l.b16 %v1784
      %v1878 = vunpack.c.l.b16 %v1798
      %v1879 = vunpack.c.l.b16 %v1808
      %v1880 = vunpack.c.l.b16 %v1822
      %v1881 = vunpack.c.l.b16 %v1832
      %v1882 = vpack.c.b16 %v1851, %v1850
      %v1883 = vpack.c.b16 %v1853, %v1852
      %v1884 = vpack.c.b16 %v1855, %v1854
      %v1885 = vpack.c.b16 %v1857, %v1856
      %v1886 = vpack.c.b16 %v1859, %v1858
      %v1887 = vpack.c.b16 %v1861, %v1860
      %v1888 = vpack.c.b16 %v1863, %v1862
      %v1889 = vpack.c.b16 %v1865, %v1864
      %v1890 = vpack.c.b16 %v1867, %v1866
      %v1891 = vpack.c.b16 %v1869, %v1868
      %v1892 = vpack.c.b16 %v1871, %v1870
      %v1893 = vpack.c.b16 %v1873, %v1872
      %v1894 = vpack.c.b16 %v1875, %v1874
      %v1895 = vpack.c.b16 %v1877, %v1876
      %v1896 = vpack.c.b16 %v1879, %v1878
      %v1897 = vpack.c.b16 %v1881, %v1880
      %v1930 = vunpack.c.l.b16 %v1834
      %v1931 = vunpack.c.l.b16 %v1835
      %v1932 = vunpack.c.l.b16 %v1836
      %v1933 = vunpack.c.l.b16 %v1837
      %v1934 = vunpack.c.l.b16 %v1838
      %v1935 = vunpack.c.l.b16 %v1839
      %v1936 = vunpack.c.l.b16 %v1840
      %v1937 = vunpack.c.l.b16 %v1841
      %v1938 = vunpack.c.l.b16 %v1842
      %v1939 = vunpack.c.l.b16 %v1843
      %v1940 = vunpack.c.l.b16 %v1844
      %v1941 = vunpack.c.l.b16 %v1845
      %v1942 = vunpack.c.l.b16 %v1846
      %v1943 = vunpack.c.l.b16 %v1847
      %v1944 = vunpack.c.l.b16 %v1848
      %v1945 = vunpack.c.l.b16 %v1849
      %v1946 = vpack.c.b16 %v1931, %v1930
      %v1947 = vpack.c.b16 %v1933, %v1932
      %v1948 = vpack.c.b16 %v1935, %v1934
      %v1949 = vpack.c.b16 %v1937, %v1936
      %v1950 = vpack.c.b16 %v1939, %v1938
      %v1951 = vpack.c.b16 %v1941, %v1940
      %v1952 = vpack.c.b16 %v1943, %v1942
      %v1953 = vpack.c.b16 %v1945, %v1944
      %1962 = vmatprep.subr.bf16.mxu0 0
      %1963 = vmatpush1.bf16.msra.mxu0 %v1946
      %1964 = vmatprep.subr.bf16.mxu0 0
      %1965 = vmatpush1.bf16.msra.mxu0 %v1947
      %1966 = vmatprep.subr.bf16.mxu0 0
      %1967 = vmatpush1.bf16.msra.mxu0 %v1948
      %1968 = vmatprep.subr.bf16.mxu0 0
      %1969 = vmatpush1.bf16.msra.mxu0 %v1949
      %1970 = vmatprep.subr.bf16.mxu0 0
      %1971 = vmatpush1.bf16.msra.mxu0 %v1950
      %1972 = vmatprep.subr.bf16.mxu0 0
      %1973 = vmatpush1.bf16.msra.mxu0 %v1951
      %1974 = vmatprep.subr.bf16.mxu0 0
      %1975 = vmatpush1.bf16.msra.mxu0 %v1952
      %1976 = vmatprep.subr.bf16.mxu0 0
      %1977 = vmatpush1.bf16.msra.mxu0 %v1953
      %1978 = vmatprep.subr.bf16.mxu0 0
      %1979 = vmatpush1.bf16.msra.mxu0 0
      %1980 = vmatprep.subr.bf16.mxu0 0
      %1981 = vmatpush1.bf16.msra.mxu0 0
      %1982 = vmatprep.subr.bf16.mxu0 0
      %1983 = vmatpush1.bf16.msra.mxu0 0
      %1984 = vmatprep.subr.bf16.mxu0 0
      %1985 = vmatpush1.bf16.msra.mxu0 0
      %1986 = vmatprep.subr.bf16.mxu0 0
      %1987 = vmatpush1.bf16.msra.mxu0 0
      %1988 = vmatprep.subr.bf16.mxu0 0
      %1989 = vmatpush1.bf16.msra.mxu0 0
      %1990 = vmatprep.subr.bf16.mxu0 0
      %1991 = vmatpush1.bf16.msra.mxu0 0
      %1992 = vmatprep.subr.bf16.mxu0 0
      %1993 = vmatpush1.bf16.msra.mxu0 0
      %1994 = vmatprep.mubr.bf16.mxu0 0
      %1995 = vmatmul.mubr.bf16.gmra.mrb[0].mxu0 %v1882
      %v1996 = vpop.f32.mrb[0].mxu0
      %v1997 = vadd.f32 0.0, %v1996
      %v1998 = vpop.f32.mrb[0].mxu0
      %v1999 = vpop.f32.mrb[0].mxu0
      %v2000 = vadd.f32 0.0, %v1999
      %v2001 = vpop.f32.mrb[0].mxu0
      %2002 = vmatprep.mubr.bf16.mxu0 0
      %2003 = vmatmul.mubr.bf16.gmra.mrb[0].mxu0 %v1883
      %v2004 = vpop.f32.mrb[0].mxu0
      %v2005 = vadd.f32 0.0, %v2004
      %v2006 = vpop.f32.mrb[0].mxu0
      %v2007 = vpop.f32.mrb[0].mxu0
      %v2008 = vadd.f32 0.0, %v2007
      %v2009 = vpop.f32.mrb[0].mxu0
      %2010 = vmatprep.mubr.bf16.mxu0 0
      %2011 = vmatmul.mubr.bf16.gmra.mrb[0].mxu0 %v1884
      %v2012 = vpop.f32.mrb[0].mxu0
      %v2013 = vadd.f32 0.0, %v2012
      %v2014 = vpop.f32.mrb[0].mxu0
      %v2015 = vpop.f32.mrb[0].mxu0
      %v2016 = vadd.f32 0.0, %v2015
      %v2017 = vpop.f32.mrb[0].mxu0
      %2018 = vmatprep.mubr.bf16.mxu0 0
      %2019 = vmatmul.mubr.bf16.gmra.mrb[0].mxu0 %v1885
      %v2020 = vpop.f32.mrb[0].mxu0
      %v2021 = vadd.f32 0.0, %v2020
      %v2022 = vpop.f32.mrb[0].mxu0
      %v2023 = vpop.f32.mrb[0].mxu0
      %v2024 = vadd.f32 0.0, %v2023
      %v2025 = vpop.f32.mrb[0].mxu0
      %2026 = vmatprep.mubr.bf16.mxu0 0
      %2027 = vmatmul.mubr.bf16.gmra.mrb[0].mxu0 %v1886
      %v2028 = vpop.f32.mrb[0].mxu0
      %v2029 = vadd.f32 0.0, %v2028
      %v2030 = vpop.f32.mrb[0].mxu0
      %v2031 = vpop.f32.mrb[0].mxu0
      %v2032 = vadd.f32 0.0, %v2031
      %v2033 = vpop.f32.mrb[0].mxu0
      %2034 = vmatprep.mubr.bf16.mxu0 0
      %2035 = vmatmul.mubr.bf16.gmra.mrb[0].mxu0 %v1887
      %v2036 = vpop.f32.mrb[0].mxu0
      %v2037 = vadd.f32 0.0, %v2036
      %v2038 = vpop.f32.mrb[0].mxu0
      %v2039 = vpop.f32.mrb[0].mxu0
      %v2040 = vadd.f32 0.0, %v2039
      %v2041 = vpop.f32.mrb[0].mxu0
      %2042 = vmatprep.mubr.bf16.mxu0 0
      %2043 = vmatmul.mubr.bf16.gmra.mrb[0].mxu0 %v1888
      %v2044 = vpop.f32.mrb[0].mxu0
      %v2045 = vadd.f32 0.0, %v2044
      %v2046 = vpop.f32.mrb[0].mxu0
      %v2047 = vpop.f32.mrb[0].mxu0
      %v2048 = vadd.f32 0.0, %v2047
      %v2049 = vpop.f32.mrb[0].mxu0
      %2050 = vmatprep.mubr.bf16.mxu0 0
      %2051 = vmatmul.mubr.bf16.gmra.mrb[0].mxu0 %v1889
      %v2052 = vpop.f32.mrb[0].mxu0
      %v2053 = vadd.f32 0.0, %v2052
      %v2054 = vpop.f32.mrb[0].mxu0
      %v2055 = vpop.f32.mrb[0].mxu0
      %v2056 = vadd.f32 0.0, %v2055
      %v2057 = vpop.f32.mrb[0].mxu0
      %2058 = vmatprep.mubr.bf16.mxu0 0
      %2059 = vmatmul.mubr.bf16.gmra.mrb[0].mxu0 %v1890
      %v2060 = vpop.f32.mrb[0].mxu0
      %v2061 = vadd.f32 0.0, %v2060
      %v2062 = vpop.f32.mrb[0].mxu0
      %v2063 = vpop.f32.mrb[0].mxu0
      %v2064 = vadd.f32 0.0, %v2063
      %v2065 = vpop.f32.mrb[0].mxu0
      %2066 = vmatprep.mubr.bf16.mxu0 0
      %2067 = vmatmul.mubr.bf16.gmra.mrb[0].mxu0 %v1891
      %v2068 = vpop.f32.mrb[0].mxu0
      %v2069 = vadd.f32 0.0, %v2068
      %v2070 = vpop.f32.mrb[0].mxu0
      %v2071 = vpop.f32.mrb[0].mxu0
      %v2072 = vadd.f32 0.0, %v2071
      %v2073 = vpop.f32.mrb[0].mxu0
      %2074 = vmatprep.mubr.bf16.mxu0 0
      %2075 = vmatmul.mubr.bf16.gmra.mrb[0].mxu0 %v1892
      %v2076 = vpop.f32.mrb[0].mxu0
      %v2077 = vadd.f32 0.0, %v2076
      %v2078 = vpop.f32.mrb[0].mxu0
      %v2079 = vpop.f32.mrb[0].mxu0
      %v2080 = vadd.f32 0.0, %v2079
      %v2081 = vpop.f32.mrb[0].mxu0
      %2082 = vmatprep.mubr.bf16.mxu0 0
      %2083 = vmatmul.mubr.bf16.gmra.mrb[0].mxu0 %v1893
      %v2084 = vpop.f32.mrb[0].mxu0
      %v2085 = vadd.f32 0.0, %v2084
      %v2086 = vpop.f32.mrb[0].mxu0
      %v2087 = vpop.f32.mrb[0].mxu0
      %v2088 = vadd.f32 0.0, %v2087
      %v2089 = vpop.f32.mrb[0].mxu0
      %2090 = vmatprep.mubr.bf16.mxu0 0
      %2091 = vmatmul.mubr.bf16.gmra.mrb[0].mxu0 %v1894
      %v2092 = vpop.f32.mrb[0].mxu0
      %v2093 = vadd.f32 0.0, %v2092
      %v2094 = vpop.f32.mrb[0].mxu0
      %v2095 = vpop.f32.mrb[0].mxu0
      %v2096 = vadd.f32 0.0, %v2095
      %v2097 = vpop.f32.mrb[0].mxu0
      %2098 = vmatprep.mubr.bf16.mxu0 0
      %2099 = vmatmul.mubr.bf16.gmra.mrb[0].mxu0 %v1895
      %v2100 = vpop.f32.mrb[0].mxu0
      %v2101 = vadd.f32 0.0, %v2100
      %v2102 = vpop.f32.mrb[0].mxu0
      %v2103 = vpop.f32.mrb[0].mxu0
      %v2104 = vadd.f32 0.0, %v2103
      %v2105 = vpop.f32.mrb[0].mxu0
      %2106 = vmatprep.mubr.bf16.mxu0 0
      %2107 = vmatmul.mubr.bf16.gmra.mrb[0].mxu0 %v1896
      %v2108 = vpop.f32.mrb[0].mxu0
      %v2109 = vadd.f32 0.0, %v2108
      %v2110 = vpop.f32.mrb[0].mxu0
      %v2111 = vpop.f32.mrb[0].mxu0
      %v2112 = vadd.f32 0.0, %v2111
      %v2113 = vpop.f32.mrb[0].mxu0
      %2114 = vmatprep.mubr.bf16.mxu0 0
      %2115 = vmatmul.mubr.bf16.gmra.mrb[0].mxu0 %v1897
      %v2116 = vpop.f32.mrb[0].mxu0
      %v2117 = vadd.f32 0.0, %v2116
      %v2118 = vpop.f32.mrb[0].mxu0
      %v2119 = vpop.f32.mrb[0].mxu0
      %v2120 = vadd.f32 0.0, %v2119
      %v2121 = vpop.f32.mrb[0].mxu0
      %2122 = vdwg.mxu0
      %v2155 = vunpack.c.l.b16 %v1382
      %v2156 = vunpack.c.l.b16 %v1383
      %v2157 = vunpack.c.l.b16 %v1384
      %v2158 = vunpack.c.l.b16 %v1385
      %v2159 = vunpack.c.l.b16 %v1386
      %v2160 = vunpack.c.l.b16 %v1387
      %v2161 = vunpack.c.l.b16 %v1388
      %v2162 = vunpack.c.l.b16 %v1389
      %v2163 = vunpack.c.l.b16 %v1390
      %v2164 = vunpack.c.l.b16 %v1391
      %v2165 = vunpack.c.l.b16 %v1392
      %v2166 = vunpack.c.l.b16 %v1393
      %v2167 = vunpack.c.l.b16 %v1394
      %v2168 = vunpack.c.l.b16 %v1395
      %v2169 = vunpack.c.l.b16 %v1396
      %v2170 = vunpack.c.l.b16 %v1397
      %v2171 = vunpack.c.l.b16 %v1398
      %v2172 = vunpack.c.l.b16 %v1399
      %v2173 = vunpack.c.l.b16 %v1400
      %v2174 = vunpack.c.l.b16 %v1401
      %v2175 = vunpack.c.l.b16 %v1402
      %v2176 = vunpack.c.l.b16 %v1403
      %v2177 = vunpack.c.l.b16 %v1404
      %v2178 = vunpack.c.l.b16 %v1405
      %v2179 = vunpack.c.l.b16 %v1406
      %v2180 = vunpack.c.l.b16 %v1407
      %v2181 = vunpack.c.l.b16 %v1408
      %v2182 = vunpack.c.l.b16 %v1409
      %v2183 = vunpack.c.l.b16 %v1410
      %v2184 = vunpack.c.l.b16 %v1411
      %v2185 = vunpack.c.l.b16 %v1412
      %v2186 = vunpack.c.l.b16 %v1413
      %v2187 = vpack.c.b16 %v2156, %v2155
      %v2188 = vpack.c.b16 %v2158, %v2157
      %v2189 = vpack.c.b16 %v2160, %v2159
      %v2190 = vpack.c.b16 %v2162, %v2161
      %v2191 = vpack.c.b16 %v2164, %v2163
      %v2192 = vpack.c.b16 %v2166, %v2165
      %v2193 = vpack.c.b16 %v2168, %v2167
      %v2194 = vpack.c.b16 %v2170, %v2169
      %v2195 = vpack.c.b16 %v2172, %v2171
      %v2196 = vpack.c.b16 %v2174, %v2173
      %v2197 = vpack.c.b16 %v2176, %v2175
      %v2198 = vpack.c.b16 %v2178, %v2177
      %v2199 = vpack.c.b16 %v2180, %v2179
      %v2200 = vpack.c.b16 %v2182, %v2181
      %v2201 = vpack.c.b16 %v2184, %v2183
      %v2202 = vpack.c.b16 %v2186, %v2185
      %v2235 = vunpack.c.l.b16 %v1414
      %v2236 = vunpack.c.l.b16 %v1415
      %v2237 = vunpack.c.l.b16 %v1416
      %v2238 = vunpack.c.l.b16 %v1417
      %v2239 = vunpack.c.l.b16 %v1418
      %v2240 = vunpack.c.l.b16 %v1419
      %v2241 = vunpack.c.l.b16 %v1420
      %v2242 = vunpack.c.l.b16 %v1421
      %v2243 = vunpack.c.l.b16 %v1422
      %v2244 = vunpack.c.l.b16 %v1423
      %v2245 = vunpack.c.l.b16 %v1424
      %v2246 = vunpack.c.l.b16 %v1425
      %v2247 = vunpack.c.l.b16 %v1426
      %v2248 = vunpack.c.l.b16 %v1427
      %v2249 = vunpack.c.l.b16 %v1428
      %v2250 = vunpack.c.l.b16 %v1429
      %v2251 = vpack.c.b16 %v2236, %v2235
      %v2252 = vpack.c.b16 %v2238, %v2237
      %v2253 = vpack.c.b16 %v2240, %v2239
      %v2254 = vpack.c.b16 %v2242, %v2241
      %v2255 = vpack.c.b16 %v2244, %v2243
      %v2256 = vpack.c.b16 %v2246, %v2245
      %v2257 = vpack.c.b16 %v2248, %v2247
      %v2258 = vpack.c.b16 %v2250, %v2249
      %2267 = vmatprep.subr.bf16.mxu0 0
      %2268 = vmatpush1.bf16.msra.mxu0 %v2251
      %2269 = vmatprep.subr.bf16.mxu0 0
      %2270 = vmatpush1.bf16.msra.mxu0 %v2252
      %2271 = vmatprep.subr.bf16.mxu0 0
      %2272 = vmatpush1.bf16.msra.mxu0 %v2253
      %2273 = vmatprep.subr.bf16.mxu0 0
      %2274 = vmatpush1.bf16.msra.mxu0 %v2254
      %2275 = vmatprep.subr.bf16.mxu0 0
      %2276 = vmatpush1.bf16.msra.mxu0 %v2255
      %2277 = vmatprep.subr.bf16.mxu0 0
      %2278 = vmatpush1.bf16.msra.mxu0 %v2256
      %2279 = vmatprep.subr.bf16.mxu0 0
      %2280 = vmatpush1.bf16.msra.mxu0 %v2257
      %2281 = vmatprep.subr.bf16.mxu0 0
      %2282 = vmatpush1.bf16.msra.mxu0 %v2258
      %2283 = vmatprep.subr.bf16.mxu0 0
      %2284 = vmatpush1.bf16.msra.mxu0 0
      %2285 = vmatprep.subr.bf16.mxu0 0
      %2286 = vmatpush1.bf16.msra.mxu0 0
      %2287 = vmatprep.subr.bf16.mxu0 0
      %2288 = vmatpush1.bf16.msra.mxu0 0
      %2289 = vmatprep.subr.bf16.mxu0 0
      %2290 = vmatpush1.bf16.msra.mxu0 0
      %2291 = vmatprep.subr.bf16.mxu0 0
      %2292 = vmatpush1.bf16.msra.mxu0 0
      %2293 = vmatprep.subr.bf16.mxu0 0
      %2294 = vmatpush1.bf16.msra.mxu0 0
      %2295 = vmatprep.subr.bf16.mxu0 0
      %2296 = vmatpush1.bf16.msra.mxu0 0
      %2297 = vmatprep.subr.bf16.mxu0 0
      %2298 = vmatpush1.bf16.msra.mxu0 0
      %2299 = vmatprep.mubr.bf16.mxu0 0
      %2300 = vmatmul.mubr.bf16.gmra.mrb[0].mxu0 %v2187
      %v2301 = vpop.f32.mrb[0].mxu0
      %v2302 = vadd.f32 %v1997, %v2301
      %v2303 = vpop.f32.mrb[0].mxu0
      %v2304 = vpop.f32.mrb[0].mxu0
      %v2305 = vadd.f32 %v2000, %v2304
      %v2306 = vpop.f32.mrb[0].mxu0
      %2307 = vmatprep.mubr.bf16.mxu0 0
      %2308 = vmatmul.mubr.bf16.gmra.mrb[0].mxu0 %v2188
      %v2309 = vpop.f32.mrb[0].mxu0
      %v2310 = vadd.f32 %v2005, %v2309
      %v2311 = vpop.f32.mrb[0].mxu0
      %v2312 = vpop.f32.mrb[0].mxu0
      %v2313 = vadd.f32 %v2008, %v2312
      %v2314 = vpop.f32.mrb[0].mxu0
      %2315 = vmatprep.mubr.bf16.mxu0 0
      %2316 = vmatmul.mubr.bf16.gmra.mrb[0].mxu0 %v2189
      %v2317 = vpop.f32.mrb[0].mxu0
      %v2318 = vadd.f32 %v2013, %v2317
      %v2319 = vpop.f32.mrb[0].mxu0
      %v2320 = vpop.f32.mrb[0].mxu0
      %v2321 = vadd.f32 %v2016, %v2320
      %v2322 = vpop.f32.mrb[0].mxu0
      %2323 = vmatprep.mubr.bf16.mxu0 0
      %2324 = vmatmul.mubr.bf16.gmra.mrb[0].mxu0 %v2190
      %v2325 = vpop.f32.mrb[0].mxu0
      %v2326 = vadd.f32 %v2021, %v2325
      %v2327 = vpop.f32.mrb[0].mxu0
      %v2328 = vpop.f32.mrb[0].mxu0
      %v2329 = vadd.f32 %v2024, %v2328
      %v2330 = vpop.f32.mrb[0].mxu0
      %2331 = vmatprep.mubr.bf16.mxu0 0
      %2332 = vmatmul.mubr.bf16.gmra.mrb[0].mxu0 %v2191
      %v2333 = vpop.f32.mrb[0].mxu0
      %v2334 = vadd.f32 %v2029, %v2333
      %v2335 = vpop.f32.mrb[0].mxu0
      %v2336 = vpop.f32.mrb[0].mxu0
      %v2337 = vadd.f32 %v2032, %v2336
      %v2338 = vpop.f32.mrb[0].mxu0
      %2339 = vmatprep.mubr.bf16.mxu0 0
      %2340 = vmatmul.mubr.bf16.gmra.mrb[0].mxu0 %v2192
      %v2341 = vpop.f32.mrb[0].mxu0
      %v2342 = vadd.f32 %v2037, %v2341
      %v2343 = vpop.f32.mrb[0].mxu0
      %v2344 = vpop.f32.mrb[0].mxu0
      %v2345 = vadd.f32 %v2040, %v2344
      %v2346 = vpop.f32.mrb[0].mxu0
      %2347 = vmatprep.mubr.bf16.mxu0 0
      %2348 = vmatmul.mubr.bf16.gmra.mrb[0].mxu0 %v2193
      %v2349 = vpop.f32.mrb[0].mxu0
      %v2350 = vadd.f32 %v2045, %v2349
      %v2351 = vpop.f32.mrb[0].mxu0
      %v2352 = vpop.f32.mrb[0].mxu0
      %v2353 = vadd.f32 %v2048, %v2352
      %v2354 = vpop.f32.mrb[0].mxu0
      %2355 = vmatprep.mubr.bf16.mxu0 0
      %2356 = vmatmul.mubr.bf16.gmra.mrb[0].mxu0 %v2194
      %v2357 = vpop.f32.mrb[0].mxu0
      %v2358 = vadd.f32 %v2053, %v2357
      %v2359 = vpop.f32.mrb[0].mxu0
      %v2360 = vpop.f32.mrb[0].mxu0
      %v2361 = vadd.f32 %v2056, %v2360
      %v2362 = vpop.f32.mrb[0].mxu0
      %2363 = vmatprep.mubr.bf16.mxu0 0
      %2364 = vmatmul.mubr.bf16.gmra.mrb[0].mxu0 %v2195
      %v2365 = vpop.f32.mrb[0].mxu0
      %v2366 = vadd.f32 %v2061, %v2365
      %v2367 = vpop.f32.mrb[0].mxu0
      %v2368 = vpop.f32.mrb[0].mxu0
      %v2369 = vadd.f32 %v2064, %v2368
      %v2370 = vpop.f32.mrb[0].mxu0
      %2371 = vmatprep.mubr.bf16.mxu0 0
      %2372 = vmatmul.mubr.bf16.gmra.mrb[0].mxu0 %v2196
      %v2373 = vpop.f32.mrb[0].mxu0
      %v2374 = vadd.f32 %v2069, %v2373
      %v2375 = vpop.f32.mrb[0].mxu0
      %v2376 = vpop.f32.mrb[0].mxu0
      %v2377 = vadd.f32 %v2072, %v2376
      %v2378 = vpop.f32.mrb[0].mxu0
      %2379 = vmatprep.mubr.bf16.mxu0 0
      %2380 = vmatmul.mubr.bf16.gmra.mrb[0].mxu0 %v2197
      %v2381 = vpop.f32.mrb[0].mxu0
      %v2382 = vadd.f32 %v2077, %v2381
      %v2383 = vpop.f32.mrb[0].mxu0
      %v2384 = vpop.f32.mrb[0].mxu0
      %v2385 = vadd.f32 %v2080, %v2384
      %v2386 = vpop.f32.mrb[0].mxu0
      %2387 = vmatprep.mubr.bf16.mxu0 0
      %2388 = vmatmul.mubr.bf16.gmra.mrb[0].mxu0 %v2198
      %v2389 = vpop.f32.mrb[0].mxu0
      %v2390 = vadd.f32 %v2085, %v2389
      %v2391 = vpop.f32.mrb[0].mxu0
      %v2392 = vpop.f32.mrb[0].mxu0
      %v2393 = vadd.f32 %v2088, %v2392
      %v2394 = vpop.f32.mrb[0].mxu0
      %2395 = vmatprep.mubr.bf16.mxu0 0
      %2396 = vmatmul.mubr.bf16.gmra.mrb[0].mxu0 %v2199
      %v2397 = vpop.f32.mrb[0].mxu0
      %v2398 = vadd.f32 %v2093, %v2397
      %v2399 = vpop.f32.mrb[0].mxu0
      %v2400 = vpop.f32.mrb[0].mxu0
      %v2401 = vadd.f32 %v2096, %v2400
      %v2402 = vpop.f32.mrb[0].mxu0
      %2403 = vmatprep.mubr.bf16.mxu0 0
      %2404 = vmatmul.mubr.bf16.gmra.mrb[0].mxu0 %v2200
      %v2405 = vpop.f32.mrb[0].mxu0
      %v2406 = vadd.f32 %v2101, %v2405
      %v2407 = vpop.f32.mrb[0].mxu0
      %v2408 = vpop.f32.mrb[0].mxu0
      %v2409 = vadd.f32 %v2104, %v2408
      %v2410 = vpop.f32.mrb[0].mxu0
      %2411 = vmatprep.mubr.bf16.mxu0 0
      %2412 = vmatmul.mubr.bf16.gmra.mrb[0].mxu0 %v2201
      %v2413 = vpop.f32.mrb[0].mxu0
      %v2414 = vadd.f32 %v2109, %v2413
      %v2415 = vpop.f32.mrb[0].mxu0
      %v2416 = vpop.f32.mrb[0].mxu0
      %v2417 = vadd.f32 %v2112, %v2416
      %v2418 = vpop.f32.mrb[0].mxu0
      %2419 = vmatprep.mubr.bf16.mxu0 0
      %2420 = vmatmul.mubr.bf16.gmra.mrb[0].mxu0 %v2202
      %v2421 = vpop.f32.mrb[0].mxu0
      %v2422 = vadd.f32 %v2117, %v2421
      %v2423 = vpop.f32.mrb[0].mxu0
      %v2424 = vpop.f32.mrb[0].mxu0
      %v2425 = vadd.f32 %v2120, %v2424
      %v2426 = vpop.f32.mrb[0].mxu0
      %2427 = vdwg.mxu0
      %v2428 = vld [vmem:[#allocation2] sm:$0xe]
      %v2429 = vld [vmem:[#allocation2 + $0xc] sm:$0xe]
      %v2430 = vld [vmem:[#allocation2 + $0x18] sm:$0xe]
      %v2431 = vld [vmem:[#allocation2 + $0x24] sm:$0xe]
      %v2432 = vld [vmem:[#allocation2 + $0x30] sm:$0xe]
      %v2433 = vld [vmem:[#allocation2 + $0x3c] sm:$0xe]
      %v2434 = vld [vmem:[#allocation2 + $0x48] sm:$0xe]
      %v2435 = vld [vmem:[#allocation2 + $0x54] sm:$0xe]
      %v2436 = vld [vmem:[#allocation2 + $0x60] sm:$0xe]
      %v2437 = vld [vmem:[#allocation2 + $0x6c] sm:$0xe]
      %v2438 = vld [vmem:[#allocation2 + $0x78] sm:$0xe]
      %v2439 = vld [vmem:[#allocation2 + $0x84] sm:$0xe]
      %v2440 = vld [vmem:[#allocation2 + $0x90] sm:$0xe]
      %v2441 = vld [vmem:[#allocation2 + $0x9c] sm:$0xe]
      %v2442 = vld [vmem:[#allocation2 + $0xa8] sm:$0xe]
      %v2443 = vld [vmem:[#allocation2 + $0xb4] sm:$0xe]
      %vm2476 = vcmask 1042432
      %vm2477 = vcmask 1046532
      %vm2478 = vmor %vm2476, %vm2477
      %v2479 = vrot.slane %v2428, 5
      %v2480 = vrot.slane %v2479, 4
      %v2481 = vrot.slane %v1383, 5
      %v2482 = vsel %vm2478, %v2480, %v2481
      %v2483 = vrot.slane %v2481, 4
      %v2484 = vrot.slane %v1430, 5
      %v2485 = vsel %vm2478, %v2483, %v2484
      %v2486 = vrot.slane %v2429, 5
      %v2487 = vrot.slane %v2486, 4
      %v2488 = vrot.slane %v1385, 5
      %v2489 = vsel %vm2478, %v2487, %v2488
      %v2490 = vrot.slane %v2488, 4
      %v2491 = vrot.slane %v1431, 5
      %v2492 = vsel %vm2478, %v2490, %v2491
      %v2493 = vrot.slane %v2430, 5
      %v2494 = vrot.slane %v2493, 4
      %v2495 = vrot.slane %v1387, 5
      %v2496 = vsel %vm2478, %v2494, %v2495
      %v2497 = vrot.slane %v2495, 4
      %v2498 = vrot.slane %v1432, 5
      %v2499 = vsel %vm2478, %v2497, %v2498
      %v2500 = vrot.slane %v2431, 5
      %v2501 = vrot.slane %v2500, 4
      %v2502 = vrot.slane %v1389, 5
      %v2503 = vsel %vm2478, %v2501, %v2502
      %v2504 = vrot.slane %v2502, 4
      %v2505 = vrot.slane %v1433, 5
      %v2506 = vsel %vm2478, %v2504, %v2505
      %v2507 = vrot.slane %v2432, 5
      %v2508 = vrot.slane %v2507, 4
      %v2509 = vrot.slane %v1391, 5
      %v2510 = vsel %vm2478, %v2508, %v2509
      %v2511 = vrot.slane %v2509, 4
      %v2512 = vrot.slane %v1434, 5
      %v2513 = vsel %vm2478, %v2511, %v2512
      %v2514 = vrot.slane %v2433, 5
      %v2515 = vrot.slane %v2514, 4
      %v2516 = vrot.slane %v1393, 5
      %v2517 = vsel %vm2478, %v2515, %v2516
      %v2518 = vrot.slane %v2516, 4
      %v2519 = vrot.slane %v1435, 5
      %v2520 = vsel %vm2478, %v2518, %v2519
      %v2521 = vrot.slane %v2434, 5
      %v2522 = vrot.slane %v2521, 4
      %v2523 = vrot.slane %v1395, 5
      %v2524 = vsel %vm2478, %v2522, %v2523
      %v2525 = vrot.slane %v2523, 4
      %v2526 = vrot.slane %v1436, 5
      %v2527 = vsel %vm2478, %v2525, %v2526
      %v2528 = vrot.slane %v2435, 5
      %v2529 = vrot.slane %v2528, 4
      %v2530 = vrot.slane %v1397, 5
      %v2531 = vsel %vm2478, %v2529, %v2530
      %v2532 = vrot.slane %v2530, 4
      %v2533 = vrot.slane %v1437, 5
      %v2534 = vsel %vm2478, %v2532, %v2533
      %v2535 = vrot.slane %v2436, 5
      %v2536 = vrot.slane %v2535, 4
      %v2537 = vrot.slane %v1399, 5
      %v2538 = vsel %vm2478, %v2536, %v2537
      %v2539 = vrot.slane %v2537, 4
      %v2540 = vrot.slane %v1438, 5
      %v2541 = vsel %vm2478, %v2539, %v2540
      %v2542 = vrot.slane %v2437, 5
      %v2543 = vrot.slane %v2542, 4
      %v2544 = vrot.slane %v1401, 5
      %v2545 = vsel %vm2478, %v2543, %v2544
      %v2546 = vrot.slane %v2544, 4
      %v2547 = vrot.slane %v1439, 5
      %v2548 = vsel %vm2478, %v2546, %v2547
      %v2549 = vrot.slane %v2438, 5
      %v2550 = vrot.slane %v2549, 4
      %v2551 = vrot.slane %v1403, 5
      %v2552 = vsel %vm2478, %v2550, %v2551
      %v2553 = vrot.slane %v2551, 4
      %v2554 = vrot.slane %v1440, 5
      %v2555 = vsel %vm2478, %v2553, %v2554
      %v2556 = vrot.slane %v2439, 5
      %v2557 = vrot.slane %v2556, 4
      %v2558 = vrot.slane %v1405, 5
      %v2559 = vsel %vm2478, %v2557, %v2558
      %v2560 = vrot.slane %v2558, 4
      %v2561 = vrot.slane %v1441, 5
      %v2562 = vsel %vm2478, %v2560, %v2561
      %v2563 = vrot.slane %v2440, 5
      %v2564 = vrot.slane %v2563, 4
      %v2565 = vrot.slane %v1407, 5
      %v2566 = vsel %vm2478, %v2564, %v2565
      %v2567 = vrot.slane %v2565, 4
      %v2568 = vrot.slane %v1442, 5
      %v2569 = vsel %vm2478, %v2567, %v2568
      %v2570 = vrot.slane %v2441, 5
      %v2571 = vrot.slane %v2570, 4
      %v2572 = vrot.slane %v1409, 5
      %v2573 = vsel %vm2478, %v2571, %v2572
      %v2574 = vrot.slane %v2572, 4
      %v2575 = vrot.slane %v1443, 5
      %v2576 = vsel %vm2478, %v2574, %v2575
      %v2577 = vrot.slane %v2442, 5
      %v2578 = vrot.slane %v2577, 4
      %v2579 = vrot.slane %v1411, 5
      %v2580 = vsel %vm2478, %v2578, %v2579
      %v2581 = vrot.slane %v2579, 4
      %v2582 = vrot.slane %v1444, 5
      %v2583 = vsel %vm2478, %v2581, %v2582
      %v2584 = vrot.slane %v2443, 5
      %v2585 = vrot.slane %v2584, 4
      %v2586 = vrot.slane %v1413, 5
      %v2587 = vsel %vm2478, %v2585, %v2586
      %v2588 = vrot.slane %v2586, 4
      %v2589 = vrot.slane %v1445, 5
      %v2590 = vsel %vm2478, %v2588, %v2589
      %s2591 = scalar_lea.vmem %s5, 128
      %v2592 = vld [vmem:[%s2591] sm:$0xf]
      %v2593 = vld [vmem:[%s2591 + $0x4] sm:$0xf]
      %v2594 = vld [vmem:[%s2591 + $0x8] sm:$0xf]
      %v2595 = vld [vmem:[%s2591 + $0xc] sm:$0xf]
      %v2596 = vld [vmem:[%s2591 + $0x10] sm:$0xf]
      %v2597 = vld [vmem:[%s2591 + $0x14] sm:$0xf]
      %v2598 = vld [vmem:[%s2591 + $0x18] sm:$0xf]
      %v2599 = vld [vmem:[%s2591 + $0x1c] sm:$0xf]
      %v2600 = vld [vmem:[%s2591 + $0x20] sm:$0xf]
      %v2601 = vld [vmem:[%s2591 + $0x24] sm:$0xf]
      %v2602 = vld [vmem:[%s2591 + $0x28] sm:$0xf]
      %v2603 = vld [vmem:[%s2591 + $0x2c] sm:$0xf]
      %v2604 = vld [vmem:[%s2591 + $0x30] sm:$0xf]
      %v2605 = vld [vmem:[%s2591 + $0x34] sm:$0xf]
      %v2606 = vld [vmem:[%s2591 + $0x38] sm:$0xf]
      %v2607 = vld [vmem:[%s2591 + $0x3c] sm:$0xf]
      %v2608 = vunpack.c.l.b16 %v2482
      %v2609 = vunpack.c.l.b16 %v2485
      %v2610 = vunpack.c.l.b16 %v2489
      %v2611 = vunpack.c.l.b16 %v2492
      %v2612 = vunpack.c.l.b16 %v2496
      %v2613 = vunpack.c.l.b16 %v2499
      %v2614 = vunpack.c.l.b16 %v2503
      %v2615 = vunpack.c.l.b16 %v2506
      %v2616 = vunpack.c.l.b16 %v2510
      %v2617 = vunpack.c.l.b16 %v2513
      %v2618 = vunpack.c.l.b16 %v2517
      %v2619 = vunpack.c.l.b16 %v2520
      %v2620 = vunpack.c.l.b16 %v2524
      %v2621 = vunpack.c.l.b16 %v2527
      %v2622 = vunpack.c.l.b16 %v2531
      %v2623 = vunpack.c.l.b16 %v2534
      %v2624 = vunpack.c.l.b16 %v2538
      %v2625 = vunpack.c.l.b16 %v2541
      %v2626 = vunpack.c.l.b16 %v2545
      %v2627 = vunpack.c.l.b16 %v2548
      %v2628 = vunpack.c.l.b16 %v2552
      %v2629 = vunpack.c.l.b16 %v2555
      %v2630 = vunpack.c.l.b16 %v2559
      %v2631 = vunpack.c.l.b16 %v2562
      %v2632 = vunpack.c.l.b16 %v2566
      %v2633 = vunpack.c.l.b16 %v2569
      %v2634 = vunpack.c.l.b16 %v2573
      %v2635 = vunpack.c.l.b16 %v2576
      %v2636 = vunpack.c.l.b16 %v2580
      %v2637 = vunpack.c.l.b16 %v2583
      %v2638 = vunpack.c.l.b16 %v2587
      %v2639 = vunpack.c.l.b16 %v2590
      %v2640 = vpack.c.b16 %v2609, %v2608
      %v2641 = vpack.c.b16 %v2611, %v2610
      %v2642 = vpack.c.b16 %v2613, %v2612
      %v2643 = vpack.c.b16 %v2615, %v2614
      %v2644 = vpack.c.b16 %v2617, %v2616
      %v2645 = vpack.c.b16 %v2619, %v2618
      %v2646 = vpack.c.b16 %v2621, %v2620
      %v2647 = vpack.c.b16 %v2623, %v2622
      %v2648 = vpack.c.b16 %v2625, %v2624
      %v2649 = vpack.c.b16 %v2627, %v2626
      %v2650 = vpack.c.b16 %v2629, %v2628
      %v2651 = vpack.c.b16 %v2631, %v2630
      %v2652 = vpack.c.b16 %v2633, %v2632
      %v2653 = vpack.c.b16 %v2635, %v2634
      %v2654 = vpack.c.b16 %v2637, %v2636
      %v2655 = vpack.c.b16 %v2639, %v2638
      %v2688 = vunpack.c.l.b16 %v2592
      %v2689 = vunpack.c.l.b16 %v2593
      %v2690 = vunpack.c.l.b16 %v2594
      %v2691 = vunpack.c.l.b16 %v2595
      %v2692 = vunpack.c.l.b16 %v2596
      %v2693 = vunpack.c.l.b16 %v2597
      %v2694 = vunpack.c.l.b16 %v2598
      %v2695 = vunpack.c.l.b16 %v2599
      %v2696 = vunpack.c.l.b16 %v2600
      %v2697 = vunpack.c.l.b16 %v2601
      %v2698 = vunpack.c.l.b16 %v2602
      %v2699 = vunpack.c.l.b16 %v2603
      %v2700 = vunpack.c.l.b16 %v2604
      %v2701 = vunpack.c.l.b16 %v2605
      %v2702 = vunpack.c.l.b16 %v2606
      %v2703 = vunpack.c.l.b16 %v2607
      %v2704 = vpack.c.b16 %v2689, %v2688
      %v2705 = vpack.c.b16 %v2691, %v2690
      %v2706 = vpack.c.b16 %v2693, %v2692
      %v2707 = vpack.c.b16 %v2695, %v2694
      %v2708 = vpack.c.b16 %v2697, %v2696
      %v2709 = vpack.c.b16 %v2699, %v2698
      %v2710 = vpack.c.b16 %v2701, %v2700
      %v2711 = vpack.c.b16 %v2703, %v2702
      %2720 = vmatprep.subr.bf16.mxu0 0
      %2721 = vmatpush1.bf16.msra.mxu0 %v2704
      %2722 = vmatprep.subr.bf16.mxu0 0
      %2723 = vmatpush1.bf16.msra.mxu0 %v2705
      %2724 = vmatprep.subr.bf16.mxu0 0
      %2725 = vmatpush1.bf16.msra.mxu0 %v2706
      %2726 = vmatprep.subr.bf16.mxu0 0
      %2727 = vmatpush1.bf16.msra.mxu0 %v2707
      %2728 = vmatprep.subr.bf16.mxu0 0
      %2729 = vmatpush1.bf16.msra.mxu0 %v2708
      %2730 = vmatprep.subr.bf16.mxu0 0
      %2731 = vmatpush1.bf16.msra.mxu0 %v2709
      %2732 = vmatprep.subr.bf16.mxu0 0
      %2733 = vmatpush1.bf16.msra.mxu0 %v2710
      %2734 = vmatprep.subr.bf16.mxu0 0
      %2735 = vmatpush1.bf16.msra.mxu0 %v2711
      %2736 = vmatprep.subr.bf16.mxu0 0
      %2737 = vmatpush1.bf16.msra.mxu0 0
      %2738 = vmatprep.subr.bf16.mxu0 0
      %2739 = vmatpush1.bf16.msra.mxu0 0
      %2740 = vmatprep.subr.bf16.mxu0 0
      %2741 = vmatpush1.bf16.msra.mxu0 0
      %2742 = vmatprep.subr.bf16.mxu0 0
      %2743 = vmatpush1.bf16.msra.mxu0 0
      %2744 = vmatprep.subr.bf16.mxu0 0
      %2745 = vmatpush1.bf16.msra.mxu0 0
      %2746 = vmatprep.subr.bf16.mxu0 0
      %2747 = vmatpush1.bf16.msra.mxu0 0
      %2748 = vmatprep.subr.bf16.mxu0 0
      %2749 = vmatpush1.bf16.msra.mxu0 0
      %2750 = vmatprep.subr.bf16.mxu0 0
      %2751 = vmatpush1.bf16.msra.mxu0 0
      %2752 = vmatprep.mubr.bf16.mxu0 0
      %2753 = vmatmul.mubr.bf16.gmra.mrb[0].mxu0 %v2640
      %v2754 = vpop.f32.mrb[0].mxu0
      %v2755 = vadd.f32 0.0, %v2754
      %v2756 = vpop.f32.mrb[0].mxu0
      %v2757 = vpop.f32.mrb[0].mxu0
      %v2758 = vadd.f32 0.0, %v2757
      %v2759 = vpop.f32.mrb[0].mxu0
      %2760 = vmatprep.mubr.bf16.mxu0 0
      %2761 = vmatmul.mubr.bf16.gmra.mrb[0].mxu0 %v2641
      %v2762 = vpop.f32.mrb[0].mxu0
      %v2763 = vadd.f32 0.0, %v2762
      %v2764 = vpop.f32.mrb[0].mxu0
      %v2765 = vpop.f32.mrb[0].mxu0
      %v2766 = vadd.f32 0.0, %v2765
      %v2767 = vpop.f32.mrb[0].mxu0
      %2768 = vmatprep.mubr.bf16.mxu0 0
      %2769 = vmatmul.mubr.bf16.gmra.mrb[0].mxu0 %v2642
      %v2770 = vpop.f32.mrb[0].mxu0
      %v2771 = vadd.f32 0.0, %v2770
      %v2772 = vpop.f32.mrb[0].mxu0
      %v2773 = vpop.f32.mrb[0].mxu0
      %v2774 = vadd.f32 0.0, %v2773
      %v2775 = vpop.f32.mrb[0].mxu0
      %2776 = vmatprep.mubr.bf16.mxu0 0
      %2777 = vmatmul.mubr.bf16.gmra.mrb[0].mxu0 %v2643
      %v2778 = vpop.f32.mrb[0].mxu0
      %v2779 = vadd.f32 0.0, %v2778
      %v2780 = vpop.f32.mrb[0].mxu0
      %v2781 = vpop.f32.mrb[0].mxu0
      %v2782 = vadd.f32 0.0, %v2781
      %v2783 = vpop.f32.mrb[0].mxu0
      %2784 = vmatprep.mubr.bf16.mxu0 0
      %2785 = vmatmul.mubr.bf16.gmra.mrb[0].mxu0 %v2644
      %v2786 = vpop.f32.mrb[0].mxu0
      %v2787 = vadd.f32 0.0, %v2786
      %v2788 = vpop.f32.mrb[0].mxu0
      %v2789 = vpop.f32.mrb[0].mxu0
      %v2790 = vadd.f32 0.0, %v2789
      %v2791 = vpop.f32.mrb[0].mxu0
      %2792 = vmatprep.mubr.bf16.mxu0 0
      %2793 = vmatmul.mubr.bf16.gmra.mrb[0].mxu0 %v2645
      %v2794 = vpop.f32.mrb[0].mxu0
      %v2795 = vadd.f32 0.0, %v2794
      %v2796 = vpop.f32.mrb[0].mxu0
      %v2797 = vpop.f32.mrb[0].mxu0
      %v2798 = vadd.f32 0.0, %v2797
      %v2799 = vpop.f32.mrb[0].mxu0
      %2800 = vmatprep.mubr.bf16.mxu0 0
      %2801 = vmatmul.mubr.bf16.gmra.mrb[0].mxu0 %v2646
      %v2802 = vpop.f32.mrb[0].mxu0
      %v2803 = vadd.f32 0.0, %v2802
      %v2804 = vpop.f32.mrb[0].mxu0
      %v2805 = vpop.f32.mrb[0].mxu0
      %v2806 = vadd.f32 0.0, %v2805
      %v2807 = vpop.f32.mrb[0].mxu0
      %2808 = vmatprep.mubr.bf16.mxu0 0
      %2809 = vmatmul.mubr.bf16.gmra.mrb[0].mxu0 %v2647
      %v2810 = vpop.f32.mrb[0].mxu0
      %v2811 = vadd.f32 0.0, %v2810
      %v2812 = vpop.f32.mrb[0].mxu0
      %v2813 = vpop.f32.mrb[0].mxu0
      %v2814 = vadd.f32 0.0, %v2813
      %v2815 = vpop.f32.mrb[0].mxu0
      %2816 = vmatprep.mubr.bf16.mxu0 0
      %2817 = vmatmul.mubr.bf16.gmra.mrb[0].mxu0 %v2648
      %v2818 = vpop.f32.mrb[0].mxu0
      %v2819 = vadd.f32 0.0, %v2818
      %v2820 = vpop.f32.mrb[0].mxu0
      %v2821 = vpop.f32.mrb[0].mxu0
      %v2822 = vadd.f32 0.0, %v2821
      %v2823 = vpop.f32.mrb[0].mxu0
      %2824 = vmatprep.mubr.bf16.mxu0 0
      %2825 = vmatmul.mubr.bf16.gmra.mrb[0].mxu0 %v2649
      %v2826 = vpop.f32.mrb[0].mxu0
      %v2827 = vadd.f32 0.0, %v2826
      %v2828 = vpop.f32.mrb[0].mxu0
      %v2829 = vpop.f32.mrb[0].mxu0
      %v2830 = vadd.f32 0.0, %v2829
      %v2831 = vpop.f32.mrb[0].mxu0
      %2832 = vmatprep.mubr.bf16.mxu0 0
      %2833 = vmatmul.mubr.bf16.gmra.mrb[0].mxu0 %v2650
      %v2834 = vpop.f32.mrb[0].mxu0
      %v2835 = vadd.f32 0.0, %v2834
      %v2836 = vpop.f32.mrb[0].mxu0
      %v2837 = vpop.f32.mrb[0].mxu0
      %v2838 = vadd.f32 0.0, %v2837
      %v2839 = vpop.f32.mrb[0].mxu0
      %2840 = vmatprep.mubr.bf16.mxu0 0
      %2841 = vmatmul.mubr.bf16.gmra.mrb[0].mxu0 %v2651
      %v2842 = vpop.f32.mrb[0].mxu0
      %v2843 = vadd.f32 0.0, %v2842
      %v2844 = vpop.f32.mrb[0].mxu0
      %v2845 = vpop.f32.mrb[0].mxu0
      %v2846 = vadd.f32 0.0, %v2845
      %v2847 = vpop.f32.mrb[0].mxu0
      %2848 = vmatprep.mubr.bf16.mxu0 0
      %2849 = vmatmul.mubr.bf16.gmra.mrb[0].mxu0 %v2652
      %v2850 = vpop.f32.mrb[0].mxu0
      %v2851 = vadd.f32 0.0, %v2850
      %v2852 = vpop.f32.mrb[0].mxu0
      %v2853 = vpop.f32.mrb[0].mxu0
      %v2854 = vadd.f32 0.0, %v2853
      %v2855 = vpop.f32.mrb[0].mxu0
      %2856 = vmatprep.mubr.bf16.mxu0 0
      %2857 = vmatmul.mubr.bf16.gmra.mrb[0].mxu0 %v2653
      %v2858 = vpop.f32.mrb[0].mxu0
      %v2859 = vadd.f32 0.0, %v2858
      %v2860 = vpop.f32.mrb[0].mxu0
      %v2861 = vpop.f32.mrb[0].mxu0
      %v2862 = vadd.f32 0.0, %v2861
      %v2863 = vpop.f32.mrb[0].mxu0
      %2864 = vmatprep.mubr.bf16.mxu0 0
      %2865 = vmatmul.mubr.bf16.gmra.mrb[0].mxu0 %v2654
      %v2866 = vpop.f32.mrb[0].mxu0
      %v2867 = vadd.f32 0.0, %v2866
      %v2868 = vpop.f32.mrb[0].mxu0
      %v2869 = vpop.f32.mrb[0].mxu0
      %v2870 = vadd.f32 0.0, %v2869
      %v2871 = vpop.f32.mrb[0].mxu0
      %2872 = vmatprep.mubr.bf16.mxu0 0
      %2873 = vmatmul.mubr.bf16.gmra.mrb[0].mxu0 %v2655
      %v2874 = vpop.f32.mrb[0].mxu0
      %v2875 = vadd.f32 0.0, %v2874
      %v2876 = vpop.f32.mrb[0].mxu0
      %v2877 = vpop.f32.mrb[0].mxu0
      %v2878 = vadd.f32 0.0, %v2877
      %v2879 = vpop.f32.mrb[0].mxu0
      %2880 = vdwg.mxu0
      %v2881 = vadd.f32 %v2302, %v2755
      %v2882 = vadd.f32 %v2305, %v2758
      %v2883 = vadd.f32 %v2310, %v2763
      %v2884 = vadd.f32 %v2313, %v2766
      %v2885 = vadd.f32 %v2318, %v2771
      %v2886 = vadd.f32 %v2321, %v2774
      %v2887 = vadd.f32 %v2326, %v2779
      %v2888 = vadd.f32 %v2329, %v2782
      %v2889 = vadd.f32 %v2334, %v2787
      %v2890 = vadd.f32 %v2337, %v2790
      %v2891 = vadd.f32 %v2342, %v2795
      %v2892 = vadd.f32 %v2345, %v2798
      %v2893 = vadd.f32 %v2350, %v2803
      %v2894 = vadd.f32 %v2353, %v2806
      %v2895 = vadd.f32 %v2358, %v2811
      %v2896 = vadd.f32 %v2361, %v2814
      %v2897 = vadd.f32 %v2366, %v2819
      %v2898 = vadd.f32 %v2369, %v2822
      %v2899 = vadd.f32 %v2374, %v2827
      %v2900 = vadd.f32 %v2377, %v2830
      %v2901 = vadd.f32 %v2382, %v2835
      %v2902 = vadd.f32 %v2385, %v2838
      %v2903 = vadd.f32 %v2390, %v2843
      %v2904 = vadd.f32 %v2393, %v2846
      %v2905 = vadd.f32 %v2398, %v2851
      %v2906 = vadd.f32 %v2401, %v2854
      %v2907 = vadd.f32 %v2406, %v2859
      %v2908 = vadd.f32 %v2409, %v2862
      %v2909 = vadd.f32 %v2414, %v2867
      %v2910 = vadd.f32 %v2417, %v2870
      %v2911 = vadd.f32 %v2422, %v2875
      %v2912 = vadd.f32 %v2425, %v2878
      %v2913 = vld [vmem:[%s1172] sm:$0xf]
      %v2914 = vld [vmem:[%s1172 + $0x4] sm:$0xf]
      %v2915 = vld [vmem:[%s1172 + $0xc] sm:$0xf]
      %v2916 = vld [vmem:[%s1172 + $0x10] sm:$0xf]
      %v2917 = vld [vmem:[%s1172 + $0x18] sm:$0xf]
      %v2918 = vld [vmem:[%s1172 + $0x1c] sm:$0xf]
      %v2919 = vld [vmem:[%s1172 + $0x24] sm:$0xf]
      %v2920 = vld [vmem:[%s1172 + $0x28] sm:$0xf]
      %v2921 = vld [vmem:[%s1172 + $0x30] sm:$0xf]
      %v2922 = vld [vmem:[%s1172 + $0x34] sm:$0xf]
      %v2923 = vld [vmem:[%s1172 + $0x3c] sm:$0xf]
      %v2924 = vld [vmem:[%s1172 + $0x40] sm:$0xf]
      %v2925 = vld [vmem:[%s1172 + $0x48] sm:$0xf]
      %v2926 = vld [vmem:[%s1172 + $0x4c] sm:$0xf]
      %v2927 = vld [vmem:[%s1172 + $0x54] sm:$0xf]
      %v2928 = vld [vmem:[%s1172 + $0x58] sm:$0xf]
      %v2929 = vld [vmem:[%s1172 + $0x60] sm:$0xf]
      %v2930 = vld [vmem:[%s1172 + $0x64] sm:$0xf]
      %v2931 = vld [vmem:[%s1172 + $0x6c] sm:$0xf]
      %v2932 = vld [vmem:[%s1172 + $0x70] sm:$0xf]
      %v2933 = vld [vmem:[%s1172 + $0x78] sm:$0xf]
      %v2934 = vld [vmem:[%s1172 + $0x7c] sm:$0xf]
      %v2935 = vld [vmem:[%s1172 + $0x84] sm:$0xf]
      %v2936 = vld [vmem:[%s1172 + $0x88] sm:$0xf]
      %v2937 = vld [vmem:[%s1172 + $0x90] sm:$0xf]
      %v2938 = vld [vmem:[%s1172 + $0x94] sm:$0xf]
      %v2939 = vld [vmem:[%s1172 + $0x9c] sm:$0xf]
      %v2940 = vld [vmem:[%s1172 + $0xa0] sm:$0xf]
      %v2941 = vld [vmem:[%s1172 + $0xa8] sm:$0xf]
      %v2942 = vld [vmem:[%s1172 + $0xac] sm:$0xf]
      %v2943 = vld [vmem:[%s1172 + $0xb4] sm:$0xf]
      %v2944 = vld [vmem:[%s1172 + $0xb8] sm:$0xf]
      %s2945 = scalar_lea.vmem %s5, 192
      %v2946 = vld [vmem:[%s2945] sm:$0xf]
      %v2947 = vld [vmem:[%s2945 + $0x4] sm:$0xf]
      %v2948 = vld [vmem:[%s2945 + $0x8] sm:$0xf]
      %v2949 = vld [vmem:[%s2945 + $0xc] sm:$0xf]
      %v2950 = vld [vmem:[%s2945 + $0x10] sm:$0xf]
      %v2951 = vld [vmem:[%s2945 + $0x14] sm:$0xf]
      %v2952 = vld [vmem:[%s2945 + $0x18] sm:$0xf]
      %v2953 = vld [vmem:[%s2945 + $0x1c] sm:$0xf]
      %v2954 = vld [vmem:[%s2945 + $0x20] sm:$0xf]
      %v2955 = vld [vmem:[%s2945 + $0x24] sm:$0xf]
      %v2956 = vld [vmem:[%s2945 + $0x28] sm:$0xf]
      %v2957 = vld [vmem:[%s2945 + $0x2c] sm:$0xf]
      %v2958 = vld [vmem:[%s2945 + $0x30] sm:$0xf]
      %v2959 = vld [vmem:[%s2945 + $0x34] sm:$0xf]
      %v2960 = vld [vmem:[%s2945 + $0x38] sm:$0xf]
      %v2961 = vld [vmem:[%s2945 + $0x3c] sm:$0xf]
      %v2994 = vunpack.c.l.b16 %v2913
      %v2995 = vunpack.c.l.b16 %v2914
      %v2996 = vunpack.c.l.b16 %v2915
      %v2997 = vunpack.c.l.b16 %v2916
      %v2998 = vunpack.c.l.b16 %v2917
      %v2999 = vunpack.c.l.b16 %v2918
      %v3000 = vunpack.c.l.b16 %v2919
      %v3001 = vunpack.c.l.b16 %v2920
      %v3002 = vunpack.c.l.b16 %v2921
      %v3003 = vunpack.c.l.b16 %v2922
      %v3004 = vunpack.c.l.b16 %v2923
      %v3005 = vunpack.c.l.b16 %v2924
      %v3006 = vunpack.c.l.b16 %v2925
      %v3007 = vunpack.c.l.b16 %v2926
      %v3008 = vunpack.c.l.b16 %v2927
      %v3009 = vunpack.c.l.b16 %v2928
      %v3010 = vunpack.c.l.b16 %v2929
      %v3011 = vunpack.c.l.b16 %v2930
      %v3012 = vunpack.c.l.b16 %v2931
      %v3013 = vunpack.c.l.b16 %v2932
      %v3014 = vunpack.c.l.b16 %v2933
      %v3015 = vunpack.c.l.b16 %v2934
      %v3016 = vunpack.c.l.b16 %v2935
      %v3017 = vunpack.c.l.b16 %v2936
      %v3018 = vunpack.c.l.b16 %v2937
      %v3019 = vunpack.c.l.b16 %v2938
      %v3020 = vunpack.c.l.b16 %v2939
      %v3021 = vunpack.c.l.b16 %v2940
      %v3022 = vunpack.c.l.b16 %v2941
      %v3023 = vunpack.c.l.b16 %v2942
      %v3024 = vunpack.c.l.b16 %v2943
      %v3025 = vunpack.c.l.b16 %v2944
      %v3026 = vpack.c.b16 %v2995, %v2994
      %v3027 = vpack.c.b16 %v2997, %v2996
      %v3028 = vpack.c.b16 %v2999, %v2998
      %v3029 = vpack.c.b16 %v3001, %v3000
      %v3030 = vpack.c.b16 %v3003, %v3002
      %v3031 = vpack.c.b16 %v3005, %v3004
      %v3032 = vpack.c.b16 %v3007, %v3006
      %v3033 = vpack.c.b16 %v3009, %v3008
      %v3034 = vpack.c.b16 %v3011, %v3010
      %v3035 = vpack.c.b16 %v3013, %v3012
      %v3036 = vpack.c.b16 %v3015, %v3014
      %v3037 = vpack.c.b16 %v3017, %v3016
      %v3038 = vpack.c.b16 %v3019, %v3018
      %v3039 = vpack.c.b16 %v3021, %v3020
      %v3040 = vpack.c.b16 %v3023, %v3022
      %v3041 = vpack.c.b16 %v3025, %v3024
      %v3074 = vunpack.c.l.b16 %v2946
      %v3075 = vunpack.c.l.b16 %v2947
      %v3076 = vunpack.c.l.b16 %v2948
      %v3077 = vunpack.c.l.b16 %v2949
      %v3078 = vunpack.c.l.b16 %v2950
      %v3079 = vunpack.c.l.b16 %v2951
      %v3080 = vunpack.c.l.b16 %v2952
      %v3081 = vunpack.c.l.b16 %v2953
      %v3082 = vunpack.c.l.b16 %v2954
      %v3083 = vunpack.c.l.b16 %v2955
      %v3084 = vunpack.c.l.b16 %v2956
      %v3085 = vunpack.c.l.b16 %v2957
      %v3086 = vunpack.c.l.b16 %v2958
      %v3087 = vunpack.c.l.b16 %v2959
      %v3088 = vunpack.c.l.b16 %v2960
      %v3089 = vunpack.c.l.b16 %v2961
      %v3090 = vpack.c.b16 %v3075, %v3074
      %v3091 = vpack.c.b16 %v3077, %v3076
      %v3092 = vpack.c.b16 %v3079, %v3078
      %v3093 = vpack.c.b16 %v3081, %v3080
      %v3094 = vpack.c.b16 %v3083, %v3082
      %v3095 = vpack.c.b16 %v3085, %v3084
      %v3096 = vpack.c.b16 %v3087, %v3086
      %v3097 = vpack.c.b16 %v3089, %v3088
      %3106 = vmatprep.subr.bf16.mxu0 0
      %3107 = vmatpush1.bf16.msra.mxu0 %v3090
      %3108 = vmatprep.subr.bf16.mxu0 0
      %3109 = vmatpush1.bf16.msra.mxu0 %v3091
      %3110 = vmatprep.subr.bf16.mxu0 0
      %3111 = vmatpush1.bf16.msra.mxu0 %v3092
      %3112 = vmatprep.subr.bf16.mxu0 0
      %3113 = vmatpush1.bf16.msra.mxu0 %v3093
      %3114 = vmatprep.subr.bf16.mxu0 0
      %3115 = vmatpush1.bf16.msra.mxu0 %v3094
      %3116 = vmatprep.subr.bf16.mxu0 0
      %3117 = vmatpush1.bf16.msra.mxu0 %v3095
      %3118 = vmatprep.subr.bf16.mxu0 0
      %3119 = vmatpush1.bf16.msra.mxu0 %v3096
      %3120 = vmatprep.subr.bf16.mxu0 0
      %3121 = vmatpush1.bf16.msra.mxu0 %v3097
      %3122 = vmatprep.subr.bf16.mxu0 0
      %3123 = vmatpush1.bf16.msra.mxu0 0
      %3124 = vmatprep.subr.bf16.mxu0 0
      %3125 = vmatpush1.bf16.msra.mxu0 0
      %3126 = vmatprep.subr.bf16.mxu0 0
      %3127 = vmatpush1.bf16.msra.mxu0 0
      %3128 = vmatprep.subr.bf16.mxu0 0
      %3129 = vmatpush1.bf16.msra.mxu0 0
      %3130 = vmatprep.subr.bf16.mxu0 0
      %3131 = vmatpush1.bf16.msra.mxu0 0
      %3132 = vmatprep.subr.bf16.mxu0 0
      %3133 = vmatpush1.bf16.msra.mxu0 0
      %3134 = vmatprep.subr.bf16.mxu0 0
      %3135 = vmatpush1.bf16.msra.mxu0 0
      %3136 = vmatprep.subr.bf16.mxu0 0
      %3137 = vmatpush1.bf16.msra.mxu0 0
      %3138 = vmatprep.mubr.bf16.mxu0 0
      %3139 = vmatmul.mubr.bf16.gmra.mrb[0].mxu0 %v3026
      %v3140 = vpop.f32.mrb[0].mxu0
      %v3141 = vadd.f32 0.0, %v3140
      %v3142 = vpop.f32.mrb[0].mxu0
      %v3143 = vpop.f32.mrb[0].mxu0
      %v3144 = vadd.f32 0.0, %v3143
      %v3145 = vpop.f32.mrb[0].mxu0
      %3146 = vmatprep.mubr.bf16.mxu0 0
      %3147 = vmatmul.mubr.bf16.gmra.mrb[0].mxu0 %v3027
      %v3148 = vpop.f32.mrb[0].mxu0
      %v3149 = vadd.f32 0.0, %v3148
      %v3150 = vpop.f32.mrb[0].mxu0
      %v3151 = vpop.f32.mrb[0].mxu0
      %v3152 = vadd.f32 0.0, %v3151
      %v3153 = vpop.f32.mrb[0].mxu0
      %3154 = vmatprep.mubr.bf16.mxu0 0
      %3155 = vmatmul.mubr.bf16.gmra.mrb[0].mxu0 %v3028
      %v3156 = vpop.f32.mrb[0].mxu0
      %v3157 = vadd.f32 0.0, %v3156
      %v3158 = vpop.f32.mrb[0].mxu0
      %v3159 = vpop.f32.mrb[0].mxu0
      %v3160 = vadd.f32 0.0, %v3159
      %v3161 = vpop.f32.mrb[0].mxu0
      %3162 = vmatprep.mubr.bf16.mxu0 0
      %3163 = vmatmul.mubr.bf16.gmra.mrb[0].mxu0 %v3029
      %v3164 = vpop.f32.mrb[0].mxu0
      %v3165 = vadd.f32 0.0, %v3164
      %v3166 = vpop.f32.mrb[0].mxu0
      %v3167 = vpop.f32.mrb[0].mxu0
      %v3168 = vadd.f32 0.0, %v3167
      %v3169 = vpop.f32.mrb[0].mxu0
      %3170 = vmatprep.mubr.bf16.mxu0 0
      %3171 = vmatmul.mubr.bf16.gmra.mrb[0].mxu0 %v3030
      %v3172 = vpop.f32.mrb[0].mxu0
      %v3173 = vadd.f32 0.0, %v3172
      %v3174 = vpop.f32.mrb[0].mxu0
      %v3175 = vpop.f32.mrb[0].mxu0
      %v3176 = vadd.f32 0.0, %v3175
      %v3177 = vpop.f32.mrb[0].mxu0
      %3178 = vmatprep.mubr.bf16.mxu0 0
      %3179 = vmatmul.mubr.bf16.gmra.mrb[0].mxu0 %v3031
      %v3180 = vpop.f32.mrb[0].mxu0
      %v3181 = vadd.f32 0.0, %v3180
      %v3182 = vpop.f32.mrb[0].mxu0
      %v3183 = vpop.f32.mrb[0].mxu0
      %v3184 = vadd.f32 0.0, %v3183
      %v3185 = vpop.f32.mrb[0].mxu0
      %3186 = vmatprep.mubr.bf16.mxu0 0
      %3187 = vmatmul.mubr.bf16.gmra.mrb[0].mxu0 %v3032
      %v3188 = vpop.f32.mrb[0].mxu0
      %v3189 = vadd.f32 0.0, %v3188
      %v3190 = vpop.f32.mrb[0].mxu0
      %v3191 = vpop.f32.mrb[0].mxu0
      %v3192 = vadd.f32 0.0, %v3191
      %v3193 = vpop.f32.mrb[0].mxu0
      %3194 = vmatprep.mubr.bf16.mxu0 0
      %3195 = vmatmul.mubr.bf16.gmra.mrb[0].mxu0 %v3033
      %v3196 = vpop.f32.mrb[0].mxu0
      %v3197 = vadd.f32 0.0, %v3196
      %v3198 = vpop.f32.mrb[0].mxu0
      %v3199 = vpop.f32.mrb[0].mxu0
      %v3200 = vadd.f32 0.0, %v3199
      %v3201 = vpop.f32.mrb[0].mxu0
      %3202 = vmatprep.mubr.bf16.mxu0 0
      %3203 = vmatmul.mubr.bf16.gmra.mrb[0].mxu0 %v3034
      %v3204 = vpop.f32.mrb[0].mxu0
      %v3205 = vadd.f32 0.0, %v3204
      %v3206 = vpop.f32.mrb[0].mxu0
      %v3207 = vpop.f32.mrb[0].mxu0
      %v3208 = vadd.f32 0.0, %v3207
      %v3209 = vpop.f32.mrb[0].mxu0
      %3210 = vmatprep.mubr.bf16.mxu0 0
      %3211 = vmatmul.mubr.bf16.gmra.mrb[0].mxu0 %v3035
      %v3212 = vpop.f32.mrb[0].mxu0
      %v3213 = vadd.f32 0.0, %v3212
      %v3214 = vpop.f32.mrb[0].mxu0
      %v3215 = vpop.f32.mrb[0].mxu0
      %v3216 = vadd.f32 0.0, %v3215
      %v3217 = vpop.f32.mrb[0].mxu0
      %3218 = vmatprep.mubr.bf16.mxu0 0
      %3219 = vmatmul.mubr.bf16.gmra.mrb[0].mxu0 %v3036
      %v3220 = vpop.f32.mrb[0].mxu0
      %v3221 = vadd.f32 0.0, %v3220
      %v3222 = vpop.f32.mrb[0].mxu0
      %v3223 = vpop.f32.mrb[0].mxu0
      %v3224 = vadd.f32 0.0, %v3223
      %v3225 = vpop.f32.mrb[0].mxu0
      %3226 = vmatprep.mubr.bf16.mxu0 0
      %3227 = vmatmul.mubr.bf16.gmra.mrb[0].mxu0 %v3037
      %v3228 = vpop.f32.mrb[0].mxu0
      %v3229 = vadd.f32 0.0, %v3228
      %v3230 = vpop.f32.mrb[0].mxu0
      %v3231 = vpop.f32.mrb[0].mxu0
      %v3232 = vadd.f32 0.0, %v3231
      %v3233 = vpop.f32.mrb[0].mxu0
      %3234 = vmatprep.mubr.bf16.mxu0 0
      %3235 = vmatmul.mubr.bf16.gmra.mrb[0].mxu0 %v3038
      %v3236 = vpop.f32.mrb[0].mxu0
      %v3237 = vadd.f32 0.0, %v3236
      %v3238 = vpop.f32.mrb[0].mxu0
      %v3239 = vpop.f32.mrb[0].mxu0
      %v3240 = vadd.f32 0.0, %v3239
      %v3241 = vpop.f32.mrb[0].mxu0
      %3242 = vmatprep.mubr.bf16.mxu0 0
      %3243 = vmatmul.mubr.bf16.gmra.mrb[0].mxu0 %v3039
      %v3244 = vpop.f32.mrb[0].mxu0
      %v3245 = vadd.f32 0.0, %v3244
      %v3246 = vpop.f32.mrb[0].mxu0
      %v3247 = vpop.f32.mrb[0].mxu0
      %v3248 = vadd.f32 0.0, %v3247
      %v3249 = vpop.f32.mrb[0].mxu0
      %3250 = vmatprep.mubr.bf16.mxu0 0
      %3251 = vmatmul.mubr.bf16.gmra.mrb[0].mxu0 %v3040
      %v3252 = vpop.f32.mrb[0].mxu0
      %v3253 = vadd.f32 0.0, %v3252
      %v3254 = vpop.f32.mrb[0].mxu0
      %v3255 = vpop.f32.mrb[0].mxu0
      %v3256 = vadd.f32 0.0, %v3255
      %v3257 = vpop.f32.mrb[0].mxu0
      %3258 = vmatprep.mubr.bf16.mxu0 0
      %3259 = vmatmul.mubr.bf16.gmra.mrb[0].mxu0 %v3041
      %v3260 = vpop.f32.mrb[0].mxu0
      %v3261 = vadd.f32 0.0, %v3260
      %v3262 = vpop.f32.mrb[0].mxu0
      %v3263 = vpop.f32.mrb[0].mxu0
      %v3264 = vadd.f32 0.0, %v3263
      %v3265 = vpop.f32.mrb[0].mxu0
      %3266 = vdwg.mxu0
      %v3267 = vadd.f32 %v2881, %v3141
      %v3268 = vadd.f32 %v2882, %v3144
      %v3269 = vadd.f32 %v2883, %v3149
      %v3270 = vadd.f32 %v2884, %v3152
      %v3271 = vadd.f32 %v2885, %v3157
      %v3272 = vadd.f32 %v2886, %v3160
      %v3273 = vadd.f32 %v2887, %v3165
      %v3274 = vadd.f32 %v2888, %v3168
      %v3275 = vadd.f32 %v2889, %v3173
      %v3276 = vadd.f32 %v2890, %v3176
      %v3277 = vadd.f32 %v2891, %v3181
      %v3278 = vadd.f32 %v2892, %v3184
      %v3279 = vadd.f32 %v2893, %v3189
      %v3280 = vadd.f32 %v2894, %v3192
      %v3281 = vadd.f32 %v2895, %v3197
      %v3282 = vadd.f32 %v2896, %v3200
      %v3283 = vadd.f32 %v2897, %v3205
      %v3284 = vadd.f32 %v2898, %v3208
      %v3285 = vadd.f32 %v2899, %v3213
      %v3286 = vadd.f32 %v2900, %v3216
      %v3287 = vadd.f32 %v2901, %v3221
      %v3288 = vadd.f32 %v2902, %v3224
      %v3289 = vadd.f32 %v2903, %v3229
      %v3290 = vadd.f32 %v2904, %v3232
      %v3291 = vadd.f32 %v2905, %v3237
      %v3292 = vadd.f32 %v2906, %v3240
      %v3293 = vadd.f32 %v2907, %v3245
      %v3294 = vadd.f32 %v2908, %v3248
      %v3295 = vadd.f32 %v2909, %v3253
      %v3296 = vadd.f32 %v2910, %v3256
      %v3297 = vadd.f32 %v2911, %v3261
      %v3298 = vadd.f32 %v2912, %v3264
      %v3299 = vld [vmem:[%s1172] sm:$0xf]
      %v3300 = vld [vmem:[%s1172 + $0x4] sm:$0xf]
      %v3301 = vld [vmem:[%s1172 + $0x8] sm:$0x1]
      %v3302 = vld [vmem:[%s1172 + $0xc] sm:$0xf]
      %v3303 = vld [vmem:[%s1172 + $0x10] sm:$0xf]
      %v3304 = vld [vmem:[%s1172 + $0x14] sm:$0x1]
      %v3305 = vld [vmem:[%s1172 + $0x18] sm:$0xf]
      %v3306 = vld [vmem:[%s1172 + $0x1c] sm:$0xf]
      %v3307 = vld [vmem:[%s1172 + $0x20] sm:$0x1]
      %v3308 = vld [vmem:[%s1172 + $0x24] sm:$0xf]
      %v3309 = vld [vmem:[%s1172 + $0x28] sm:$0xf]
      %v3310 = vld [vmem:[%s1172 + $0x2c] sm:$0x1]
      %v3311 = vld [vmem:[%s1172 + $0x30] sm:$0xf]
      %v3312 = vld [vmem:[%s1172 + $0x34] sm:$0xf]
      %v3313 = vld [vmem:[%s1172 + $0x38] sm:$0x1]
      %v3314 = vld [vmem:[%s1172 + $0x3c] sm:$0xf]
      %v3315 = vld [vmem:[%s1172 + $0x40] sm:$0xf]
      %v3316 = vld [vmem:[%s1172 + $0x44] sm:$0x1]
      %v3317 = vld [vmem:[%s1172 + $0x48] sm:$0xf]
      %v3318 = vld [vmem:[%s1172 + $0x4c] sm:$0xf]
      %v3319 = vld [vmem:[%s1172 + $0x50] sm:$0x1]
      %v3320 = vld [vmem:[%s1172 + $0x54] sm:$0xf]
      %v3321 = vld [vmem:[%s1172 + $0x58] sm:$0xf]
      %v3322 = vld [vmem:[%s1172 + $0x5c] sm:$0x1]
      %v3323 = vld [vmem:[%s1172 + $0x60] sm:$0xf]
      %v3324 = vld [vmem:[%s1172 + $0x64] sm:$0xf]
      %v3325 = vld [vmem:[%s1172 + $0x68] sm:$0x1]
      %v3326 = vld [vmem:[%s1172 + $0x6c] sm:$0xf]
      %v3327 = vld [vmem:[%s1172 + $0x70] sm:$0xf]
      %v3328 = vld [vmem:[%s1172 + $0x74] sm:$0x1]
      %v3329 = vld [vmem:[%s1172 + $0x78] sm:$0xf]
      %v3330 = vld [vmem:[%s1172 + $0x7c] sm:$0xf]
      %v3331 = vld [vmem:[%s1172 + $0x80] sm:$0x1]
      %v3332 = vld [vmem:[%s1172 + $0x84] sm:$0xf]
      %v3333 = vld [vmem:[%s1172 + $0x88] sm:$0xf]
      %v3334 = vld [vmem:[%s1172 + $0x8c] sm:$0x1]
      %v3335 = vld [vmem:[%s1172 + $0x90] sm:$0xf]
      %v3336 = vld [vmem:[%s1172 + $0x94] sm:$0xf]
      %v3337 = vld [vmem:[%s1172 + $0x98] sm:$0x1]
      %v3338 = vld [vmem:[%s1172 + $0x9c] sm:$0xf]
      %v3339 = vld [vmem:[%s1172 + $0xa0] sm:$0xf]
      %v3340 = vld [vmem:[%s1172 + $0xa4] sm:$0x1]
      %v3341 = vld [vmem:[%s1172 + $0xa8] sm:$0xf]
      %v3342 = vld [vmem:[%s1172 + $0xac] sm:$0xf]
      %v3343 = vld [vmem:[%s1172 + $0xb0] sm:$0x1]
      %v3344 = vld [vmem:[%s1172 + $0xb4] sm:$0xf]
      %v3345 = vld [vmem:[%s1172 + $0xb8] sm:$0xf]
      %v3346 = vld [vmem:[%s1172 + $0xbc] sm:$0x1]
      %v3348 = vshrl.u32 %v3299, 16
      %v3350 = vrot.slane %v3348, 4
      %v3351 = vshll.u32 %v3299, 16
      %v3353 = vrot.slane %v3351, 5
      %v3354 = vor.u32 %v3350, %v3353
      %v3355 = vrot.slane %v3354, 4
      %v3357 = vshll.u32 %v3300, 16
      %v3359 = vrot.slane %v3357, 5
      %v3360 = vsel %vm1448, %v3355, %v3359
      %v3361 = vshrl.u32 %v3300, 16
      %v3363 = vrot.slane %v3361, 4
      %v3364 = vor.u32 %v3363, %v3359
      %v3365 = vrot.slane %v3364, 4
      %v3367 = vshll.u32 %v3301, 16
      %v3369 = vrot.slane %v3367, 5
      %v3370 = vsel %vm1448, %v3365, %v3369
      %v3372 = vshrl.u32 %v3302, 16
      %v3374 = vrot.slane %v3372, 4
      %v3375 = vshll.u32 %v3302, 16
      %v3377 = vrot.slane %v3375, 5
      %v3378 = vor.u32 %v3374, %v3377
      %v3379 = vrot.slane %v3378, 4
      %v3381 = vshll.u32 %v3303, 16
      %v3383 = vrot.slane %v3381, 5
      %v3384 = vsel %vm1448, %v3379, %v3383
      %v3385 = vshrl.u32 %v3303, 16
      %v3387 = vrot.slane %v3385, 4
      %v3388 = vor.u32 %v3387, %v3383
      %v3389 = vrot.slane %v3388, 4
      %v3391 = vshll.u32 %v3304, 16
      %v3393 = vrot.slane %v3391, 5
      %v3394 = vsel %vm1448, %v3389, %v3393
      %v3396 = vshrl.u32 %v3305, 16
      %v3398 = vrot.slane %v3396, 4
      %v3399 = vshll.u32 %v3305, 16
      %v3401 = vrot.slane %v3399, 5
      %v3402 = vor.u32 %v3398, %v3401
      %v3403 = vrot.slane %v3402, 4
      %v3405 = vshll.u32 %v3306, 16
      %v3407 = vrot.slane %v3405, 5
      %v3408 = vsel %vm1448, %v3403, %v3407
      %v3409 = vshrl.u32 %v3306, 16
      %v3411 = vrot.slane %v3409, 4
      %v3412 = vor.u32 %v3411, %v3407
      %v3413 = vrot.slane %v3412, 4
      %v3415 = vshll.u32 %v3307, 16
      %v3417 = vrot.slane %v3415, 5
      %v3418 = vsel %vm1448, %v3413, %v3417
      %v3420 = vshrl.u32 %v3308, 16
      %v3422 = vrot.slane %v3420, 4
      %v3423 = vshll.u32 %v3308, 16
      %v3425 = vrot.slane %v3423, 5
      %v3426 = vor.u32 %v3422, %v3425
      %v3427 = vrot.slane %v3426, 4
      %v3429 = vshll.u32 %v3309, 16
      %v3431 = vrot.slane %v3429, 5
      %v3432 = vsel %vm1448, %v3427, %v3431
      %v3433 = vshrl.u32 %v3309, 16
      %v3435 = vrot.slane %v3433, 4
      %v3436 = vor.u32 %v3435, %v3431
      %v3437 = vrot.slane %v3436, 4
      %v3439 = vshll.u32 %v3310, 16
      %v3441 = vrot.slane %v3439, 5
      %v3442 = vsel %vm1448, %v3437, %v3441
      %v3444 = vshrl.u32 %v3311, 16
      %v3446 = vrot.slane %v3444, 4
      %v3447 = vshll.u32 %v3311, 16
      %v3449 = vrot.slane %v3447, 5
      %v3450 = vor.u32 %v3446, %v3449
      %v3451 = vrot.slane %v3450, 4
      %v3453 = vshll.u32 %v3312, 16
      %v3455 = vrot.slane %v3453, 5
      %v3456 = vsel %vm1448, %v3451, %v3455
      %v3457 = vshrl.u32 %v3312, 16
      %v3459 = vrot.slane %v3457, 4
      %v3460 = vor.u32 %v3459, %v3455
      %v3461 = vrot.slane %v3460, 4
      %v3463 = vshll.u32 %v3313, 16
      %v3465 = vrot.slane %v3463, 5
      %v3466 = vsel %vm1448, %v3461, %v3465
      %v3468 = vshrl.u32 %v3314, 16
      %v3470 = vrot.slane %v3468, 4
      %v3471 = vshll.u32 %v3314, 16
      %v3473 = vrot.slane %v3471, 5
      %v3474 = vor.u32 %v3470, %v3473
      %v3475 = vrot.slane %v3474, 4
      %v3477 = vshll.u32 %v3315, 16
      %v3479 = vrot.slane %v3477, 5
      %v3480 = vsel %vm1448, %v3475, %v3479
      %v3481 = vshrl.u32 %v3315, 16
      %v3483 = vrot.slane %v3481, 4
      %v3484 = vor.u32 %v3483, %v3479
      %v3485 = vrot.slane %v3484, 4
      %v3487 = vshll.u32 %v3316, 16
      %v3489 = vrot.slane %v3487, 5
      %v3490 = vsel %vm1448, %v3485, %v3489
      %v3492 = vshrl.u32 %v3317, 16
      %v3494 = vrot.slane %v3492, 4
      %v3495 = vshll.u32 %v3317, 16
      %v3497 = vrot.slane %v3495, 5
      %v3498 = vor.u32 %v3494, %v3497
      %v3499 = vrot.slane %v3498, 4
      %v3501 = vshll.u32 %v3318, 16
      %v3503 = vrot.slane %v3501, 5
      %v3504 = vsel %vm1448, %v3499, %v3503
      %v3505 = vshrl.u32 %v3318, 16
      %v3507 = vrot.slane %v3505, 4
      %v3508 = vor.u32 %v3507, %v3503
      %v3509 = vrot.slane %v3508, 4
      %v3511 = vshll.u32 %v3319, 16
      %v3513 = vrot.slane %v3511, 5
      %v3514 = vsel %vm1448, %v3509, %v3513
      %v3516 = vshrl.u32 %v3320, 16
      %v3518 = vrot.slane %v3516, 4
      %v3519 = vshll.u32 %v3320, 16
      %v3521 = vrot.slane %v3519, 5
      %v3522 = vor.u32 %v3518, %v3521
      %v3523 = vrot.slane %v3522, 4
      %v3525 = vshll.u32 %v3321, 16
      %v3527 = vrot.slane %v3525, 5
      %v3528 = vsel %vm1448, %v3523, %v3527
      %v3529 = vshrl.u32 %v3321, 16
      %v3531 = vrot.slane %v3529, 4
      %v3532 = vor.u32 %v3531, %v3527
      %v3533 = vrot.slane %v3532, 4
      %v3535 = vshll.u32 %v3322, 16
      %v3537 = vrot.slane %v3535, 5
      %v3538 = vsel %vm1448, %v3533, %v3537
      %v3540 = vshrl.u32 %v3323, 16
      %v3542 = vrot.slane %v3540, 4
      %v3543 = vshll.u32 %v3323, 16
      %v3545 = vrot.slane %v3543, 5
      %v3546 = vor.u32 %v3542, %v3545
      %v3547 = vrot.slane %v3546, 4
      %v3549 = vshll.u32 %v3324, 16
      %v3551 = vrot.slane %v3549, 5
      %v3552 = vsel %vm1448, %v3547, %v3551
      %v3553 = vshrl.u32 %v3324, 16
      %v3555 = vrot.slane %v3553, 4
      %v3556 = vor.u32 %v3555, %v3551
      %v3557 = vrot.slane %v3556, 4
      %v3559 = vshll.u32 %v3325, 16
      %v3561 = vrot.slane %v3559, 5
      %v3562 = vsel %vm1448, %v3557, %v3561
      %v3564 = vshrl.u32 %v3326, 16
      %v3566 = vrot.slane %v3564, 4
      %v3567 = vshll.u32 %v3326, 16
      %v3569 = vrot.slane %v3567, 5
      %v3570 = vor.u32 %v3566, %v3569
      %v3571 = vrot.slane %v3570, 4
      %v3573 = vshll.u32 %v3327, 16
      %v3575 = vrot.slane %v3573, 5
      %v3576 = vsel %vm1448, %v3571, %v3575
      %v3577 = vshrl.u32 %v3327, 16
      %v3579 = vrot.slane %v3577, 4
      %v3580 = vor.u32 %v3579, %v3575
      %v3581 = vrot.slane %v3580, 4
      %v3583 = vshll.u32 %v3328, 16
      %v3585 = vrot.slane %v3583, 5
      %v3586 = vsel %vm1448, %v3581, %v3585
      %v3588 = vshrl.u32 %v3329, 16
      %v3590 = vrot.slane %v3588, 4
      %v3591 = vshll.u32 %v3329, 16
      %v3593 = vrot.slane %v3591, 5
      %v3594 = vor.u32 %v3590, %v3593
      %v3595 = vrot.slane %v3594, 4
      %v3597 = vshll.u32 %v3330, 16
      %v3599 = vrot.slane %v3597, 5
      %v3600 = vsel %vm1448, %v3595, %v3599
      %v3601 = vshrl.u32 %v3330, 16
      %v3603 = vrot.slane %v3601, 4
      %v3604 = vor.u32 %v3603, %v3599
      %v3605 = vrot.slane %v3604, 4
      %v3607 = vshll.u32 %v3331, 16
      %v3609 = vrot.slane %v3607, 5
      %v3610 = vsel %vm1448, %v3605, %v3609
      %v3612 = vshrl.u32 %v3332, 16
      %v3614 = vrot.slane %v3612, 4
      %v3615 = vshll.u32 %v3332, 16
      %v3617 = vrot.slane %v3615, 5
      %v3618 = vor.u32 %v3614, %v3617
      %v3619 = vrot.slane %v3618, 4
      %v3621 = vshll.u32 %v3333, 16
      %v3623 = vrot.slane %v3621, 5
      %v3624 = vsel %vm1448, %v3619, %v3623
      %v3625 = vshrl.u32 %v3333, 16
      %v3627 = vrot.slane %v3625, 4
      %v3628 = vor.u32 %v3627, %v3623
      %v3629 = vrot.slane %v3628, 4
      %v3631 = vshll.u32 %v3334, 16
      %v3633 = vrot.slane %v3631, 5
      %v3634 = vsel %vm1448, %v3629, %v3633
      %v3636 = vshrl.u32 %v3335, 16
      %v3638 = vrot.slane %v3636, 4
      %v3639 = vshll.u32 %v3335, 16
      %v3641 = vrot.slane %v3639, 5
      %v3642 = vor.u32 %v3638, %v3641
      %v3643 = vrot.slane %v3642, 4
      %v3645 = vshll.u32 %v3336, 16
      %v3647 = vrot.slane %v3645, 5
      %v3648 = vsel %vm1448, %v3643, %v3647
      %v3649 = vshrl.u32 %v3336, 16
      %v3651 = vrot.slane %v3649, 4
      %v3652 = vor.u32 %v3651, %v3647
      %v3653 = vrot.slane %v3652, 4
      %v3655 = vshll.u32 %v3337, 16
      %v3657 = vrot.slane %v3655, 5
      %v3658 = vsel %vm1448, %v3653, %v3657
      %v3660 = vshrl.u32 %v3338, 16
      %v3662 = vrot.slane %v3660, 4
      %v3663 = vshll.u32 %v3338, 16
      %v3665 = vrot.slane %v3663, 5
      %v3666 = vor.u32 %v3662, %v3665
      %v3667 = vrot.slane %v3666, 4
      %v3669 = vshll.u32 %v3339, 16
      %v3671 = vrot.slane %v3669, 5
      %v3672 = vsel %vm1448, %v3667, %v3671
      %v3673 = vshrl.u32 %v3339, 16
      %v3675 = vrot.slane %v3673, 4
      %v3676 = vor.u32 %v3675, %v3671
      %v3677 = vrot.slane %v3676, 4
      %v3679 = vshll.u32 %v3340, 16
      %v3681 = vrot.slane %v3679, 5
      %v3682 = vsel %vm1448, %v3677, %v3681
      %v3684 = vshrl.u32 %v3341, 16
      %v3686 = vrot.slane %v3684, 4
      %v3687 = vshll.u32 %v3341, 16
      %v3689 = vrot.slane %v3687, 5
      %v3690 = vor.u32 %v3686, %v3689
      %v3691 = vrot.slane %v3690, 4
      %v3693 = vshll.u32 %v3342, 16
      %v3695 = vrot.slane %v3693, 5
      %v3696 = vsel %vm1448, %v3691, %v3695
      %v3697 = vshrl.u32 %v3342, 16
      %v3699 = vrot.slane %v3697, 4
      %v3700 = vor.u32 %v3699, %v3695
      %v3701 = vrot.slane %v3700, 4
      %v3703 = vshll.u32 %v3343, 16
      %v3705 = vrot.slane %v3703, 5
      %v3706 = vsel %vm1448, %v3701, %v3705
      %v3708 = vshrl.u32 %v3344, 16
      %v3710 = vrot.slane %v3708, 4
      %v3711 = vshll.u32 %v3344, 16
      %v3713 = vrot.slane %v3711, 5
      %v3714 = vor.u32 %v3710, %v3713
      %v3715 = vrot.slane %v3714, 4
      %v3717 = vshll.u32 %v3345, 16
      %v3719 = vrot.slane %v3717, 5
      %v3720 = vsel %vm1448, %v3715, %v3719
      %v3721 = vshrl.u32 %v3345, 16
      %v3723 = vrot.slane %v3721, 4
      %v3724 = vor.u32 %v3723, %v3719
      %v3725 = vrot.slane %v3724, 4
      %v3727 = vshll.u32 %v3346, 16
      %v3729 = vrot.slane %v3727, 5
      %v3730 = vsel %vm1448, %v3725, %v3729
      %s3731 = scalar_lea.vmem %s5, 256
      %v3732 = vld [vmem:[%s3731] sm:$0xf]
      %v3733 = vld [vmem:[%s3731 + $0x4] sm:$0xf]
      %v3734 = vld [vmem:[%s3731 + $0x8] sm:$0xf]
      %v3735 = vld [vmem:[%s3731 + $0xc] sm:$0xf]
      %v3736 = vld [vmem:[%s3731 + $0x10] sm:$0xf]
      %v3737 = vld [vmem:[%s3731 + $0x14] sm:$0xf]
      %v3738 = vld [vmem:[%s3731 + $0x18] sm:$0xf]
      %v3739 = vld [vmem:[%s3731 + $0x1c] sm:$0xf]
      %v3740 = vld [vmem:[%s3731 + $0x20] sm:$0xf]
      %v3741 = vld [vmem:[%s3731 + $0x24] sm:$0xf]
      %v3742 = vld [vmem:[%s3731 + $0x28] sm:$0xf]
      %v3743 = vld [vmem:[%s3731 + $0x2c] sm:$0xf]
      %v3744 = vld [vmem:[%s3731 + $0x30] sm:$0xf]
      %v3745 = vld [vmem:[%s3731 + $0x34] sm:$0xf]
      %v3746 = vld [vmem:[%s3731 + $0x38] sm:$0xf]
      %v3747 = vld [vmem:[%s3731 + $0x3c] sm:$0xf]
      %v3748 = vunpack.c.l.b16 %v3360
      %v3749 = vunpack.c.l.b16 %v3370
      %v3750 = vunpack.c.l.b16 %v3384
      %v3751 = vunpack.c.l.b16 %v3394
      %v3752 = vunpack.c.l.b16 %v3408
      %v3753 = vunpack.c.l.b16 %v3418
      %v3754 = vunpack.c.l.b16 %v3432
      %v3755 = vunpack.c.l.b16 %v3442
      %v3756 = vunpack.c.l.b16 %v3456
      %v3757 = vunpack.c.l.b16 %v3466
      %v3758 = vunpack.c.l.b16 %v3480
      %v3759 = vunpack.c.l.b16 %v3490
      %v3760 = vunpack.c.l.b16 %v3504
      %v3761 = vunpack.c.l.b16 %v3514
      %v3762 = vunpack.c.l.b16 %v3528
      %v3763 = vunpack.c.l.b16 %v3538
      %v3764 = vunpack.c.l.b16 %v3552
      %v3765 = vunpack.c.l.b16 %v3562
      %v3766 = vunpack.c.l.b16 %v3576
      %v3767 = vunpack.c.l.b16 %v3586
      %v3768 = vunpack.c.l.b16 %v3600
      %v3769 = vunpack.c.l.b16 %v3610
      %v3770 = vunpack.c.l.b16 %v3624
      %v3771 = vunpack.c.l.b16 %v3634
      %v3772 = vunpack.c.l.b16 %v3648
      %v3773 = vunpack.c.l.b16 %v3658
      %v3774 = vunpack.c.l.b16 %v3672
      %v3775 = vunpack.c.l.b16 %v3682
      %v3776 = vunpack.c.l.b16 %v3696
      %v3777 = vunpack.c.l.b16 %v3706
      %v3778 = vunpack.c.l.b16 %v3720
      %v3779 = vunpack.c.l.b16 %v3730
      %v3780 = vpack.c.b16 %v3749, %v3748
      %v3781 = vpack.c.b16 %v3751, %v3750
      %v3782 = vpack.c.b16 %v3753, %v3752
      %v3783 = vpack.c.b16 %v3755, %v3754
      %v3784 = vpack.c.b16 %v3757, %v3756
      %v3785 = vpack.c.b16 %v3759, %v3758
      %v3786 = vpack.c.b16 %v3761, %v3760
      %v3787 = vpack.c.b16 %v3763, %v3762
      %v3788 = vpack.c.b16 %v3765, %v3764
      %v3789 = vpack.c.b16 %v3767, %v3766
      %v3790 = vpack.c.b16 %v3769, %v3768
      %v3791 = vpack.c.b16 %v3771, %v3770
      %v3792 = vpack.c.b16 %v3773, %v3772
      %v3793 = vpack.c.b16 %v3775, %v3774
      %v3794 = vpack.c.b16 %v3777, %v3776
      %v3795 = vpack.c.b16 %v3779, %v3778
      %v3828 = vunpack.c.l.b16 %v3732
      %v3829 = vunpack.c.l.b16 %v3733
      %v3830 = vunpack.c.l.b16 %v3734
      %v3831 = vunpack.c.l.b16 %v3735
      %v3832 = vunpack.c.l.b16 %v3736
      %v3833 = vunpack.c.l.b16 %v3737
      %v3834 = vunpack.c.l.b16 %v3738
      %v3835 = vunpack.c.l.b16 %v3739
      %v3836 = vunpack.c.l.b16 %v3740
      %v3837 = vunpack.c.l.b16 %v3741
      %v3838 = vunpack.c.l.b16 %v3742
      %v3839 = vunpack.c.l.b16 %v3743
      %v3840 = vunpack.c.l.b16 %v3744
      %v3841 = vunpack.c.l.b16 %v3745
      %v3842 = vunpack.c.l.b16 %v3746
      %v3843 = vunpack.c.l.b16 %v3747
      %v3844 = vpack.c.b16 %v3829, %v3828
      %v3845 = vpack.c.b16 %v3831, %v3830
      %v3846 = vpack.c.b16 %v3833, %v3832
      %v3847 = vpack.c.b16 %v3835, %v3834
      %v3848 = vpack.c.b16 %v3837, %v3836
      %v3849 = vpack.c.b16 %v3839, %v3838
      %v3850 = vpack.c.b16 %v3841, %v3840
      %v3851 = vpack.c.b16 %v3843, %v3842
      %3860 = vmatprep.subr.bf16.mxu0 0
      %3861 = vmatpush1.bf16.msra.mxu0 %v3844
      %3862 = vmatprep.subr.bf16.mxu0 0
      %3863 = vmatpush1.bf16.msra.mxu0 %v3845
      %3864 = vmatprep.subr.bf16.mxu0 0
      %3865 = vmatpush1.bf16.msra.mxu0 %v3846
      %3866 = vmatprep.subr.bf16.mxu0 0
      %3867 = vmatpush1.bf16.msra.mxu0 %v3847
      %3868 = vmatprep.subr.bf16.mxu0 0
      %3869 = vmatpush1.bf16.msra.mxu0 %v3848
      %3870 = vmatprep.subr.bf16.mxu0 0
      %3871 = vmatpush1.bf16.msra.mxu0 %v3849
      %3872 = vmatprep.subr.bf16.mxu0 0
      %3873 = vmatpush1.bf16.msra.mxu0 %v3850
      %3874 = vmatprep.subr.bf16.mxu0 0
      %3875 = vmatpush1.bf16.msra.mxu0 %v3851
      %3876 = vmatprep.subr.bf16.mxu0 0
      %3877 = vmatpush1.bf16.msra.mxu0 0
      %3878 = vmatprep.subr.bf16.mxu0 0
      %3879 = vmatpush1.bf16.msra.mxu0 0
      %3880 = vmatprep.subr.bf16.mxu0 0
      %3881 = vmatpush1.bf16.msra.mxu0 0
      %3882 = vmatprep.subr.bf16.mxu0 0
      %3883 = vmatpush1.bf16.msra.mxu0 0
      %3884 = vmatprep.subr.bf16.mxu0 0
      %3885 = vmatpush1.bf16.msra.mxu0 0
      %3886 = vmatprep.subr.bf16.mxu0 0
      %3887 = vmatpush1.bf16.msra.mxu0 0
      %3888 = vmatprep.subr.bf16.mxu0 0
      %3889 = vmatpush1.bf16.msra.mxu0 0
      %3890 = vmatprep.subr.bf16.mxu0 0
      %3891 = vmatpush1.bf16.msra.mxu0 0
      %3892 = vmatprep.mubr.bf16.mxu0 0
      %3893 = vmatmul.mubr.bf16.gmra.mrb[0].mxu0 %v3780
      %v3894 = vpop.f32.mrb[0].mxu0
      %v3895 = vadd.f32 0.0, %v3894
      %v3896 = vpop.f32.mrb[0].mxu0
      %v3897 = vpop.f32.mrb[0].mxu0
      %v3898 = vadd.f32 0.0, %v3897
      %v3899 = vpop.f32.mrb[0].mxu0
      %3900 = vmatprep.mubr.bf16.mxu0 0
      %3901 = vmatmul.mubr.bf16.gmra.mrb[0].mxu0 %v3781
      %v3902 = vpop.f32.mrb[0].mxu0
      %v3903 = vadd.f32 0.0, %v3902
      %v3904 = vpop.f32.mrb[0].mxu0
      %v3905 = vpop.f32.mrb[0].mxu0
      %v3906 = vadd.f32 0.0, %v3905
      %v3907 = vpop.f32.mrb[0].mxu0
      %3908 = vmatprep.mubr.bf16.mxu0 0
      %3909 = vmatmul.mubr.bf16.gmra.mrb[0].mxu0 %v3782
      %v3910 = vpop.f32.mrb[0].mxu0
      %v3911 = vadd.f32 0.0, %v3910
      %v3912 = vpop.f32.mrb[0].mxu0
      %v3913 = vpop.f32.mrb[0].mxu0
      %v3914 = vadd.f32 0.0, %v3913
      %v3915 = vpop.f32.mrb[0].mxu0
      %3916 = vmatprep.mubr.bf16.mxu0 0
      %3917 = vmatmul.mubr.bf16.gmra.mrb[0].mxu0 %v3783
      %v3918 = vpop.f32.mrb[0].mxu0
      %v3919 = vadd.f32 0.0, %v3918
      %v3920 = vpop.f32.mrb[0].mxu0
      %v3921 = vpop.f32.mrb[0].mxu0
      %v3922 = vadd.f32 0.0, %v3921
      %v3923 = vpop.f32.mrb[0].mxu0
      %3924 = vmatprep.mubr.bf16.mxu0 0
      %3925 = vmatmul.mubr.bf16.gmra.mrb[0].mxu0 %v3784
      %v3926 = vpop.f32.mrb[0].mxu0
      %v3927 = vadd.f32 0.0, %v3926
      %v3928 = vpop.f32.mrb[0].mxu0
      %v3929 = vpop.f32.mrb[0].mxu0
      %v3930 = vadd.f32 0.0, %v3929
      %v3931 = vpop.f32.mrb[0].mxu0
      %3932 = vmatprep.mubr.bf16.mxu0 0
      %3933 = vmatmul.mubr.bf16.gmra.mrb[0].mxu0 %v3785
      %v3934 = vpop.f32.mrb[0].mxu0
      %v3935 = vadd.f32 0.0, %v3934
      %v3936 = vpop.f32.mrb[0].mxu0
      %v3937 = vpop.f32.mrb[0].mxu0
      %v3938 = vadd.f32 0.0, %v3937
      %v3939 = vpop.f32.mrb[0].mxu0
      %3940 = vmatprep.mubr.bf16.mxu0 0
      %3941 = vmatmul.mubr.bf16.gmra.mrb[0].mxu0 %v3786
      %v3942 = vpop.f32.mrb[0].mxu0
      %v3943 = vadd.f32 0.0, %v3942
      %v3944 = vpop.f32.mrb[0].mxu0
      %v3945 = vpop.f32.mrb[0].mxu0
      %v3946 = vadd.f32 0.0, %v3945
      %v3947 = vpop.f32.mrb[0].mxu0
      %3948 = vmatprep.mubr.bf16.mxu0 0
      %3949 = vmatmul.mubr.bf16.gmra.mrb[0].mxu0 %v3787
      %v3950 = vpop.f32.mrb[0].mxu0
      %v3951 = vadd.f32 0.0, %v3950
      %v3952 = vpop.f32.mrb[0].mxu0
      %v3953 = vpop.f32.mrb[0].mxu0
      %v3954 = vadd.f32 0.0, %v3953
      %v3955 = vpop.f32.mrb[0].mxu0
      %3956 = vmatprep.mubr.bf16.mxu0 0
      %3957 = vmatmul.mubr.bf16.gmra.mrb[0].mxu0 %v3788
      %v3958 = vpop.f32.mrb[0].mxu0
      %v3959 = vadd.f32 0.0, %v3958
      %v3960 = vpop.f32.mrb[0].mxu0
      %v3961 = vpop.f32.mrb[0].mxu0
      %v3962 = vadd.f32 0.0, %v3961
      %v3963 = vpop.f32.mrb[0].mxu0
      %3964 = vmatprep.mubr.bf16.mxu0 0
      %3965 = vmatmul.mubr.bf16.gmra.mrb[0].mxu0 %v3789
      %v3966 = vpop.f32.mrb[0].mxu0
      %v3967 = vadd.f32 0.0, %v3966
      %v3968 = vpop.f32.mrb[0].mxu0
      %v3969 = vpop.f32.mrb[0].mxu0
      %v3970 = vadd.f32 0.0, %v3969
      %v3971 = vpop.f32.mrb[0].mxu0
      %3972 = vmatprep.mubr.bf16.mxu0 0
      %3973 = vmatmul.mubr.bf16.gmra.mrb[0].mxu0 %v3790
      %v3974 = vpop.f32.mrb[0].mxu0
      %v3975 = vadd.f32 0.0, %v3974
      %v3976 = vpop.f32.mrb[0].mxu0
      %v3977 = vpop.f32.mrb[0].mxu0
      %v3978 = vadd.f32 0.0, %v3977
      %v3979 = vpop.f32.mrb[0].mxu0
      %3980 = vmatprep.mubr.bf16.mxu0 0
      %3981 = vmatmul.mubr.bf16.gmra.mrb[0].mxu0 %v3791
      %v3982 = vpop.f32.mrb[0].mxu0
      %v3983 = vadd.f32 0.0, %v3982
      %v3984 = vpop.f32.mrb[0].mxu0
      %v3985 = vpop.f32.mrb[0].mxu0
      %v3986 = vadd.f32 0.0, %v3985
      %v3987 = vpop.f32.mrb[0].mxu0
      %3988 = vmatprep.mubr.bf16.mxu0 0
      %3989 = vmatmul.mubr.bf16.gmra.mrb[0].mxu0 %v3792
      %v3990 = vpop.f32.mrb[0].mxu0
      %v3991 = vadd.f32 0.0, %v3990
      %v3992 = vpop.f32.mrb[0].mxu0
      %v3993 = vpop.f32.mrb[0].mxu0
      %v3994 = vadd.f32 0.0, %v3993
      %v3995 = vpop.f32.mrb[0].mxu0
      %3996 = vmatprep.mubr.bf16.mxu0 0
      %3997 = vmatmul.mubr.bf16.gmra.mrb[0].mxu0 %v3793
      %v3998 = vpop.f32.mrb[0].mxu0
      %v3999 = vadd.f32 0.0, %v3998
      %v4000 = vpop.f32.mrb[0].mxu0
      %v4001 = vpop.f32.mrb[0].mxu0
      %v4002 = vadd.f32 0.0, %v4001
      %v4003 = vpop.f32.mrb[0].mxu0
      %4004 = vmatprep.mubr.bf16.mxu0 0
      %4005 = vmatmul.mubr.bf16.gmra.mrb[0].mxu0 %v3794
      %v4006 = vpop.f32.mrb[0].mxu0
      %v4007 = vadd.f32 0.0, %v4006
      %v4008 = vpop.f32.mrb[0].mxu0
      %v4009 = vpop.f32.mrb[0].mxu0
      %v4010 = vadd.f32 0.0, %v4009
      %v4011 = vpop.f32.mrb[0].mxu0
      %4012 = vmatprep.mubr.bf16.mxu0 0
      %4013 = vmatmul.mubr.bf16.gmra.mrb[0].mxu0 %v3795
      %v4014 = vpop.f32.mrb[0].mxu0
      %v4015 = vadd.f32 0.0, %v4014
      %v4016 = vpop.f32.mrb[0].mxu0
      %v4017 = vpop.f32.mrb[0].mxu0
      %v4018 = vadd.f32 0.0, %v4017
      %v4019 = vpop.f32.mrb[0].mxu0
      %4020 = vdwg.mxu0
      %v4021 = vadd.f32 %v3267, %v3895
      %v4022 = vadd.f32 %v3268, %v3898
      %v4023 = vadd.f32 %v3269, %v3903
      %v4024 = vadd.f32 %v3270, %v3906
      %v4025 = vadd.f32 %v3271, %v3911
      %v4026 = vadd.f32 %v3272, %v3914
      %v4027 = vadd.f32 %v3273, %v3919
      %v4028 = vadd.f32 %v3274, %v3922
      %v4029 = vadd.f32 %v3275, %v3927
      %v4030 = vadd.f32 %v3276, %v3930
      %v4031 = vadd.f32 %v3277, %v3935
      %v4032 = vadd.f32 %v3278, %v3938
      %v4033 = vadd.f32 %v3279, %v3943
      %v4034 = vadd.f32 %v3280, %v3946
      %v4035 = vadd.f32 %v3281, %v3951
      %v4036 = vadd.f32 %v3282, %v3954
      %v4037 = vadd.f32 %v3283, %v3959
      %v4038 = vadd.f32 %v3284, %v3962
      %v4039 = vadd.f32 %v3285, %v3967
      %v4040 = vadd.f32 %v3286, %v3970
      %v4041 = vadd.f32 %v3287, %v3975
      %v4042 = vadd.f32 %v3288, %v3978
      %v4043 = vadd.f32 %v3289, %v3983
      %v4044 = vadd.f32 %v3290, %v3986
      %v4045 = vadd.f32 %v3291, %v3991
      %v4046 = vadd.f32 %v3292, %v3994
      %v4047 = vadd.f32 %v3293, %v3999
      %v4048 = vadd.f32 %v3294, %v4002
      %v4049 = vadd.f32 %v3295, %v4007
      %v4050 = vadd.f32 %v3296, %v4010
      %v4051 = vadd.f32 %v3297, %v4015
      %v4052 = vadd.f32 %v3298, %v4018
      %v4053 = vld [vmem:[%s1172] sm:$0xe]
      %v4054 = vld [vmem:[%s1172 + $0xc] sm:$0xe]
      %v4055 = vld [vmem:[%s1172 + $0x18] sm:$0xe]
      %v4056 = vld [vmem:[%s1172 + $0x24] sm:$0xe]
      %v4057 = vld [vmem:[%s1172 + $0x30] sm:$0xe]
      %v4058 = vld [vmem:[%s1172 + $0x3c] sm:$0xe]
      %v4059 = vld [vmem:[%s1172 + $0x48] sm:$0xe]
      %v4060 = vld [vmem:[%s1172 + $0x54] sm:$0xe]
      %v4061 = vld [vmem:[%s1172 + $0x60] sm:$0xe]
      %v4062 = vld [vmem:[%s1172 + $0x6c] sm:$0xe]
      %v4063 = vld [vmem:[%s1172 + $0x78] sm:$0xe]
      %v4064 = vld [vmem:[%s1172 + $0x84] sm:$0xe]
      %v4065 = vld [vmem:[%s1172 + $0x90] sm:$0xe]
      %v4066 = vld [vmem:[%s1172 + $0x9c] sm:$0xe]
      %v4067 = vld [vmem:[%s1172 + $0xa8] sm:$0xe]
      %v4068 = vld [vmem:[%s1172 + $0xb4] sm:$0xe]
      %v4117 = vrot.slane %v4053, 5
      %v4118 = vrot.slane %v4117, 4
      %v4119 = vrot.slane %v3300, 5
      %v4120 = vsel %vm2478, %v4118, %v4119
      %v4121 = vrot.slane %v4119, 4
      %v4122 = vrot.slane %v3301, 5
      %v4123 = vsel %vm2478, %v4121, %v4122
      %v4124 = vrot.slane %v4054, 5
      %v4125 = vrot.slane %v4124, 4
      %v4126 = vrot.slane %v3303, 5
      %v4127 = vsel %vm2478, %v4125, %v4126
      %v4128 = vrot.slane %v4126, 4
      %v4129 = vrot.slane %v3304, 5
      %v4130 = vsel %vm2478, %v4128, %v4129
      %v4131 = vrot.slane %v4055, 5
      %v4132 = vrot.slane %v4131, 4
      %v4133 = vrot.slane %v3306, 5
      %v4134 = vsel %vm2478, %v4132, %v4133
      %v4135 = vrot.slane %v4133, 4
      %v4136 = vrot.slane %v3307, 5
      %v4137 = vsel %vm2478, %v4135, %v4136
      %v4138 = vrot.slane %v4056, 5
      %v4139 = vrot.slane %v4138, 4
      %v4140 = vrot.slane %v3309, 5
      %v4141 = vsel %vm2478, %v4139, %v4140
      %v4142 = vrot.slane %v4140, 4
      %v4143 = vrot.slane %v3310, 5
      %v4144 = vsel %vm2478, %v4142, %v4143
      %v4145 = vrot.slane %v4057, 5
      %v4146 = vrot.slane %v4145, 4
      %v4147 = vrot.slane %v3312, 5
      %v4148 = vsel %vm2478, %v4146, %v4147
      %v4149 = vrot.slane %v4147, 4
      %v4150 = vrot.slane %v3313, 5
      %v4151 = vsel %vm2478, %v4149, %v4150
      %v4152 = vrot.slane %v4058, 5
      %v4153 = vrot.slane %v4152, 4
      %v4154 = vrot.slane %v3315, 5
      %v4155 = vsel %vm2478, %v4153, %v4154
      %v4156 = vrot.slane %v4154, 4
      %v4157 = vrot.slane %v3316, 5
      %v4158 = vsel %vm2478, %v4156, %v4157
      %v4159 = vrot.slane %v4059, 5
      %v4160 = vrot.slane %v4159, 4
      %v4161 = vrot.slane %v3318, 5
      %v4162 = vsel %vm2478, %v4160, %v4161
      %v4163 = vrot.slane %v4161, 4
      %v4164 = vrot.slane %v3319, 5
      %v4165 = vsel %vm2478, %v4163, %v4164
      %v4166 = vrot.slane %v4060, 5
      %v4167 = vrot.slane %v4166, 4
      %v4168 = vrot.slane %v3321, 5
      %v4169 = vsel %vm2478, %v4167, %v4168
      %v4170 = vrot.slane %v4168, 4
      %v4171 = vrot.slane %v3322, 5
      %v4172 = vsel %vm2478, %v4170, %v4171
      %v4173 = vrot.slane %v4061, 5
      %v4174 = vrot.slane %v4173, 4
      %v4175 = vrot.slane %v3324, 5
      %v4176 = vsel %vm2478, %v4174, %v4175
      %v4177 = vrot.slane %v4175, 4
      %v4178 = vrot.slane %v3325, 5
      %v4179 = vsel %vm2478, %v4177, %v4178
      %v4180 = vrot.slane %v4062, 5
      %v4181 = vrot.slane %v4180, 4
      %v4182 = vrot.slane %v3327, 5
      %v4183 = vsel %vm2478, %v4181, %v4182
      %v4184 = vrot.slane %v4182, 4
      %v4185 = vrot.slane %v3328, 5
      %v4186 = vsel %vm2478, %v4184, %v4185
      %v4187 = vrot.slane %v4063, 5
      %v4188 = vrot.slane %v4187, 4
      %v4189 = vrot.slane %v3330, 5
      %v4190 = vsel %vm2478, %v4188, %v4189
      %v4191 = vrot.slane %v4189, 4
      %v4192 = vrot.slane %v3331, 5
      %v4193 = vsel %vm2478, %v4191, %v4192
      %v4194 = vrot.slane %v4064, 5
      %v4195 = vrot.slane %v4194, 4
      %v4196 = vrot.slane %v3333, 5
      %v4197 = vsel %vm2478, %v4195, %v4196
      %v4198 = vrot.slane %v4196, 4
      %v4199 = vrot.slane %v3334, 5
      %v4200 = vsel %vm2478, %v4198, %v4199
      %v4201 = vrot.slane %v4065, 5
      %v4202 = vrot.slane %v4201, 4
      %v4203 = vrot.slane %v3336, 5
      %v4204 = vsel %vm2478, %v4202, %v4203
      %v4205 = vrot.slane %v4203, 4
      %v4206 = vrot.slane %v3337, 5
      %v4207 = vsel %vm2478, %v4205, %v4206
      %v4208 = vrot.slane %v4066, 5
      %v4209 = vrot.slane %v4208, 4
      %v4210 = vrot.slane %v3339, 5
      %v4211 = vsel %vm2478, %v4209, %v4210
      %v4212 = vrot.slane %v4210, 4
      %v4213 = vrot.slane %v3340, 5
      %v4214 = vsel %vm2478, %v4212, %v4213
      %v4215 = vrot.slane %v4067, 5
      %v4216 = vrot.slane %v4215, 4
      %v4217 = vrot.slane %v3342, 5
      %v4218 = vsel %vm2478, %v4216, %v4217
      %v4219 = vrot.slane %v4217, 4
      %v4220 = vrot.slane %v3343, 5
      %v4221 = vsel %vm2478, %v4219, %v4220
      %v4222 = vrot.slane %v4068, 5
      %v4223 = vrot.slane %v4222, 4
      %v4224 = vrot.slane %v3345, 5
      %v4225 = vsel %vm2478, %v4223, %v4224
      %v4226 = vrot.slane %v4224, 4
      %v4227 = vrot.slane %v3346, 5
      %v4228 = vsel %vm2478, %v4226, %v4227
      %s4229 = scalar_lea.vmem %s5, 320
      %v4230 = vld [vmem:[%s4229] sm:$0xf]
      %v4231 = vld [vmem:[%s4229 + $0x4] sm:$0xf]
      %v4232 = vld [vmem:[%s4229 + $0x8] sm:$0xf]
      %v4233 = vld [vmem:[%s4229 + $0xc] sm:$0xf]
      %v4234 = vld [vmem:[%s4229 + $0x10] sm:$0xf]
      %v4235 = vld [vmem:[%s4229 + $0x14] sm:$0xf]
      %v4236 = vld [vmem:[%s4229 + $0x18] sm:$0xf]
      %v4237 = vld [vmem:[%s4229 + $0x1c] sm:$0xf]
      %v4238 = vld [vmem:[%s4229 + $0x20] sm:$0xf]
      %v4239 = vld [vmem:[%s4229 + $0x24] sm:$0xf]
      %v4240 = vld [vmem:[%s4229 + $0x28] sm:$0xf]
      %v4241 = vld [vmem:[%s4229 + $0x2c] sm:$0xf]
      %v4242 = vld [vmem:[%s4229 + $0x30] sm:$0xf]
      %v4243 = vld [vmem:[%s4229 + $0x34] sm:$0xf]
      %v4244 = vld [vmem:[%s4229 + $0x38] sm:$0xf]
      %v4245 = vld [vmem:[%s4229 + $0x3c] sm:$0xf]
      %v4246 = vunpack.c.l.b16 %v4120
      %v4247 = vunpack.c.l.b16 %v4123
      %v4248 = vunpack.c.l.b16 %v4127
      %v4249 = vunpack.c.l.b16 %v4130
      %v4250 = vunpack.c.l.b16 %v4134
      %v4251 = vunpack.c.l.b16 %v4137
      %v4252 = vunpack.c.l.b16 %v4141
      %v4253 = vunpack.c.l.b16 %v4144
      %v4254 = vunpack.c.l.b16 %v4148
      %v4255 = vunpack.c.l.b16 %v4151
      %v4256 = vunpack.c.l.b16 %v4155
      %v4257 = vunpack.c.l.b16 %v4158
      %v4258 = vunpack.c.l.b16 %v4162
      %v4259 = vunpack.c.l.b16 %v4165
      %v4260 = vunpack.c.l.b16 %v4169
      %v4261 = vunpack.c.l.b16 %v4172
      %v4262 = vunpack.c.l.b16 %v4176
      %v4263 = vunpack.c.l.b16 %v4179
      %v4264 = vunpack.c.l.b16 %v4183
      %v4265 = vunpack.c.l.b16 %v4186
      %v4266 = vunpack.c.l.b16 %v4190
      %v4267 = vunpack.c.l.b16 %v4193
      %v4268 = vunpack.c.l.b16 %v4197
      %v4269 = vunpack.c.l.b16 %v4200
      %v4270 = vunpack.c.l.b16 %v4204
      %v4271 = vunpack.c.l.b16 %v4207
      %v4272 = vunpack.c.l.b16 %v4211
      %v4273 = vunpack.c.l.b16 %v4214
      %v4274 = vunpack.c.l.b16 %v4218
      %v4275 = vunpack.c.l.b16 %v4221
      %v4276 = vunpack.c.l.b16 %v4225
      %v4277 = vunpack.c.l.b16 %v4228
      %v4278 = vpack.c.b16 %v4247, %v4246
      %v4279 = vpack.c.b16 %v4249, %v4248
      %v4280 = vpack.c.b16 %v4251, %v4250
      %v4281 = vpack.c.b16 %v4253, %v4252
      %v4282 = vpack.c.b16 %v4255, %v4254
      %v4283 = vpack.c.b16 %v4257, %v4256
      %v4284 = vpack.c.b16 %v4259, %v4258
      %v4285 = vpack.c.b16 %v4261, %v4260
      %v4286 = vpack.c.b16 %v4263, %v4262
      %v4287 = vpack.c.b16 %v4265, %v4264
      %v4288 = vpack.c.b16 %v4267, %v4266
      %v4289 = vpack.c.b16 %v4269, %v4268
      %v4290 = vpack.c.b16 %v4271, %v4270
      %v4291 = vpack.c.b16 %v4273, %v4272
      %v4292 = vpack.c.b16 %v4275, %v4274
      %v4293 = vpack.c.b16 %v4277, %v4276
      %v4326 = vunpack.c.l.b16 %v4230
      %v4327 = vunpack.c.l.b16 %v4231
      %v4328 = vunpack.c.l.b16 %v4232
      %v4329 = vunpack.c.l.b16 %v4233
      %v4330 = vunpack.c.l.b16 %v4234
      %v4331 = vunpack.c.l.b16 %v4235
      %v4332 = vunpack.c.l.b16 %v4236
      %v4333 = vunpack.c.l.b16 %v4237
      %v4334 = vunpack.c.l.b16 %v4238
      %v4335 = vunpack.c.l.b16 %v4239
      %v4336 = vunpack.c.l.b16 %v4240
      %v4337 = vunpack.c.l.b16 %v4241
      %v4338 = vunpack.c.l.b16 %v4242
      %v4339 = vunpack.c.l.b16 %v4243
      %v4340 = vunpack.c.l.b16 %v4244
      %v4341 = vunpack.c.l.b16 %v4245
      %v4342 = vpack.c.b16 %v4327, %v4326
      %v4343 = vpack.c.b16 %v4329, %v4328
      %v4344 = vpack.c.b16 %v4331, %v4330
      %v4345 = vpack.c.b16 %v4333, %v4332
      %v4346 = vpack.c.b16 %v4335, %v4334
      %v4347 = vpack.c.b16 %v4337, %v4336
      %v4348 = vpack.c.b16 %v4339, %v4338
      %v4349 = vpack.c.b16 %v4341, %v4340
      %4358 = vmatprep.subr.bf16.mxu0 0
      %4359 = vmatpush1.bf16.msra.mxu0 %v4342
      %4360 = vmatprep.subr.bf16.mxu0 0
      %4361 = vmatpush1.bf16.msra.mxu0 %v4343
      %4362 = vmatprep.subr.bf16.mxu0 0
      %4363 = vmatpush1.bf16.msra.mxu0 %v4344
      %4364 = vmatprep.subr.bf16.mxu0 0
      %4365 = vmatpush1.bf16.msra.mxu0 %v4345
      %4366 = vmatprep.subr.bf16.mxu0 0
      %4367 = vmatpush1.bf16.msra.mxu0 %v4346
      %4368 = vmatprep.subr.bf16.mxu0 0
      %4369 = vmatpush1.bf16.msra.mxu0 %v4347
      %4370 = vmatprep.subr.bf16.mxu0 0
      %4371 = vmatpush1.bf16.msra.mxu0 %v4348
      %4372 = vmatprep.subr.bf16.mxu0 0
      %4373 = vmatpush1.bf16.msra.mxu0 %v4349
      %4374 = vmatprep.subr.bf16.mxu0 0
      %4375 = vmatpush1.bf16.msra.mxu0 0
      %4376 = vmatprep.subr.bf16.mxu0 0
      %4377 = vmatpush1.bf16.msra.mxu0 0
      %4378 = vmatprep.subr.bf16.mxu0 0
      %4379 = vmatpush1.bf16.msra.mxu0 0
      %4380 = vmatprep.subr.bf16.mxu0 0
      %4381 = vmatpush1.bf16.msra.mxu0 0
      %4382 = vmatprep.subr.bf16.mxu0 0
      %4383 = vmatpush1.bf16.msra.mxu0 0
      %4384 = vmatprep.subr.bf16.mxu0 0
      %4385 = vmatpush1.bf16.msra.mxu0 0
      %4386 = vmatprep.subr.bf16.mxu0 0
      %4387 = vmatpush1.bf16.msra.mxu0 0
      %4388 = vmatprep.subr.bf16.mxu0 0
      %4389 = vmatpush1.bf16.msra.mxu0 0
      %4390 = vmatprep.mubr.bf16.mxu0 0
      %4391 = vmatmul.mubr.bf16.gmra.mrb[0].mxu0 %v4278
      %v4392 = vpop.f32.mrb[0].mxu0
      %v4393 = vadd.f32 0.0, %v4392
      %v4394 = vpop.f32.mrb[0].mxu0
      %v4395 = vpop.f32.mrb[0].mxu0
      %v4396 = vadd.f32 0.0, %v4395
      %v4397 = vpop.f32.mrb[0].mxu0
      %4398 = vmatprep.mubr.bf16.mxu0 0
      %4399 = vmatmul.mubr.bf16.gmra.mrb[0].mxu0 %v4279
      %v4400 = vpop.f32.mrb[0].mxu0
      %v4401 = vadd.f32 0.0, %v4400
      %v4402 = vpop.f32.mrb[0].mxu0
      %v4403 = vpop.f32.mrb[0].mxu0
      %v4404 = vadd.f32 0.0, %v4403
      %v4405 = vpop.f32.mrb[0].mxu0
      %4406 = vmatprep.mubr.bf16.mxu0 0
      %4407 = vmatmul.mubr.bf16.gmra.mrb[0].mxu0 %v4280
      %v4408 = vpop.f32.mrb[0].mxu0
      %v4409 = vadd.f32 0.0, %v4408
      %v4410 = vpop.f32.mrb[0].mxu0
      %v4411 = vpop.f32.mrb[0].mxu0
      %v4412 = vadd.f32 0.0, %v4411
      %v4413 = vpop.f32.mrb[0].mxu0
      %4414 = vmatprep.mubr.bf16.mxu0 0
      %4415 = vmatmul.mubr.bf16.gmra.mrb[0].mxu0 %v4281
      %v4416 = vpop.f32.mrb[0].mxu0
      %v4417 = vadd.f32 0.0, %v4416
      %v4418 = vpop.f32.mrb[0].mxu0
      %v4419 = vpop.f32.mrb[0].mxu0
      %v4420 = vadd.f32 0.0, %v4419
      %v4421 = vpop.f32.mrb[0].mxu0
      %4422 = vmatprep.mubr.bf16.mxu0 0
      %4423 = vmatmul.mubr.bf16.gmra.mrb[0].mxu0 %v4282
      %v4424 = vpop.f32.mrb[0].mxu0
      %v4425 = vadd.f32 0.0, %v4424
      %v4426 = vpop.f32.mrb[0].mxu0
      %v4427 = vpop.f32.mrb[0].mxu0
      %v4428 = vadd.f32 0.0, %v4427
      %v4429 = vpop.f32.mrb[0].mxu0
      %4430 = vmatprep.mubr.bf16.mxu0 0
      %4431 = vmatmul.mubr.bf16.gmra.mrb[0].mxu0 %v4283
      %v4432 = vpop.f32.mrb[0].mxu0
      %v4433 = vadd.f32 0.0, %v4432
      %v4434 = vpop.f32.mrb[0].mxu0
      %v4435 = vpop.f32.mrb[0].mxu0
      %v4436 = vadd.f32 0.0, %v4435
      %v4437 = vpop.f32.mrb[0].mxu0
      %4438 = vmatprep.mubr.bf16.mxu0 0
      %4439 = vmatmul.mubr.bf16.gmra.mrb[0].mxu0 %v4284
      %v4440 = vpop.f32.mrb[0].mxu0
      %v4441 = vadd.f32 0.0, %v4440
      %v4442 = vpop.f32.mrb[0].mxu0
      %v4443 = vpop.f32.mrb[0].mxu0
      %v4444 = vadd.f32 0.0, %v4443
      %v4445 = vpop.f32.mrb[0].mxu0
      %4446 = vmatprep.mubr.bf16.mxu0 0
      %4447 = vmatmul.mubr.bf16.gmra.mrb[0].mxu0 %v4285
      %v4448 = vpop.f32.mrb[0].mxu0
      %v4449 = vadd.f32 0.0, %v4448
      %v4450 = vpop.f32.mrb[0].mxu0
      %v4451 = vpop.f32.mrb[0].mxu0
      %v4452 = vadd.f32 0.0, %v4451
      %v4453 = vpop.f32.mrb[0].mxu0
      %4454 = vmatprep.mubr.bf16.mxu0 0
      %4455 = vmatmul.mubr.bf16.gmra.mrb[0].mxu0 %v4286
      %v4456 = vpop.f32.mrb[0].mxu0
      %v4457 = vadd.f32 0.0, %v4456
      %v4458 = vpop.f32.mrb[0].mxu0
      %v4459 = vpop.f32.mrb[0].mxu0
      %v4460 = vadd.f32 0.0, %v4459
      %v4461 = vpop.f32.mrb[0].mxu0
      %4462 = vmatprep.mubr.bf16.mxu0 0
      %4463 = vmatmul.mubr.bf16.gmra.mrb[0].mxu0 %v4287
      %v4464 = vpop.f32.mrb[0].mxu0
      %v4465 = vadd.f32 0.0, %v4464
      %v4466 = vpop.f32.mrb[0].mxu0
      %v4467 = vpop.f32.mrb[0].mxu0
      %v4468 = vadd.f32 0.0, %v4467
      %v4469 = vpop.f32.mrb[0].mxu0
      %4470 = vmatprep.mubr.bf16.mxu0 0
      %4471 = vmatmul.mubr.bf16.gmra.mrb[0].mxu0 %v4288
      %v4472 = vpop.f32.mrb[0].mxu0
      %v4473 = vadd.f32 0.0, %v4472
      %v4474 = vpop.f32.mrb[0].mxu0
      %v4475 = vpop.f32.mrb[0].mxu0
      %v4476 = vadd.f32 0.0, %v4475
      %v4477 = vpop.f32.mrb[0].mxu0
      %4478 = vmatprep.mubr.bf16.mxu0 0
      %4479 = vmatmul.mubr.bf16.gmra.mrb[0].mxu0 %v4289
      %v4480 = vpop.f32.mrb[0].mxu0
      %v4481 = vadd.f32 0.0, %v4480
      %v4482 = vpop.f32.mrb[0].mxu0
      %v4483 = vpop.f32.mrb[0].mxu0
      %v4484 = vadd.f32 0.0, %v4483
      %v4485 = vpop.f32.mrb[0].mxu0
      %4486 = vmatprep.mubr.bf16.mxu0 0
      %4487 = vmatmul.mubr.bf16.gmra.mrb[0].mxu0 %v4290
      %v4488 = vpop.f32.mrb[0].mxu0
      %v4489 = vadd.f32 0.0, %v4488
      %v4490 = vpop.f32.mrb[0].mxu0
      %v4491 = vpop.f32.mrb[0].mxu0
      %v4492 = vadd.f32 0.0, %v4491
      %v4493 = vpop.f32.mrb[0].mxu0
      %4494 = vmatprep.mubr.bf16.mxu0 0
      %4495 = vmatmul.mubr.bf16.gmra.mrb[0].mxu0 %v4291
      %v4496 = vpop.f32.mrb[0].mxu0
      %v4497 = vadd.f32 0.0, %v4496
      %v4498 = vpop.f32.mrb[0].mxu0
      %v4499 = vpop.f32.mrb[0].mxu0
      %v4500 = vadd.f32 0.0, %v4499
      %v4501 = vpop.f32.mrb[0].mxu0
      %4502 = vmatprep.mubr.bf16.mxu0 0
      %4503 = vmatmul.mubr.bf16.gmra.mrb[0].mxu0 %v4292
      %v4504 = vpop.f32.mrb[0].mxu0
      %v4505 = vadd.f32 0.0, %v4504
      %v4506 = vpop.f32.mrb[0].mxu0
      %v4507 = vpop.f32.mrb[0].mxu0
      %v4508 = vadd.f32 0.0, %v4507
      %v4509 = vpop.f32.mrb[0].mxu0
      %4510 = vmatprep.mubr.bf16.mxu0 0
      %4511 = vmatmul.mubr.bf16.gmra.mrb[0].mxu0 %v4293
      %v4512 = vpop.f32.mrb[0].mxu0
      %v4513 = vadd.f32 0.0, %v4512
      %v4514 = vpop.f32.mrb[0].mxu0
      %v4515 = vpop.f32.mrb[0].mxu0
      %v4516 = vadd.f32 0.0, %v4515
      %v4517 = vpop.f32.mrb[0].mxu0
      %4518 = vdwg.mxu0
      %v4519 = vadd.f32 %v4021, %v4393
      %v4520 = vadd.f32 %v4022, %v4396
      %v4521 = vadd.f32 %v4023, %v4401
      %v4522 = vadd.f32 %v4024, %v4404
      %v4523 = vadd.f32 %v4025, %v4409
      %v4524 = vadd.f32 %v4026, %v4412
      %v4525 = vadd.f32 %v4027, %v4417
      %v4526 = vadd.f32 %v4028, %v4420
      %v4527 = vadd.f32 %v4029, %v4425
      %v4528 = vadd.f32 %v4030, %v4428
      %v4529 = vadd.f32 %v4031, %v4433
      %v4530 = vadd.f32 %v4032, %v4436
      %v4531 = vadd.f32 %v4033, %v4441
      %v4532 = vadd.f32 %v4034, %v4444
      %v4533 = vadd.f32 %v4035, %v4449
      %v4534 = vadd.f32 %v4036, %v4452
      %v4535 = vadd.f32 %v4037, %v4457
      %v4536 = vadd.f32 %v4038, %v4460
      %v4537 = vadd.f32 %v4039, %v4465
      %v4538 = vadd.f32 %v4040, %v4468
      %v4539 = vadd.f32 %v4041, %v4473
      %v4540 = vadd.f32 %v4042, %v4476
      %v4541 = vadd.f32 %v4043, %v4481
      %v4542 = vadd.f32 %v4044, %v4484
      %v4543 = vadd.f32 %v4045, %v4489
      %v4544 = vadd.f32 %v4046, %v4492
      %v4545 = vadd.f32 %v4047, %v4497
      %v4546 = vadd.f32 %v4048, %v4500
      %v4547 = vadd.f32 %v4049, %v4505
      %v4548 = vadd.f32 %v4050, %v4508
      %v4549 = vadd.f32 %v4051, %v4513
      %v4550 = vadd.f32 %v4052, %v4516
      %s4551 = scalar_lea.vmem [#allocation2], 24
      %v4552 = vld [vmem:[%s4551] sm:$0xf]
      %v4553 = vld [vmem:[%s4551 + $0x4] sm:$0xf]
      %v4554 = vld [vmem:[%s4551 + $0xc] sm:$0xf]
      %v4555 = vld [vmem:[%s4551 + $0x10] sm:$0xf]
      %v4556 = vld [vmem:[%s4551 + $0x18] sm:$0xf]
      %v4557 = vld [vmem:[%s4551 + $0x1c] sm:$0xf]
      %v4558 = vld [vmem:[%s4551 + $0x24] sm:$0xf]
      %v4559 = vld [vmem:[%s4551 + $0x28] sm:$0xf]
      %v4560 = vld [vmem:[%s4551 + $0x30] sm:$0xf]
      %v4561 = vld [vmem:[%s4551 + $0x34] sm:$0xf]
      %v4562 = vld [vmem:[%s4551 + $0x3c] sm:$0xf]
      %v4563 = vld [vmem:[%s4551 + $0x40] sm:$0xf]
      %v4564 = vld [vmem:[%s4551 + $0x48] sm:$0xf]
      %v4565 = vld [vmem:[%s4551 + $0x4c] sm:$0xf]
      %v4566 = vld [vmem:[%s4551 + $0x54] sm:$0xf]
      %v4567 = vld [vmem:[%s4551 + $0x58] sm:$0xf]
      %v4568 = vld [vmem:[%s4551 + $0x60] sm:$0xf]
      %v4569 = vld [vmem:[%s4551 + $0x64] sm:$0xf]
      %v4570 = vld [vmem:[%s4551 + $0x6c] sm:$0xf]
      %v4571 = vld [vmem:[%s4551 + $0x70] sm:$0xf]
      %v4572 = vld [vmem:[%s4551 + $0x78] sm:$0xf]
      %v4573 = vld [vmem:[%s4551 + $0x7c] sm:$0xf]
      %v4574 = vld [vmem:[%s4551 + $0x84] sm:$0xf]
      %v4575 = vld [vmem:[%s4551 + $0x88] sm:$0xf]
      %v4576 = vld [vmem:[%s4551 + $0x90] sm:$0xf]
      %v4577 = vld [vmem:[%s4551 + $0x94] sm:$0xf]
      %v4578 = vld [vmem:[%s4551 + $0x9c] sm:$0xf]
      %v4579 = vld [vmem:[%s4551 + $0xa0] sm:$0xf]
      %v4580 = vld [vmem:[%s4551 + $0xa8] sm:$0xf]
      %v4581 = vld [vmem:[%s4551 + $0xac] sm:$0xf]
      %v4582 = vld [vmem:[%s4551 + $0xb4] sm:$0xf]
      %v4583 = vld [vmem:[%s4551 + $0xb8] sm:$0xf]
      %s4584 = scalar_lea.vmem %s5, 384
      %v4585 = vld [vmem:[%s4584] sm:$0xf]
      %v4586 = vld [vmem:[%s4584 + $0x4] sm:$0xf]
      %v4587 = vld [vmem:[%s4584 + $0x8] sm:$0xf]
      %v4588 = vld [vmem:[%s4584 + $0xc] sm:$0xf]
      %v4589 = vld [vmem:[%s4584 + $0x10] sm:$0xf]
      %v4590 = vld [vmem:[%s4584 + $0x14] sm:$0xf]
      %v4591 = vld [vmem:[%s4584 + $0x18] sm:$0xf]
      %v4592 = vld [vmem:[%s4584 + $0x1c] sm:$0xf]
      %v4593 = vld [vmem:[%s4584 + $0x20] sm:$0xf]
      %v4594 = vld [vmem:[%s4584 + $0x24] sm:$0xf]
      %v4595 = vld [vmem:[%s4584 + $0x28] sm:$0xf]
      %v4596 = vld [vmem:[%s4584 + $0x2c] sm:$0xf]
      %v4597 = vld [vmem:[%s4584 + $0x30] sm:$0xf]
      %v4598 = vld [vmem:[%s4584 + $0x34] sm:$0xf]
      %v4599 = vld [vmem:[%s4584 + $0x38] sm:$0xf]
      %v4600 = vld [vmem:[%s4584 + $0x3c] sm:$0xf]
      %v4633 = vunpack.c.l.b16 %v4552
      %v4634 = vunpack.c.l.b16 %v4553
      %v4635 = vunpack.c.l.b16 %v4554
      %v4636 = vunpack.c.l.b16 %v4555
      %v4637 = vunpack.c.l.b16 %v4556
      %v4638 = vunpack.c.l.b16 %v4557
      %v4639 = vunpack.c.l.b16 %v4558
      %v4640 = vunpack.c.l.b16 %v4559
      %v4641 = vunpack.c.l.b16 %v4560
      %v4642 = vunpack.c.l.b16 %v4561
      %v4643 = vunpack.c.l.b16 %v4562
      %v4644 = vunpack.c.l.b16 %v4563
      %v4645 = vunpack.c.l.b16 %v4564
      %v4646 = vunpack.c.l.b16 %v4565
      %v4647 = vunpack.c.l.b16 %v4566
      %v4648 = vunpack.c.l.b16 %v4567
      %v4649 = vunpack.c.l.b16 %v4568
      %v4650 = vunpack.c.l.b16 %v4569
      %v4651 = vunpack.c.l.b16 %v4570
      %v4652 = vunpack.c.l.b16 %v4571
      %v4653 = vunpack.c.l.b16 %v4572
      %v4654 = vunpack.c.l.b16 %v4573
      %v4655 = vunpack.c.l.b16 %v4574
      %v4656 = vunpack.c.l.b16 %v4575
      %v4657 = vunpack.c.l.b16 %v4576
      %v4658 = vunpack.c.l.b16 %v4577
      %v4659 = vunpack.c.l.b16 %v4578
      %v4660 = vunpack.c.l.b16 %v4579
      %v4661 = vunpack.c.l.b16 %v4580
      %v4662 = vunpack.c.l.b16 %v4581
      %v4663 = vunpack.c.l.b16 %v4582
      %v4664 = vunpack.c.l.b16 %v4583
      %v4665 = vpack.c.b16 %v4634, %v4633
      %v4666 = vpack.c.b16 %v4636, %v4635
      %v4667 = vpack.c.b16 %v4638, %v4637
      %v4668 = vpack.c.b16 %v4640, %v4639
      %v4669 = vpack.c.b16 %v4642, %v4641
      %v4670 = vpack.c.b16 %v4644, %v4643
      %v4671 = vpack.c.b16 %v4646, %v4645
      %v4672 = vpack.c.b16 %v4648, %v4647
      %v4673 = vpack.c.b16 %v4650, %v4649
      %v4674 = vpack.c.b16 %v4652, %v4651
      %v4675 = vpack.c.b16 %v4654, %v4653
      %v4676 = vpack.c.b16 %v4656, %v4655
      %v4677 = vpack.c.b16 %v4658, %v4657
      %v4678 = vpack.c.b16 %v4660, %v4659
      %v4679 = vpack.c.b16 %v4662, %v4661
      %v4680 = vpack.c.b16 %v4664, %v4663
      %v4713 = vunpack.c.l.b16 %v4585
      %v4714 = vunpack.c.l.b16 %v4586
      %v4715 = vunpack.c.l.b16 %v4587
      %v4716 = vunpack.c.l.b16 %v4588
      %v4717 = vunpack.c.l.b16 %v4589
      %v4718 = vunpack.c.l.b16 %v4590
      %v4719 = vunpack.c.l.b16 %v4591
      %v4720 = vunpack.c.l.b16 %v4592
      %v4721 = vunpack.c.l.b16 %v4593
      %v4722 = vunpack.c.l.b16 %v4594
      %v4723 = vunpack.c.l.b16 %v4595
      %v4724 = vunpack.c.l.b16 %v4596
      %v4725 = vunpack.c.l.b16 %v4597
      %v4726 = vunpack.c.l.b16 %v4598
      %v4727 = vunpack.c.l.b16 %v4599
      %v4728 = vunpack.c.l.b16 %v4600
      %v4729 = vpack.c.b16 %v4714, %v4713
      %v4730 = vpack.c.b16 %v4716, %v4715
      %v4731 = vpack.c.b16 %v4718, %v4717
      %v4732 = vpack.c.b16 %v4720, %v4719
      %v4733 = vpack.c.b16 %v4722, %v4721
      %v4734 = vpack.c.b16 %v4724, %v4723
      %v4735 = vpack.c.b16 %v4726, %v4725
      %v4736 = vpack.c.b16 %v4728, %v4727
      %4745 = vmatprep.subr.bf16.mxu0 0
      %4746 = vmatpush1.bf16.msra.mxu0 %v4729
      %4747 = vmatprep.subr.bf16.mxu0 0
      %4748 = vmatpush1.bf16.msra.mxu0 %v4730
      %4749 = vmatprep.subr.bf16.mxu0 0
      %4750 = vmatpush1.bf16.msra.mxu0 %v4731
      %4751 = vmatprep.subr.bf16.mxu0 0
      %4752 = vmatpush1.bf16.msra.mxu0 %v4732
      %4753 = vmatprep.subr.bf16.mxu0 0
      %4754 = vmatpush1.bf16.msra.mxu0 %v4733
      %4755 = vmatprep.subr.bf16.mxu0 0
      %4756 = vmatpush1.bf16.msra.mxu0 %v4734
      %4757 = vmatprep.subr.bf16.mxu0 0
      %4758 = vmatpush1.bf16.msra.mxu0 %v4735
      %4759 = vmatprep.subr.bf16.mxu0 0
      %4760 = vmatpush1.bf16.msra.mxu0 %v4736
      %4761 = vmatprep.subr.bf16.mxu0 0
      %4762 = vmatpush1.bf16.msra.mxu0 0
      %4763 = vmatprep.subr.bf16.mxu0 0
      %4764 = vmatpush1.bf16.msra.mxu0 0
      %4765 = vmatprep.subr.bf16.mxu0 0
      %4766 = vmatpush1.bf16.msra.mxu0 0
      %4767 = vmatprep.subr.bf16.mxu0 0
      %4768 = vmatpush1.bf16.msra.mxu0 0
      %4769 = vmatprep.subr.bf16.mxu0 0
      %4770 = vmatpush1.bf16.msra.mxu0 0
      %4771 = vmatprep.subr.bf16.mxu0 0
      %4772 = vmatpush1.bf16.msra.mxu0 0
      %4773 = vmatprep.subr.bf16.mxu0 0
      %4774 = vmatpush1.bf16.msra.mxu0 0
      %4775 = vmatprep.subr.bf16.mxu0 0
      %4776 = vmatpush1.bf16.msra.mxu0 0
      %4777 = vmatprep.mubr.bf16.mxu0 0
      %4778 = vmatmul.mubr.bf16.gmra.mrb[0].mxu0 %v4665
      %v4779 = vpop.f32.mrb[0].mxu0
      %v4780 = vadd.f32 0.0, %v4779
      %v4781 = vpop.f32.mrb[0].mxu0
      %v4782 = vpop.f32.mrb[0].mxu0
      %v4783 = vadd.f32 0.0, %v4782
      %v4784 = vpop.f32.mrb[0].mxu0
      %4785 = vmatprep.mubr.bf16.mxu0 0
      %4786 = vmatmul.mubr.bf16.gmra.mrb[0].mxu0 %v4666
      %v4787 = vpop.f32.mrb[0].mxu0
      %v4788 = vadd.f32 0.0, %v4787
      %v4789 = vpop.f32.mrb[0].mxu0
      %v4790 = vpop.f32.mrb[0].mxu0
      %v4791 = vadd.f32 0.0, %v4790
      %v4792 = vpop.f32.mrb[0].mxu0
      %4793 = vmatprep.mubr.bf16.mxu0 0
      %4794 = vmatmul.mubr.bf16.gmra.mrb[0].mxu0 %v4667
      %v4795 = vpop.f32.mrb[0].mxu0
      %v4796 = vadd.f32 0.0, %v4795
      %v4797 = vpop.f32.mrb[0].mxu0
      %v4798 = vpop.f32.mrb[0].mxu0
      %v4799 = vadd.f32 0.0, %v4798
      %v4800 = vpop.f32.mrb[0].mxu0
      %4801 = vmatprep.mubr.bf16.mxu0 0
      %4802 = vmatmul.mubr.bf16.gmra.mrb[0].mxu0 %v4668
      %v4803 = vpop.f32.mrb[0].mxu0
      %v4804 = vadd.f32 0.0, %v4803
      %v4805 = vpop.f32.mrb[0].mxu0
      %v4806 = vpop.f32.mrb[0].mxu0
      %v4807 = vadd.f32 0.0, %v4806
      %v4808 = vpop.f32.mrb[0].mxu0
      %4809 = vmatprep.mubr.bf16.mxu0 0
      %4810 = vmatmul.mubr.bf16.gmra.mrb[0].mxu0 %v4669
      %v4811 = vpop.f32.mrb[0].mxu0
      %v4812 = vadd.f32 0.0, %v4811
      %v4813 = vpop.f32.mrb[0].mxu0
      %v4814 = vpop.f32.mrb[0].mxu0
      %v4815 = vadd.f32 0.0, %v4814
      %v4816 = vpop.f32.mrb[0].mxu0
      %4817 = vmatprep.mubr.bf16.mxu0 0
      %4818 = vmatmul.mubr.bf16.gmra.mrb[0].mxu0 %v4670
      %v4819 = vpop.f32.mrb[0].mxu0
      %v4820 = vadd.f32 0.0, %v4819
      %v4821 = vpop.f32.mrb[0].mxu0
      %v4822 = vpop.f32.mrb[0].mxu0
      %v4823 = vadd.f32 0.0, %v4822
      %v4824 = vpop.f32.mrb[0].mxu0
      %4825 = vmatprep.mubr.bf16.mxu0 0
      %4826 = vmatmul.mubr.bf16.gmra.mrb[0].mxu0 %v4671
      %v4827 = vpop.f32.mrb[0].mxu0
      %v4828 = vadd.f32 0.0, %v4827
      %v4829 = vpop.f32.mrb[0].mxu0
      %v4830 = vpop.f32.mrb[0].mxu0
      %v4831 = vadd.f32 0.0, %v4830
      %v4832 = vpop.f32.mrb[0].mxu0
      %4833 = vmatprep.mubr.bf16.mxu0 0
      %4834 = vmatmul.mubr.bf16.gmra.mrb[0].mxu0 %v4672
      %v4835 = vpop.f32.mrb[0].mxu0
      %v4836 = vadd.f32 0.0, %v4835
      %v4837 = vpop.f32.mrb[0].mxu0
      %v4838 = vpop.f32.mrb[0].mxu0
      %v4839 = vadd.f32 0.0, %v4838
      %v4840 = vpop.f32.mrb[0].mxu0
      %4841 = vmatprep.mubr.bf16.mxu0 0
      %4842 = vmatmul.mubr.bf16.gmra.mrb[0].mxu0 %v4673
      %v4843 = vpop.f32.mrb[0].mxu0
      %v4844 = vadd.f32 0.0, %v4843
      %v4845 = vpop.f32.mrb[0].mxu0
      %v4846 = vpop.f32.mrb[0].mxu0
      %v4847 = vadd.f32 0.0, %v4846
      %v4848 = vpop.f32.mrb[0].mxu0
      %4849 = vmatprep.mubr.bf16.mxu0 0
      %4850 = vmatmul.mubr.bf16.gmra.mrb[0].mxu0 %v4674
      %v4851 = vpop.f32.mrb[0].mxu0
      %v4852 = vadd.f32 0.0, %v4851
      %v4853 = vpop.f32.mrb[0].mxu0
      %v4854 = vpop.f32.mrb[0].mxu0
      %v4855 = vadd.f32 0.0, %v4854
      %v4856 = vpop.f32.mrb[0].mxu0
      %4857 = vmatprep.mubr.bf16.mxu0 0
      %4858 = vmatmul.mubr.bf16.gmra.mrb[0].mxu0 %v4675
      %v4859 = vpop.f32.mrb[0].mxu0
      %v4860 = vadd.f32 0.0, %v4859
      %v4861 = vpop.f32.mrb[0].mxu0
      %v4862 = vpop.f32.mrb[0].mxu0
      %v4863 = vadd.f32 0.0, %v4862
      %v4864 = vpop.f32.mrb[0].mxu0
      %4865 = vmatprep.mubr.bf16.mxu0 0
      %4866 = vmatmul.mubr.bf16.gmra.mrb[0].mxu0 %v4676
      %v4867 = vpop.f32.mrb[0].mxu0
      %v4868 = vadd.f32 0.0, %v4867
      %v4869 = vpop.f32.mrb[0].mxu0
      %v4870 = vpop.f32.mrb[0].mxu0
      %v4871 = vadd.f32 0.0, %v4870
      %v4872 = vpop.f32.mrb[0].mxu0
      %4873 = vmatprep.mubr.bf16.mxu0 0
      %4874 = vmatmul.mubr.bf16.gmra.mrb[0].mxu0 %v4677
      %v4875 = vpop.f32.mrb[0].mxu0
      %v4876 = vadd.f32 0.0, %v4875
      %v4877 = vpop.f32.mrb[0].mxu0
      %v4878 = vpop.f32.mrb[0].mxu0
      %v4879 = vadd.f32 0.0, %v4878
      %v4880 = vpop.f32.mrb[0].mxu0
      %4881 = vmatprep.mubr.bf16.mxu0 0
      %4882 = vmatmul.mubr.bf16.gmra.mrb[0].mxu0 %v4678
      %v4883 = vpop.f32.mrb[0].mxu0
      %v4884 = vadd.f32 0.0, %v4883
      %v4885 = vpop.f32.mrb[0].mxu0
      %v4886 = vpop.f32.mrb[0].mxu0
      %v4887 = vadd.f32 0.0, %v4886
      %v4888 = vpop.f32.mrb[0].mxu0
      %4889 = vmatprep.mubr.bf16.mxu0 0
      %4890 = vmatmul.mubr.bf16.gmra.mrb[0].mxu0 %v4679
      %v4891 = vpop.f32.mrb[0].mxu0
      %v4892 = vadd.f32 0.0, %v4891
      %v4893 = vpop.f32.mrb[0].mxu0
      %v4894 = vpop.f32.mrb[0].mxu0
      %v4895 = vadd.f32 0.0, %v4894
      %v4896 = vpop.f32.mrb[0].mxu0
      %4897 = vmatprep.mubr.bf16.mxu0 0
      %4898 = vmatmul.mubr.bf16.gmra.mrb[0].mxu0 %v4680
      %v4899 = vpop.f32.mrb[0].mxu0
      %v4900 = vadd.f32 0.0, %v4899
      %v4901 = vpop.f32.mrb[0].mxu0
      %v4902 = vpop.f32.mrb[0].mxu0
      %v4903 = vadd.f32 0.0, %v4902
      %v4904 = vpop.f32.mrb[0].mxu0
      %4905 = vdwg.mxu0
      %v4906 = vadd.f32 %v4519, %v4780
      %v4907 = vadd.f32 %v4520, %v4783
      %v4908 = vadd.f32 %v4521, %v4788
      %v4909 = vadd.f32 %v4522, %v4791
      %v4910 = vadd.f32 %v4523, %v4796
      %v4911 = vadd.f32 %v4524, %v4799
      %v4912 = vadd.f32 %v4525, %v4804
      %v4913 = vadd.f32 %v4526, %v4807
      %v4914 = vadd.f32 %v4527, %v4812
      %v4915 = vadd.f32 %v4528, %v4815
      %v4916 = vadd.f32 %v4529, %v4820
      %v4917 = vadd.f32 %v4530, %v4823
      %v4918 = vadd.f32 %v4531, %v4828
      %v4919 = vadd.f32 %v4532, %v4831
      %v4920 = vadd.f32 %v4533, %v4836
      %v4921 = vadd.f32 %v4534, %v4839
      %v4922 = vadd.f32 %v4535, %v4844
      %v4923 = vadd.f32 %v4536, %v4847
      %v4924 = vadd.f32 %v4537, %v4852
      %v4925 = vadd.f32 %v4538, %v4855
      %v4926 = vadd.f32 %v4539, %v4860
      %v4927 = vadd.f32 %v4540, %v4863
      %v4928 = vadd.f32 %v4541, %v4868
      %v4929 = vadd.f32 %v4542, %v4871
      %v4930 = vadd.f32 %v4543, %v4876
      %v4931 = vadd.f32 %v4544, %v4879
      %v4932 = vadd.f32 %v4545, %v4884
      %v4933 = vadd.f32 %v4546, %v4887
      %v4934 = vadd.f32 %v4547, %v4892
      %v4935 = vadd.f32 %v4548, %v4895
      %v4936 = vadd.f32 %v4549, %v4900
      %v4937 = vadd.f32 %v4550, %v4903
      %v4938 = vld [vmem:[%s4551] sm:$0xf]
      %v4939 = vld [vmem:[%s4551 + $0x4] sm:$0xf]
      %v4940 = vld [vmem:[%s4551 + $0x8] sm:$0x1]
      %v4941 = vld [vmem:[%s4551 + $0xc] sm:$0xf]
      %v4942 = vld [vmem:[%s4551 + $0x10] sm:$0xf]
      %v4943 = vld [vmem:[%s4551 + $0x14] sm:$0x1]
      %v4944 = vld [vmem:[%s4551 + $0x18] sm:$0xf]
      %v4945 = vld [vmem:[%s4551 + $0x1c] sm:$0xf]
      %v4946 = vld [vmem:[%s4551 + $0x20] sm:$0x1]
      %v4947 = vld [vmem:[%s4551 + $0x24] sm:$0xf]
      %v4948 = vld [vmem:[%s4551 + $0x28] sm:$0xf]
      %v4949 = vld [vmem:[%s4551 + $0x2c] sm:$0x1]
      %v4950 = vld [vmem:[%s4551 + $0x30] sm:$0xf]
      %v4951 = vld [vmem:[%s4551 + $0x34] sm:$0xf]
      %v4952 = vld [vmem:[%s4551 + $0x38] sm:$0x1]
      %v4953 = vld [vmem:[%s4551 + $0x3c] sm:$0xf]
      %v4954 = vld [vmem:[%s4551 + $0x40] sm:$0xf]
      %v4955 = vld [vmem:[%s4551 + $0x44] sm:$0x1]
      %v4956 = vld [vmem:[%s4551 + $0x48] sm:$0xf]
      %v4957 = vld [vmem:[%s4551 + $0x4c] sm:$0xf]
      %v4958 = vld [vmem:[%s4551 + $0x50] sm:$0x1]
      %v4959 = vld [vmem:[%s4551 + $0x54] sm:$0xf]
      %v4960 = vld [vmem:[%s4551 + $0x58] sm:$0xf]
      %v4961 = vld [vmem:[%s4551 + $0x5c] sm:$0x1]
      %v4962 = vld [vmem:[%s4551 + $0x60] sm:$0xf]
      %v4963 = vld [vmem:[%s4551 + $0x64] sm:$0xf]
      %v4964 = vld [vmem:[%s4551 + $0x68] sm:$0x1]
      %v4965 = vld [vmem:[%s4551 + $0x6c] sm:$0xf]
      %v4966 = vld [vmem:[%s4551 + $0x70] sm:$0xf]
      %v4967 = vld [vmem:[%s4551 + $0x74] sm:$0x1]
      %v4968 = vld [vmem:[%s4551 + $0x78] sm:$0xf]
      %v4969 = vld [vmem:[%s4551 + $0x7c] sm:$0xf]
      %v4970 = vld [vmem:[%s4551 + $0x80] sm:$0x1]
      %v4971 = vld [vmem:[%s4551 + $0x84] sm:$0xf]
      %v4972 = vld [vmem:[%s4551 + $0x88] sm:$0xf]
      %v4973 = vld [vmem:[%s4551 + $0x8c] sm:$0x1]
      %v4974 = vld [vmem:[%s4551 + $0x90] sm:$0xf]
      %v4975 = vld [vmem:[%s4551 + $0x94] sm:$0xf]
      %v4976 = vld [vmem:[%s4551 + $0x98] sm:$0x1]
      %v4977 = vld [vmem:[%s4551 + $0x9c] sm:$0xf]
      %v4978 = vld [vmem:[%s4551 + $0xa0] sm:$0xf]
      %v4979 = vld [vmem:[%s4551 + $0xa4] sm:$0x1]
      %v4980 = vld [vmem:[%s4551 + $0xa8] sm:$0xf]
      %v4981 = vld [vmem:[%s4551 + $0xac] sm:$0xf]
      %v4982 = vld [vmem:[%s4551 + $0xb0] sm:$0x1]
      %v4983 = vld [vmem:[%s4551 + $0xb4] sm:$0xf]
      %v4984 = vld [vmem:[%s4551 + $0xb8] sm:$0xf]
      %v4985 = vld [vmem:[%s4551 + $0xbc] sm:$0x1]
      %v4987 = vshrl.u32 %v4938, 16
      %v4989 = vrot.slane %v4987, 4
      %v4990 = vshll.u32 %v4938, 16
      %v4992 = vrot.slane %v4990, 5
      %v4993 = vor.u32 %v4989, %v4992
      %v4994 = vrot.slane %v4993, 4
      %v4996 = vshll.u32 %v4939, 16
      %v4998 = vrot.slane %v4996, 5
      %v4999 = vsel %vm1448, %v4994, %v4998
      %v5000 = vshrl.u32 %v4939, 16
      %v5002 = vrot.slane %v5000, 4
      %v5003 = vor.u32 %v5002, %v4998
      %v5004 = vrot.slane %v5003, 4
      %v5006 = vshll.u32 %v4940, 16
      %v5008 = vrot.slane %v5006, 5
      %v5009 = vsel %vm1448, %v5004, %v5008
      %v5011 = vshrl.u32 %v4941, 16
      %v5013 = vrot.slane %v5011, 4
      %v5014 = vshll.u32 %v4941, 16
      %v5016 = vrot.slane %v5014, 5
      %v5017 = vor.u32 %v5013, %v5016
      %v5018 = vrot.slane %v5017, 4
      %v5020 = vshll.u32 %v4942, 16
      %v5022 = vrot.slane %v5020, 5
      %v5023 = vsel %vm1448, %v5018, %v5022
      %v5024 = vshrl.u32 %v4942, 16
      %v5026 = vrot.slane %v5024, 4
      %v5027 = vor.u32 %v5026, %v5022
      %v5028 = vrot.slane %v5027, 4
      %v5030 = vshll.u32 %v4943, 16
      %v5032 = vrot.slane %v5030, 5
      %v5033 = vsel %vm1448, %v5028, %v5032
      %v5035 = vshrl.u32 %v4944, 16
      %v5037 = vrot.slane %v5035, 4
      %v5038 = vshll.u32 %v4944, 16
      %v5040 = vrot.slane %v5038, 5
      %v5041 = vor.u32 %v5037, %v5040
      %v5042 = vrot.slane %v5041, 4
      %v5044 = vshll.u32 %v4945, 16
      %v5046 = vrot.slane %v5044, 5
      %v5047 = vsel %vm1448, %v5042, %v5046
      %v5048 = vshrl.u32 %v4945, 16
      %v5050 = vrot.slane %v5048, 4
      %v5051 = vor.u32 %v5050, %v5046
      %v5052 = vrot.slane %v5051, 4
      %v5054 = vshll.u32 %v4946, 16
      %v5056 = vrot.slane %v5054, 5
      %v5057 = vsel %vm1448, %v5052, %v5056
      %v5059 = vshrl.u32 %v4947, 16
      %v5061 = vrot.slane %v5059, 4
      %v5062 = vshll.u32 %v4947, 16
      %v5064 = vrot.slane %v5062, 5
      %v5065 = vor.u32 %v5061, %v5064
      %v5066 = vrot.slane %v5065, 4
      %v5068 = vshll.u32 %v4948, 16
      %v5070 = vrot.slane %v5068, 5
      %v5071 = vsel %vm1448, %v5066, %v5070
      %v5072 = vshrl.u32 %v4948, 16
      %v5074 = vrot.slane %v5072, 4
      %v5075 = vor.u32 %v5074, %v5070
      %v5076 = vrot.slane %v5075, 4
      %v5078 = vshll.u32 %v4949, 16
      %v5080 = vrot.slane %v5078, 5
      %v5081 = vsel %vm1448, %v5076, %v5080
      %v5083 = vshrl.u32 %v4950, 16
      %v5085 = vrot.slane %v5083, 4
      %v5086 = vshll.u32 %v4950, 16
      %v5088 = vrot.slane %v5086, 5
      %v5089 = vor.u32 %v5085, %v5088
      %v5090 = vrot.slane %v5089, 4
      %v5092 = vshll.u32 %v4951, 16
      %v5094 = vrot.slane %v5092, 5
      %v5095 = vsel %vm1448, %v5090, %v5094
      %v5096 = vshrl.u32 %v4951, 16
      %v5098 = vrot.slane %v5096, 4
      %v5099 = vor.u32 %v5098, %v5094
      %v5100 = vrot.slane %v5099, 4
      %v5102 = vshll.u32 %v4952, 16
      %v5104 = vrot.slane %v5102, 5
      %v5105 = vsel %vm1448, %v5100, %v5104
      %v5107 = vshrl.u32 %v4953, 16
      %v5109 = vrot.slane %v5107, 4
      %v5110 = vshll.u32 %v4953, 16
      %v5112 = vrot.slane %v5110, 5
      %v5113 = vor.u32 %v5109, %v5112
      %v5114 = vrot.slane %v5113, 4
      %v5116 = vshll.u32 %v4954, 16
      %v5118 = vrot.slane %v5116, 5
      %v5119 = vsel %vm1448, %v5114, %v5118
      %v5120 = vshrl.u32 %v4954, 16
      %v5122 = vrot.slane %v5120, 4
      %v5123 = vor.u32 %v5122, %v5118
      %v5124 = vrot.slane %v5123, 4
      %v5126 = vshll.u32 %v4955, 16
      %v5128 = vrot.slane %v5126, 5
      %v5129 = vsel %vm1448, %v5124, %v5128
      %v5131 = vshrl.u32 %v4956, 16
      %v5133 = vrot.slane %v5131, 4
      %v5134 = vshll.u32 %v4956, 16
      %v5136 = vrot.slane %v5134, 5
      %v5137 = vor.u32 %v5133, %v5136
      %v5138 = vrot.slane %v5137, 4
      %v5140 = vshll.u32 %v4957, 16
      %v5142 = vrot.slane %v5140, 5
      %v5143 = vsel %vm1448, %v5138, %v5142
      %v5144 = vshrl.u32 %v4957, 16
      %v5146 = vrot.slane %v5144, 4
      %v5147 = vor.u32 %v5146, %v5142
      %v5148 = vrot.slane %v5147, 4
      %v5150 = vshll.u32 %v4958, 16
      %v5152 = vrot.slane %v5150, 5
      %v5153 = vsel %vm1448, %v5148, %v5152
      %v5155 = vshrl.u32 %v4959, 16
      %v5157 = vrot.slane %v5155, 4
      %v5158 = vshll.u32 %v4959, 16
      %v5160 = vrot.slane %v5158, 5
      %v5161 = vor.u32 %v5157, %v5160
      %v5162 = vrot.slane %v5161, 4
      %v5164 = vshll.u32 %v4960, 16
      %v5166 = vrot.slane %v5164, 5
      %v5167 = vsel %vm1448, %v5162, %v5166
      %v5168 = vshrl.u32 %v4960, 16
      %v5170 = vrot.slane %v5168, 4
      %v5171 = vor.u32 %v5170, %v5166
      %v5172 = vrot.slane %v5171, 4
      %v5174 = vshll.u32 %v4961, 16
      %v5176 = vrot.slane %v5174, 5
      %v5177 = vsel %vm1448, %v5172, %v5176
      %v5179 = vshrl.u32 %v4962, 16
      %v5181 = vrot.slane %v5179, 4
      %v5182 = vshll.u32 %v4962, 16
      %v5184 = vrot.slane %v5182, 5
      %v5185 = vor.u32 %v5181, %v5184
      %v5186 = vrot.slane %v5185, 4
      %v5188 = vshll.u32 %v4963, 16
      %v5190 = vrot.slane %v5188, 5
      %v5191 = vsel %vm1448, %v5186, %v5190
      %v5192 = vshrl.u32 %v4963, 16
      %v5194 = vrot.slane %v5192, 4
      %v5195 = vor.u32 %v5194, %v5190
      %v5196 = vrot.slane %v5195, 4
      %v5198 = vshll.u32 %v4964, 16
      %v5200 = vrot.slane %v5198, 5
      %v5201 = vsel %vm1448, %v5196, %v5200
      %v5203 = vshrl.u32 %v4965, 16
      %v5205 = vrot.slane %v5203, 4
      %v5206 = vshll.u32 %v4965, 16
      %v5208 = vrot.slane %v5206, 5
      %v5209 = vor.u32 %v5205, %v5208
      %v5210 = vrot.slane %v5209, 4
      %v5212 = vshll.u32 %v4966, 16
      %v5214 = vrot.slane %v5212, 5
      %v5215 = vsel %vm1448, %v5210, %v5214
      %v5216 = vshrl.u32 %v4966, 16
      %v5218 = vrot.slane %v5216, 4
      %v5219 = vor.u32 %v5218, %v5214
      %v5220 = vrot.slane %v5219, 4
      %v5222 = vshll.u32 %v4967, 16
      %v5224 = vrot.slane %v5222, 5
      %v5225 = vsel %vm1448, %v5220, %v5224
      %v5227 = vshrl.u32 %v4968, 16
      %v5229 = vrot.slane %v5227, 4
      %v5230 = vshll.u32 %v4968, 16
      %v5232 = vrot.slane %v5230, 5
      %v5233 = vor.u32 %v5229, %v5232
      %v5234 = vrot.slane %v5233, 4
      %v5236 = vshll.u32 %v4969, 16
      %v5238 = vrot.slane %v5236, 5
      %v5239 = vsel %vm1448, %v5234, %v5238
      %v5240 = vshrl.u32 %v4969, 16
      %v5242 = vrot.slane %v5240, 4
      %v5243 = vor.u32 %v5242, %v5238
      %v5244 = vrot.slane %v5243, 4
      %v5246 = vshll.u32 %v4970, 16
      %v5248 = vrot.slane %v5246, 5
      %v5249 = vsel %vm1448, %v5244, %v5248
      %v5251 = vshrl.u32 %v4971, 16
      %v5253 = vrot.slane %v5251, 4
      %v5254 = vshll.u32 %v4971, 16
      %v5256 = vrot.slane %v5254, 5
      %v5257 = vor.u32 %v5253, %v5256
      %v5258 = vrot.slane %v5257, 4
      %v5260 = vshll.u32 %v4972, 16
      %v5262 = vrot.slane %v5260, 5
      %v5263 = vsel %vm1448, %v5258, %v5262
      %v5264 = vshrl.u32 %v4972, 16
      %v5266 = vrot.slane %v5264, 4
      %v5267 = vor.u32 %v5266, %v5262
      %v5268 = vrot.slane %v5267, 4
      %v5270 = vshll.u32 %v4973, 16
      %v5272 = vrot.slane %v5270, 5
      %v5273 = vsel %vm1448, %v5268, %v5272
      %v5275 = vshrl.u32 %v4974, 16
      %v5277 = vrot.slane %v5275, 4
      %v5278 = vshll.u32 %v4974, 16
      %v5280 = vrot.slane %v5278, 5
      %v5281 = vor.u32 %v5277, %v5280
      %v5282 = vrot.slane %v5281, 4
      %v5284 = vshll.u32 %v4975, 16
      %v5286 = vrot.slane %v5284, 5
      %v5287 = vsel %vm1448, %v5282, %v5286
      %v5288 = vshrl.u32 %v4975, 16
      %v5290 = vrot.slane %v5288, 4
      %v5291 = vor.u32 %v5290, %v5286
      %v5292 = vrot.slane %v5291, 4
      %v5294 = vshll.u32 %v4976, 16
      %v5296 = vrot.slane %v5294, 5
      %v5297 = vsel %vm1448, %v5292, %v5296
      %v5299 = vshrl.u32 %v4977, 16
      %v5301 = vrot.slane %v5299, 4
      %v5302 = vshll.u32 %v4977, 16
      %v5304 = vrot.slane %v5302, 5
      %v5305 = vor.u32 %v5301, %v5304
      %v5306 = vrot.slane %v5305, 4
      %v5308 = vshll.u32 %v4978, 16
      %v5310 = vrot.slane %v5308, 5
      %v5311 = vsel %vm1448, %v5306, %v5310
      %v5312 = vshrl.u32 %v4978, 16
      %v5314 = vrot.slane %v5312, 4
      %v5315 = vor.u32 %v5314, %v5310
      %v5316 = vrot.slane %v5315, 4
      %v5318 = vshll.u32 %v4979, 16
      %v5320 = vrot.slane %v5318, 5
      %v5321 = vsel %vm1448, %v5316, %v5320
      %v5323 = vshrl.u32 %v4980, 16
      %v5325 = vrot.slane %v5323, 4
      %v5326 = vshll.u32 %v4980, 16
      %v5328 = vrot.slane %v5326, 5
      %v5329 = vor.u32 %v5325, %v5328
      %v5330 = vrot.slane %v5329, 4
      %v5332 = vshll.u32 %v4981, 16
      %v5334 = vrot.slane %v5332, 5
      %v5335 = vsel %vm1448, %v5330, %v5334
      %v5336 = vshrl.u32 %v4981, 16
      %v5338 = vrot.slane %v5336, 4
      %v5339 = vor.u32 %v5338, %v5334
      %v5340 = vrot.slane %v5339, 4
      %v5342 = vshll.u32 %v4982, 16
      %v5344 = vrot.slane %v5342, 5
      %v5345 = vsel %vm1448, %v5340, %v5344
      %v5347 = vshrl.u32 %v4983, 16
      %v5349 = vrot.slane %v5347, 4
      %v5350 = vshll.u32 %v4983, 16
      %v5352 = vrot.slane %v5350, 5
      %v5353 = vor.u32 %v5349, %v5352
      %v5354 = vrot.slane %v5353, 4
      %v5356 = vshll.u32 %v4984, 16
      %v5358 = vrot.slane %v5356, 5
      %v5359 = vsel %vm1448, %v5354, %v5358
      %v5360 = vshrl.u32 %v4984, 16
      %v5362 = vrot.slane %v5360, 4
      %v5363 = vor.u32 %v5362, %v5358
      %v5364 = vrot.slane %v5363, 4
      %v5366 = vshll.u32 %v4985, 16
      %v5368 = vrot.slane %v5366, 5
      %v5369 = vsel %vm1448, %v5364, %v5368
      %s5370 = scalar_lea.vmem %s5, 448
      %v5371 = vld [vmem:[%s5370] sm:$0xf]
      %v5372 = vld [vmem:[%s5370 + $0x4] sm:$0xf]
      %v5373 = vld [vmem:[%s5370 + $0x8] sm:$0xf]
      %v5374 = vld [vmem:[%s5370 + $0xc] sm:$0xf]
      %v5375 = vld [vmem:[%s5370 + $0x10] sm:$0xf]
      %v5376 = vld [vmem:[%s5370 + $0x14] sm:$0xf]
      %v5377 = vld [vmem:[%s5370 + $0x18] sm:$0xf]
      %v5378 = vld [vmem:[%s5370 + $0x1c] sm:$0xf]
      %v5379 = vld [vmem:[%s5370 + $0x20] sm:$0xf]
      %v5380 = vld [vmem:[%s5370 + $0x24] sm:$0xf]
      %v5381 = vld [vmem:[%s5370 + $0x28] sm:$0xf]
      %v5382 = vld [vmem:[%s5370 + $0x2c] sm:$0xf]
      %v5383 = vld [vmem:[%s5370 + $0x30] sm:$0xf]
      %v5384 = vld [vmem:[%s5370 + $0x34] sm:$0xf]
      %v5385 = vld [vmem:[%s5370 + $0x38] sm:$0xf]
      %v5386 = vld [vmem:[%s5370 + $0x3c] sm:$0xf]
      %v5387 = vunpack.c.l.b16 %v4999
      %v5388 = vunpack.c.l.b16 %v5009
      %v5389 = vunpack.c.l.b16 %v5023
      %v5390 = vunpack.c.l.b16 %v5033
      %v5391 = vunpack.c.l.b16 %v5047
      %v5392 = vunpack.c.l.b16 %v5057
      %v5393 = vunpack.c.l.b16 %v5071
      %v5394 = vunpack.c.l.b16 %v5081
      %v5395 = vunpack.c.l.b16 %v5095
      %v5396 = vunpack.c.l.b16 %v5105
      %v5397 = vunpack.c.l.b16 %v5119
      %v5398 = vunpack.c.l.b16 %v5129
      %v5399 = vunpack.c.l.b16 %v5143
      %v5400 = vunpack.c.l.b16 %v5153
      %v5401 = vunpack.c.l.b16 %v5167
      %v5402 = vunpack.c.l.b16 %v5177
      %v5403 = vunpack.c.l.b16 %v5191
      %v5404 = vunpack.c.l.b16 %v5201
      %v5405 = vunpack.c.l.b16 %v5215
      %v5406 = vunpack.c.l.b16 %v5225
      %v5407 = vunpack.c.l.b16 %v5239
      %v5408 = vunpack.c.l.b16 %v5249
      %v5409 = vunpack.c.l.b16 %v5263
      %v5410 = vunpack.c.l.b16 %v5273
      %v5411 = vunpack.c.l.b16 %v5287
      %v5412 = vunpack.c.l.b16 %v5297
      %v5413 = vunpack.c.l.b16 %v5311
      %v5414 = vunpack.c.l.b16 %v5321
      %v5415 = vunpack.c.l.b16 %v5335
      %v5416 = vunpack.c.l.b16 %v5345
      %v5417 = vunpack.c.l.b16 %v5359
      %v5418 = vunpack.c.l.b16 %v5369
      %v5419 = vpack.c.b16 %v5388, %v5387
      %v5420 = vpack.c.b16 %v5390, %v5389
      %v5421 = vpack.c.b16 %v5392, %v5391
      %v5422 = vpack.c.b16 %v5394, %v5393
      %v5423 = vpack.c.b16 %v5396, %v5395
      %v5424 = vpack.c.b16 %v5398, %v5397
      %v5425 = vpack.c.b16 %v5400, %v5399
      %v5426 = vpack.c.b16 %v5402, %v5401
      %v5427 = vpack.c.b16 %v5404, %v5403
      %v5428 = vpack.c.b16 %v5406, %v5405
      %v5429 = vpack.c.b16 %v5408, %v5407
      %v5430 = vpack.c.b16 %v5410, %v5409
      %v5431 = vpack.c.b16 %v5412, %v5411
      %v5432 = vpack.c.b16 %v5414, %v5413
      %v5433 = vpack.c.b16 %v5416, %v5415
      %v5434 = vpack.c.b16 %v5418, %v5417
      %v5467 = vunpack.c.l.b16 %v5371
      %v5468 = vunpack.c.l.b16 %v5372
      %v5469 = vunpack.c.l.b16 %v5373
      %v5470 = vunpack.c.l.b16 %v5374
      %v5471 = vunpack.c.l.b16 %v5375
      %v5472 = vunpack.c.l.b16 %v5376
      %v5473 = vunpack.c.l.b16 %v5377
      %v5474 = vunpack.c.l.b16 %v5378
      %v5475 = vunpack.c.l.b16 %v5379
      %v5476 = vunpack.c.l.b16 %v5380
      %v5477 = vunpack.c.l.b16 %v5381
      %v5478 = vunpack.c.l.b16 %v5382
      %v5479 = vunpack.c.l.b16 %v5383
      %v5480 = vunpack.c.l.b16 %v5384
      %v5481 = vunpack.c.l.b16 %v5385
      %v5482 = vunpack.c.l.b16 %v5386
      %v5483 = vpack.c.b16 %v5468, %v5467
      %v5484 = vpack.c.b16 %v5470, %v5469
      %v5485 = vpack.c.b16 %v5472, %v5471
      %v5486 = vpack.c.b16 %v5474, %v5473
      %v5487 = vpack.c.b16 %v5476, %v5475
      %v5488 = vpack.c.b16 %v5478, %v5477
      %v5489 = vpack.c.b16 %v5480, %v5479
      %v5490 = vpack.c.b16 %v5482, %v5481
      %5499 = vmatprep.subr.bf16.mxu0 0
      %5500 = vmatpush1.bf16.msra.mxu0 %v5483
      %5501 = vmatprep.subr.bf16.mxu0 0
      %5502 = vmatpush1.bf16.msra.mxu0 %v5484
      %5503 = vmatprep.subr.bf16.mxu0 0
      %5504 = vmatpush1.bf16.msra.mxu0 %v5485
      %5505 = vmatprep.subr.bf16.mxu0 0
      %5506 = vmatpush1.bf16.msra.mxu0 %v5486
      %5507 = vmatprep.subr.bf16.mxu0 0
      %5508 = vmatpush1.bf16.msra.mxu0 %v5487
      %5509 = vmatprep.subr.bf16.mxu0 0
      %5510 = vmatpush1.bf16.msra.mxu0 %v5488
      %5511 = vmatprep.subr.bf16.mxu0 0
      %5512 = vmatpush1.bf16.msra.mxu0 %v5489
      %5513 = vmatprep.subr.bf16.mxu0 0
      %5514 = vmatpush1.bf16.msra.mxu0 %v5490
      %5515 = vmatprep.subr.bf16.mxu0 0
      %5516 = vmatpush1.bf16.msra.mxu0 0
      %5517 = vmatprep.subr.bf16.mxu0 0
      %5518 = vmatpush1.bf16.msra.mxu0 0
      %5519 = vmatprep.subr.bf16.mxu0 0
      %5520 = vmatpush1.bf16.msra.mxu0 0
      %5521 = vmatprep.subr.bf16.mxu0 0
      %5522 = vmatpush1.bf16.msra.mxu0 0
      %5523 = vmatprep.subr.bf16.mxu0 0
      %5524 = vmatpush1.bf16.msra.mxu0 0
      %5525 = vmatprep.subr.bf16.mxu0 0
      %5526 = vmatpush1.bf16.msra.mxu0 0
      %5527 = vmatprep.subr.bf16.mxu0 0
      %5528 = vmatpush1.bf16.msra.mxu0 0
      %5529 = vmatprep.subr.bf16.mxu0 0
      %5530 = vmatpush1.bf16.msra.mxu0 0
      %5531 = vmatprep.mubr.bf16.mxu0 0
      %5532 = vmatmul.mubr.bf16.gmra.mrb[0].mxu0 %v5419
      %v5533 = vpop.f32.mrb[0].mxu0
      %v5534 = vadd.f32 0.0, %v5533
      %v5535 = vpop.f32.mrb[0].mxu0
      %v5536 = vpop.f32.mrb[0].mxu0
      %v5537 = vadd.f32 0.0, %v5536
      %v5538 = vpop.f32.mrb[0].mxu0
      %5539 = vmatprep.mubr.bf16.mxu0 0
      %5540 = vmatmul.mubr.bf16.gmra.mrb[0].mxu0 %v5420
      %v5541 = vpop.f32.mrb[0].mxu0
      %v5542 = vadd.f32 0.0, %v5541
      %v5543 = vpop.f32.mrb[0].mxu0
      %v5544 = vpop.f32.mrb[0].mxu0
      %v5545 = vadd.f32 0.0, %v5544
      %v5546 = vpop.f32.mrb[0].mxu0
      %5547 = vmatprep.mubr.bf16.mxu0 0
      %5548 = vmatmul.mubr.bf16.gmra.mrb[0].mxu0 %v5421
      %v5549 = vpop.f32.mrb[0].mxu0
      %v5550 = vadd.f32 0.0, %v5549
      %v5551 = vpop.f32.mrb[0].mxu0
      %v5552 = vpop.f32.mrb[0].mxu0
      %v5553 = vadd.f32 0.0, %v5552
      %v5554 = vpop.f32.mrb[0].mxu0
      %5555 = vmatprep.mubr.bf16.mxu0 0
      %5556 = vmatmul.mubr.bf16.gmra.mrb[0].mxu0 %v5422
      %v5557 = vpop.f32.mrb[0].mxu0
      %v5558 = vadd.f32 0.0, %v5557
      %v5559 = vpop.f32.mrb[0].mxu0
      %v5560 = vpop.f32.mrb[0].mxu0
      %v5561 = vadd.f32 0.0, %v5560
      %v5562 = vpop.f32.mrb[0].mxu0
      %5563 = vmatprep.mubr.bf16.mxu0 0
      %5564 = vmatmul.mubr.bf16.gmra.mrb[0].mxu0 %v5423
      %v5565 = vpop.f32.mrb[0].mxu0
      %v5566 = vadd.f32 0.0, %v5565
      %v5567 = vpop.f32.mrb[0].mxu0
      %v5568 = vpop.f32.mrb[0].mxu0
      %v5569 = vadd.f32 0.0, %v5568
      %v5570 = vpop.f32.mrb[0].mxu0
      %5571 = vmatprep.mubr.bf16.mxu0 0
      %5572 = vmatmul.mubr.bf16.gmra.mrb[0].mxu0 %v5424
      %v5573 = vpop.f32.mrb[0].mxu0
      %v5574 = vadd.f32 0.0, %v5573
      %v5575 = vpop.f32.mrb[0].mxu0
      %v5576 = vpop.f32.mrb[0].mxu0
      %v5577 = vadd.f32 0.0, %v5576
      %v5578 = vpop.f32.mrb[0].mxu0
      %5579 = vmatprep.mubr.bf16.mxu0 0
      %5580 = vmatmul.mubr.bf16.gmra.mrb[0].mxu0 %v5425
      %v5581 = vpop.f32.mrb[0].mxu0
      %v5582 = vadd.f32 0.0, %v5581
      %v5583 = vpop.f32.mrb[0].mxu0
      %v5584 = vpop.f32.mrb[0].mxu0
      %v5585 = vadd.f32 0.0, %v5584
      %v5586 = vpop.f32.mrb[0].mxu0
      %5587 = vmatprep.mubr.bf16.mxu0 0
      %5588 = vmatmul.mubr.bf16.gmra.mrb[0].mxu0 %v5426
      %v5589 = vpop.f32.mrb[0].mxu0
      %v5590 = vadd.f32 0.0, %v5589
      %v5591 = vpop.f32.mrb[0].mxu0
      %v5592 = vpop.f32.mrb[0].mxu0
      %v5593 = vadd.f32 0.0, %v5592
      %v5594 = vpop.f32.mrb[0].mxu0
      %5595 = vmatprep.mubr.bf16.mxu0 0
      %5596 = vmatmul.mubr.bf16.gmra.mrb[0].mxu0 %v5427
      %v5597 = vpop.f32.mrb[0].mxu0
      %v5598 = vadd.f32 0.0, %v5597
      %v5599 = vpop.f32.mrb[0].mxu0
      %v5600 = vpop.f32.mrb[0].mxu0
      %v5601 = vadd.f32 0.0, %v5600
      %v5602 = vpop.f32.mrb[0].mxu0
      %5603 = vmatprep.mubr.bf16.mxu0 0
      %5604 = vmatmul.mubr.bf16.gmra.mrb[0].mxu0 %v5428
      %v5605 = vpop.f32.mrb[0].mxu0
      %v5606 = vadd.f32 0.0, %v5605
      %v5607 = vpop.f32.mrb[0].mxu0
      %v5608 = vpop.f32.mrb[0].mxu0
      %v5609 = vadd.f32 0.0, %v5608
      %v5610 = vpop.f32.mrb[0].mxu0
      %5611 = vmatprep.mubr.bf16.mxu0 0
      %5612 = vmatmul.mubr.bf16.gmra.mrb[0].mxu0 %v5429
      %v5613 = vpop.f32.mrb[0].mxu0
      %v5614 = vadd.f32 0.0, %v5613
      %v5615 = vpop.f32.mrb[0].mxu0
      %v5616 = vpop.f32.mrb[0].mxu0
      %v5617 = vadd.f32 0.0, %v5616
      %v5618 = vpop.f32.mrb[0].mxu0
      %5619 = vmatprep.mubr.bf16.mxu0 0
      %5620 = vmatmul.mubr.bf16.gmra.mrb[0].mxu0 %v5430
      %v5621 = vpop.f32.mrb[0].mxu0
      %v5622 = vadd.f32 0.0, %v5621
      %v5623 = vpop.f32.mrb[0].mxu0
      %v5624 = vpop.f32.mrb[0].mxu0
      %v5625 = vadd.f32 0.0, %v5624
      %v5626 = vpop.f32.mrb[0].mxu0
      %5627 = vmatprep.mubr.bf16.mxu0 0
      %5628 = vmatmul.mubr.bf16.gmra.mrb[0].mxu0 %v5431
      %v5629 = vpop.f32.mrb[0].mxu0
      %v5630 = vadd.f32 0.0, %v5629
      %v5631 = vpop.f32.mrb[0].mxu0
      %v5632 = vpop.f32.mrb[0].mxu0
      %v5633 = vadd.f32 0.0, %v5632
      %v5634 = vpop.f32.mrb[0].mxu0
      %5635 = vmatprep.mubr.bf16.mxu0 0
      %5636 = vmatmul.mubr.bf16.gmra.mrb[0].mxu0 %v5432
      %v5637 = vpop.f32.mrb[0].mxu0
      %v5638 = vadd.f32 0.0, %v5637
      %v5639 = vpop.f32.mrb[0].mxu0
      %v5640 = vpop.f32.mrb[0].mxu0
      %v5641 = vadd.f32 0.0, %v5640
      %v5642 = vpop.f32.mrb[0].mxu0
      %5643 = vmatprep.mubr.bf16.mxu0 0
      %5644 = vmatmul.mubr.bf16.gmra.mrb[0].mxu0 %v5433
      %v5645 = vpop.f32.mrb[0].mxu0
      %v5646 = vadd.f32 0.0, %v5645
      %v5647 = vpop.f32.mrb[0].mxu0
      %v5648 = vpop.f32.mrb[0].mxu0
      %v5649 = vadd.f32 0.0, %v5648
      %v5650 = vpop.f32.mrb[0].mxu0
      %5651 = vmatprep.mubr.bf16.mxu0 0
      %5652 = vmatmul.mubr.bf16.gmra.mrb[0].mxu0 %v5434
      %v5653 = vpop.f32.mrb[0].mxu0
      %v5654 = vadd.f32 0.0, %v5653
      %v5655 = vpop.f32.mrb[0].mxu0
      %v5656 = vpop.f32.mrb[0].mxu0
      %v5657 = vadd.f32 0.0, %v5656
      %v5658 = vpop.f32.mrb[0].mxu0
      %5659 = vdwg.mxu0
      %v5660 = vadd.f32 %v4906, %v5534
      %v5661 = vadd.f32 %v4907, %v5537
      %v5662 = vadd.f32 %v4908, %v5542
      %v5663 = vadd.f32 %v4909, %v5545
      %v5664 = vadd.f32 %v4910, %v5550
      %v5665 = vadd.f32 %v4911, %v5553
      %v5666 = vadd.f32 %v4912, %v5558
      %v5667 = vadd.f32 %v4913, %v5561
      %v5668 = vadd.f32 %v4914, %v5566
      %v5669 = vadd.f32 %v4915, %v5569
      %v5670 = vadd.f32 %v4916, %v5574
      %v5671 = vadd.f32 %v4917, %v5577
      %v5672 = vadd.f32 %v4918, %v5582
      %v5673 = vadd.f32 %v4919, %v5585
      %v5674 = vadd.f32 %v4920, %v5590
      %v5675 = vadd.f32 %v4921, %v5593
      %v5676 = vadd.f32 %v4922, %v5598
      %v5677 = vadd.f32 %v4923, %v5601
      %v5678 = vadd.f32 %v4924, %v5606
      %v5679 = vadd.f32 %v4925, %v5609
      %v5680 = vadd.f32 %v4926, %v5614
      %v5681 = vadd.f32 %v4927, %v5617
      %v5682 = vadd.f32 %v4928, %v5622
      %v5683 = vadd.f32 %v4929, %v5625
      %v5684 = vadd.f32 %v4930, %v5630
      %v5685 = vadd.f32 %v4931, %v5633
      %v5686 = vadd.f32 %v4932, %v5638
      %v5687 = vadd.f32 %v4933, %v5641
      %v5688 = vadd.f32 %v4934, %v5646
      %v5689 = vadd.f32 %v4935, %v5649
      %v5690 = vadd.f32 %v4936, %v5654
      %v5691 = vadd.f32 %v4937, %v5657
      %v5692 = vld [vmem:[%s4551] sm:$0xe]
      %v5693 = vld [vmem:[%s4551 + $0xc] sm:$0xe]
      %v5694 = vld [vmem:[%s4551 + $0x18] sm:$0xe]
      %v5695 = vld [vmem:[%s4551 + $0x24] sm:$0xe]
      %v5696 = vld [vmem:[%s4551 + $0x30] sm:$0xe]
      %v5697 = vld [vmem:[%s4551 + $0x3c] sm:$0xe]
      %v5698 = vld [vmem:[%s4551 + $0x48] sm:$0xe]
      %v5699 = vld [vmem:[%s4551 + $0x54] sm:$0xe]
      %v5700 = vld [vmem:[%s4551 + $0x60] sm:$0xe]
      %v5701 = vld [vmem:[%s4551 + $0x6c] sm:$0xe]
      %v5702 = vld [vmem:[%s4551 + $0x78] sm:$0xe]
      %v5703 = vld [vmem:[%s4551 + $0x84] sm:$0xe]
      %v5704 = vld [vmem:[%s4551 + $0x90] sm:$0xe]
      %v5705 = vld [vmem:[%s4551 + $0x9c] sm:$0xe]
      %v5706 = vld [vmem:[%s4551 + $0xa8] sm:$0xe]
      %v5707 = vld [vmem:[%s4551 + $0xb4] sm:$0xe]
      %v5756 = vrot.slane %v5692, 5
      %v5757 = vrot.slane %v5756, 4
      %v5758 = vrot.slane %v4939, 5
      %v5759 = vsel %vm2478, %v5757, %v5758
      %v5760 = vrot.slane %v5758, 4
      %v5761 = vrot.slane %v4940, 5
      %v5762 = vsel %vm2478, %v5760, %v5761
      %v5763 = vrot.slane %v5693, 5
      %v5764 = vrot.slane %v5763, 4
      %v5765 = vrot.slane %v4942, 5
      %v5766 = vsel %vm2478, %v5764, %v5765
      %v5767 = vrot.slane %v5765, 4
      %v5768 = vrot.slane %v4943, 5
      %v5769 = vsel %vm2478, %v5767, %v5768
      %v5770 = vrot.slane %v5694, 5
      %v5771 = vrot.slane %v5770, 4
      %v5772 = vrot.slane %v4945, 5
      %v5773 = vsel %vm2478, %v5771, %v5772
      %v5774 = vrot.slane %v5772, 4
      %v5775 = vrot.slane %v4946, 5
      %v5776 = vsel %vm2478, %v5774, %v5775
      %v5777 = vrot.slane %v5695, 5
      %v5778 = vrot.slane %v5777, 4
      %v5779 = vrot.slane %v4948, 5
      %v5780 = vsel %vm2478, %v5778, %v5779
      %v5781 = vrot.slane %v5779, 4
      %v5782 = vrot.slane %v4949, 5
      %v5783 = vsel %vm2478, %v5781, %v5782
      %v5784 = vrot.slane %v5696, 5
      %v5785 = vrot.slane %v5784, 4
      %v5786 = vrot.slane %v4951, 5
      %v5787 = vsel %vm2478, %v5785, %v5786
      %v5788 = vrot.slane %v5786, 4
      %v5789 = vrot.slane %v4952, 5
      %v5790 = vsel %vm2478, %v5788, %v5789
      %v5791 = vrot.slane %v5697, 5
      %v5792 = vrot.slane %v5791, 4
      %v5793 = vrot.slane %v4954, 5
      %v5794 = vsel %vm2478, %v5792, %v5793
      %v5795 = vrot.slane %v5793, 4
      %v5796 = vrot.slane %v4955, 5
      %v5797 = vsel %vm2478, %v5795, %v5796
      %v5798 = vrot.slane %v5698, 5
      %v5799 = vrot.slane %v5798, 4
      %v5800 = vrot.slane %v4957, 5
      %v5801 = vsel %vm2478, %v5799, %v5800
      %v5802 = vrot.slane %v5800, 4
      %v5803 = vrot.slane %v4958, 5
      %v5804 = vsel %vm2478, %v5802, %v5803
      %v5805 = vrot.slane %v5699, 5
      %v5806 = vrot.slane %v5805, 4
      %v5807 = vrot.slane %v4960, 5
      %v5808 = vsel %vm2478, %v5806, %v5807
      %v5809 = vrot.slane %v5807, 4
      %v5810 = vrot.slane %v4961, 5
      %v5811 = vsel %vm2478, %v5809, %v5810
      %v5812 = vrot.slane %v5700, 5
      %v5813 = vrot.slane %v5812, 4
      %v5814 = vrot.slane %v4963, 5
      %v5815 = vsel %vm2478, %v5813, %v5814
      %v5816 = vrot.slane %v5814, 4
      %v5817 = vrot.slane %v4964, 5
      %v5818 = vsel %vm2478, %v5816, %v5817
      %v5819 = vrot.slane %v5701, 5
      %v5820 = vrot.slane %v5819, 4
      %v5821 = vrot.slane %v4966, 5
      %v5822 = vsel %vm2478, %v5820, %v5821
      %v5823 = vrot.slane %v5821, 4
      %v5824 = vrot.slane %v4967, 5
      %v5825 = vsel %vm2478, %v5823, %v5824
      %v5826 = vrot.slane %v5702, 5
      %v5827 = vrot.slane %v5826, 4
      %v5828 = vrot.slane %v4969, 5
      %v5829 = vsel %vm2478, %v5827, %v5828
      %v5830 = vrot.slane %v5828, 4
      %v5831 = vrot.slane %v4970, 5
      %v5832 = vsel %vm2478, %v5830, %v5831
      %v5833 = vrot.slane %v5703, 5
      %v5834 = vrot.slane %v5833, 4
      %v5835 = vrot.slane %v4972, 5
      %v5836 = vsel %vm2478, %v5834, %v5835
      %v5837 = vrot.slane %v5835, 4
      %v5838 = vrot.slane %v4973, 5
      %v5839 = vsel %vm2478, %v5837, %v5838
      %v5840 = vrot.slane %v5704, 5
      %v5841 = vrot.slane %v5840, 4
      %v5842 = vrot.slane %v4975, 5
      %v5843 = vsel %vm2478, %v5841, %v5842
      %v5844 = vrot.slane %v5842, 4
      %v5845 = vrot.slane %v4976, 5
      %v5846 = vsel %vm2478, %v5844, %v5845
      %v5847 = vrot.slane %v5705, 5
      %v5848 = vrot.slane %v5847, 4
      %v5849 = vrot.slane %v4978, 5
      %v5850 = vsel %vm2478, %v5848, %v5849
      %v5851 = vrot.slane %v5849, 4
      %v5852 = vrot.slane %v4979, 5
      %v5853 = vsel %vm2478, %v5851, %v5852
      %v5854 = vrot.slane %v5706, 5
      %v5855 = vrot.slane %v5854, 4
      %v5856 = vrot.slane %v4981, 5
      %v5857 = vsel %vm2478, %v5855, %v5856
      %v5858 = vrot.slane %v5856, 4
      %v5859 = vrot.slane %v4982, 5
      %v5860 = vsel %vm2478, %v5858, %v5859
      %v5861 = vrot.slane %v5707, 5
      %v5862 = vrot.slane %v5861, 4
      %v5863 = vrot.slane %v4984, 5
      %v5864 = vsel %vm2478, %v5862, %v5863
      %v5865 = vrot.slane %v5863, 4
      %v5866 = vrot.slane %v4985, 5
      %v5867 = vsel %vm2478, %v5865, %v5866
      %s5868 = scalar_lea.vmem %s5, 512
      %v5869 = vld [vmem:[%s5868] sm:$0xf]
      %v5870 = vld [vmem:[%s5868 + $0x4] sm:$0xf]
      %v5871 = vld [vmem:[%s5868 + $0x8] sm:$0xf]
      %v5872 = vld [vmem:[%s5868 + $0xc] sm:$0xf]
      %v5873 = vld [vmem:[%s5868 + $0x10] sm:$0xf]
      %v5874 = vld [vmem:[%s5868 + $0x14] sm:$0xf]
      %v5875 = vld [vmem:[%s5868 + $0x18] sm:$0xf]
      %v5876 = vld [vmem:[%s5868 + $0x1c] sm:$0xf]
      %v5877 = vld [vmem:[%s5868 + $0x20] sm:$0xf]
      %v5878 = vld [vmem:[%s5868 + $0x24] sm:$0xf]
      %v5879 = vld [vmem:[%s5868 + $0x28] sm:$0xf]
      %v5880 = vld [vmem:[%s5868 + $0x2c] sm:$0xf]
      %v5881 = vld [vmem:[%s5868 + $0x30] sm:$0xf]
      %v5882 = vld [vmem:[%s5868 + $0x34] sm:$0xf]
      %v5883 = vld [vmem:[%s5868 + $0x38] sm:$0xf]
      %v5884 = vld [vmem:[%s5868 + $0x3c] sm:$0xf]
      %v5885 = vunpack.c.l.b16 %v5759
      %v5886 = vunpack.c.l.b16 %v5762
      %v5887 = vunpack.c.l.b16 %v5766
      %v5888 = vunpack.c.l.b16 %v5769
      %v5889 = vunpack.c.l.b16 %v5773
      %v5890 = vunpack.c.l.b16 %v5776
      %v5891 = vunpack.c.l.b16 %v5780
      %v5892 = vunpack.c.l.b16 %v5783
      %v5893 = vunpack.c.l.b16 %v5787
      %v5894 = vunpack.c.l.b16 %v5790
      %v5895 = vunpack.c.l.b16 %v5794
      %v5896 = vunpack.c.l.b16 %v5797
      %v5897 = vunpack.c.l.b16 %v5801
      %v5898 = vunpack.c.l.b16 %v5804
      %v5899 = vunpack.c.l.b16 %v5808
      %v5900 = vunpack.c.l.b16 %v5811
      %v5901 = vunpack.c.l.b16 %v5815
      %v5902 = vunpack.c.l.b16 %v5818
      %v5903 = vunpack.c.l.b16 %v5822
      %v5904 = vunpack.c.l.b16 %v5825
      %v5905 = vunpack.c.l.b16 %v5829
      %v5906 = vunpack.c.l.b16 %v5832
      %v5907 = vunpack.c.l.b16 %v5836
      %v5908 = vunpack.c.l.b16 %v5839
      %v5909 = vunpack.c.l.b16 %v5843
      %v5910 = vunpack.c.l.b16 %v5846
      %v5911 = vunpack.c.l.b16 %v5850
      %v5912 = vunpack.c.l.b16 %v5853
      %v5913 = vunpack.c.l.b16 %v5857
      %v5914 = vunpack.c.l.b16 %v5860
      %v5915 = vunpack.c.l.b16 %v5864
      %v5916 = vunpack.c.l.b16 %v5867
      %v5917 = vpack.c.b16 %v5886, %v5885
      %v5918 = vpack.c.b16 %v5888, %v5887
      %v5919 = vpack.c.b16 %v5890, %v5889
      %v5920 = vpack.c.b16 %v5892, %v5891
      %v5921 = vpack.c.b16 %v5894, %v5893
      %v5922 = vpack.c.b16 %v5896, %v5895
      %v5923 = vpack.c.b16 %v5898, %v5897
      %v5924 = vpack.c.b16 %v5900, %v5899
      %v5925 = vpack.c.b16 %v5902, %v5901
      %v5926 = vpack.c.b16 %v5904, %v5903
      %v5927 = vpack.c.b16 %v5906, %v5905
      %v5928 = vpack.c.b16 %v5908, %v5907
      %v5929 = vpack.c.b16 %v5910, %v5909
      %v5930 = vpack.c.b16 %v5912, %v5911
      %v5931 = vpack.c.b16 %v5914, %v5913
      %v5932 = vpack.c.b16 %v5916, %v5915
      %v5965 = vunpack.c.l.b16 %v5869
      %v5966 = vunpack.c.l.b16 %v5870
      %v5967 = vunpack.c.l.b16 %v5871
      %v5968 = vunpack.c.l.b16 %v5872
      %v5969 = vunpack.c.l.b16 %v5873
      %v5970 = vunpack.c.l.b16 %v5874
      %v5971 = vunpack.c.l.b16 %v5875
      %v5972 = vunpack.c.l.b16 %v5876
      %v5973 = vunpack.c.l.b16 %v5877
      %v5974 = vunpack.c.l.b16 %v5878
      %v5975 = vunpack.c.l.b16 %v5879
      %v5976 = vunpack.c.l.b16 %v5880
      %v5977 = vunpack.c.l.b16 %v5881
      %v5978 = vunpack.c.l.b16 %v5882
      %v5979 = vunpack.c.l.b16 %v5883
      %v5980 = vunpack.c.l.b16 %v5884
      %v5981 = vpack.c.b16 %v5966, %v5965
      %v5982 = vpack.c.b16 %v5968, %v5967
      %v5983 = vpack.c.b16 %v5970, %v5969
      %v5984 = vpack.c.b16 %v5972, %v5971
      %v5985 = vpack.c.b16 %v5974, %v5973
      %v5986 = vpack.c.b16 %v5976, %v5975
      %v5987 = vpack.c.b16 %v5978, %v5977
      %v5988 = vpack.c.b16 %v5980, %v5979
      %5997 = vmatprep.subr.bf16.mxu0 0
      %5998 = vmatpush1.bf16.msra.mxu0 %v5981
      %5999 = vmatprep.subr.bf16.mxu0 0
      %6000 = vmatpush1.bf16.msra.mxu0 %v5982
      %6001 = vmatprep.subr.bf16.mxu0 0
      %6002 = vmatpush1.bf16.msra.mxu0 %v5983
      %6003 = vmatprep.subr.bf16.mxu0 0
      %6004 = vmatpush1.bf16.msra.mxu0 %v5984
      %6005 = vmatprep.subr.bf16.mxu0 0
      %6006 = vmatpush1.bf16.msra.mxu0 %v5985
      %6007 = vmatprep.subr.bf16.mxu0 0
      %6008 = vmatpush1.bf16.msra.mxu0 %v5986
      %6009 = vmatprep.subr.bf16.mxu0 0
      %6010 = vmatpush1.bf16.msra.mxu0 %v5987
      %6011 = vmatprep.subr.bf16.mxu0 0
      %6012 = vmatpush1.bf16.msra.mxu0 %v5988
      %6013 = vmatprep.subr.bf16.mxu0 0
      %6014 = vmatpush1.bf16.msra.mxu0 0
      %6015 = vmatprep.subr.bf16.mxu0 0
      %6016 = vmatpush1.bf16.msra.mxu0 0
      %6017 = vmatprep.subr.bf16.mxu0 0
      %6018 = vmatpush1.bf16.msra.mxu0 0
      %6019 = vmatprep.subr.bf16.mxu0 0
      %6020 = vmatpush1.bf16.msra.mxu0 0
      %6021 = vmatprep.subr.bf16.mxu0 0
      %6022 = vmatpush1.bf16.msra.mxu0 0
      %6023 = vmatprep.subr.bf16.mxu0 0
      %6024 = vmatpush1.bf16.msra.mxu0 0
      %6025 = vmatprep.subr.bf16.mxu0 0
      %6026 = vmatpush1.bf16.msra.mxu0 0
      %6027 = vmatprep.subr.bf16.mxu0 0
      %6028 = vmatpush1.bf16.msra.mxu0 0
      %6029 = vmatprep.mubr.bf16.mxu0 0
      %6030 = vmatmul.mubr.bf16.gmra.mrb[0].mxu0 %v5917
      %v6031 = vpop.f32.mrb[0].mxu0
      %v6032 = vadd.f32 0.0, %v6031
      %v6033 = vpop.f32.mrb[0].mxu0
      %v6034 = vpop.f32.mrb[0].mxu0
      %v6035 = vadd.f32 0.0, %v6034
      %v6036 = vpop.f32.mrb[0].mxu0
      %6037 = vmatprep.mubr.bf16.mxu0 0
      %6038 = vmatmul.mubr.bf16.gmra.mrb[0].mxu0 %v5918
      %v6039 = vpop.f32.mrb[0].mxu0
      %v6040 = vadd.f32 0.0, %v6039
      %v6041 = vpop.f32.mrb[0].mxu0
      %v6042 = vpop.f32.mrb[0].mxu0
      %v6043 = vadd.f32 0.0, %v6042
      %v6044 = vpop.f32.mrb[0].mxu0
      %6045 = vmatprep.mubr.bf16.mxu0 0
      %6046 = vmatmul.mubr.bf16.gmra.mrb[0].mxu0 %v5919
      %v6047 = vpop.f32.mrb[0].mxu0
      %v6048 = vadd.f32 0.0, %v6047
      %v6049 = vpop.f32.mrb[0].mxu0
      %v6050 = vpop.f32.mrb[0].mxu0
      %v6051 = vadd.f32 0.0, %v6050
      %v6052 = vpop.f32.mrb[0].mxu0
      %6053 = vmatprep.mubr.bf16.mxu0 0
      %6054 = vmatmul.mubr.bf16.gmra.mrb[0].mxu0 %v5920
      %v6055 = vpop.f32.mrb[0].mxu0
      %v6056 = vadd.f32 0.0, %v6055
      %v6057 = vpop.f32.mrb[0].mxu0
      %v6058 = vpop.f32.mrb[0].mxu0
      %v6059 = vadd.f32 0.0, %v6058
      %v6060 = vpop.f32.mrb[0].mxu0
      %6061 = vmatprep.mubr.bf16.mxu0 0
      %6062 = vmatmul.mubr.bf16.gmra.mrb[0].mxu0 %v5921
      %v6063 = vpop.f32.mrb[0].mxu0
      %v6064 = vadd.f32 0.0, %v6063
      %v6065 = vpop.f32.mrb[0].mxu0
      %v6066 = vpop.f32.mrb[0].mxu0
      %v6067 = vadd.f32 0.0, %v6066
      %v6068 = vpop.f32.mrb[0].mxu0
      %6069 = vmatprep.mubr.bf16.mxu0 0
      %6070 = vmatmul.mubr.bf16.gmra.mrb[0].mxu0 %v5922
      %v6071 = vpop.f32.mrb[0].mxu0
      %v6072 = vadd.f32 0.0, %v6071
      %v6073 = vpop.f32.mrb[0].mxu0
      %v6074 = vpop.f32.mrb[0].mxu0
      %v6075 = vadd.f32 0.0, %v6074
      %v6076 = vpop.f32.mrb[0].mxu0
      %6077 = vmatprep.mubr.bf16.mxu0 0
      %6078 = vmatmul.mubr.bf16.gmra.mrb[0].mxu0 %v5923
      %v6079 = vpop.f32.mrb[0].mxu0
      %v6080 = vadd.f32 0.0, %v6079
      %v6081 = vpop.f32.mrb[0].mxu0
      %v6082 = vpop.f32.mrb[0].mxu0
      %v6083 = vadd.f32 0.0, %v6082
      %v6084 = vpop.f32.mrb[0].mxu0
      %6085 = vmatprep.mubr.bf16.mxu0 0
      %6086 = vmatmul.mubr.bf16.gmra.mrb[0].mxu0 %v5924
      %v6087 = vpop.f32.mrb[0].mxu0
      %v6088 = vadd.f32 0.0, %v6087
      %v6089 = vpop.f32.mrb[0].mxu0
      %v6090 = vpop.f32.mrb[0].mxu0
      %v6091 = vadd.f32 0.0, %v6090
      %v6092 = vpop.f32.mrb[0].mxu0
      %6093 = vmatprep.mubr.bf16.mxu0 0
      %6094 = vmatmul.mubr.bf16.gmra.mrb[0].mxu0 %v5925
      %v6095 = vpop.f32.mrb[0].mxu0
      %v6096 = vadd.f32 0.0, %v6095
      %v6097 = vpop.f32.mrb[0].mxu0
      %v6098 = vpop.f32.mrb[0].mxu0
      %v6099 = vadd.f32 0.0, %v6098
      %v6100 = vpop.f32.mrb[0].mxu0
      %6101 = vmatprep.mubr.bf16.mxu0 0
      %6102 = vmatmul.mubr.bf16.gmra.mrb[0].mxu0 %v5926
      %v6103 = vpop.f32.mrb[0].mxu0
      %v6104 = vadd.f32 0.0, %v6103
      %v6105 = vpop.f32.mrb[0].mxu0
      %v6106 = vpop.f32.mrb[0].mxu0
      %v6107 = vadd.f32 0.0, %v6106
      %v6108 = vpop.f32.mrb[0].mxu0
      %6109 = vmatprep.mubr.bf16.mxu0 0
      %6110 = vmatmul.mubr.bf16.gmra.mrb[0].mxu0 %v5927
      %v6111 = vpop.f32.mrb[0].mxu0
      %v6112 = vadd.f32 0.0, %v6111
      %v6113 = vpop.f32.mrb[0].mxu0
      %v6114 = vpop.f32.mrb[0].mxu0
      %v6115 = vadd.f32 0.0, %v6114
      %v6116 = vpop.f32.mrb[0].mxu0
      %6117 = vmatprep.mubr.bf16.mxu0 0
      %6118 = vmatmul.mubr.bf16.gmra.mrb[0].mxu0 %v5928
      %v6119 = vpop.f32.mrb[0].mxu0
      %v6120 = vadd.f32 0.0, %v6119
      %v6121 = vpop.f32.mrb[0].mxu0
      %v6122 = vpop.f32.mrb[0].mxu0
      %v6123 = vadd.f32 0.0, %v6122
      %v6124 = vpop.f32.mrb[0].mxu0
      %6125 = vmatprep.mubr.bf16.mxu0 0
      %6126 = vmatmul.mubr.bf16.gmra.mrb[0].mxu0 %v5929
      %v6127 = vpop.f32.mrb[0].mxu0
      %v6128 = vadd.f32 0.0, %v6127
      %v6129 = vpop.f32.mrb[0].mxu0
      %v6130 = vpop.f32.mrb[0].mxu0
      %v6131 = vadd.f32 0.0, %v6130
      %v6132 = vpop.f32.mrb[0].mxu0
      %6133 = vmatprep.mubr.bf16.mxu0 0
      %6134 = vmatmul.mubr.bf16.gmra.mrb[0].mxu0 %v5930
      %v6135 = vpop.f32.mrb[0].mxu0
      %v6136 = vadd.f32 0.0, %v6135
      %v6137 = vpop.f32.mrb[0].mxu0
      %v6138 = vpop.f32.mrb[0].mxu0
      %v6139 = vadd.f32 0.0, %v6138
      %v6140 = vpop.f32.mrb[0].mxu0
      %6141 = vmatprep.mubr.bf16.mxu0 0
      %6142 = vmatmul.mubr.bf16.gmra.mrb[0].mxu0 %v5931
      %v6143 = vpop.f32.mrb[0].mxu0
      %v6144 = vadd.f32 0.0, %v6143
      %v6145 = vpop.f32.mrb[0].mxu0
      %v6146 = vpop.f32.mrb[0].mxu0
      %v6147 = vadd.f32 0.0, %v6146
      %v6148 = vpop.f32.mrb[0].mxu0
      %6149 = vmatprep.mubr.bf16.mxu0 0
      %6150 = vmatmul.mubr.bf16.gmra.mrb[0].mxu0 %v5932
      %v6151 = vpop.f32.mrb[0].mxu0
      %v6152 = vadd.f32 0.0, %v6151
      %v6153 = vpop.f32.mrb[0].mxu0
      %v6154 = vpop.f32.mrb[0].mxu0
      %v6155 = vadd.f32 0.0, %v6154
      %v6156 = vpop.f32.mrb[0].mxu0
      %6157 = vdwg.mxu0
      %v6158 = vadd.f32 %v5660, %v6032
      %v6159 = vadd.f32 %v5661, %v6035
      %v6160 = vadd.f32 %v5662, %v6040
      %v6161 = vadd.f32 %v5663, %v6043
      %v6162 = vadd.f32 %v5664, %v6048
      %v6163 = vadd.f32 %v5665, %v6051
      %v6164 = vadd.f32 %v5666, %v6056
      %v6165 = vadd.f32 %v5667, %v6059
      %v6166 = vadd.f32 %v5668, %v6064
      %v6167 = vadd.f32 %v5669, %v6067
      %v6168 = vadd.f32 %v5670, %v6072
      %v6169 = vadd.f32 %v5671, %v6075
      %v6170 = vadd.f32 %v5672, %v6080
      %v6171 = vadd.f32 %v5673, %v6083
      %v6172 = vadd.f32 %v5674, %v6088
      %v6173 = vadd.f32 %v5675, %v6091
      %v6174 = vadd.f32 %v5676, %v6096
      %v6175 = vadd.f32 %v5677, %v6099
      %v6176 = vadd.f32 %v5678, %v6104
      %v6177 = vadd.f32 %v5679, %v6107
      %v6178 = vadd.f32 %v5680, %v6112
      %v6179 = vadd.f32 %v5681, %v6115
      %v6180 = vadd.f32 %v5682, %v6120
      %v6181 = vadd.f32 %v5683, %v6123
      %v6182 = vadd.f32 %v5684, %v6128
      %v6183 = vadd.f32 %v5685, %v6131
      %v6184 = vadd.f32 %v5686, %v6136
      %v6185 = vadd.f32 %v5687, %v6139
      %v6186 = vadd.f32 %v5688, %v6144
      %v6187 = vadd.f32 %v5689, %v6147
      %v6188 = vadd.f32 %v5690, %v6152
      %v6189 = vadd.f32 %v5691, %v6155
      %v6190 = vpack.c.bf16 %v6159, %v6158
      %v6191 = vpack.c.bf16 %v6161, %v6160
      %v6192 = vpack.c.bf16 %v6163, %v6162
      %v6193 = vpack.c.bf16 %v6165, %v6164
      %v6194 = vpack.c.bf16 %v6167, %v6166
      %v6195 = vpack.c.bf16 %v6169, %v6168
      %v6196 = vpack.c.bf16 %v6171, %v6170
      %v6197 = vpack.c.bf16 %v6173, %v6172
      %v6198 = vpack.c.bf16 %v6175, %v6174
      %v6199 = vpack.c.bf16 %v6177, %v6176
      %v6200 = vpack.c.bf16 %v6179, %v6178
      %v6201 = vpack.c.bf16 %v6181, %v6180
      %v6202 = vpack.c.bf16 %v6183, %v6182
      %v6203 = vpack.c.bf16 %v6185, %v6184
      %v6204 = vpack.c.bf16 %v6187, %v6186
      %v6205 = vpack.c.bf16 %v6189, %v6188
      %v6222 = vunpack.c.l.b16 %v6190
      %v6223 = vunpack.c.h.b16 %v6190
      %v6224 = vunpack.c.l.b16 %v6191
      %v6225 = vunpack.c.h.b16 %v6191
      %v6226 = vunpack.c.l.b16 %v6192
      %v6227 = vunpack.c.h.b16 %v6192
      %v6228 = vunpack.c.l.b16 %v6193
      %v6229 = vunpack.c.h.b16 %v6193
      %v6230 = vunpack.c.l.b16 %v6194
      %v6231 = vunpack.c.h.b16 %v6194
      %v6232 = vunpack.c.l.b16 %v6195
      %v6233 = vunpack.c.h.b16 %v6195
      %v6234 = vunpack.c.l.b16 %v6196
      %v6235 = vunpack.c.h.b16 %v6196
      %v6236 = vunpack.c.l.b16 %v6197
      %v6237 = vunpack.c.h.b16 %v6197
      %v6238 = vunpack.c.l.b16 %v6198
      %v6239 = vunpack.c.h.b16 %v6198
      %v6240 = vunpack.c.l.b16 %v6199
      %v6241 = vunpack.c.h.b16 %v6199
      %v6242 = vunpack.c.l.b16 %v6200
      %v6243 = vunpack.c.h.b16 %v6200
      %v6244 = vunpack.c.l.b16 %v6201
      %v6245 = vunpack.c.h.b16 %v6201
      %v6246 = vunpack.c.l.b16 %v6202
      %v6247 = vunpack.c.h.b16 %v6202
      %v6248 = vunpack.c.l.b16 %v6203
      %v6249 = vunpack.c.h.b16 %v6203
      %v6250 = vunpack.c.l.b16 %v6204
      %v6251 = vunpack.c.h.b16 %v6204
      %v6252 = vunpack.c.l.b16 %v6205
      %v6253 = vunpack.c.h.b16 %v6205
      %v6254 = vpack.c.b16 %v6222, %v6222
      %v6255 = vpack.c.b16 %v6223, %v6223
      %v6256 = vpack.c.b16 %v6224, %v6224
      %v6257 = vpack.c.b16 %v6225, %v6225
      %v6258 = vpack.c.b16 %v6226, %v6226
      %v6259 = vpack.c.b16 %v6227, %v6227
      %v6260 = vpack.c.b16 %v6228, %v6228
      %v6261 = vpack.c.b16 %v6229, %v6229
      %v6262 = vpack.c.b16 %v6230, %v6230
      %v6263 = vpack.c.b16 %v6231, %v6231
      %v6264 = vpack.c.b16 %v6232, %v6232
      %v6265 = vpack.c.b16 %v6233, %v6233
      %v6266 = vpack.c.b16 %v6234, %v6234
      %v6267 = vpack.c.b16 %v6235, %v6235
      %v6268 = vpack.c.b16 %v6236, %v6236
      %v6269 = vpack.c.b16 %v6237, %v6237
      %v6270 = vpack.c.b16 %v6238, %v6238
      %v6271 = vpack.c.b16 %v6239, %v6239
      %v6272 = vpack.c.b16 %v6240, %v6240
      %v6273 = vpack.c.b16 %v6241, %v6241
      %v6274 = vpack.c.b16 %v6242, %v6242
      %v6275 = vpack.c.b16 %v6243, %v6243
      %v6276 = vpack.c.b16 %v6244, %v6244
      %v6277 = vpack.c.b16 %v6245, %v6245
      %v6278 = vpack.c.b16 %v6246, %v6246
      %v6279 = vpack.c.b16 %v6247, %v6247
      %v6280 = vpack.c.b16 %v6248, %v6248
      %v6281 = vpack.c.b16 %v6249, %v6249
      %v6282 = vpack.c.b16 %v6250, %v6250
      %v6283 = vpack.c.b16 %v6251, %v6251
      %v6284 = vpack.c.b16 %v6252, %v6252
      %v6285 = vpack.c.b16 %v6253, %v6253
      %6318 = vst [vmem:[%s457] sm:$0xf] %v6254
      %6319 = vst [vmem:[%s457 + $0x4] sm:$0xf] %v6255
      %6320 = vst [vmem:[%s457 + $0x8] sm:$0xf] %v6256
      %6321 = vst [vmem:[%s457 + $0xc] sm:$0xf] %v6257
      %6322 = vst [vmem:[%s457 + $0x10] sm:$0xf] %v6258
      %6323 = vst [vmem:[%s457 + $0x14] sm:$0xf] %v6259
      %6324 = vst [vmem:[%s457 + $0x18] sm:$0xf] %v6260
      %6325 = vst [vmem:[%s457 + $0x1c] sm:$0xf] %v6261
      %6326 = vst [vmem:[%s457 + $0x20] sm:$0xf] %v6262
      %6327 = vst [vmem:[%s457 + $0x24] sm:$0xf] %v6263
      %6328 = vst [vmem:[%s457 + $0x28] sm:$0xf] %v6264
      %6329 = vst [vmem:[%s457 + $0x2c] sm:$0xf] %v6265
      %6330 = vst [vmem:[%s457 + $0x30] sm:$0xf] %v6266
      %6331 = vst [vmem:[%s457 + $0x34] sm:$0xf] %v6267
      %6332 = vst [vmem:[%s457 + $0x38] sm:$0xf] %v6268
      %6333 = vst [vmem:[%s457 + $0x3c] sm:$0xf] %v6269
      %6334 = vst [vmem:[%s457 + $0x40] sm:$0xf] %v6270
      %6335 = vst [vmem:[%s457 + $0x44] sm:$0xf] %v6271
      %6336 = vst [vmem:[%s457 + $0x48] sm:$0xf] %v6272
      %6337 = vst [vmem:[%s457 + $0x4c] sm:$0xf] %v6273
      %6338 = vst [vmem:[%s457 + $0x50] sm:$0xf] %v6274
      %6339 = vst [vmem:[%s457 + $0x54] sm:$0xf] %v6275
      %6340 = vst [vmem:[%s457 + $0x58] sm:$0xf] %v6276
      %6341 = vst [vmem:[%s457 + $0x5c] sm:$0xf] %v6277
      %6342 = vst [vmem:[%s457 + $0x60] sm:$0xf] %v6278
      %6343 = vst [vmem:[%s457 + $0x64] sm:$0xf] %v6279
      %6344 = vst [vmem:[%s457 + $0x68] sm:$0xf] %v6280
      %6345 = vst [vmem:[%s457 + $0x6c] sm:$0xf] %v6281
      %6346 = vst [vmem:[%s457 + $0x70] sm:$0xf] %v6282
      %6347 = vst [vmem:[%s457 + $0x74] sm:$0xf] %v6283
      %6348 = vst [vmem:[%s457 + $0x78] sm:$0xf] %v6284
      %6349 = vst [vmem:[%s457 + $0x7c] sm:$0xf] %v6285
      %v6350 = vunpack.c.l.bf16 %v6190
      %v6351 = vunpack.c.h.bf16 %v6190
      %v6352 = vunpack.c.l.bf16 %v6191
      %v6353 = vunpack.c.h.bf16 %v6191
      %v6354 = vunpack.c.l.bf16 %v6192
      %v6355 = vunpack.c.h.bf16 %v6192
      %v6356 = vunpack.c.l.bf16 %v6193
      %v6357 = vunpack.c.h.bf16 %v6193
      %v6358 = vunpack.c.l.bf16 %v6194
      %v6359 = vunpack.c.h.bf16 %v6194
      %v6360 = vunpack.c.l.bf16 %v6195
      %v6361 = vunpack.c.h.bf16 %v6195
      %v6362 = vunpack.c.l.bf16 %v6196
      %v6363 = vunpack.c.h.bf16 %v6196
      %v6364 = vunpack.c.l.bf16 %v6197
      %v6365 = vunpack.c.h.bf16 %v6197
      %v6366 = vunpack.c.l.bf16 %v6198
      %v6367 = vunpack.c.h.bf16 %v6198
      %v6368 = vunpack.c.l.bf16 %v6199
      %v6369 = vunpack.c.h.bf16 %v6199
      %v6370 = vunpack.c.l.bf16 %v6200
      %v6371 = vunpack.c.h.bf16 %v6200
      %v6372 = vunpack.c.l.bf16 %v6201
      %v6373 = vunpack.c.h.bf16 %v6201
      %v6374 = vunpack.c.l.bf16 %v6202
      %v6375 = vunpack.c.h.bf16 %v6202
      %v6376 = vunpack.c.l.bf16 %v6203
      %v6377 = vunpack.c.h.bf16 %v6203
      %v6378 = vunpack.c.l.bf16 %v6204
      %v6379 = vunpack.c.h.bf16 %v6204
      %v6380 = vunpack.c.l.bf16 %v6205
      %v6381 = vunpack.c.h.bf16 %v6205
      %v6382 = vadd.f32 %v6350, %v6351
      %v6383 = vadd.f32 %v6382, %v6352
      %v6384 = vadd.f32 %v6383, %v6353
      %v6385 = vadd.f32 %v6384, %v6354
      %v6386 = vadd.f32 %v6385, %v6355
      %v6387 = vadd.f32 %v6386, %v6356
      %v6388 = vadd.f32 %v6387, %v6357
      %v6389 = vadd.f32 %v6388, %v6358
      %v6390 = vadd.f32 %v6389, %v6359
      %v6391 = vadd.f32 %v6390, %v6360
      %v6392 = vadd.f32 %v6391, %v6361
      %v6393 = vadd.f32 %v6392, %v6362
      %v6394 = vadd.f32 %v6393, %v6363
      %v6395 = vadd.f32 %v6394, %v6364
      %v6396 = vadd.f32 %v6395, %v6365
      %v6397 = vadd.f32 %v6396, %v6366
      %v6398 = vadd.f32 %v6397, %v6367
      %v6399 = vadd.f32 %v6398, %v6368
      %v6400 = vadd.f32 %v6399, %v6369
      %v6401 = vadd.f32 %v6400, %v6370
      %v6402 = vadd.f32 %v6401, %v6371
      %v6403 = vadd.f32 %v6402, %v6372
      %v6404 = vadd.f32 %v6403, %v6373
      %v6405 = vadd.f32 %v6404, %v6374
      %v6406 = vadd.f32 %v6405, %v6375
      %v6407 = vadd.f32 %v6406, %v6376
      %v6408 = vadd.f32 %v6407, %v6377
      %v6409 = vadd.f32 %v6408, %v6378
      %v6410 = vadd.f32 %v6409, %v6379
      %v6411 = vadd.f32 %v6410, %v6380
      %v6412 = vadd.f32 %v6411, %v6381
      %v6413 = vrot.slane %v6412, 4
      %v6414 = vadd.f32 %v6412, %v6413
      %v6415 = vrot.slane %v6414, 2
      %v6416 = vadd.f32 %v6414, %v6415
      %v6417 = vrot.slane %v6416, 1
      %v6418 = vadd.f32 %v6416, %v6417
      %v6419 = vmul.f32 %v6350, %v6350
      %v6420 = vmul.f32 %v6351, %v6351
      %v6421 = vmul.f32 %v6352, %v6352
      %v6422 = vmul.f32 %v6353, %v6353
      %v6423 = vmul.f32 %v6354, %v6354
      %v6424 = vmul.f32 %v6355, %v6355
      %v6425 = vmul.f32 %v6356, %v6356
      %v6426 = vmul.f32 %v6357, %v6357
      %v6427 = vmul.f32 %v6358, %v6358
      %v6428 = vmul.f32 %v6359, %v6359
      %v6429 = vmul.f32 %v6360, %v6360
      %v6430 = vmul.f32 %v6361, %v6361
      %v6431 = vmul.f32 %v6362, %v6362
      %v6432 = vmul.f32 %v6363, %v6363
      %v6433 = vmul.f32 %v6364, %v6364
      %v6434 = vmul.f32 %v6365, %v6365
      %v6435 = vmul.f32 %v6366, %v6366
      %v6436 = vmul.f32 %v6367, %v6367
      %v6437 = vmul.f32 %v6368, %v6368
      %v6438 = vmul.f32 %v6369, %v6369
      %v6439 = vmul.f32 %v6370, %v6370
      %v6440 = vmul.f32 %v6371, %v6371
      %v6441 = vmul.f32 %v6372, %v6372
      %v6442 = vmul.f32 %v6373, %v6373
      %v6443 = vmul.f32 %v6374, %v6374
      %v6444 = vmul.f32 %v6375, %v6375
      %v6445 = vmul.f32 %v6376, %v6376
      %v6446 = vmul.f32 %v6377, %v6377
      %v6447 = vmul.f32 %v6378, %v6378
      %v6448 = vmul.f32 %v6379, %v6379
      %v6449 = vmul.f32 %v6380, %v6380
      %v6450 = vmul.f32 %v6381, %v6381
      %v6451 = vadd.f32 %v6419, %v6420
      %v6452 = vadd.f32 %v6451, %v6421
      %v6453 = vadd.f32 %v6452, %v6422
      %v6454 = vadd.f32 %v6453, %v6423
      %v6455 = vadd.f32 %v6454, %v6424
      %v6456 = vadd.f32 %v6455, %v6425
      %v6457 = vadd.f32 %v6456, %v6426
      %v6458 = vadd.f32 %v6457, %v6427
      %v6459 = vadd.f32 %v6458, %v6428
      %v6460 = vadd.f32 %v6459, %v6429
      %v6461 = vadd.f32 %v6460, %v6430
      %v6462 = vadd.f32 %v6461, %v6431
      %v6463 = vadd.f32 %v6462, %v6432
      %v6464 = vadd.f32 %v6463, %v6433
      %v6465 = vadd.f32 %v6464, %v6434
      %v6466 = vadd.f32 %v6465, %v6435
      %v6467 = vadd.f32 %v6466, %v6436
      %v6468 = vadd.f32 %v6467, %v6437
      %v6469 = vadd.f32 %v6468, %v6438
      %v6470 = vadd.f32 %v6469, %v6439
      %v6471 = vadd.f32 %v6470, %v6440
      %v6472 = vadd.f32 %v6471, %v6441
      %v6473 = vadd.f32 %v6472, %v6442
      %v6474 = vadd.f32 %v6473, %v6443
      %v6475 = vadd.f32 %v6474, %v6444
      %v6476 = vadd.f32 %v6475, %v6445
      %v6477 = vadd.f32 %v6476, %v6446
      %v6478 = vadd.f32 %v6477, %v6447
      %v6479 = vadd.f32 %v6478, %v6448
      %v6480 = vadd.f32 %v6479, %v6449
      %v6481 = vadd.f32 %v6480, %v6450
      %v6482 = vrot.slane %v6481, 4
      %v6483 = vadd.f32 %v6481, %v6482
      %v6484 = vrot.slane %v6483, 2
      %v6485 = vadd.f32 %v6483, %v6484
      %v6486 = vrot.slane %v6485, 1
      %v6487 = vadd.f32 %v6485, %v6486
      %vm6488 = vcmask 1040384
      %v6489 = vsel %vm6488, %v6418, %v6487
      %6490 = vst [vmem:[%s465] sm:$0x3] %v6489
      %s6491 = smul.u32 16, %s24
      %p6492 = scmp.lt.s32.totalorder %s23, 1
      %s6493 = scalar_select %p6492, %s23, 1
      %p6494 = scmp.lt.s32.totalorder %s6491, 15
      %s6495 = scalar_select %p6494, %s6491, 15
      %s6496 = smul.addr %s6495, 2
      %s6497 = smul.addr %s6493, 32
      %s6498 = sadd.s32 %s6496, %s6497
      %s6499 = smul.addr %s6498, 4
      %s6500 = scalar_lea.vmem %s6, %s6499
      %p6501 = scmp.lt.s32.totalorder %s23, 1
      %s6502 = scalar_select %p6501, %s23, 1
      %p6503 = scmp.lt.s32.totalorder %s24, 0
      %s6504 = scalar_select %p6503, %s24, 0
      %s6505 = sadd.s32 %s6504, %s6502
      %s6506 = smul.addr %s6505, 2
      %s6507 = scalar_lea.vmem %s7, %s6506
      // Predicated region
      $region45: #{double_convolution.4} parent=43 // pred_check
        %p6508 = pneg %p214
      $region46: #{double_convolution.4} parent=43 // pred_check_branch
        %6510 = sbr.rel (%p6508) target = $region48
      $region47: #{double_convolution.4} parent=43 // pred_region
        %s6511 = smul.u32 16, %s24
      $region48: #{double_convolution.4} parent=43 // pred_fallthru
        _
      // Predicated region
      $region49: #{double_convolution.4} parent=43 // pred_check
        %p6512 = pneg %p242
      $region50: #{double_convolution.4} parent=43 // pred_check_branch
        %6514 = sbr.rel (%p6512) target = $region52
      $region51: #{double_convolution.4} parent=43 // pred_region
        _
      $region52: #{double_convolution.4} parent=43 // pred_fallthru
        _
    $region44: #{double_convolution.4} parent=5 // pred_fallthru
      _
    %p6515 = scmp.le.s32.totalorder 2, %s14
    // Predicated region
    $region53: #{double_convolution.4} parent=5 // pred_check
      %p6516 = pneg %p6515
    $region54: #{double_convolution.4} parent=5 // pred_check_branch
      %6518 = sbr.rel (%p6516) target = $region56
    $region55: #{double_convolution.4} parent=5 // pred_region
      %s6519 = ssub.s32 %s14, 2
      // Predicated region
      $region57: #{double_convolution.4} parent=55 // pred_check
        %p6520 = pneg %p220
      $region58: #{double_convolution.4} parent=55 // pred_check_branch
        %6522 = sbr.rel (%p6520) target = $region60
      $region59: #{double_convolution.4} parent=55 // pred_region
        %s6523 = smul.u32 16, %s26
        %p6524 = scmp.lt.s32.totalorder %s25, 1
        %s6525 = scalar_select %p6524, %s25, 1
        %p6526 = scmp.lt.s32.totalorder %s6523, 15
        %s6527 = scalar_select %p6526, %s6523, 15
        %s6528 = smul.addr %s6527, 2
        %s6529 = smul.addr %s6525, 32
        %s6530 = sadd.s32 %s6528, %s6529
        %s6531 = smul.addr %s6530, 4
        %s6532 = scalar_lea.vmem %s6, %s6531
      $region60: #{double_convolution.4} parent=55 // pred_fallthru
        _
      // Predicated region
      $region61: #{double_convolution.4} parent=55 // pred_check
        %p6533 = pneg %p248
      $region62: #{double_convolution.4} parent=55 // pred_check_branch
        %6535 = sbr.rel (%p6533) target = $region64
      $region63: #{double_convolution.4} parent=55 // pred_region
        %p6536 = scmp.lt.s32.totalorder %s25, 1
        %s6537 = scalar_select %p6536, %s25, 1
        %p6538 = scmp.lt.s32.totalorder %s26, 0
        %s6539 = scalar_select %p6538, %s26, 0
        %s6540 = sadd.s32 %s6539, %s6537
        %s6541 = smul.addr %s6540, 2
        %s6542 = scalar_lea.vmem %s7, %s6541
      $region64: #{double_convolution.4} parent=55 // pred_fallthru
        _
    $region56: #{double_convolution.4} parent=5 // pred_fallthru
      _
  $region6: #{double_convolution.4} parent=0 // loop_footer
    %s18 = sadd.s32 1, %s14
  $region7: #{double_convolution.4} parent=0 // loop_footer_branch
    %13 = sbr.rel target = $region3
  $region8: #{double_convolution.4} parent=0 // loop_exit
    _

</llo_original>
